<compile_context>
chip_gen: v7x
topology: tpu7x:2x2x1
jax: 0.10.0
libtpu: 0.0.40
codegen_flags: <defaults>
</compile_context>

<pallas_src>
import functools

import jax
import jax.numpy as jnp
from jax.experimental import pallas as pl
from jax.experimental.pallas import tpu as pltpu

# ----------------------------- tiny model config -----------------------------
BATCH = 2
SAMPLES = 400          # raw audio samples
CONV_DIM = 32          # "C" (512 in wav2vec2-base)
HIDDEN = 64            # "H" (768 in wav2vec2-base)
FFN = 128              # intermediate size (3072 in base)
N_HEADS = 4
HEAD_DIM = HIDDEN // N_HEADS
N_LAYERS = 2           # encoder layers -> 3 hidden states (base has 12 -> 13)
# facebook/wav2vec2-base-960h ships do_normalize=False in its processor config.
DO_NORMALIZE = False
LN_EPS = 1e-5

CONV0_K, CONV0_STRIDE = 10, 5
CONV1_K, CONV1_STRIDE = 3, 2


# ----------------------------- in-kernel helpers ------------------------------
def _gelu(x):
    # TODO(synk): HF wav2vec2 uses exact (erf) GELU; tanh approximation is used here.
    return jax.nn.gelu(x, approximate=True)


def _ln(x, gamma, beta, eps):
    """LayerNorm over the last axis; gamma/beta are (1, D) rows."""
    mean = jnp.mean(x, axis=-1, keepdims=True)
    xc = x - mean
    var = jnp.mean(xc * xc, axis=-1, keepdims=True)
    return xc * jax.lax.rsqrt(var + eps) * gamma + beta


# ----------------------------- Pallas kernels --------------------------------
def _conv0_gn_gelu_kernel(p_ref, w_ref, gw_ref, gb_ref, o_ref, *, eps):
    """conv0 (as matmul over im2col patches) + GroupNorm(C, C) + GELU, one batch element."""
    p = p_ref[0]                                                     # (F1, K0) f32 (Cin == 1)
    y = jnp.dot(p.astype(jnp.bfloat16), w_ref[...],
                preferred_element_type=jnp.float32)                  # (F1, C)
    # GroupNorm with num_groups == num_channels: per-channel stats over time (axis 0).
    mean = jnp.mean(y, axis=0, keepdims=True)
    yc = y - mean
    var = jnp.mean(yc * yc, axis=0, keepdims=True)
    y = yc * jax.lax.rsqrt(var + eps) * gw_ref[...] + gb_ref[...]
    o_ref[0] = _gelu(y).astype(o_ref.dtype)


def _conv1_gelu_kernel(p_ref, w_ref, o_ref):
    """conv1 (as matmul over im2col patches) + GELU, one batch element."""
    p = p_ref[0]                                                     # (F2, K1*C)
    y = jnp.dot(p.astype(jnp.bfloat16), w_ref[...],
                preferred_element_type=jnp.float32)                  # (F2, C)
    o_ref[0] = _gelu(y).astype(o_ref.dtype)


def _encoder_kernel(feat_ref,
                    fp_lw_ref, fp_lb_ref, fp_w_ref, fp_b_ref,
                    enc_lw_ref, enc_lb_ref,
                    qw_ref, qb_ref, kw_ref, kb_ref, vw_ref, vb_ref,
                    ow_ref, ob_ref, alw_ref, alb_ref,
                    w1_ref, b1_ref, w2_ref, b2_ref, flw_ref, flb_ref,
                    hs_ref, *, n_layers, n_heads, eps):
    """Fully fused encoder for one batch element:
    feature_projection.layer_norm + projection + bias + encoder layer_norm, then every
    transformer layer (QKV with q-scale pre-folded, per-head softmax attention, out-proj,
    residual, post-attn LN, FFN with GELU, residual, final LN).  Each intermediate hidden
    state is written straight into the stacked output hs_ref[layer]."""
    x = feat_ref[0]                                                  # (F, C) f32
    xn = _ln(x, fp_lw_ref[...], fp_lb_ref[...], eps)
    h = jnp.dot(xn.astype(jnp.bfloat16), fp_w_ref[...],
                preferred_element_type=jnp.float32) + fp_b_ref[...]  # (F, H)
    # TODO(synk): positional convolutional embedding (pos_conv_embed) omitted.
    h = _ln(h, enc_lw_ref[...], enc_lb_ref[...], eps)
    hs_ref[0, 0] = h.astype(hs_ref.dtype)

    for l in range(n_layers):                                        # static unroll over layers
        h_bf = h.astype(jnp.bfloat16)
        acc = h + ob_ref[l]                                          # residual + out-proj bias
        for hd in range(n_heads):                                    # static unroll, all in VMEM
            q = jnp.dot(h_bf, qw_ref[l, hd],
                        preferred_element_type=jnp.float32) + qb_ref[l, hd]
            k = jnp.dot(h_bf, kw_ref[l, hd],
                        preferred_element_type=jnp.float32) + kb_ref[l, hd]
            v = jnp.dot(h_bf, vw_ref[l, hd],
                        preferred_element_type=jnp.float32) + vb_ref[l, hd]
            s = jax.lax.dot_general(q.astype(jnp.bfloat16), k.astype(jnp.bfloat16),
                                    (((1,), (1,)), ((), ())),
                                    preferred_element_type=jnp.float32)   # (F, F) scores
            m = jnp.max(s, axis=-1, keepdims=True)
            p = jnp.exp(s - m)
            p = p * pl.reciprocal(jnp.sum(p, axis=-1, keepdims=True), approx=True)
            ctx = jnp.dot(p.astype(jnp.bfloat16), v.astype(jnp.bfloat16),
                          preferred_element_type=jnp.float32)             # (F, dh)
            acc = acc + jnp.dot(ctx.astype(jnp.bfloat16), ow_ref[l, hd],
                                preferred_element_type=jnp.float32)       # (F, H)
        h = _ln(acc, alw_ref[l], alb_ref[l], eps)                    # post-attention LN

        a = jnp.dot(h.astype(jnp.bfloat16), w1_ref[l],
                    preferred_element_type=jnp.float32) + b1_ref[l]  # (F, FFN)
        a = _gelu(a)
        f = jnp.dot(a.astype(jnp.bfloat16), w2_ref[l],
                    preferred_element_type=jnp.float32) + b2_ref[l]  # (F, H)
        h = _ln(h + f, flw_ref[l], flb_ref[l], eps)                  # final LN (post-norm)
        hs_ref[l + 1, 0] = h.astype(hs_ref.dtype)
    # TODO(synk): CTC lm_head logits omitted (unused by the returned value).


# ----------------------------- BlockSpec helpers ------------------------------
def _per_batch_spec(shape):
    """Block = one batch element, full trailing dims (legal: block dims equal array dims)."""
    nd = len(shape)
    return pl.BlockSpec((1,) + tuple(shape[1:]), lambda b: (b,) + (0,) * (nd - 1))


def _bcast_spec(shape):
    """Whole (small) weight array as a single block, same for every grid step."""
    nd = len(shape)
    return pl.BlockSpec(tuple(shape), lambda b: (0,) * nd)


_PARALLEL = pltpu.CompilerParams(dimension_semantics=("parallel",))


# ----------------------------- pallas_call wrappers ----------------------------
def conv0_block(patches, fp):
    B, F1, kin = patches.shape
    C = fp['conv0_w'].shape[1]
    return pl.pallas_call(
        functools.partial(_conv0_gn_gelu_kernel, eps=LN_EPS),
        out_shape=jax.ShapeDtypeStruct((B, F1, C), jnp.float32),
        grid=(B,),
        in_specs=[_per_batch_spec((B, F1, kin)),
                  _bcast_spec(fp['conv0_w'].shape),
                  _bcast_spec(fp['gn_w'].shape),
                  _bcast_spec(fp['gn_b'].shape)],
        out_specs=_per_batch_spec((B, F1, C)),
        compiler_params=_PARALLEL,
    )(patches, fp['conv0_w'], fp['gn_w'], fp['gn_b'])


def conv1_block(patches, fp):
    B, F2, kin = patches.shape
    C = fp['conv1_w'].shape[1]
    return pl.pallas_call(
        _conv1_gelu_kernel,
        out_shape=jax.ShapeDtypeStruct((B, F2, C), jnp.float32),
        grid=(B,),
        in_specs=[_per_batch_spec((B, F2, kin)),
                  _bcast_spec(fp['conv1_w'].shape)],
        out_specs=_per_batch_spec((B, F2, C)),
        compiler_params=_PARALLEL,
    )(patches, fp['conv1_w'])


def encoder_block(feat, fp):
    """Feature projection + full transformer encoder in one fused pallas_call.
    Returns the stacked hidden states (N_LAYERS+1, B, F, H)."""
    B, F2, _ = feat.shape
    L, H = N_LAYERS, HIDDEN
    args = [feat,
            fp['fp_ln_w'], fp['fp_ln_b'], fp['fp_w'], fp['fp_b'],
            fp['enc_ln_w'], fp['enc_ln_b'],
            fp['qw'], fp['qb'], fp['kw'], fp['kb'], fp['vw'], fp['vb'],
            fp['ow'], fp['ob'], fp['attn_ln_w'], fp['attn_ln_b'],
            fp['w1'], fp['b1'], fp['w2'], fp['b2'], fp['fln_w'], fp['fln_b']]
    in_specs = [_per_batch_spec(feat.shape)] + [_bcast_spec(a.shape) for a in args[1:]]
    return pl.pallas_call(
        functools.partial(_encoder_kernel, n_layers=L, n_heads=N_HEADS, eps=LN_EPS),
        out_shape=jax.ShapeDtypeStruct((L + 1, B, F2, H), jnp.float32),
        grid=(B,),
        in_specs=in_specs,
        out_specs=pl.BlockSpec((L + 1, 1, F2, H), lambda b: (0, b, 0, 0)),
        compiler_params=_PARALLEL,
    )(*args)


# ------------------------------ model pieces ---------------------------------
def get_output_rep(hidden_states, state_dict):
    """Mirror of the reference get_output_rep.  Its unique compute is a handful of
    length-H dot products, so it stays in plain JAX (a Pallas launch would cost far
    more than the arithmetic)."""
    ln_weight = state_dict['wav2vec2.feature_projection.layer_norm.weight']
    ln_bias = state_dict['wav2vec2.feature_projection.layer_norm.bias']
    p_weight = state_dict['wav2vec2.feature_projection.projection.weight']  # (C, H) math layout
    p_bias = state_dict['wav2vec2.feature_projection.projection.bias']
    learnable_weights = [ln_weight @ p_weight + p_bias]
    learnable_bias = [ln_bias @ p_weight + p_bias]
    nb_layers = len(hidden_states)
    for i in range(nb_layers - 1):
        learnable_weights.append(
            state_dict[f'wav2vec2.encoder.layers.{i}.final_layer_norm.weight'])
        learnable_bias.append(
            state_dict[f'wav2vec2.encoder.layers.{i}.final_layer_norm.bias'])
    result = []
    # Reference loop body: o_t = learnable_weights[l] @ hidden_states[0, l, :]
    # interpreted as: layer-0 hidden states, batch 0, frame index l.
    W = jnp.stack(learnable_weights, axis=0)                         # (nb_layers, H)
    hs0_rows = hidden_states[0][0, :nb_layers, :]                    # (nb_layers, H)
    o = jnp.sum(W * hs0_rows, axis=-1, keepdims=True)                # (nb_layers, 1)
    del learnable_bias   # reference builds but never uses it
    return result, o                                                 # reference returns []


def forward(x, fp, state_dict):
    """CustomModelWav2Vec2.forward on the synthetic tiny model (fused-kernel version)."""
    B, T = x.shape
    # --- processor (Wav2Vec2Processor feature extractor); do_normalize=False for base-960h ---
    if DO_NORMALIZE:
        mu = jnp.mean(x, axis=-1, keepdims=True)
        var = jnp.var(x, axis=-1, keepdims=True)
        x = (x - mu) / jnp.sqrt(var + 1e-7)

    # --- feature extractor (conv stack, bias-free convs as in base config) ---
    F1 = (T - CONV0_K) // CONV0_STRIDE + 1
    idx0 = jnp.arange(F1)[:, None] * CONV0_STRIDE + jnp.arange(CONV0_K)[None, :]
    patches0 = x[:, idx0]                                            # (B, F1, K0), Cin == 1
    y0 = conv0_block(patches0, fp)                                   # (B, F1, C) conv+GN+GELU

    F2 = (F1 - CONV1_K) // CONV1_STRIDE + 1
    idx1 = jnp.arange(F2)[:, None] * CONV1_STRIDE + jnp.arange(CONV1_K)[None, :]
    patches1 = y0[:, idx1, :].reshape(B, F2, CONV1_K * CONV_DIM)     # (B, F2, K1*C)
    feat = conv1_block(patches1, fp)                                 # (B, F2, C) conv+GELU

    # --- feature projection + full encoder, single fused kernel ---
    hs_stack = encoder_block(feat, fp)                               # (L+1, B, F2, H)
    hidden_states = [hs_stack[i] for i in range(N_LAYERS + 1)]

    result, o = get_output_rep(hidden_states, state_dict)
    return result, o, hs_stack


# ----------------------------- deterministic init ----------------------------
def init_params(key):
    keys = iter(jax.random.split(key, 64))

    def nrm(shape, scale=0.05):
        return scale * jax.random.normal(next(keys), shape, dtype=jnp.float32)

    p = {
        'conv0_w': nrm((CONV_DIM, 1, CONV0_K)),
        'conv1_w': nrm((CONV_DIM, CONV_DIM, CONV1_K)),
        'gn_w': 1.0 + nrm((CONV_DIM,), 0.1), 'gn_b': nrm((CONV_DIM,), 0.02),
        'fp_ln_w': 1.0 + nrm((CONV_DIM,), 0.1), 'fp_ln_b': nrm((CONV_DIM,), 0.02),
        # NOTE: stored in math orientation (in, out); PyTorch Linear stores (out, in).
        'fp_w': nrm((CONV_DIM, HIDDEN)), 'fp_b': nrm((HIDDEN,), 0.02),
        'enc_ln_w': 1.0 + nrm((HIDDEN,), 0.1), 'enc_ln_b': nrm((HIDDEN,), 0.02),
        'layers': [],
    }
    for _ in range(N_LAYERS):
        p['layers'].append(dict(
            q_w=nrm((HIDDEN, HIDDEN)), q_b=nrm((HIDDEN,), 0.02),
            k_w=nrm((HIDDEN, HIDDEN)), k_b=nrm((HIDDEN,), 0.02),
            v_w=nrm((HIDDEN, HIDDEN)), v_b=nrm((HIDDEN,), 0.02),
            o_w=nrm((HIDDEN, HIDDEN)), o_b=nrm((HIDDEN,), 0.02),
            ln_w=1.0 + nrm((HIDDEN,), 0.1), ln_b=nrm((HIDDEN,), 0.02),
            ffn_w1=nrm((HIDDEN, FFN)), ffn_b1=nrm((FFN,), 0.02),
            ffn_w2=nrm((FFN, HIDDEN)), ffn_b2=nrm((HIDDEN,), 0.02),
            fln_w=1.0 + nrm((HIDDEN,), 0.1), fln_b=nrm((HIDDEN,), 0.02),
        ))

    state_dict = {
        'wav2vec2.feature_projection.layer_norm.weight': p['fp_ln_w'],
        'wav2vec2.feature_projection.layer_norm.bias': p['fp_ln_b'],
        'wav2vec2.feature_projection.projection.weight': p['fp_w'],
        'wav2vec2.feature_projection.projection.bias': p['fp_b'],
    }
    for i, lp in enumerate(p['layers']):
        state_dict[f'wav2vec2.encoder.layers.{i}.final_layer_norm.weight'] = lp['fln_w']
        state_dict[f'wav2vec2.encoder.layers.{i}.final_layer_norm.bias'] = lp['fln_b']
    return p, state_dict


def prepare_fused_params(params):
    """One-time weight preparation for the fused kernels:
    bf16 MXU operands, per-head (L, nh, H, dh)/(L, nh, dh, H) layouts with the q-scale folded
    in, all per-layer tensors stacked along a leading layer axis (so the whole encoder fits in
    one kernel), conv weights in im2col orientation, biases / norm params as lane-major rows."""
    C, H = CONV_DIM, HIDDEN

    def bf(w):
        return w.astype(jnp.bfloat16)

    def row(v):
        return v.reshape(1, -1).astype(jnp.float32)

    fp = {
        'conv0_w': bf(params['conv0_w'].reshape(C, CONV0_K).T),                     # (K0, C)
        'gn_w': row(params['gn_w']), 'gn_b': row(params['gn_b']),
        # (Cout, Cin, K) -> (K, Cin, Cout) -> (K*Cin, Cout) to match (k, cin) patch flattening.
        'conv1_w': bf(jnp.transpose(params['conv1_w'], (2, 1, 0)).reshape(CONV1_K * C, C)),
        'fp_ln_w': row(params['fp_ln_w']), 'fp_ln_b': row(params['fp_ln_b']),
        'fp_w': bf(params['fp_w']), 'fp_b': row(params['fp_b']),
        'enc_ln_w': row(params['enc_ln_w']), 'enc_ln_b': row(params['enc_ln_b']),
    }
    scale = HEAD_DIM ** -0.5
    layers = params['layers']

    def heads_in(w):      # (H, H) math (in, out) -> per-head (nh, H, dh)
        return jnp.transpose(w.reshape(H, N_HEADS, HEAD_DIM), (1, 0, 2))

    def heads_bias(b):    # (H,) -> (nh, 1, dh)
        return b.reshape(N_HEADS, 1, HEAD_DIM).astype(jnp.float32)

    def stk(fn, name):
        return jnp.stack([fn(lp[name]) for lp in layers], axis=0)

    fp.update(
        qw=bf(stk(lambda w: heads_in(w) * scale, 'q_w')),            # (L, nh, H, dh) bf16
        qb=stk(lambda b: heads_bias(b) * scale, 'q_b'),              # (L, nh, 1, dh) f32
        kw=bf(stk(heads_in, 'k_w')), kb=stk(heads_bias, 'k_b'),
        vw=bf(stk(heads_in, 'v_w')), vb=stk(heads_bias, 'v_b'),
        ow=bf(stk(lambda w: w.reshape(N_HEADS, HEAD_DIM, H), 'o_w')),  # (L, nh, dh, H)
        ob=stk(row, 'o_b'),                                          # (L, 1, H)
        attn_ln_w=stk(row, 'ln_w'), attn_ln_b=stk(row, 'ln_b'),
        w1=bf(stk(lambda w: w, 'ffn_w1')), b1=stk(row, 'ffn_b1'),    # (L, H, FFN) / (L, 1, FFN)
        w2=bf(stk(lambda w: w, 'ffn_w2')), b2=stk(row, 'ffn_b2'),    # (L, FFN, H) / (L, 1, H)
        fln_w=stk(row, 'fln_w'), fln_b=stk(row, 'fln_b'),
    )
    return fp


# ----------------------------------- main -------------------------------------
if __name__ == "__main__":
    key = jax.random.PRNGKey(0)
    pkey, xkey = jax.random.split(key)
    params, state_dict = init_params(pkey)
    fused = prepare_fused_params(params)
    x = 0.1 * jax.random.normal(xkey, (BATCH, SAMPLES), dtype=jnp.float32)

    fwd = jax.jit(forward)
    result, o_dots, hs_stack = fwd(x, fused, state_dict)
    jax.block_until_ready((o_dots, hs_stack))

    n_frames = ((SAMPLES - CONV0_K) // CONV0_STRIDE + 1 - CONV1_K) // CONV1_STRIDE + 1
    assert result == []                                    # reference get_output_rep returns []
    assert o_dots.shape == (N_LAYERS + 1, 1)
    assert hs_stack.shape == (N_LAYERS + 1, BATCH, n_frames, HIDDEN)
    assert bool(jnp.all(jnp.isfinite(hs_stack)))
    print("KERNEL_OK")
</pallas_src>

<mosaic_0001>
module attributes {stable_mosaic.version = 11 : i64} {
  func.func @_conv0_gn_gelu_kernel(%arg0: i32, %arg1: memref<1x79x10xf32, #tpu.memory_space<vmem>>, %arg2: memref<10x32xbf16, #tpu.memory_space<vmem>>, %arg3: memref<1x32xf32, #tpu.memory_space<vmem>>, %arg4: memref<1x32xf32, #tpu.memory_space<vmem>>, %arg5: memref<1x79x32xf32, #tpu.memory_space<vmem>>) attributes {dimension_semantics = [#tpu.dimension_semantics<parallel>], iteration_bounds = array<i64: 2>, scalar_prefetch = 0 : i64, scratch_operands = 0 : i64, tpu.core_type = #tpu.core_type<tc>, window_params = [{transform_indices = @transform_0, window_bounds = array<i64: 1, 79, 10>}, {pipeline_mode = #tpu.pipeline_mode<synchronous>, transform_indices = @transform_1, window_bounds = array<i64: 10, 32>}, {pipeline_mode = #tpu.pipeline_mode<synchronous>, transform_indices = @transform_2, window_bounds = array<i64: 1, 32>}, {pipeline_mode = #tpu.pipeline_mode<synchronous>, transform_indices = @transform_3, window_bounds = array<i64: 1, 32>}, {transform_indices = @transform_4, window_bounds = array<i64: 1, 79, 32>}]} {
    %c0 = arith.constant 0 : index
    %c0_0 = arith.constant 0 : index
    %c0_1 = arith.constant 0 : index
    %0 = vector.load %arg1[%c0, %c0_0, %c0_1] : memref<1x79x10xf32, #tpu.memory_space<vmem>>, vector<1x79x10xf32>
    %1 = vector.shape_cast %0 : vector<1x79x10xf32> to vector<79x10xf32>
    %2 = arith.truncf %1 : vector<79x10xf32> to vector<79x10xbf16>
    %c0_2 = arith.constant 0 : index
    %c0_3 = arith.constant 0 : index
    %3 = vector.load %arg2[%c0_2, %c0_3] : memref<10x32xbf16, #tpu.memory_space<vmem>>, vector<10x32xbf16>
    %cst = arith.constant dense<0.000000e+00> : vector<79x32xf32>
    %4 = tpu.matmul %2, %3, %cst {dimension_numbers = #tpu.dot_dimension_numbers<[1], [0], [0], [1], [0, 0, 1, 1], [], []>} : vector<79x10xbf16>, vector<10x32xbf16>, vector<79x32xf32> -> vector<79x32xf32>
    %cst_4 = arith.constant dense<0.000000e+00> : vector<32xf32>
    %5 = vector.multi_reduction <add>, %4, %cst_4 [0] : vector<79x32xf32> to vector<32xf32>
    %6 = vector.shape_cast %5 : vector<32xf32> to vector<1x32xf32>
    %cst_5 = arith.constant 7.900000e+01 : f32
    %7 = vector.broadcast %cst_5 : f32 to vector<1x32xf32>
    %8 = arith.divf %6, %7 : vector<1x32xf32>
    %9 = vector.broadcast %8 : vector<1x32xf32> to vector<79x32xf32>
    %10 = arith.subf %4, %9 : vector<79x32xf32>
    %11 = arith.mulf %10, %10 : vector<79x32xf32>
    %cst_6 = arith.constant dense<0.000000e+00> : vector<32xf32>
    %12 = vector.multi_reduction <add>, %11, %cst_6 [0] : vector<79x32xf32> to vector<32xf32>
    %13 = vector.shape_cast %12 : vector<32xf32> to vector<1x32xf32>
    %cst_7 = arith.constant 7.900000e+01 : f32
    %14 = vector.broadcast %cst_7 : f32 to vector<1x32xf32>
    %15 = arith.divf %13, %14 : vector<1x32xf32>
    %cst_8 = arith.constant 9.99999974E-6 : f32
    %16 = vector.broadcast %cst_8 : f32 to vector<1x32xf32>
    %17 = arith.addf %15, %16 : vector<1x32xf32>
    %18 = math.rsqrt %17 : vector<1x32xf32>
    %19 = vector.broadcast %18 : vector<1x32xf32> to vector<79x32xf32>
    %20 = arith.mulf %10, %19 : vector<79x32xf32>
    %c0_9 = arith.constant 0 : index
    %c0_10 = arith.constant 0 : index
    %21 = vector.load %arg3[%c0_9, %c0_10] : memref<1x32xf32, #tpu.memory_space<vmem>>, vector<1x32xf32>
    %22 = vector.broadcast %21 : vector<1x32xf32> to vector<79x32xf32>
    %23 = arith.mulf %20, %22 : vector<79x32xf32>
    %c0_11 = arith.constant 0 : index
    %c0_12 = arith.constant 0 : index
    %24 = vector.load %arg4[%c0_11, %c0_12] : memref<1x32xf32, #tpu.memory_space<vmem>>, vector<1x32xf32>
    %25 = vector.broadcast %24 : vector<1x32xf32> to vector<79x32xf32>
    %26 = arith.addf %23, %25 : vector<79x32xf32>
    %27 = arith.mulf %26, %26 : vector<79x32xf32>
    %28 = arith.mulf %26, %27 : vector<79x32xf32>
    %cst_13 = arith.constant 4.471500e-02 : f32
    %29 = vector.broadcast %cst_13 : f32 to vector<79x32xf32>
    %30 = arith.mulf %29, %28 : vector<79x32xf32>
    %31 = arith.addf %26, %30 : vector<79x32xf32>
    %cst_14 = arith.constant 0.797884583 : f32
    %32 = vector.broadcast %cst_14 : f32 to vector<79x32xf32>
    %33 = arith.mulf %32, %31 : vector<79x32xf32>
    %34 = math.tanh %33 : vector<79x32xf32>
    %cst_15 = arith.constant 1.000000e+00 : f32
    %35 = vector.broadcast %cst_15 : f32 to vector<79x32xf32>
    %36 = arith.addf %35, %34 : vector<79x32xf32>
    %cst_16 = arith.constant 5.000000e-01 : f32
    %37 = vector.broadcast %cst_16 : f32 to vector<79x32xf32>
    %38 = arith.mulf %37, %36 : vector<79x32xf32>
    %39 = arith.mulf %26, %38 : vector<79x32xf32>
    %c0_17 = arith.constant 0 : index
    %c0_18 = arith.constant 0 : index
    %c0_19 = arith.constant 0 : index
    %40 = vector.load %arg5[%c0_17, %c0_18, %c0_19] : memref<1x79x32xf32, #tpu.memory_space<vmem>>, vector<1x79x32xf32>
    %41 = vector.shape_cast %40 : vector<1x79x32xf32> to vector<79x32xf32>
    %42 = vector.shape_cast %39 : vector<79x32xf32> to vector<1x79x32xf32>
    tpu.vector_store %arg5[%c0_17, %c0_18, %c0_19], %42 {strides = array<i32>} : memref<1x79x32xf32, #tpu.memory_space<vmem>>, vector<1x79x32xf32>,
    return
  }
  func.func @transform_0(%arg0: i32) -> (i32, i32, i32) {
    %c0_i32 = arith.constant 0 : i32
    %c0_i32_0 = arith.constant 0 : i32
    %c0_i32_1 = arith.constant 0 : i32
    return %arg0, %c0_i32, %c0_i32_0 : i32, i32, i32
  }
  func.func @transform_1(%arg0: i32) -> (i32, i32) {
    %c0_i32 = arith.constant 0 : i32
    %c0_i32_0 = arith.constant 0 : i32
    %c0_i32_1 = arith.constant 0 : i32
    return %c0_i32, %c0_i32_0 : i32, i32
  }
  func.func @transform_2(%arg0: i32) -> (i32, i32) {
    %c0_i32 = arith.constant 0 : i32
    %c0_i32_0 = arith.constant 0 : i32
    %c0_i32_1 = arith.constant 0 : i32
    return %c0_i32, %c0_i32_0 : i32, i32
  }
  func.func @transform_3(%arg0: i32) -> (i32, i32) {
    %c0_i32 = arith.constant 0 : i32
    %c0_i32_0 = arith.constant 0 : i32
    %c0_i32_1 = arith.constant 0 : i32
    return %c0_i32, %c0_i32_0 : i32, i32
  }
  func.func @transform_4(%arg0: i32) -> (i32, i32, i32) {
    %c0_i32 = arith.constant 0 : i32
    %c0_i32_0 = arith.constant 0 : i32
    %c0_i32_1 = arith.constant 0 : i32
    return %arg0, %c0_i32, %c0_i32_0 : i32, i32, i32
  }
}

module attributes {stable_mosaic.version = 11 : i64} {
  func.func @_conv1_gelu_kernel(%arg0: i32, %arg1: memref<1x39x96xf32, #tpu.memory_space<vmem>>, %arg2: memref<96x32xbf16, #tpu.memory_space<vmem>>, %arg3: memref<1x39x32xf32, #tpu.memory_space<vmem>>) attributes {dimension_semantics = [#tpu.dimension_semantics<parallel>], iteration_bounds = array<i64: 2>, scalar_prefetch = 0 : i64, scratch_operands = 0 : i64, tpu.core_type = #tpu.core_type<tc>, window_params = [{transform_indices = @transform_0, window_bounds = array<i64: 1, 39, 96>}, {pipeline_mode = #tpu.pipeline_mode<synchronous>, transform_indices = @transform_1, window_bounds = array<i64: 96, 32>}, {transform_indices = @transform_2, window_bounds = array<i64: 1, 39, 32>}]} {
    %c0 = arith.constant 0 : index
    %c0_0 = arith.constant 0 : index
    %c0_1 = arith.constant 0 : index
    %0 = vector.load %arg1[%c0, %c0_0, %c0_1] : memref<1x39x96xf32, #tpu.memory_space<vmem>>, vector<1x39x96xf32>
    %1 = vector.shape_cast %0 : vector<1x39x96xf32> to vector<39x96xf32>
    %2 = arith.truncf %1 : vector<39x96xf32> to vector<39x96xbf16>
    %c0_2 = arith.constant 0 : index
    %c0_3 = arith.constant 0 : index
    %3 = vector.load %arg2[%c0_2, %c0_3] : memref<96x32xbf16, #tpu.memory_space<vmem>>, vector<96x32xbf16>
    %cst = arith.constant dense<0.000000e+00> : vector<39x32xf32>
    %4 = tpu.matmul %2, %3, %cst {dimension_numbers = #tpu.dot_dimension_numbers<[1], [0], [0], [1], [0, 0, 1, 1], [], []>} : vector<39x96xbf16>, vector<96x32xbf16>, vector<39x32xf32> -> vector<39x32xf32>
    %5 = arith.mulf %4, %4 : vector<39x32xf32>
    %6 = arith.mulf %4, %5 : vector<39x32xf32>
    %cst_4 = arith.constant 4.471500e-02 : f32
    %7 = vector.broadcast %cst_4 : f32 to vector<39x32xf32>
    %8 = arith.mulf %7, %6 : vector<39x32xf32>
    %9 = arith.addf %4, %8 : vector<39x32xf32>
    %cst_5 = arith.constant 0.797884583 : f32
    %10 = vector.broadcast %cst_5 : f32 to vector<39x32xf32>
    %11 = arith.mulf %10, %9 : vector<39x32xf32>
    %12 = math.tanh %11 : vector<39x32xf32>
    %cst_6 = arith.constant 1.000000e+00 : f32
    %13 = vector.broadcast %cst_6 : f32 to vector<39x32xf32>
    %14 = arith.addf %13, %12 : vector<39x32xf32>
    %cst_7 = arith.constant 5.000000e-01 : f32
    %15 = vector.broadcast %cst_7 : f32 to vector<39x32xf32>
    %16 = arith.mulf %15, %14 : vector<39x32xf32>
    %17 = arith.mulf %4, %16 : vector<39x32xf32>
    %c0_8 = arith.constant 0 : index
    %c0_9 = arith.constant 0 : index
    %c0_10 = arith.constant 0 : index
    %18 = vector.load %arg3[%c0_8, %c0_9, %c0_10] : memref<1x39x32xf32, #tpu.memory_space<vmem>>, vector<1x39x32xf32>
    %19 = vector.shape_cast %18 : vector<1x39x32xf32> to vector<39x32xf32>
    %20 = vector.shape_cast %17 : vector<39x32xf32> to vector<1x39x32xf32>
    tpu.vector_store %arg3[%c0_8, %c0_9, %c0_10], %20 {strides = array<i32>} : memref<1x39x32xf32, #tpu.memory_space<vmem>>, vector<1x39x32xf32>,
    return
  }
  func.func @transform_0(%arg0: i32) -> (i32, i32, i32) {
    %c0_i32 = arith.constant 0 : i32
    %c0_i32_0 = arith.constant 0 : i32
    %c0_i32_1 = arith.constant 0 : i32
    return %arg0, %c0_i32, %c0_i32_0 : i32, i32, i32
  }
  func.func @transform_1(%arg0: i32) -> (i32, i32) {
    %c0_i32 = arith.constant 0 : i32
    %c0_i32_0 = arith.constant 0 : i32
    %c0_i32_1 = arith.constant 0 : i32
    return %c0_i32, %c0_i32_0 : i32, i32
  }
  func.func @transform_2(%arg0: i32) -> (i32, i32, i32) {
    %c0_i32 = arith.constant 0 : i32
    %c0_i32_0 = arith.constant 0 : i32
    %c0_i32_1 = arith.constant 0 : i32
    return %arg0, %c0_i32, %c0_i32_0 : i32, i32, i32
  }
}

module attributes {stable_mosaic.version = 11 : i64} {
  func.func @_encoder_kernel(%arg0: i32, %arg1: memref<1x39x32xf32, #tpu.memory_space<vmem>>, %arg2: memref<1x32xf32, #tpu.memory_space<vmem>>, %arg3: memref<1x32xf32, #tpu.memory_space<vmem>>, %arg4: memref<32x64xbf16, #tpu.memory_space<vmem>>, %arg5: memref<1x64xf32, #tpu.memory_space<vmem>>, %arg6: memref<1x64xf32, #tpu.memory_space<vmem>>, %arg7: memref<1x64xf32, #tpu.memory_space<vmem>>, %arg8: memref<2x4x64x16xbf16, #tpu.memory_space<vmem>>, %arg9: memref<2x4x1x16xf32, #tpu.memory_space<vmem>>, %arg10: memref<2x4x64x16xbf16, #tpu.memory_space<vmem>>, %arg11: memref<2x4x1x16xf32, #tpu.memory_space<vmem>>, %arg12: memref<2x4x64x16xbf16, #tpu.memory_space<vmem>>, %arg13: memref<2x4x1x16xf32, #tpu.memory_space<vmem>>, %arg14: memref<2x4x16x64xbf16, #tpu.memory_space<vmem>>, %arg15: memref<2x1x64xf32, #tpu.memory_space<vmem>>, %arg16: memref<2x1x64xf32, #tpu.memory_space<vmem>>, %arg17: memref<2x1x64xf32, #tpu.memory_space<vmem>>, %arg18: memref<2x64x128xbf16, #tpu.memory_space<vmem>>, %arg19: memref<2x1x128xf32, #tpu.memory_space<vmem>>, %arg20: memref<2x128x64xbf16, #tpu.memory_space<vmem>>, %arg21: memref<2x1x64xf32, #tpu.memory_space<vmem>>, %arg22: memref<2x1x64xf32, #tpu.memory_space<vmem>>, %arg23: memref<2x1x64xf32, #tpu.memory_space<vmem>>, %arg24: memref<3x1x39x64xf32, #tpu.memory_space<vmem>>) attributes {dimension_semantics = [#tpu.dimension_semantics<parallel>], iteration_bounds = array<i64: 2>, scalar_prefetch = 0 : i64, scratch_operands = 0 : i64, tpu.core_type = #tpu.core_type<tc>, window_params = [{transform_indices = @transform_0, window_bounds = array<i64: 1, 39, 32>}, {pipeline_mode = #tpu.pipeline_mode<synchronous>, transform_indices = @transform_1, window_bounds = array<i64: 1, 32>}, {pipeline_mode = #tpu.pipeline_mode<synchronous>, transform_indices = @transform_2, window_bounds = array<i64: 1, 32>}, {pipeline_mode = #tpu.pipeline_mode<synchronous>, transform_indices = @transform_3, window_bounds = array<i64: 32, 64>}, {pipeline_mode = #tpu.pipeline_mode<synchronous>, transform_indices = @transform_4, window_bounds = array<i64: 1, 64>}, {pipeline_mode = #tpu.pipeline_mode<synchronous>, transform_indices = @transform_5, window_bounds = array<i64: 1, 64>}, {pipeline_mode = #tpu.pipeline_mode<synchronous>, transform_indices = @transform_6, window_bounds = array<i64: 1, 64>}, {pipeline_mode = #tpu.pipeline_mode<synchronous>, transform_indices = @transform_7, window_bounds = array<i64: 2, 4, 64, 16>}, {pipeline_mode = #tpu.pipeline_mode<synchronous>, transform_indices = @transform_8, window_bounds = array<i64: 2, 4, 1, 16>}, {pipeline_mode = #tpu.pipeline_mode<synchronous>, transform_indices = @transform_9, window_bounds = array<i64: 2, 4, 64, 16>}, {pipeline_mode = #tpu.pipeline_mode<synchronous>, transform_indices = @transform_10, window_bounds = array<i64: 2, 4, 1, 16>}, {pipeline_mode = #tpu.pipeline_mode<synchronous>, transform_indices = @transform_11, window_bounds = array<i64: 2, 4, 64, 16>}, {pipeline_mode = #tpu.pipeline_mode<synchronous>, transform_indices = @transform_12, window_bounds = array<i64: 2, 4, 1, 16>}, {pipeline_mode = #tpu.pipeline_mode<synchronous>, transform_indices = @transform_13, window_bounds = array<i64: 2, 4, 16, 64>}, {pipeline_mode = #tpu.pipeline_mode<synchronous>, transform_indices = @transform_14, window_bounds = array<i64: 2, 1, 64>}, {pipeline_mode = #tpu.pipeline_mode<synchronous>, transform_indices = @transform_15, window_bounds = array<i64: 2, 1, 64>}, {pipeline_mode = #tpu.pipeline_mode<synchronous>, transform_indices = @transform_16, window_bounds = array<i64: 2, 1, 64>}, {pipeline_mode = #tpu.pipeline_mode<synchronous>, transform_indices = @transform_17, window_bounds = array<i64: 2, 64, 128>}, {pipeline_mode = #tpu.pipeline_mode<synchronous>, transform_indices = @transform_18, window_bounds = array<i64: 2, 1, 128>}, {pipeline_mode = #tpu.pipeline_mode<synchronous>, transform_indices = @transform_19, window_bounds = array<i64: 2, 128, 64>}, {pipeline_mode = #tpu.pipeline_mode<synchronous>, transform_indices = @transform_20, window_bounds = array<i64: 2, 1, 64>}, {pipeline_mode = #tpu.pipeline_mode<synchronous>, transform_indices = @transform_21, window_bounds = array<i64: 2, 1, 64>}, {pipeline_mode = #tpu.pipeline_mode<synchronous>, transform_indices = @transform_22, window_bounds = array<i64: 2, 1, 64>}, {transform_indices = @transform_23, window_bounds = array<i64: 3, 1, 39, 64>}]} {
    %c0 = arith.constant 0 : index
    %c0_0 = arith.constant 0 : index
    %c0_1 = arith.constant 0 : index
    %0 = vector.load %arg1[%c0, %c0_0, %c0_1] : memref<1x39x32xf32, #tpu.memory_space<vmem>>, vector<1x39x32xf32>
    %1 = vector.shape_cast %0 : vector<1x39x32xf32> to vector<39x32xf32>
    %c0_2 = arith.constant 0 : index
    %c0_3 = arith.constant 0 : index
    %2 = vector.load %arg2[%c0_2, %c0_3] : memref<1x32xf32, #tpu.memory_space<vmem>>, vector<1x32xf32>
    %c0_4 = arith.constant 0 : index
    %c0_5 = arith.constant 0 : index
    %3 = vector.load %arg3[%c0_4, %c0_5] : memref<1x32xf32, #tpu.memory_space<vmem>>, vector<1x32xf32>
    %cst = arith.constant dense<0.000000e+00> : vector<39xf32>
    %4 = vector.multi_reduction <add>, %1, %cst [1] : vector<39x32xf32> to vector<39xf32>
    %5 = vector.shape_cast %4 : vector<39xf32> to vector<39x1xf32>
    %cst_6 = arith.constant 3.200000e+01 : f32
    %6 = vector.broadcast %cst_6 : f32 to vector<39x1xf32>
    %7 = arith.divf %5, %6 : vector<39x1xf32>
    %8 = vector.broadcast %7 : vector<39x1xf32> to vector<39x32xf32>
    %9 = arith.subf %1, %8 : vector<39x32xf32>
    %10 = arith.mulf %9, %9 : vector<39x32xf32>
    %cst_7 = arith.constant dense<0.000000e+00> : vector<39xf32>
    %11 = vector.multi_reduction <add>, %10, %cst_7 [1] : vector<39x32xf32> to vector<39xf32>
    %12 = vector.shape_cast %11 : vector<39xf32> to vector<39x1xf32>
    %cst_8 = arith.constant 3.200000e+01 : f32
    %13 = vector.broadcast %cst_8 : f32 to vector<39x1xf32>
    %14 = arith.divf %12, %13 : vector<39x1xf32>
    %cst_9 = arith.constant 9.99999974E-6 : f32
    %15 = vector.broadcast %cst_9 : f32 to vector<39x1xf32>
    %16 = arith.addf %14, %15 : vector<39x1xf32>
    %17 = math.rsqrt %16 : vector<39x1xf32>
    %18 = vector.broadcast %17 : vector<39x1xf32> to vector<39x32xf32>
    %19 = arith.mulf %9, %18 : vector<39x32xf32>
    %20 = vector.broadcast %2 : vector<1x32xf32> to vector<39x32xf32>
    %21 = arith.mulf %19, %20 : vector<39x32xf32>
    %22 = vector.broadcast %3 : vector<1x32xf32> to vector<39x32xf32>
    %23 = arith.addf %21, %22 : vector<39x32xf32>
    %24 = arith.truncf %23 : vector<39x32xf32> to vector<39x32xbf16>
    %c0_10 = arith.constant 0 : index
    %c0_11 = arith.constant 0 : index
    %25 = vector.load %arg4[%c0_10, %c0_11] : memref<32x64xbf16, #tpu.memory_space<vmem>>, vector<32x64xbf16>
    %cst_12 = arith.constant dense<0.000000e+00> : vector<39x64xf32>
    %26 = tpu.matmul %24, %25, %cst_12 {dimension_numbers = #tpu.dot_dimension_numbers<[1], [0], [0], [1], [0, 0, 1, 1], [], []>} : vector<39x32xbf16>, vector<32x64xbf16>, vector<39x64xf32> -> vector<39x64xf32>
    %c0_13 = arith.constant 0 : index
    %c0_14 = arith.constant 0 : index
    %27 = vector.load %arg5[%c0_13, %c0_14] : memref<1x64xf32, #tpu.memory_space<vmem>>, vector<1x64xf32>
    %28 = vector.broadcast %27 : vector<1x64xf32> to vector<39x64xf32>
    %29 = arith.addf %26, %28 : vector<39x64xf32>
    %c0_15 = arith.constant 0 : index
    %c0_16 = arith.constant 0 : index
    %30 = vector.load %arg6[%c0_15, %c0_16] : memref<1x64xf32, #tpu.memory_space<vmem>>, vector<1x64xf32>
    %c0_17 = arith.constant 0 : index
    %c0_18 = arith.constant 0 : index
    %31 = vector.load %arg7[%c0_17, %c0_18] : memref<1x64xf32, #tpu.memory_space<vmem>>, vector<1x64xf32>
    %cst_19 = arith.constant dense<0.000000e+00> : vector<39xf32>
    %32 = vector.multi_reduction <add>, %29, %cst_19 [1] : vector<39x64xf32> to vector<39xf32>
    %33 = vector.shape_cast %32 : vector<39xf32> to vector<39x1xf32>
    %cst_20 = arith.constant 6.400000e+01 : f32
    %34 = vector.broadcast %cst_20 : f32 to vector<39x1xf32>
    %35 = arith.divf %33, %34 : vector<39x1xf32>
    %36 = vector.broadcast %35 : vector<39x1xf32> to vector<39x64xf32>
    %37 = arith.subf %29, %36 : vector<39x64xf32>
    %38 = arith.mulf %37, %37 : vector<39x64xf32>
    %cst_21 = arith.constant dense<0.000000e+00> : vector<39xf32>
    %39 = vector.multi_reduction <add>, %38, %cst_21 [1] : vector<39x64xf32> to vector<39xf32>
    %40 = vector.shape_cast %39 : vector<39xf32> to vector<39x1xf32>
    %cst_22 = arith.constant 6.400000e+01 : f32
    %41 = vector.broadcast %cst_22 : f32 to vector<39x1xf32>
    %42 = arith.divf %40, %41 : vector<39x1xf32>
    %cst_23 = arith.constant 9.99999974E-6 : f32
    %43 = vector.broadcast %cst_23 : f32 to vector<39x1xf32>
    %44 = arith.addf %42, %43 : vector<39x1xf32>
    %45 = math.rsqrt %44 : vector<39x1xf32>
    %46 = vector.broadcast %45 : vector<39x1xf32> to vector<39x64xf32>
    %47 = arith.mulf %37, %46 : vector<39x64xf32>
    %48 = vector.broadcast %30 : vector<1x64xf32> to vector<39x64xf32>
    %49 = arith.mulf %47, %48 : vector<39x64xf32>
    %50 = vector.broadcast %31 : vector<1x64xf32> to vector<39x64xf32>
    %51 = arith.addf %49, %50 : vector<39x64xf32>
    %c0_24 = arith.constant 0 : index
    %c0_25 = arith.constant 0 : index
    %c0_26 = arith.constant 0 : index
    %c0_27 = arith.constant 0 : index
    %52 = vector.load %arg24[%c0_24, %c0_25, %c0_26, %c0_27] : memref<3x1x39x64xf32, #tpu.memory_space<vmem>>, vector<1x1x39x64xf32>
    %53 = vector.shape_cast %52 : vector<1x1x39x64xf32> to vector<39x64xf32>
    %54 = vector.shape_cast %51 : vector<39x64xf32> to vector<1x1x39x64xf32>
    tpu.vector_store %arg24[%c0_24, %c0_25, %c0_26, %c0_27], %54 {strides = array<i32>} : memref<3x1x39x64xf32, #tpu.memory_space<vmem>>, vector<1x1x39x64xf32>,
    %55 = arith.truncf %51 : vector<39x64xf32> to vector<39x64xbf16>
    %c0_28 = arith.constant 0 : index
    %c0_29 = arith.constant 0 : index
    %c0_30 = arith.constant 0 : index
    %56 = vector.load %arg15[%c0_28, %c0_29, %c0_30] : memref<2x1x64xf32, #tpu.memory_space<vmem>>, vector<1x1x64xf32>
    %57 = vector.shape_cast %56 : vector<1x1x64xf32> to vector<1x64xf32>
    %58 = vector.broadcast %57 : vector<1x64xf32> to vector<39x64xf32>
    %59 = arith.addf %51, %58 : vector<39x64xf32>
    %c0_31 = arith.constant 0 : index
    %c0_32 = arith.constant 0 : index
    %c0_33 = arith.constant 0 : index
    %c0_34 = arith.constant 0 : index
    %60 = vector.load %arg8[%c0_31, %c0_32, %c0_33, %c0_34] : memref<2x4x64x16xbf16, #tpu.memory_space<vmem>>, vector<1x1x64x16xbf16>
    %61 = vector.shape_cast %60 : vector<1x1x64x16xbf16> to vector<64x16xbf16>
    %cst_35 = arith.constant dense<0.000000e+00> : vector<39x16xf32>
    %62 = tpu.matmul %55, %61, %cst_35 {dimension_numbers = #tpu.dot_dimension_numbers<[1], [0], [0], [1], [0, 0, 1, 1], [], []>} : vector<39x64xbf16>, vector<64x16xbf16>, vector<39x16xf32> -> vector<39x16xf32>
    %c0_36 = arith.constant 0 : index
    %c0_37 = arith.constant 0 : index
    %c0_38 = arith.constant 0 : index
    %c0_39 = arith.constant 0 : index
    %63 = vector.load %arg9[%c0_36, %c0_37, %c0_38, %c0_39] : memref<2x4x1x16xf32, #tpu.memory_space<vmem>>, vector<1x1x1x16xf32>
    %64 = vector.shape_cast %63 : vector<1x1x1x16xf32> to vector<1x16xf32>
    %65 = vector.broadcast %64 : vector<1x16xf32> to vector<39x16xf32>
    %66 = arith.addf %62, %65 : vector<39x16xf32>
    %c0_40 = arith.constant 0 : index
    %c0_41 = arith.constant 0 : index
    %c0_42 = arith.constant 0 : index
    %c0_43 = arith.constant 0 : index
    %67 = vector.load %arg10[%c0_40, %c0_41, %c0_42, %c0_43] : memref<2x4x64x16xbf16, #tpu.memory_space<vmem>>, vector<1x1x64x16xbf16>
    %68 = vector.shape_cast %67 : vector<1x1x64x16xbf16> to vector<64x16xbf16>
    %cst_44 = arith.constant dense<0.000000e+00> : vector<39x16xf32>
    %69 = tpu.matmul %55, %68, %cst_44 {dimension_numbers = #tpu.dot_dimension_numbers<[1], [0], [0], [1], [0, 0, 1, 1], [], []>} : vector<39x64xbf16>, vector<64x16xbf16>, vector<39x16xf32> -> vector<39x16xf32>
    %c0_45 = arith.constant 0 : index
    %c0_46 = arith.constant 0 : index
    %c0_47 = arith.constant 0 : index
    %c0_48 = arith.constant 0 : index
    %70 = vector.load %arg11[%c0_45, %c0_46, %c0_47, %c0_48] : memref<2x4x1x16xf32, #tpu.memory_space<vmem>>, vector<1x1x1x16xf32>
    %71 = vector.shape_cast %70 : vector<1x1x1x16xf32> to vector<1x16xf32>
    %72 = vector.broadcast %71 : vector<1x16xf32> to vector<39x16xf32>
    %73 = arith.addf %69, %72 : vector<39x16xf32>
    %c0_49 = arith.constant 0 : index
    %c0_50 = arith.constant 0 : index
    %c0_51 = arith.constant 0 : index
    %c0_52 = arith.constant 0 : index
    %74 = vector.load %arg12[%c0_49, %c0_50, %c0_51, %c0_52] : memref<2x4x64x16xbf16, #tpu.memory_space<vmem>>, vector<1x1x64x16xbf16>
    %75 = vector.shape_cast %74 : vector<1x1x64x16xbf16> to vector<64x16xbf16>
    %cst_53 = arith.constant dense<0.000000e+00> : vector<39x16xf32>
    %76 = tpu.matmul %55, %75, %cst_53 {dimension_numbers = #tpu.dot_dimension_numbers<[1], [0], [0], [1], [0, 0, 1, 1], [], []>} : vector<39x64xbf16>, vector<64x16xbf16>, vector<39x16xf32> -> vector<39x16xf32>
    %c0_54 = arith.constant 0 : index
    %c0_55 = arith.constant 0 : index
    %c0_56 = arith.constant 0 : index
    %c0_57 = arith.constant 0 : index
    %77 = vector.load %arg13[%c0_54, %c0_55, %c0_56, %c0_57] : memref<2x4x1x16xf32, #tpu.memory_space<vmem>>, vector<1x1x1x16xf32>
    %78 = vector.shape_cast %77 : vector<1x1x1x16xf32> to vector<1x16xf32>
    %79 = vector.broadcast %78 : vector<1x16xf32> to vector<39x16xf32>
    %80 = arith.addf %76, %79 : vector<39x16xf32>
    %81 = arith.truncf %66 : vector<39x16xf32> to vector<39x16xbf16>
    %82 = arith.truncf %73 : vector<39x16xf32> to vector<39x16xbf16>
    %cst_58 = arith.constant dense<0.000000e+00> : vector<39x39xf32>
    %83 = tpu.matmul %81, %82, %cst_58 {dimension_numbers = #tpu.dot_dimension_numbers<[1], [1], [0], [0], [0, 0, 1, 0], [], []>} : vector<39x16xbf16>, vector<39x16xbf16>, vector<39x39xf32> -> vector<39x39xf32>
    %cst_59 = arith.constant dense<0xFF800000> : vector<39xf32>
    %84 = vector.multi_reduction <maximumf>, %83, %cst_59 [1] : vector<39x39xf32> to vector<39xf32>
    %85 = vector.shape_cast %84 : vector<39xf32> to vector<39x1xf32>
    %86 = vector.broadcast %85 : vector<39x1xf32> to vector<39x39xf32>
    %87 = arith.subf %83, %86 : vector<39x39xf32>
    %88 = math.exp %87 : vector<39x39xf32>
    %cst_60 = arith.constant dense<0.000000e+00> : vector<39xf32>
    %89 = vector.multi_reduction <add>, %88, %cst_60 [1] : vector<39x39xf32> to vector<39xf32>
    %90 = vector.shape_cast %89 : vector<39xf32> to vector<39x1xf32>
    %91 = tpu.reciprocal %90 {approx = true} : vector<39x1xf32> -> vector<39x1xf32>
    %92 = vector.broadcast %91 : vector<39x1xf32> to vector<39x39xf32>
    %93 = arith.mulf %88, %92 : vector<39x39xf32>
    %94 = arith.truncf %93 : vector<39x39xf32> to vector<39x39xbf16>
    %95 = arith.truncf %80 : vector<39x16xf32> to vector<39x16xbf16>
    %cst_61 = arith.constant dense<0.000000e+00> : vector<39x16xf32>
    %96 = tpu.matmul %94, %95, %cst_61 {dimension_numbers = #tpu.dot_dimension_numbers<[1], [0], [0], [1], [0, 0, 1, 1], [], []>} : vector<39x39xbf16>, vector<39x16xbf16>, vector<39x16xf32> -> vector<39x16xf32>
    %97 = arith.truncf %96 : vector<39x16xf32> to vector<39x16xbf16>
    %c0_62 = arith.constant 0 : index
    %c0_63 = arith.constant 0 : index
    %c0_64 = arith.constant 0 : index
    %c0_65 = arith.constant 0 : index
    %98 = vector.load %arg14[%c0_62, %c0_63, %c0_64, %c0_65] : memref<2x4x16x64xbf16, #tpu.memory_space<vmem>>, vector<1x1x16x64xbf16>
    %99 = vector.shape_cast %98 : vector<1x1x16x64xbf16> to vector<16x64xbf16>
    %cst_66 = arith.constant dense<0.000000e+00> : vector<39x64xf32>
    %100 = tpu.matmul %97, %99, %cst_66 {dimension_numbers = #tpu.dot_dimension_numbers<[1], [0], [0], [1], [0, 0, 1, 1], [], []>} : vector<39x16xbf16>, vector<16x64xbf16>, vector<39x64xf32> -> vector<39x64xf32>
    %101 = arith.addf %59, %100 : vector<39x64xf32>
    %c0_67 = arith.constant 0 : index
    %c1 = arith.constant 1 : index
    %c0_68 = arith.constant 0 : index
    %c0_69 = arith.constant 0 : index
    %102 = vector.load %arg8[%c0_67, %c1, %c0_68, %c0_69] : memref<2x4x64x16xbf16, #tpu.memory_space<vmem>>, vector<1x1x64x16xbf16>
    %103 = vector.shape_cast %102 : vector<1x1x64x16xbf16> to vector<64x16xbf16>
    %cst_70 = arith.constant dense<0.000000e+00> : vector<39x16xf32>
    %104 = tpu.matmul %55, %103, %cst_70 {dimension_numbers = #tpu.dot_dimension_numbers<[1], [0], [0], [1], [0, 0, 1, 1], [], []>} : vector<39x64xbf16>, vector<64x16xbf16>, vector<39x16xf32> -> vector<39x16xf32>
    %c0_71 = arith.constant 0 : index
    %c1_72 = arith.constant 1 : index
    %c0_73 = arith.constant 0 : index
    %c0_74 = arith.constant 0 : index
    %105 = vector.load %arg9[%c0_71, %c1_72, %c0_73, %c0_74] : memref<2x4x1x16xf32, #tpu.memory_space<vmem>>, vector<1x1x1x16xf32>
    %106 = vector.shape_cast %105 : vector<1x1x1x16xf32> to vector<1x16xf32>
    %107 = vector.broadcast %106 : vector<1x16xf32> to vector<39x16xf32>
    %108 = arith.addf %104, %107 : vector<39x16xf32>
    %c0_75 = arith.constant 0 : index
    %c1_76 = arith.constant 1 : index
    %c0_77 = arith.constant 0 : index
    %c0_78 = arith.constant 0 : index
    %109 = vector.load %arg10[%c0_75, %c1_76, %c0_77, %c0_78] : memref<2x4x64x16xbf16, #tpu.memory_space<vmem>>, vector<1x1x64x16xbf16>
    %110 = vector.shape_cast %109 : vector<1x1x64x16xbf16> to vector<64x16xbf16>
    %cst_79 = arith.constant dense<0.000000e+00> : vector<39x16xf32>
    %111 = tpu.matmul %55, %110, %cst_79 {dimension_numbers = #tpu.dot_dimension_numbers<[1], [0], [0], [1], [0, 0, 1, 1], [], []>} : vector<39x64xbf16>, vector<64x16xbf16>, vector<39x16xf32> -> vector<39x16xf32>
    %c0_80 = arith.constant 0 : index
    %c1_81 = arith.constant 1 : index
    %c0_82 = arith.constant 0 : index
    %c0_83 = arith.constant 0 : index
    %112 = vector.load %arg11[%c0_80, %c1_81, %c0_82, %c0_83] : memref<2x4x1x16xf32, #tpu.memory_space<vmem>>, vector<1x1x1x16xf32>
    %113 = vector.shape_cast %112 : vector<1x1x1x16xf32> to vector<1x16xf32>
    %114 = vector.broadcast %113 : vector<1x16xf32> to vector<39x16xf32>
    %115 = arith.addf %111, %114 : vector<39x16xf32>
    %c0_84 = arith.constant 0 : index
    %c1_85 = arith.constant 1 : index
    %c0_86 = arith.constant 0 : index
    %c0_87 = arith.constant 0 : index
    %116 = vector.load %arg12[%c0_84, %c1_85, %c0_86, %c0_87] : memref<2x4x64x16xbf16, #tpu.memory_space<vmem>>, vector<1x1x64x16xbf16>
    %117 = vector.shape_cast %116 : vector<1x1x64x16xbf16> to vector<64x16xbf16>
    %cst_88 = arith.constant dense<0.000000e+00> : vector<39x16xf32>
    %118 = tpu.matmul %55, %117, %cst_88 {dimension_numbers = #tpu.dot_dimension_numbers<[1], [0], [0], [1], [0, 0, 1, 1], [], []>} : vector<39x64xbf16>, vector<64x16xbf16>, vector<39x16xf32> -> vector<39x16xf32>
    %c0_89 = arith.constant 0 : index
    %c1_90 = arith.constant 1 : index
    %c0_91 = arith.constant 0 : index
    %c0_92 = arith.constant 0 : index
    %119 = vector.load %arg13[%c0_89, %c1_90, %c0_91, %c0_92] : memref<2x4x1x16xf32, #tpu.memory_space<vmem>>, vector<1x1x1x16xf32>
    %120 = vector.shape_cast %119 : vector<1x1x1x16xf32> to vector<1x16xf32>
    %121 = vector.broadcast %120 : vector<1x16xf32> to vector<39x16xf32>
    %122 = arith.addf %118, %121 : vector<39x16xf32>
    %123 = arith.truncf %108 : vector<39x16xf32> to vector<39x16xbf16>
    %124 = arith.truncf %115 : vector<39x16xf32> to vector<39x16xbf16>
    %cst_93 = arith.constant dense<0.000000e+00> : vector<39x39xf32>
    %125 = tpu.matmul %123, %124, %cst_93 {dimension_numbers = #tpu.dot_dimension_numbers<[1], [1], [0], [0], [0, 0, 1, 0], [], []>} : vector<39x16xbf16>, vector<39x16xbf16>, vector<39x39xf32> -> vector<39x39xf32>
    %cst_94 = arith.constant dense<0xFF800000> : vector<39xf32>
    %126 = vector.multi_reduction <maximumf>, %125, %cst_94 [1] : vector<39x39xf32> to vector<39xf32>
    %127 = vector.shape_cast %126 : vector<39xf32> to vector<39x1xf32>
    %128 = vector.broadcast %127 : vector<39x1xf32> to vector<39x39xf32>
    %129 = arith.subf %125, %128 : vector<39x39xf32>
    %130 = math.exp %129 : vector<39x39xf32>
    %cst_95 = arith.constant dense<0.000000e+00> : vector<39xf32>
    %131 = vector.multi_reduction <add>, %130, %cst_95 [1] : vector<39x39xf32> to vector<39xf32>
    %132 = vector.shape_cast %131 : vector<39xf32> to vector<39x1xf32>
    %133 = tpu.reciprocal %132 {approx = true} : vector<39x1xf32> -> vector<39x1xf32>
    %134 = vector.broadcast %133 : vector<39x1xf32> to vector<39x39xf32>
    %135 = arith.mulf %130, %134 : vector<39x39xf32>
    %136 = arith.truncf %135 : vector<39x39xf32> to vector<39x39xbf16>
    %137 = arith.truncf %122 : vector<39x16xf32> to vector<39x16xbf16>
    %cst_96 = arith.constant dense<0.000000e+00> : vector<39x16xf32>
    %138 = tpu.matmul %136, %137, %cst_96 {dimension_numbers = #tpu.dot_dimension_numbers<[1], [0], [0], [1], [0, 0, 1, 1], [], []>} : vector<39x39xbf16>, vector<39x16xbf16>, vector<39x16xf32> -> vector<39x16xf32>
    %139 = arith.truncf %138 : vector<39x16xf32> to vector<39x16xbf16>
    %c0_97 = arith.constant 0 : index
    %c1_98 = arith.constant 1 : index
    %c0_99 = arith.constant 0 : index
    %c0_100 = arith.constant 0 : index
    %140 = vector.load %arg14[%c0_97, %c1_98, %c0_99, %c0_100] : memref<2x4x16x64xbf16, #tpu.memory_space<vmem>>, vector<1x1x16x64xbf16>
    %141 = vector.shape_cast %140 : vector<1x1x16x64xbf16> to vector<16x64xbf16>
    %cst_101 = arith.constant dense<0.000000e+00> : vector<39x64xf32>
    %142 = tpu.matmul %139, %141, %cst_101 {dimension_numbers = #tpu.dot_dimension_numbers<[1], [0], [0], [1], [0, 0, 1, 1], [], []>} : vector<39x16xbf16>, vector<16x64xbf16>, vector<39x64xf32> -> vector<39x64xf32>
    %143 = arith.addf %101, %142 : vector<39x64xf32>
    %c0_102 = arith.constant 0 : index
    %c2 = arith.constant 2 : index
    %c0_103 = arith.constant 0 : index
    %c0_104 = arith.constant 0 : index
    %144 = vector.load %arg8[%c0_102, %c2, %c0_103, %c0_104] : memref<2x4x64x16xbf16, #tpu.memory_space<vmem>>, vector<1x1x64x16xbf16>
    %145 = vector.shape_cast %144 : vector<1x1x64x16xbf16> to vector<64x16xbf16>
    %cst_105 = arith.constant dense<0.000000e+00> : vector<39x16xf32>
    %146 = tpu.matmul %55, %145, %cst_105 {dimension_numbers = #tpu.dot_dimension_numbers<[1], [0], [0], [1], [0, 0, 1, 1], [], []>} : vector<39x64xbf16>, vector<64x16xbf16>, vector<39x16xf32> -> vector<39x16xf32>
    %c0_106 = arith.constant 0 : index
    %c2_107 = arith.constant 2 : index
    %c0_108 = arith.constant 0 : index
    %c0_109 = arith.constant 0 : index
    %147 = vector.load %arg9[%c0_106, %c2_107, %c0_108, %c0_109] : memref<2x4x1x16xf32, #tpu.memory_space<vmem>>, vector<1x1x1x16xf32>
    %148 = vector.shape_cast %147 : vector<1x1x1x16xf32> to vector<1x16xf32>
    %149 = vector.broadcast %148 : vector<1x16xf32> to vector<39x16xf32>
    %150 = arith.addf %146, %149 : vector<39x16xf32>
    %c0_110 = arith.constant 0 : index
    %c2_111 = arith.constant 2 : index
    %c0_112 = arith.constant 0 : index
    %c0_113 = arith.constant 0 : index
    %151 = vector.load %arg10[%c0_110, %c2_111, %c0_112, %c0_113] : memref<2x4x64x16xbf16, #tpu.memory_space<vmem>>, vector<1x1x64x16xbf16>
    %152 = vector.shape_cast %151 : vector<1x1x64x16xbf16> to vector<64x16xbf16>
    %cst_114 = arith.constant dense<0.000000e+00> : vector<39x16xf32>
    %153 = tpu.matmul %55, %152, %cst_114 {dimension_numbers = #tpu.dot_dimension_numbers<[1], [0], [0], [1], [0, 0, 1, 1], [], []>} : vector<39x64xbf16>, vector<64x16xbf16>, vector<39x16xf32> -> vector<39x16xf32>
    %c0_115 = arith.constant 0 : index
    %c2_116 = arith.constant 2 : index
    %c0_117 = arith.constant 0 : index
    %c0_118 = arith.constant 0 : index
    %154 = vector.load %arg11[%c0_115, %c2_116, %c0_117, %c0_118] : memref<2x4x1x16xf32, #tpu.memory_space<vmem>>, vector<1x1x1x16xf32>
    %155 = vector.shape_cast %154 : vector<1x1x1x16xf32> to vector<1x16xf32>
    %156 = vector.broadcast %155 : vector<1x16xf32> to vector<39x16xf32>
    %157 = arith.addf %153, %156 : vector<39x16xf32>
    %c0_119 = arith.constant 0 : index
    %c2_120 = arith.constant 2 : index
    %c0_121 = arith.constant 0 : index
    %c0_122 = arith.constant 0 : index
    %158 = vector.load %arg12[%c0_119, %c2_120, %c0_121, %c0_122] : memref<2x4x64x16xbf16, #tpu.memory_space<vmem>>, vector<1x1x64x16xbf16>
    %159 = vector.shape_cast %158 : vector<1x1x64x16xbf16> to vector<64x16xbf16>
    %cst_123 = arith.constant dense<0.000000e+00> : vector<39x16xf32>
    %160 = tpu.matmul %55, %159, %cst_123 {dimension_numbers = #tpu.dot_dimension_numbers<[1], [0], [0], [1], [0, 0, 1, 1], [], []>} : vector<39x64xbf16>, vector<64x16xbf16>, vector<39x16xf32> -> vector<39x16xf32>
    %c0_124 = arith.constant 0 : index
    %c2_125 = arith.constant 2 : index
    %c0_126 = arith.constant 0 : index
    %c0_127 = arith.constant 0 : index
    %161 = vector.load %arg13[%c0_124, %c2_125, %c0_126, %c0_127] : memref<2x4x1x16xf32, #tpu.memory_space<vmem>>, vector<1x1x1x16xf32>
    %162 = vector.shape_cast %161 : vector<1x1x1x16xf32> to vector<1x16xf32>
    %163 = vector.broadcast %162 : vector<1x16xf32> to vector<39x16xf32>
    %164 = arith.addf %160, %163 : vector<39x16xf32>
    %165 = arith.truncf %150 : vector<39x16xf32> to vector<39x16xbf16>
    %166 = arith.truncf %157 : vector<39x16xf32> to vector<39x16xbf16>
    %cst_128 = arith.constant dense<0.000000e+00> : vector<39x39xf32>
    %167 = tpu.matmul %165, %166, %cst_128 {dimension_numbers = #tpu.dot_dimension_numbers<[1], [1], [0], [0], [0, 0, 1, 0], [], []>} : vector<39x16xbf16>, vector<39x16xbf16>, vector<39x39xf32> -> vector<39x39xf32>
    %cst_129 = arith.constant dense<0xFF800000> : vector<39xf32>
    %168 = vector.multi_reduction <maximumf>, %167, %cst_129 [1] : vector<39x39xf32> to vector<39xf32>
    %169 = vector.shape_cast %168 : vector<39xf32> to vector<39x1xf32>
    %170 = vector.broadcast %169 : vector<39x1xf32> to vector<39x39xf32>
    %171 = arith.subf %167, %170 : vector<39x39xf32>
    %172 = math.exp %171 : vector<39x39xf32>
    %cst_130 = arith.constant dense<0.000000e+00> : vector<39xf32>
    %173 = vector.multi_reduction <add>, %172, %cst_130 [1] : vector<39x39xf32> to vector<39xf32>
    %174 = vector.shape_cast %173 : vector<39xf32> to vector<39x1xf32>
    %175 = tpu.reciprocal %174 {approx = true} : vector<39x1xf32> -> vector<39x1xf32>
    %176 = vector.broadcast %175 : vector<39x1xf32> to vector<39x39xf32>
    %177 = arith.mulf %172, %176 : vector<39x39xf32>
    %178 = arith.truncf %177 : vector<39x39xf32> to vector<39x39xbf16>
    %179 = arith.truncf %164 : vector<39x16xf32> to vector<39x16xbf16>
    %cst_131 = arith.constant dense<0.000000e+00> : vector<39x16xf32>
    %180 = tpu.matmul %178, %179, %cst_131 {dimension_numbers = #tpu.dot_dimension_numbers<[1], [0], [0], [1], [0, 0, 1, 1], [], []>} : vector<39x39xbf16>, vector<39x16xbf16>, vector<39x16xf32> -> vector<39x16xf32>
    %181 = arith.truncf %180 : vector<39x16xf32> to vector<39x16xbf16>
    %c0_132 = arith.constant 0 : index
    %c2_133 = arith.constant 2 : index
    %c0_134 = arith.constant 0 : index
    %c0_135 = arith.constant 0 : index
    %182 = vector.load %arg14[%c0_132, %c2_133, %c0_134, %c0_135] : memref<2x4x16x64xbf16, #tpu.memory_space<vmem>>, vector<1x1x16x64xbf16>
    %183 = vector.shape_cast %182 : vector<1x1x16x64xbf16> to vector<16x64xbf16>
    %cst_136 = arith.constant dense<0.000000e+00> : vector<39x64xf32>
    %184 = tpu.matmul %181, %183, %cst_136 {dimension_numbers = #tpu.dot_dimension_numbers<[1], [0], [0], [1], [0, 0, 1, 1], [], []>} : vector<39x16xbf16>, vector<16x64xbf16>, vector<39x64xf32> -> vector<39x64xf32>
    %185 = arith.addf %143, %184 : vector<39x64xf32>
    %c0_137 = arith.constant 0 : index
    %c3 = arith.constant 3 : index
    %c0_138 = arith.constant 0 : index
    %c0_139 = arith.constant 0 : index
    %186 = vector.load %arg8[%c0_137, %c3, %c0_138, %c0_139] : memref<2x4x64x16xbf16, #tpu.memory_space<vmem>>, vector<1x1x64x16xbf16>
    %187 = vector.shape_cast %186 : vector<1x1x64x16xbf16> to vector<64x16xbf16>
    %cst_140 = arith.constant dense<0.000000e+00> : vector<39x16xf32>
    %188 = tpu.matmul %55, %187, %cst_140 {dimension_numbers = #tpu.dot_dimension_numbers<[1], [0], [0], [1], [0, 0, 1, 1], [], []>} : vector<39x64xbf16>, vector<64x16xbf16>, vector<39x16xf32> -> vector<39x16xf32>
    %c0_141 = arith.constant 0 : index
    %c3_142 = arith.constant 3 : index
    %c0_143 = arith.constant 0 : index
    %c0_144 = arith.constant 0 : index
    %189 = vector.load %arg9[%c0_141, %c3_142, %c0_143, %c0_144] : memref<2x4x1x16xf32, #tpu.memory_space<vmem>>, vector<1x1x1x16xf32>
    %190 = vector.shape_cast %189 : vector<1x1x1x16xf32> to vector<1x16xf32>
    %191 = vector.broadcast %190 : vector<1x16xf32> to vector<39x16xf32>
    %192 = arith.addf %188, %191 : vector<39x16xf32>
    %c0_145 = arith.constant 0 : index
    %c3_146 = arith.constant 3 : index
    %c0_147 = arith.constant 0 : index
    %c0_148 = arith.constant 0 : index
    %193 = vector.load %arg10[%c0_145, %c3_146, %c0_147, %c0_148] : memref<2x4x64x16xbf16, #tpu.memory_space<vmem>>, vector<1x1x64x16xbf16>
    %194 = vector.shape_cast %193 : vector<1x1x64x16xbf16> to vector<64x16xbf16>
    %cst_149 = arith.constant dense<0.000000e+00> : vector<39x16xf32>
    %195 = tpu.matmul %55, %194, %cst_149 {dimension_numbers = #tpu.dot_dimension_numbers<[1], [0], [0], [1], [0, 0, 1, 1], [], []>} : vector<39x64xbf16>, vector<64x16xbf16>, vector<39x16xf32> -> vector<39x16xf32>
    %c0_150 = arith.constant 0 : index
    %c3_151 = arith.constant 3 : index
    %c0_152 = arith.constant 0 : index
    %c0_153 = arith.constant 0 : index
    %196 = vector.load %arg11[%c0_150, %c3_151, %c0_152, %c0_153] : memref<2x4x1x16xf32, #tpu.memory_space<vmem>>, vector<1x1x1x16xf32>
    %197 = vector.shape_cast %196 : vector<1x1x1x16xf32> to vector<1x16xf32>
    %198 = vector.broadcast %197 : vector<1x16xf32> to vector<39x16xf32>
    %199 = arith.addf %195, %198 : vector<39x16xf32>
    %c0_154 = arith.constant 0 : index
    %c3_155 = arith.constant 3 : index
    %c0_156 = arith.constant 0 : index
    %c0_157 = arith.constant 0 : index
    %200 = vector.load %arg12[%c0_154, %c3_155, %c0_156, %c0_157] : memref<2x4x64x16xbf16, #tpu.memory_space<vmem>>, vector<1x1x64x16xbf16>
    %201 = vector.shape_cast %200 : vector<1x1x64x16xbf16> to vector<64x16xbf16>
    %cst_158 = arith.constant dense<0.000000e+00> : vector<39x16xf32>
    %202 = tpu.matmul %55, %201, %cst_158 {dimension_numbers = #tpu.dot_dimension_numbers<[1], [0], [0], [1], [0, 0, 1, 1], [], []>} : vector<39x64xbf16>, vector<64x16xbf16>, vector<39x16xf32> -> vector<39x16xf32>
    %c0_159 = arith.constant 0 : index
    %c3_160 = arith.constant 3 : index
    %c0_161 = arith.constant 0 : index
    %c0_162 = arith.constant 0 : index
    %203 = vector.load %arg13[%c0_159, %c3_160, %c0_161, %c0_162] : memref<2x4x1x16xf32, #tpu.memory_space<vmem>>, vector<1x1x1x16xf32>
    %204 = vector.shape_cast %203 : vector<1x1x1x16xf32> to vector<1x16xf32>
    %205 = vector.broadcast %204 : vector<1x16xf32> to vector<39x16xf32>
    %206 = arith.addf %202, %205 : vector<39x16xf32>
    %207 = arith.truncf %192 : vector<39x16xf32> to vector<39x16xbf16>
    %208 = arith.truncf %199 : vector<39x16xf32> to vector<39x16xbf16>
    %cst_163 = arith.constant dense<0.000000e+00> : vector<39x39xf32>
    %209 = tpu.matmul %207, %208, %cst_163 {dimension_numbers = #tpu.dot_dimension_numbers<[1], [1], [0], [0], [0, 0, 1, 0], [], []>} : vector<39x16xbf16>, vector<39x16xbf16>, vector<39x39xf32> -> vector<39x39xf32>
    %cst_164 = arith.constant dense<0xFF800000> : vector<39xf32>
    %210 = vector.multi_reduction <maximumf>, %209, %cst_164 [1] : vector<39x39xf32> to vector<39xf32>
    %211 = vector.shape_cast %210 : vector<39xf32> to vector<39x1xf32>
    %212 = vector.broadcast %211 : vector<39x1xf32> to vector<39x39xf32>
    %213 = arith.subf %209, %212 : vector<39x39xf32>
    %214 = math.exp %213 : vector<39x39xf32>
    %cst_165 = arith.constant dense<0.000000e+00> : vector<39xf32>
    %215 = vector.multi_reduction <add>, %214, %cst_165 [1] : vector<39x39xf32> to vector<39xf32>
    %216 = vector.shape_cast %215 : vector<39xf32> to vector<39x1xf32>
    %217 = tpu.reciprocal %216 {approx = true} : vector<39x1xf32> -> vector<39x1xf32>
    %218 = vector.broadcast %217 : vector<39x1xf32> to vector<39x39xf32>
    %219 = arith.mulf %214, %218 : vector<39x39xf32>
    %220 = arith.truncf %219 : vector<39x39xf32> to vector<39x39xbf16>
    %221 = arith.truncf %206 : vector<39x16xf32> to vector<39x16xbf16>
    %cst_166 = arith.constant dense<0.000000e+00> : vector<39x16xf32>
    %222 = tpu.matmul %220, %221, %cst_166 {dimension_numbers = #tpu.dot_dimension_numbers<[1], [0], [0], [1], [0, 0, 1, 1], [], []>} : vector<39x39xbf16>, vector<39x16xbf16>, vector<39x16xf32> -> vector<39x16xf32>
    %223 = arith.truncf %222 : vector<39x16xf32> to vector<39x16xbf16>
    %c0_167 = arith.constant 0 : index
    %c3_168 = arith.constant 3 : index
    %c0_169 = arith.constant 0 : index
    %c0_170 = arith.constant 0 : index
    %224 = vector.load %arg14[%c0_167, %c3_168, %c0_169, %c0_170] : memref<2x4x16x64xbf16, #tpu.memory_space<vmem>>, vector<1x1x16x64xbf16>
    %225 = vector.shape_cast %224 : vector<1x1x16x64xbf16> to vector<16x64xbf16>
    %cst_171 = arith.constant dense<0.000000e+00> : vector<39x64xf32>
    %226 = tpu.matmul %223, %225, %cst_171 {dimension_numbers = #tpu.dot_dimension_numbers<[1], [0], [0], [1], [0, 0, 1, 1], [], []>} : vector<39x16xbf16>, vector<16x64xbf16>, vector<39x64xf32> -> vector<39x64xf32>
    %227 = arith.addf %185, %226 : vector<39x64xf32>
    %c0_172 = arith.constant 0 : index
    %c0_173 = arith.constant 0 : index
    %c0_174 = arith.constant 0 : index
    %228 = vector.load %arg16[%c0_172, %c0_173, %c0_174] : memref<2x1x64xf32, #tpu.memory_space<vmem>>, vector<1x1x64xf32>
    %229 = vector.shape_cast %228 : vector<1x1x64xf32> to vector<1x64xf32>
    %c0_175 = arith.constant 0 : index
    %c0_176 = arith.constant 0 : index
    %c0_177 = arith.constant 0 : index
    %230 = vector.load %arg17[%c0_175, %c0_176, %c0_177] : memref<2x1x64xf32, #tpu.memory_space<vmem>>, vector<1x1x64xf32>
    %231 = vector.shape_cast %230 : vector<1x1x64xf32> to vector<1x64xf32>
    %cst_178 = arith.constant dense<0.000000e+00> : vector<39xf32>
    %232 = vector.multi_reduction <add>, %227, %cst_178 [1] : vector<39x64xf32> to vector<39xf32>
    %233 = vector.shape_cast %232 : vector<39xf32> to vector<39x1xf32>
    %cst_179 = arith.constant 6.400000e+01 : f32
    %234 = vector.broadcast %cst_179 : f32 to vector<39x1xf32>
    %235 = arith.divf %233, %234 : vector<39x1xf32>
    %236 = vector.broadcast %235 : vector<39x1xf32> to vector<39x64xf32>
    %237 = arith.subf %227, %236 : vector<39x64xf32>
    %238 = arith.mulf %237, %237 : vector<39x64xf32>
    %cst_180 = arith.constant dense<0.000000e+00> : vector<39xf32>
    %239 = vector.multi_reduction <add>, %238, %cst_180 [1] : vector<39x64xf32> to vector<39xf32>
    %240 = vector.shape_cast %239 : vector<39xf32> to vector<39x1xf32>
    %cst_181 = arith.constant 6.400000e+01 : f32
    %241 = vector.broadcast %cst_181 : f32 to vector<39x1xf32>
    %242 = arith.divf %240, %241 : vector<39x1xf32>
    %cst_182 = arith.constant 9.99999974E-6 : f32
    %243 = vector.broadcast %cst_182 : f32 to vector<39x1xf32>
    %244 = arith.addf %242, %243 : vector<39x1xf32>
    %245 = math.rsqrt %244 : vector<39x1xf32>
    %246 = vector.broadcast %245 : vector<39x1xf32> to vector<39x64xf32>
    %247 = arith.mulf %237, %246 : vector<39x64xf32>
    %248 = vector.broadcast %229 : vector<1x64xf32> to vector<39x64xf32>
    %249 = arith.mulf %247, %248 : vector<39x64xf32>
    %250 = vector.broadcast %231 : vector<1x64xf32> to vector<39x64xf32>
    %251 = arith.addf %249, %250 : vector<39x64xf32>
    %252 = arith.truncf %251 : vector<39x64xf32> to vector<39x64xbf16>
    %c0_183 = arith.constant 0 : index
    %c0_184 = arith.constant 0 : index
    %c0_185 = arith.constant 0 : index
    %253 = vector.load %arg18[%c0_183, %c0_184, %c0_185] : memref<2x64x128xbf16, #tpu.memory_space<vmem>>, vector<1x64x128xbf16>
    %254 = vector.shape_cast %253 : vector<1x64x128xbf16> to vector<64x128xbf16>
    %cst_186 = arith.constant dense<0.000000e+00> : vector<39x128xf32>
    %255 = tpu.matmul %252, %254, %cst_186 {dimension_numbers = #tpu.dot_dimension_numbers<[1], [0], [0], [1], [0, 0, 1, 1], [], []>} : vector<39x64xbf16>, vector<64x128xbf16>, vector<39x128xf32> -> vector<39x128xf32>
    %c0_187 = arith.constant 0 : index
    %c0_188 = arith.constant 0 : index
    %c0_189 = arith.constant 0 : index
    %256 = vector.load %arg19[%c0_187, %c0_188, %c0_189] : memref<2x1x128xf32, #tpu.memory_space<vmem>>, vector<1x1x128xf32>
    %257 = vector.shape_cast %256 : vector<1x1x128xf32> to vector<1x128xf32>
    %258 = vector.broadcast %257 : vector<1x128xf32> to vector<39x128xf32>
    %259 = arith.addf %255, %258 : vector<39x128xf32>
    %260 = arith.mulf %259, %259 : vector<39x128xf32>
    %261 = arith.mulf %259, %260 : vector<39x128xf32>
    %cst_190 = arith.constant 4.471500e-02 : f32
    %262 = vector.broadcast %cst_190 : f32 to vector<39x128xf32>
    %263 = arith.mulf %262, %261 : vector<39x128xf32>
    %264 = arith.addf %259, %263 : vector<39x128xf32>
    %cst_191 = arith.constant 0.797884583 : f32
    %265 = vector.broadcast %cst_191 : f32 to vector<39x128xf32>
    %266 = arith.mulf %265, %264 : vector<39x128xf32>
    %267 = math.tanh %266 : vector<39x128xf32>
    %cst_192 = arith.constant 1.000000e+00 : f32
    %268 = vector.broadcast %cst_192 : f32 to vector<39x128xf32>
    %269 = arith.addf %268, %267 : vector<39x128xf32>
    %cst_193 = arith.constant 5.000000e-01 : f32
    %270 = vector.broadcast %cst_193 : f32 to vector<39x128xf32>
    %271 = arith.mulf %270, %269 : vector<39x128xf32>
    %272 = arith.mulf %259, %271 : vector<39x128xf32>
    %273 = arith.truncf %272 : vector<39x128xf32> to vector<39x128xbf16>
    %c0_194 = arith.constant 0 : index
    %c0_195 = arith.constant 0 : index
    %c0_196 = arith.constant 0 : index
    %274 = vector.load %arg20[%c0_194, %c0_195, %c0_196] : memref<2x128x64xbf16, #tpu.memory_space<vmem>>, vector<1x128x64xbf16>
    %275 = vector.shape_cast %274 : vector<1x128x64xbf16> to vector<128x64xbf16>
    %cst_197 = arith.constant dense<0.000000e+00> : vector<39x64xf32>
    %276 = tpu.matmul %273, %275, %cst_197 {dimension_numbers = #tpu.dot_dimension_numbers<[1], [0], [0], [1], [0, 0, 1, 1], [], []>} : vector<39x128xbf16>, vector<128x64xbf16>, vector<39x64xf32> -> vector<39x64xf32>
    %c0_198 = arith.constant 0 : index
    %c0_199 = arith.constant 0 : index
    %c0_200 = arith.constant 0 : index
    %277 = vector.load %arg21[%c0_198, %c0_199, %c0_200] : memref<2x1x64xf32, #tpu.memory_space<vmem>>, vector<1x1x64xf32>
    %278 = vector.shape_cast %277 : vector<1x1x64xf32> to vector<1x64xf32>
    %279 = vector.broadcast %278 : vector<1x64xf32> to vector<39x64xf32>
    %280 = arith.addf %276, %279 : vector<39x64xf32>
    %281 = arith.addf %251, %280 : vector<39x64xf32>
    %c0_201 = arith.constant 0 : index
    %c0_202 = arith.constant 0 : index
    %c0_203 = arith.constant 0 : index
    %282 = vector.load %arg22[%c0_201, %c0_202, %c0_203] : memref<2x1x64xf32, #tpu.memory_space<vmem>>, vector<1x1x64xf32>
    %283 = vector.shape_cast %282 : vector<1x1x64xf32> to vector<1x64xf32>
    %c0_204 = arith.constant 0 : index
    %c0_205 = arith.constant 0 : index
    %c0_206 = arith.constant 0 : index
    %284 = vector.load %arg23[%c0_204, %c0_205, %c0_206] : memref<2x1x64xf32, #tpu.memory_space<vmem>>, vector<1x1x64xf32>
    %285 = vector.shape_cast %284 : vector<1x1x64xf32> to vector<1x64xf32>
    %cst_207 = arith.constant dense<0.000000e+00> : vector<39xf32>
    %286 = vector.multi_reduction <add>, %281, %cst_207 [1] : vector<39x64xf32> to vector<39xf32>
    %287 = vector.shape_cast %286 : vector<39xf32> to vector<39x1xf32>
    %cst_208 = arith.constant 6.400000e+01 : f32
    %288 = vector.broadcast %cst_208 : f32 to vector<39x1xf32>
    %289 = arith.divf %287, %288 : vector<39x1xf32>
    %290 = vector.broadcast %289 : vector<39x1xf32> to vector<39x64xf32>
    %291 = arith.subf %281, %290 : vector<39x64xf32>
    %292 = arith.mulf %291, %291 : vector<39x64xf32>
    %cst_209 = arith.constant dense<0.000000e+00> : vector<39xf32>
    %293 = vector.multi_reduction <add>, %292, %cst_209 [1] : vector<39x64xf32> to vector<39xf32>
    %294 = vector.shape_cast %293 : vector<39xf32> to vector<39x1xf32>
    %cst_210 = arith.constant 6.400000e+01 : f32
    %295 = vector.broadcast %cst_210 : f32 to vector<39x1xf32>
    %296 = arith.divf %294, %295 : vector<39x1xf32>
    %cst_211 = arith.constant 9.99999974E-6 : f32
    %297 = vector.broadcast %cst_211 : f32 to vector<39x1xf32>
    %298 = arith.addf %296, %297 : vector<39x1xf32>
    %299 = math.rsqrt %298 : vector<39x1xf32>
    %300 = vector.broadcast %299 : vector<39x1xf32> to vector<39x64xf32>
    %301 = arith.mulf %291, %300 : vector<39x64xf32>
    %302 = vector.broadcast %283 : vector<1x64xf32> to vector<39x64xf32>
    %303 = arith.mulf %301, %302 : vector<39x64xf32>
    %304 = vector.broadcast %285 : vector<1x64xf32> to vector<39x64xf32>
    %305 = arith.addf %303, %304 : vector<39x64xf32>
    %c1_212 = arith.constant 1 : index
    %c0_213 = arith.constant 0 : index
    %c0_214 = arith.constant 0 : index
    %c0_215 = arith.constant 0 : index
    %306 = vector.load %arg24[%c1_212, %c0_213, %c0_214, %c0_215] : memref<3x1x39x64xf32, #tpu.memory_space<vmem>>, vector<1x1x39x64xf32>
    %307 = vector.shape_cast %306 : vector<1x1x39x64xf32> to vector<39x64xf32>
    %308 = vector.shape_cast %305 : vector<39x64xf32> to vector<1x1x39x64xf32>
    tpu.vector_store %arg24[%c1_212, %c0_213, %c0_214, %c0_215], %308 {strides = array<i32>} : memref<3x1x39x64xf32, #tpu.memory_space<vmem>>, vector<1x1x39x64xf32>,
    %309 = arith.truncf %305 : vector<39x64xf32> to vector<39x64xbf16>
    %c1_216 = arith.constant 1 : index
    %c0_217 = arith.constant 0 : index
    %c0_218 = arith.constant 0 : index
    %310 = vector.load %arg15[%c1_216, %c0_217, %c0_218] : memref<2x1x64xf32, #tpu.memory_space<vmem>>, vector<1x1x64xf32>
    %311 = vector.shape_cast %310 : vector<1x1x64xf32> to vector<1x64xf32>
    %312 = vector.broadcast %311 : vector<1x64xf32> to vector<39x64xf32>
    %313 = arith.addf %305, %312 : vector<39x64xf32>
    %c1_219 = arith.constant 1 : index
    %c0_220 = arith.constant 0 : index
    %c0_221 = arith.constant 0 : index
    %c0_222 = arith.constant 0 : index
    %314 = vector.load %arg8[%c1_219, %c0_220, %c0_221, %c0_222] : memref<2x4x64x16xbf16, #tpu.memory_space<vmem>>, vector<1x1x64x16xbf16>
    %315 = vector.shape_cast %314 : vector<1x1x64x16xbf16> to vector<64x16xbf16>
    %cst_223 = arith.constant dense<0.000000e+00> : vector<39x16xf32>
    %316 = tpu.matmul %309, %315, %cst_223 {dimension_numbers = #tpu.dot_dimension_numbers<[1], [0], [0], [1], [0, 0, 1, 1], [], []>} : vector<39x64xbf16>, vector<64x16xbf16>, vector<39x16xf32> -> vector<39x16xf32>
    %c1_224 = arith.constant 1 : index
    %c0_225 = arith.constant 0 : index
    %c0_226 = arith.constant 0 : index
    %c0_227 = arith.constant 0 : index
    %317 = vector.load %arg9[%c1_224, %c0_225, %c0_226, %c0_227] : memref<2x4x1x16xf32, #tpu.memory_space<vmem>>, vector<1x1x1x16xf32>
    %318 = vector.shape_cast %317 : vector<1x1x1x16xf32> to vector<1x16xf32>
    %319 = vector.broadcast %318 : vector<1x16xf32> to vector<39x16xf32>
    %320 = arith.addf %316, %319 : vector<39x16xf32>
    %c1_228 = arith.constant 1 : index
    %c0_229 = arith.constant 0 : index
    %c0_230 = arith.constant 0 : index
    %c0_231 = arith.constant 0 : index
    %321 = vector.load %arg10[%c1_228, %c0_229, %c0_230, %c0_231] : memref<2x4x64x16xbf16, #tpu.memory_space<vmem>>, vector<1x1x64x16xbf16>
    %322 = vector.shape_cast %321 : vector<1x1x64x16xbf16> to vector<64x16xbf16>
    %cst_232 = arith.constant dense<0.000000e+00> : vector<39x16xf32>
    %323 = tpu.matmul %309, %322, %cst_232 {dimension_numbers = #tpu.dot_dimension_numbers<[1], [0], [0], [1], [0, 0, 1, 1], [], []>} : vector<39x64xbf16>, vector<64x16xbf16>, vector<39x16xf32> -> vector<39x16xf32>
    %c1_233 = arith.constant 1 : index
    %c0_234 = arith.constant 0 : index
    %c0_235 = arith.constant 0 : index
    %c0_236 = arith.constant 0 : index
    %324 = vector.load %arg11[%c1_233, %c0_234, %c0_235, %c0_236] : memref<2x4x1x16xf32, #tpu.memory_space<vmem>>, vector<1x1x1x16xf32>
    %325 = vector.shape_cast %324 : vector<1x1x1x16xf32> to vector<1x16xf32>
    %326 = vector.broadcast %325 : vector<1x16xf32> to vector<39x16xf32>
    %327 = arith.addf %323, %326 : vector<39x16xf32>
    %c1_237 = arith.constant 1 : index
    %c0_238 = arith.constant 0 : index
    %c0_239 = arith.constant 0 : index
    %c0_240 = arith.constant 0 : index
    %328 = vector.load %arg12[%c1_237, %c0_238, %c0_239, %c0_240] : memref<2x4x64x16xbf16, #tpu.memory_space<vmem>>, vector<1x1x64x16xbf16>
    %329 = vector.shape_cast %328 : vector<1x1x64x16xbf16> to vector<64x16xbf16>
    %cst_241 = arith.constant dense<0.000000e+00> : vector<39x16xf32>
    %330 = tpu.matmul %309, %329, %cst_241 {dimension_numbers = #tpu.dot_dimension_numbers<[1], [0], [0], [1], [0, 0, 1, 1], [], []>} : vector<39x64xbf16>, vector<64x16xbf16>, vector<39x16xf32> -> vector<39x16xf32>
    %c1_242 = arith.constant 1 : index
    %c0_243 = arith.constant 0 : index
    %c0_244 = arith.constant 0 : index
    %c0_245 = arith.constant 0 : index
    %331 = vector.load %arg13[%c1_242, %c0_243, %c0_244, %c0_245] : memref<2x4x1x16xf32, #tpu.memory_space<vmem>>, vector<1x1x1x16xf32>
    %332 = vector.shape_cast %331 : vector<1x1x1x16xf32> to vector<1x16xf32>
    %333 = vector.broadcast %332 : vector<1x16xf32> to vector<39x16xf32>
    %334 = arith.addf %330, %333 : vector<39x16xf32>
    %335 = arith.truncf %320 : vector<39x16xf32> to vector<39x16xbf16>
    %336 = arith.truncf %327 : vector<39x16xf32> to vector<39x16xbf16>
    %cst_246 = arith.constant dense<0.000000e+00> : vector<39x39xf32>
    %337 = tpu.matmul %335, %336, %cst_246 {dimension_numbers = #tpu.dot_dimension_numbers<[1], [1], [0], [0], [0, 0, 1, 0], [], []>} : vector<39x16xbf16>, vector<39x16xbf16>, vector<39x39xf32> -> vector<39x39xf32>
    %cst_247 = arith.constant dense<0xFF800000> : vector<39xf32>
    %338 = vector.multi_reduction <maximumf>, %337, %cst_247 [1] : vector<39x39xf32> to vector<39xf32>
    %339 = vector.shape_cast %338 : vector<39xf32> to vector<39x1xf32>
    %340 = vector.broadcast %339 : vector<39x1xf32> to vector<39x39xf32>
    %341 = arith.subf %337, %340 : vector<39x39xf32>
    %342 = math.exp %341 : vector<39x39xf32>
    %cst_248 = arith.constant dense<0.000000e+00> : vector<39xf32>
    %343 = vector.multi_reduction <add>, %342, %cst_248 [1] : vector<39x39xf32> to vector<39xf32>
    %344 = vector.shape_cast %343 : vector<39xf32> to vector<39x1xf32>
    %345 = tpu.reciprocal %344 {approx = true} : vector<39x1xf32> -> vector<39x1xf32>
    %346 = vector.broadcast %345 : vector<39x1xf32> to vector<39x39xf32>
    %347 = arith.mulf %342, %346 : vector<39x39xf32>
    %348 = arith.truncf %347 : vector<39x39xf32> to vector<39x39xbf16>
    %349 = arith.truncf %334 : vector<39x16xf32> to vector<39x16xbf16>
    %cst_249 = arith.constant dense<0.000000e+00> : vector<39x16xf32>
    %350 = tpu.matmul %348, %349, %cst_249 {dimension_numbers = #tpu.dot_dimension_numbers<[1], [0], [0], [1], [0, 0, 1, 1], [], []>} : vector<39x39xbf16>, vector<39x16xbf16>, vector<39x16xf32> -> vector<39x16xf32>
    %351 = arith.truncf %350 : vector<39x16xf32> to vector<39x16xbf16>
    %c1_250 = arith.constant 1 : index
    %c0_251 = arith.constant 0 : index
    %c0_252 = arith.constant 0 : index
    %c0_253 = arith.constant 0 : index
    %352 = vector.load %arg14[%c1_250, %c0_251, %c0_252, %c0_253] : memref<2x4x16x64xbf16, #tpu.memory_space<vmem>>, vector<1x1x16x64xbf16>
    %353 = vector.shape_cast %352 : vector<1x1x16x64xbf16> to vector<16x64xbf16>
    %cst_254 = arith.constant dense<0.000000e+00> : vector<39x64xf32>
    %354 = tpu.matmul %351, %353, %cst_254 {dimension_numbers = #tpu.dot_dimension_numbers<[1], [0], [0], [1], [0, 0, 1, 1], [], []>} : vector<39x16xbf16>, vector<16x64xbf16>, vector<39x64xf32> -> vector<39x64xf32>
    %355 = arith.addf %313, %354 : vector<39x64xf32>
    %c1_255 = arith.constant 1 : index
    %c1_256 = arith.constant 1 : index
    %c0_257 = arith.constant 0 : index
    %c0_258 = arith.constant 0 : index
    %356 = vector.load %arg8[%c1_255, %c1_256, %c0_257, %c0_258] : memref<2x4x64x16xbf16, #tpu.memory_space<vmem>>, vector<1x1x64x16xbf16>
    %357 = vector.shape_cast %356 : vector<1x1x64x16xbf16> to vector<64x16xbf16>
    %cst_259 = arith.constant dense<0.000000e+00> : vector<39x16xf32>
    %358 = tpu.matmul %309, %357, %cst_259 {dimension_numbers = #tpu.dot_dimension_numbers<[1], [0], [0], [1], [0, 0, 1, 1], [], []>} : vector<39x64xbf16>, vector<64x16xbf16>, vector<39x16xf32> -> vector<39x16xf32>
    %c1_260 = arith.constant 1 : index
    %c1_261 = arith.constant 1 : index
    %c0_262 = arith.constant 0 : index
    %c0_263 = arith.constant 0 : index
    %359 = vector.load %arg9[%c1_260, %c1_261, %c0_262, %c0_263] : memref<2x4x1x16xf32, #tpu.memory_space<vmem>>, vector<1x1x1x16xf32>
    %360 = vector.shape_cast %359 : vector<1x1x1x16xf32> to vector<1x16xf32>
    %361 = vector.broadcast %360 : vector<1x16xf32> to vector<39x16xf32>
    %362 = arith.addf %358, %361 : vector<39x16xf32>
    %c1_264 = arith.constant 1 : index
    %c1_265 = arith.constant 1 : index
    %c0_266 = arith.constant 0 : index
    %c0_267 = arith.constant 0 : index
    %363 = vector.load %arg10[%c1_264, %c1_265, %c0_266, %c0_267] : memref<2x4x64x16xbf16, #tpu.memory_space<vmem>>, vector<1x1x64x16xbf16>
    %364 = vector.shape_cast %363 : vector<1x1x64x16xbf16> to vector<64x16xbf16>
    %cst_268 = arith.constant dense<0.000000e+00> : vector<39x16xf32>
    %365 = tpu.matmul %309, %364, %cst_268 {dimension_numbers = #tpu.dot_dimension_numbers<[1], [0], [0], [1], [0, 0, 1, 1], [], []>} : vector<39x64xbf16>, vector<64x16xbf16>, vector<39x16xf32> -> vector<39x16xf32>
    %c1_269 = arith.constant 1 : index
    %c1_270 = arith.constant 1 : index
    %c0_271 = arith.constant 0 : index
    %c0_272 = arith.constant 0 : index
    %366 = vector.load %arg11[%c1_269, %c1_270, %c0_271, %c0_272] : memref<2x4x1x16xf32, #tpu.memory_space<vmem>>, vector<1x1x1x16xf32>
    %367 = vector.shape_cast %366 : vector<1x1x1x16xf32> to vector<1x16xf32>
    %368 = vector.broadcast %367 : vector<1x16xf32> to vector<39x16xf32>
    %369 = arith.addf %365, %368 : vector<39x16xf32>
    %c1_273 = arith.constant 1 : index
    %c1_274 = arith.constant 1 : index
    %c0_275 = arith.constant 0 : index
    %c0_276 = arith.constant 0 : index
    %370 = vector.load %arg12[%c1_273, %c1_274, %c0_275, %c0_276] : memref<2x4x64x16xbf16, #tpu.memory_space<vmem>>, vector<1x1x64x16xbf16>
    %371 = vector.shape_cast %370 : vector<1x1x64x16xbf16> to vector<64x16xbf16>
    %cst_277 = arith.constant dense<0.000000e+00> : vector<39x16xf32>
    %372 = tpu.matmul %309, %371, %cst_277 {dimension_numbers = #tpu.dot_dimension_numbers<[1], [0], [0], [1], [0, 0, 1, 1], [], []>} : vector<39x64xbf16>, vector<64x16xbf16>, vector<39x16xf32> -> vector<39x16xf32>
    %c1_278 = arith.constant 1 : index
    %c1_279 = arith.constant 1 : index
    %c0_280 = arith.constant 0 : index
    %c0_281 = arith.constant 0 : index
    %373 = vector.load %arg13[%c1_278, %c1_279, %c0_280, %c0_281] : memref<2x4x1x16xf32, #tpu.memory_space<vmem>>, vector<1x1x1x16xf32>
    %374 = vector.shape_cast %373 : vector<1x1x1x16xf32> to vector<1x16xf32>
    %375 = vector.broadcast %374 : vector<1x16xf32> to vector<39x16xf32>
    %376 = arith.addf %372, %375 : vector<39x16xf32>
    %377 = arith.truncf %362 : vector<39x16xf32> to vector<39x16xbf16>
    %378 = arith.truncf %369 : vector<39x16xf32> to vector<39x16xbf16>
    %cst_282 = arith.constant dense<0.000000e+00> : vector<39x39xf32>
    %379 = tpu.matmul %377, %378, %cst_282 {dimension_numbers = #tpu.dot_dimension_numbers<[1], [1], [0], [0], [0, 0, 1, 0], [], []>} : vector<39x16xbf16>, vector<39x16xbf16>, vector<39x39xf32> -> vector<39x39xf32>
    %cst_283 = arith.constant dense<0xFF800000> : vector<39xf32>
    %380 = vector.multi_reduction <maximumf>, %379, %cst_283 [1] : vector<39x39xf32> to vector<39xf32>
    %381 = vector.shape_cast %380 : vector<39xf32> to vector<39x1xf32>
    %382 = vector.broadcast %381 : vector<39x1xf32> to vector<39x39xf32>
    %383 = arith.subf %379, %382 : vector<39x39xf32>
    %384 = math.exp %383 : vector<39x39xf32>
    %cst_284 = arith.constant dense<0.000000e+00> : vector<39xf32>
    %385 = vector.multi_reduction <add>, %384, %cst_284 [1] : vector<39x39xf32> to vector<39xf32>
    %386 = vector.shape_cast %385 : vector<39xf32> to vector<39x1xf32>
    %387 = tpu.reciprocal %386 {approx = true} : vector<39x1xf32> -> vector<39x1xf32>
    %388 = vector.broadcast %387 : vector<39x1xf32> to vector<39x39xf32>
    %389 = arith.mulf %384, %388 : vector<39x39xf32>
    %390 = arith.truncf %389 : vector<39x39xf32> to vector<39x39xbf16>
    %391 = arith.truncf %376 : vector<39x16xf32> to vector<39x16xbf16>
    %cst_285 = arith.constant dense<0.000000e+00> : vector<39x16xf32>
    %392 = tpu.matmul %390, %391, %cst_285 {dimension_numbers = #tpu.dot_dimension_numbers<[1], [0], [0], [1], [0, 0, 1, 1], [], []>} : vector<39x39xbf16>, vector<39x16xbf16>, vector<39x16xf32> -> vector<39x16xf32>
    %393 = arith.truncf %392 : vector<39x16xf32> to vector<39x16xbf16>
    %c1_286 = arith.constant 1 : index
    %c1_287 = arith.constant 1 : index
    %c0_288 = arith.constant 0 : index
    %c0_289 = arith.constant 0 : index
    %394 = vector.load %arg14[%c1_286, %c1_287, %c0_288, %c0_289] : memref<2x4x16x64xbf16, #tpu.memory_space<vmem>>, vector<1x1x16x64xbf16>
    %395 = vector.shape_cast %394 : vector<1x1x16x64xbf16> to vector<16x64xbf16>
    %cst_290 = arith.constant dense<0.000000e+00> : vector<39x64xf32>
    %396 = tpu.matmul %393, %395, %cst_290 {dimension_numbers = #tpu.dot_dimension_numbers<[1], [0], [0], [1], [0, 0, 1, 1], [], []>} : vector<39x16xbf16>, vector<16x64xbf16>, vector<39x64xf32> -> vector<39x64xf32>
    %397 = arith.addf %355, %396 : vector<39x64xf32>
    %c1_291 = arith.constant 1 : index
    %c2_292 = arith.constant 2 : index
    %c0_293 = arith.constant 0 : index
    %c0_294 = arith.constant 0 : index
    %398 = vector.load %arg8[%c1_291, %c2_292, %c0_293, %c0_294] : memref<2x4x64x16xbf16, #tpu.memory_space<vmem>>, vector<1x1x64x16xbf16>
    %399 = vector.shape_cast %398 : vector<1x1x64x16xbf16> to vector<64x16xbf16>
    %cst_295 = arith.constant dense<0.000000e+00> : vector<39x16xf32>
    %400 = tpu.matmul %309, %399, %cst_295 {dimension_numbers = #tpu.dot_dimension_numbers<[1], [0], [0], [1], [0, 0, 1, 1], [], []>} : vector<39x64xbf16>, vector<64x16xbf16>, vector<39x16xf32> -> vector<39x16xf32>
    %c1_296 = arith.constant 1 : index
    %c2_297 = arith.constant 2 : index
    %c0_298 = arith.constant 0 : index
    %c0_299 = arith.constant 0 : index
    %401 = vector.load %arg9[%c1_296, %c2_297, %c0_298, %c0_299] : memref<2x4x1x16xf32, #tpu.memory_space<vmem>>, vector<1x1x1x16xf32>
    %402 = vector.shape_cast %401 : vector<1x1x1x16xf32> to vector<1x16xf32>
    %403 = vector.broadcast %402 : vector<1x16xf32> to vector<39x16xf32>
    %404 = arith.addf %400, %403 : vector<39x16xf32>
    %c1_300 = arith.constant 1 : index
    %c2_301 = arith.constant 2 : index
    %c0_302 = arith.constant 0 : index
    %c0_303 = arith.constant 0 : index
    %405 = vector.load %arg10[%c1_300, %c2_301, %c0_302, %c0_303] : memref<2x4x64x16xbf16, #tpu.memory_space<vmem>>, vector<1x1x64x16xbf16>
    %406 = vector.shape_cast %405 : vector<1x1x64x16xbf16> to vector<64x16xbf16>
    %cst_304 = arith.constant dense<0.000000e+00> : vector<39x16xf32>
    %407 = tpu.matmul %309, %406, %cst_304 {dimension_numbers = #tpu.dot_dimension_numbers<[1], [0], [0], [1], [0, 0, 1, 1], [], []>} : vector<39x64xbf16>, vector<64x16xbf16>, vector<39x16xf32> -> vector<39x16xf32>
    %c1_305 = arith.constant 1 : index
    %c2_306 = arith.constant 2 : index
    %c0_307 = arith.constant 0 : index
    %c0_308 = arith.constant 0 : index
    %408 = vector.load %arg11[%c1_305, %c2_306, %c0_307, %c0_308] : memref<2x4x1x16xf32, #tpu.memory_space<vmem>>, vector<1x1x1x16xf32>
    %409 = vector.shape_cast %408 : vector<1x1x1x16xf32> to vector<1x16xf32>
    %410 = vector.broadcast %409 : vector<1x16xf32> to vector<39x16xf32>
    %411 = arith.addf %407, %410 : vector<39x16xf32>
    %c1_309 = arith.constant 1 : index
    %c2_310 = arith.constant 2 : index
    %c0_311 = arith.constant 0 : index
    %c0_312 = arith.constant 0 : index
    %412 = vector.load %arg12[%c1_309, %c2_310, %c0_311, %c0_312] : memref<2x4x64x16xbf16, #tpu.memory_space<vmem>>, vector<1x1x64x16xbf16>
    %413 = vector.shape_cast %412 : vector<1x1x64x16xbf16> to vector<64x16xbf16>
    %cst_313 = arith.constant dense<0.000000e+00> : vector<39x16xf32>
    %414 = tpu.matmul %309, %413, %cst_313 {dimension_numbers = #tpu.dot_dimension_numbers<[1], [0], [0], [1], [0, 0, 1, 1], [], []>} : vector<39x64xbf16>, vector<64x16xbf16>, vector<39x16xf32> -> vector<39x16xf32>
    %c1_314 = arith.constant 1 : index
    %c2_315 = arith.constant 2 : index
    %c0_316 = arith.constant 0 : index
    %c0_317 = arith.constant 0 : index
    %415 = vector.load %arg13[%c1_314, %c2_315, %c0_316, %c0_317] : memref<2x4x1x16xf32, #tpu.memory_space<vmem>>, vector<1x1x1x16xf32>
    %416 = vector.shape_cast %415 : vector<1x1x1x16xf32> to vector<1x16xf32>
    %417 = vector.broadcast %416 : vector<1x16xf32> to vector<39x16xf32>
    %418 = arith.addf %414, %417 : vector<39x16xf32>
    %419 = arith.truncf %404 : vector<39x16xf32> to vector<39x16xbf16>
    %420 = arith.truncf %411 : vector<39x16xf32> to vector<39x16xbf16>
    %cst_318 = arith.constant dense<0.000000e+00> : vector<39x39xf32>
    %421 = tpu.matmul %419, %420, %cst_318 {dimension_numbers = #tpu.dot_dimension_numbers<[1], [1], [0], [0], [0, 0, 1, 0], [], []>} : vector<39x16xbf16>, vector<39x16xbf16>, vector<39x39xf32> -> vector<39x39xf32>
    %cst_319 = arith.constant dense<0xFF800000> : vector<39xf32>
    %422 = vector.multi_reduction <maximumf>, %421, %cst_319 [1] : vector<39x39xf32> to vector<39xf32>
    %423 = vector.shape_cast %422 : vector<39xf32> to vector<39x1xf32>
    %424 = vector.broadcast %423 : vector<39x1xf32> to vector<39x39xf32>
    %425 = arith.subf %421, %424 : vector<39x39xf32>
    %426 = math.exp %425 : vector<39x39xf32>
    %cst_320 = arith.constant dense<0.000000e+00> : vector<39xf32>
    %427 = vector.multi_reduction <add>, %426, %cst_320 [1] : vector<39x39xf32> to vector<39xf32>
    %428 = vector.shape_cast %427 : vector<39xf32> to vector<39x1xf32>
    %429 = tpu.reciprocal %428 {approx = true} : vector<39x1xf32> -> vector<39x1xf32>
    %430 = vector.broadcast %429 : vector<39x1xf32> to vector<39x39xf32>
    %431 = arith.mulf %426, %430 : vector<39x39xf32>
    %432 = arith.truncf %431 : vector<39x39xf32> to vector<39x39xbf16>
    %433 = arith.truncf %418 : vector<39x16xf32> to vector<39x16xbf16>
    %cst_321 = arith.constant dense<0.000000e+00> : vector<39x16xf32>
    %434 = tpu.matmul %432, %433, %cst_321 {dimension_numbers = #tpu.dot_dimension_numbers<[1], [0], [0], [1], [0, 0, 1, 1], [], []>} : vector<39x39xbf16>, vector<39x16xbf16>, vector<39x16xf32> -> vector<39x16xf32>
    %435 = arith.truncf %434 : vector<39x16xf32> to vector<39x16xbf16>
    %c1_322 = arith.constant 1 : index
    %c2_323 = arith.constant 2 : index
    %c0_324 = arith.constant 0 : index
    %c0_325 = arith.constant 0 : index
    %436 = vector.load %arg14[%c1_322, %c2_323, %c0_324, %c0_325] : memref<2x4x16x64xbf16, #tpu.memory_space<vmem>>, vector<1x1x16x64xbf16>
    %437 = vector.shape_cast %436 : vector<1x1x16x64xbf16> to vector<16x64xbf16>
    %cst_326 = arith.constant dense<0.000000e+00> : vector<39x64xf32>
    %438 = tpu.matmul %435, %437, %cst_326 {dimension_numbers = #tpu.dot_dimension_numbers<[1], [0], [0], [1], [0, 0, 1, 1], [], []>} : vector<39x16xbf16>, vector<16x64xbf16>, vector<39x64xf32> -> vector<39x64xf32>
    %439 = arith.addf %397, %438 : vector<39x64xf32>
    %c1_327 = arith.constant 1 : index
    %c3_328 = arith.constant 3 : index
    %c0_329 = arith.constant 0 : index
    %c0_330 = arith.constant 0 : index
    %440 = vector.load %arg8[%c1_327, %c3_328, %c0_329, %c0_330] : memref<2x4x64x16xbf16, #tpu.memory_space<vmem>>, vector<1x1x64x16xbf16>
    %441 = vector.shape_cast %440 : vector<1x1x64x16xbf16> to vector<64x16xbf16>
    %cst_331 = arith.constant dense<0.000000e+00> : vector<39x16xf32>
    %442 = tpu.matmul %309, %441, %cst_331 {dimension_numbers = #tpu.dot_dimension_numbers<[1], [0], [0], [1], [0, 0, 1, 1], [], []>} : vector<39x64xbf16>, vector<64x16xbf16>, vector<39x16xf32> -> vector<39x16xf32>
    %c1_332 = arith.constant 1 : index
    %c3_333 = arith.constant 3 : index
    %c0_334 = arith.constant 0 : index
    %c0_335 = arith.constant 0 : index
    %443 = vector.load %arg9[%c1_332, %c3_333, %c0_334, %c0_335] : memref<2x4x1x16xf32, #tpu.memory_space<vmem>>, vector<1x1x1x16xf32>
    %444 = vector.shape_cast %443 : vector<1x1x1x16xf32> to vector<1x16xf32>
    %445 = vector.broadcast %444 : vector<1x16xf32> to vector<39x16xf32>
    %446 = arith.addf %442, %445 : vector<39x16xf32>
    %c1_336 = arith.constant 1 : index
    %c3_337 = arith.constant 3 : index
    %c0_338 = arith.constant 0 : index
    %c0_339 = arith.constant 0 : index
    %447 = vector.load %arg10[%c1_336, %c3_337, %c0_338, %c0_339] : memref<2x4x64x16xbf16, #tpu.memory_space<vmem>>, vector<1x1x64x16xbf16>
    %448 = vector.shape_cast %447 : vector<1x1x64x16xbf16> to vector<64x16xbf16>
    %cst_340 = arith.constant dense<0.000000e+00> : vector<39x16xf32>
    %449 = tpu.matmul %309, %448, %cst_340 {dimension_numbers = #tpu.dot_dimension_numbers<[1], [0], [0], [1], [0, 0, 1, 1], [], []>} : vector<39x64xbf16>, vector<64x16xbf16>, vector<39x16xf32> -> vector<39x16xf32>
    %c1_341 = arith.constant 1 : index
    %c3_342 = arith.constant 3 : index
    %c0_343 = arith.constant 0 : index
    %c0_344 = arith.constant 0 : index
    %450 = vector.load %arg11[%c1_341, %c3_342, %c0_343, %c0_344] : memref<2x4x1x16xf32, #tpu.memory_space<vmem>>, vector<1x1x1x16xf32>
    %451 = vector.shape_cast %450 : vector<1x1x1x16xf32> to vector<1x16xf32>
    %452 = vector.broadcast %451 : vector<1x16xf32> to vector<39x16xf32>
    %453 = arith.addf %449, %452 : vector<39x16xf32>
    %c1_345 = arith.constant 1 : index
    %c3_346 = arith.constant 3 : index
    %c0_347 = arith.constant 0 : index
    %c0_348 = arith.constant 0 : index
    %454 = vector.load %arg12[%c1_345, %c3_346, %c0_347, %c0_348] : memref<2x4x64x16xbf16, #tpu.memory_space<vmem>>, vector<1x1x64x16xbf16>
    %455 = vector.shape_cast %454 : vector<1x1x64x16xbf16> to vector<64x16xbf16>
    %cst_349 = arith.constant dense<0.000000e+00> : vector<39x16xf32>
    %456 = tpu.matmul %309, %455, %cst_349 {dimension_numbers = #tpu.dot_dimension_numbers<[1], [0], [0], [1], [0, 0, 1, 1], [], []>} : vector<39x64xbf16>, vector<64x16xbf16>, vector<39x16xf32> -> vector<39x16xf32>
    %c1_350 = arith.constant 1 : index
    %c3_351 = arith.constant 3 : index
    %c0_352 = arith.constant 0 : index
    %c0_353 = arith.constant 0 : index
    %457 = vector.load %arg13[%c1_350, %c3_351, %c0_352, %c0_353] : memref<2x4x1x16xf32, #tpu.memory_space<vmem>>, vector<1x1x1x16xf32>
    %458 = vector.shape_cast %457 : vector<1x1x1x16xf32> to vector<1x16xf32>
    %459 = vector.broadcast %458 : vector<1x16xf32> to vector<39x16xf32>
    %460 = arith.addf %456, %459 : vector<39x16xf32>
    %461 = arith.truncf %446 : vector<39x16xf32> to vector<39x16xbf16>
    %462 = arith.truncf %453 : vector<39x16xf32> to vector<39x16xbf16>
    %cst_354 = arith.constant dense<0.000000e+00> : vector<39x39xf32>
    %463 = tpu.matmul %461, %462, %cst_354 {dimension_numbers = #tpu.dot_dimension_numbers<[1], [1], [0], [0], [0, 0, 1, 0], [], []>} : vector<39x16xbf16>, vector<39x16xbf16>, vector<39x39xf32> -> vector<39x39xf32>
    %cst_355 = arith.constant dense<0xFF800000> : vector<39xf32>
    %464 = vector.multi_reduction <maximumf>, %463, %cst_355 [1] : vector<39x39xf32> to vector<39xf32>
    %465 = vector.shape_cast %464 : vector<39xf32> to vector<39x1xf32>
    %466 = vector.broadcast %465 : vector<39x1xf32> to vector<39x39xf32>
    %467 = arith.subf %463, %466 : vector<39x39xf32>
    %468 = math.exp %467 : vector<39x39xf32>
    %cst_356 = arith.constant dense<0.000000e+00> : vector<39xf32>
    %469 = vector.multi_reduction <add>, %468, %cst_356 [1] : vector<39x39xf32> to vector<39xf32>
    %470 = vector.shape_cast %469 : vector<39xf32> to vector<39x1xf32>
    %471 = tpu.reciprocal %470 {approx = true} : vector<39x1xf32> -> vector<39x1xf32>
    %472 = vector.broadcast %471 : vector<39x1xf32> to vector<39x39xf32>
    %473 = arith.mulf %468, %472 : vector<39x39xf32>
    %474 = arith.truncf %473 : vector<39x39xf32> to vector<39x39xbf16>
    %475 = arith.truncf %460 : vector<39x16xf32> to vector<39x16xbf16>
    %cst_357 = arith.constant dense<0.000000e+00> : vector<39x16xf32>
    %476 = tpu.matmul %474, %475, %cst_357 {dimension_numbers = #tpu.dot_dimension_numbers<[1], [0], [0], [1], [0, 0, 1, 1], [], []>} : vector<39x39xbf16>, vector<39x16xbf16>, vector<39x16xf32> -> vector<39x16xf32>
    %477 = arith.truncf %476 : vector<39x16xf32> to vector<39x16xbf16>
    %c1_358 = arith.constant 1 : index
    %c3_359 = arith.constant 3 : index
    %c0_360 = arith.constant 0 : index
    %c0_361 = arith.constant 0 : index
    %478 = vector.load %arg14[%c1_358, %c3_359, %c0_360, %c0_361] : memref<2x4x16x64xbf16, #tpu.memory_space<vmem>>, vector<1x1x16x64xbf16>
    %479 = vector.shape_cast %478 : vector<1x1x16x64xbf16> to vector<16x64xbf16>
    %cst_362 = arith.constant dense<0.000000e+00> : vector<39x64xf32>
    %480 = tpu.matmul %477, %479, %cst_362 {dimension_numbers = #tpu.dot_dimension_numbers<[1], [0], [0], [1], [0, 0, 1, 1], [], []>} : vector<39x16xbf16>, vector<16x64xbf16>, vector<39x64xf32> -> vector<39x64xf32>
    %481 = arith.addf %439, %480 : vector<39x64xf32>
    %c1_363 = arith.constant 1 : index
    %c0_364 = arith.constant 0 : index
    %c0_365 = arith.constant 0 : index
    %482 = vector.load %arg16[%c1_363, %c0_364, %c0_365] : memref<2x1x64xf32, #tpu.memory_space<vmem>>, vector<1x1x64xf32>
    %483 = vector.shape_cast %482 : vector<1x1x64xf32> to vector<1x64xf32>
    %c1_366 = arith.constant 1 : index
    %c0_367 = arith.constant 0 : index
    %c0_368 = arith.constant 0 : index
    %484 = vector.load %arg17[%c1_366, %c0_367, %c0_368] : memref<2x1x64xf32, #tpu.memory_space<vmem>>, vector<1x1x64xf32>
    %485 = vector.shape_cast %484 : vector<1x1x64xf32> to vector<1x64xf32>
    %cst_369 = arith.constant dense<0.000000e+00> : vector<39xf32>
    %486 = vector.multi_reduction <add>, %481, %cst_369 [1] : vector<39x64xf32> to vector<39xf32>
    %487 = vector.shape_cast %486 : vector<39xf32> to vector<39x1xf32>
    %cst_370 = arith.constant 6.400000e+01 : f32
    %488 = vector.broadcast %cst_370 : f32 to vector<39x1xf32>
    %489 = arith.divf %487, %488 : vector<39x1xf32>
    %490 = vector.broadcast %489 : vector<39x1xf32> to vector<39x64xf32>
    %491 = arith.subf %481, %490 : vector<39x64xf32>
    %492 = arith.mulf %491, %491 : vector<39x64xf32>
    %cst_371 = arith.constant dense<0.000000e+00> : vector<39xf32>
    %493 = vector.multi_reduction <add>, %492, %cst_371 [1] : vector<39x64xf32> to vector<39xf32>
    %494 = vector.shape_cast %493 : vector<39xf32> to vector<39x1xf32>
    %cst_372 = arith.constant 6.400000e+01 : f32
    %495 = vector.broadcast %cst_372 : f32 to vector<39x1xf32>
    %496 = arith.divf %494, %495 : vector<39x1xf32>
    %cst_373 = arith.constant 9.99999974E-6 : f32
    %497 = vector.broadcast %cst_373 : f32 to vector<39x1xf32>
    %498 = arith.addf %496, %497 : vector<39x1xf32>
    %499 = math.rsqrt %498 : vector<39x1xf32>
    %500 = vector.broadcast %499 : vector<39x1xf32> to vector<39x64xf32>
    %501 = arith.mulf %491, %500 : vector<39x64xf32>
    %502 = vector.broadcast %483 : vector<1x64xf32> to vector<39x64xf32>
    %503 = arith.mulf %501, %502 : vector<39x64xf32>
    %504 = vector.broadcast %485 : vector<1x64xf32> to vector<39x64xf32>
    %505 = arith.addf %503, %504 : vector<39x64xf32>
    %506 = arith.truncf %505 : vector<39x64xf32> to vector<39x64xbf16>
    %c1_374 = arith.constant 1 : index
    %c0_375 = arith.constant 0 : index
    %c0_376 = arith.constant 0 : index
    %507 = vector.load %arg18[%c1_374, %c0_375, %c0_376] : memref<2x64x128xbf16, #tpu.memory_space<vmem>>, vector<1x64x128xbf16>
    %508 = vector.shape_cast %507 : vector<1x64x128xbf16> to vector<64x128xbf16>
    %cst_377 = arith.constant dense<0.000000e+00> : vector<39x128xf32>
    %509 = tpu.matmul %506, %508, %cst_377 {dimension_numbers = #tpu.dot_dimension_numbers<[1], [0], [0], [1], [0, 0, 1, 1], [], []>} : vector<39x64xbf16>, vector<64x128xbf16>, vector<39x128xf32> -> vector<39x128xf32>
    %c1_378 = arith.constant 1 : index
    %c0_379 = arith.constant 0 : index
    %c0_380 = arith.constant 0 : index
    %510 = vector.load %arg19[%c1_378, %c0_379, %c0_380] : memref<2x1x128xf32, #tpu.memory_space<vmem>>, vector<1x1x128xf32>
    %511 = vector.shape_cast %510 : vector<1x1x128xf32> to vector<1x128xf32>
    %512 = vector.broadcast %511 : vector<1x128xf32> to vector<39x128xf32>
    %513 = arith.addf %509, %512 : vector<39x128xf32>
    %514 = arith.mulf %513, %513 : vector<39x128xf32>
    %515 = arith.mulf %513, %514 : vector<39x128xf32>
    %cst_381 = arith.constant 4.471500e-02 : f32
    %516 = vector.broadcast %cst_381 : f32 to vector<39x128xf32>
    %517 = arith.mulf %516, %515 : vector<39x128xf32>
    %518 = arith.addf %513, %517 : vector<39x128xf32>
    %cst_382 = arith.constant 0.797884583 : f32
    %519 = vector.broadcast %cst_382 : f32 to vector<39x128xf32>
    %520 = arith.mulf %519, %518 : vector<39x128xf32>
    %521 = math.tanh %520 : vector<39x128xf32>
    %cst_383 = arith.constant 1.000000e+00 : f32
    %522 = vector.broadcast %cst_383 : f32 to vector<39x128xf32>
    %523 = arith.addf %522, %521 : vector<39x128xf32>
    %cst_384 = arith.constant 5.000000e-01 : f32
    %524 = vector.broadcast %cst_384 : f32 to vector<39x128xf32>
    %525 = arith.mulf %524, %523 : vector<39x128xf32>
    %526 = arith.mulf %513, %525 : vector<39x128xf32>
    %527 = arith.truncf %526 : vector<39x128xf32> to vector<39x128xbf16>
    %c1_385 = arith.constant 1 : index
    %c0_386 = arith.constant 0 : index
    %c0_387 = arith.constant 0 : index
    %528 = vector.load %arg20[%c1_385, %c0_386, %c0_387] : memref<2x128x64xbf16, #tpu.memory_space<vmem>>, vector<1x128x64xbf16>
    %529 = vector.shape_cast %528 : vector<1x128x64xbf16> to vector<128x64xbf16>
    %cst_388 = arith.constant dense<0.000000e+00> : vector<39x64xf32>
    %530 = tpu.matmul %527, %529, %cst_388 {dimension_numbers = #tpu.dot_dimension_numbers<[1], [0], [0], [1], [0, 0, 1, 1], [], []>} : vector<39x128xbf16>, vector<128x64xbf16>, vector<39x64xf32> -> vector<39x64xf32>
    %c1_389 = arith.constant 1 : index
    %c0_390 = arith.constant 0 : index
    %c0_391 = arith.constant 0 : index
    %531 = vector.load %arg21[%c1_389, %c0_390, %c0_391] : memref<2x1x64xf32, #tpu.memory_space<vmem>>, vector<1x1x64xf32>
    %532 = vector.shape_cast %531 : vector<1x1x64xf32> to vector<1x64xf32>
    %533 = vector.broadcast %532 : vector<1x64xf32> to vector<39x64xf32>
    %534 = arith.addf %530, %533 : vector<39x64xf32>
    %535 = arith.addf %505, %534 : vector<39x64xf32>
    %c1_392 = arith.constant 1 : index
    %c0_393 = arith.constant 0 : index
    %c0_394 = arith.constant 0 : index
    %536 = vector.load %arg22[%c1_392, %c0_393, %c0_394] : memref<2x1x64xf32, #tpu.memory_space<vmem>>, vector<1x1x64xf32>
    %537 = vector.shape_cast %536 : vector<1x1x64xf32> to vector<1x64xf32>
    %c1_395 = arith.constant 1 : index
    %c0_396 = arith.constant 0 : index
    %c0_397 = arith.constant 0 : index
    %538 = vector.load %arg23[%c1_395, %c0_396, %c0_397] : memref<2x1x64xf32, #tpu.memory_space<vmem>>, vector<1x1x64xf32>
    %539 = vector.shape_cast %538 : vector<1x1x64xf32> to vector<1x64xf32>
    %cst_398 = arith.constant dense<0.000000e+00> : vector<39xf32>
    %540 = vector.multi_reduction <add>, %535, %cst_398 [1] : vector<39x64xf32> to vector<39xf32>
    %541 = vector.shape_cast %540 : vector<39xf32> to vector<39x1xf32>
    %cst_399 = arith.constant 6.400000e+01 : f32
    %542 = vector.broadcast %cst_399 : f32 to vector<39x1xf32>
    %543 = arith.divf %541, %542 : vector<39x1xf32>
    %544 = vector.broadcast %543 : vector<39x1xf32> to vector<39x64xf32>
    %545 = arith.subf %535, %544 : vector<39x64xf32>
    %546 = arith.mulf %545, %545 : vector<39x64xf32>
    %cst_400 = arith.constant dense<0.000000e+00> : vector<39xf32>
    %547 = vector.multi_reduction <add>, %546, %cst_400 [1] : vector<39x64xf32> to vector<39xf32>
    %548 = vector.shape_cast %547 : vector<39xf32> to vector<39x1xf32>
    %cst_401 = arith.constant 6.400000e+01 : f32
    %549 = vector.broadcast %cst_401 : f32 to vector<39x1xf32>
    %550 = arith.divf %548, %549 : vector<39x1xf32>
    %cst_402 = arith.constant 9.99999974E-6 : f32
    %551 = vector.broadcast %cst_402 : f32 to vector<39x1xf32>
    %552 = arith.addf %550, %551 : vector<39x1xf32>
    %553 = math.rsqrt %552 : vector<39x1xf32>
    %554 = vector.broadcast %553 : vector<39x1xf32> to vector<39x64xf32>
    %555 = arith.mulf %545, %554 : vector<39x64xf32>
    %556 = vector.broadcast %537 : vector<1x64xf32> to vector<39x64xf32>
    %557 = arith.mulf %555, %556 : vector<39x64xf32>
    %558 = vector.broadcast %539 : vector<1x64xf32> to vector<39x64xf32>
    %559 = arith.addf %557, %558 : vector<39x64xf32>
    %c2_403 = arith.constant 2 : index
    %c0_404 = arith.constant 0 : index
    %c0_405 = arith.constant 0 : index
    %c0_406 = arith.constant 0 : index
    %560 = vector.load %arg24[%c2_403, %c0_404, %c0_405, %c0_406] : memref<3x1x39x64xf32, #tpu.memory_space<vmem>>, vector<1x1x39x64xf32>
    %561 = vector.shape_cast %560 : vector<1x1x39x64xf32> to vector<39x64xf32>
    %562 = vector.shape_cast %559 : vector<39x64xf32> to vector<1x1x39x64xf32>
    tpu.vector_store %arg24[%c2_403, %c0_404, %c0_405, %c0_406], %562 {strides = array<i32>} : memref<3x1x39x64xf32, #tpu.memory_space<vmem>>, vector<1x1x39x64xf32>,
    return
  }
  func.func @transform_0(%arg0: i32) -> (i32, i32, i32) {
    %c0_i32 = arith.constant 0 : i32
    %c0_i32_0 = arith.constant 0 : i32
    %c0_i32_1 = arith.constant 0 : i32
    return %arg0, %c0_i32, %c0_i32_0 : i32, i32, i32
  }
  func.func @transform_1(%arg0: i32) -> (i32, i32) {
    %c0_i32 = arith.constant 0 : i32
    %c0_i32_0 = arith.constant 0 : i32
    %c0_i32_1 = arith.constant 0 : i32
    return %c0_i32, %c0_i32_0 : i32, i32
  }
  func.func @transform_2(%arg0: i32) -> (i32, i32) {
    %c0_i32 = arith.constant 0 : i32
    %c0_i32_0 = arith.constant 0 : i32
    %c0_i32_1 = arith.constant 0 : i32
    return %c0_i32, %c0_i32_0 : i32, i32
  }
  func.func @transform_3(%arg0: i32) -> (i32, i32) {
    %c0_i32 = arith.constant 0 : i32
    %c0_i32_0 = arith.constant 0 : i32
    %c0_i32_1 = arith.constant 0 : i32
    return %c0_i32, %c0_i32_0 : i32, i32
  }
  func.func @transform_4(%arg0: i32) -> (i32, i32) {
    %c0_i32 = arith.constant 0 : i32
    %c0_i32_0 = arith.constant 0 : i32
    %c0_i32_1 = arith.constant 0 : i32
    return %c0_i32, %c0_i32_0 : i32, i32
  }
  func.func @transform_5(%arg0: i32) -> (i32, i32) {
    %c0_i32 = arith.constant 0 : i32
    %c0_i32_0 = arith.constant 0 : i32
    %c0_i32_1 = arith.constant 0 : i32
    return %c0_i32, %c0_i32_0 : i32, i32
  }
  func.func @transform_6(%arg0: i32) -> (i32, i32) {
    %c0_i32 = arith.constant 0 : i32
    %c0_i32_0 = arith.constant 0 : i32
    %c0_i32_1 = arith.constant 0 : i32
    return %c0_i32, %c0_i32_0 : i32, i32
  }
  func.func @transform_7(%arg0: i32) -> (i32, i32, i32, i32) {
    %c0_i32 = arith.constant 0 : i32
    %c0_i32_0 = arith.constant 0 : i32
    %c0_i32_1 = arith.constant 0 : i32
    %c0_i32_2 = arith.constant 0 : i32
    %c0_i32_3 = arith.constant 0 : i32
    return %c0_i32, %c0_i32_0, %c0_i32_1, %c0_i32_2 : i32, i32, i32, i32
  }
  func.func @transform_8(%arg0: i32) -> (i32, i32, i32, i32) {
    %c0_i32 = arith.constant 0 : i32
    %c0_i32_0 = arith.constant 0 : i32
    %c0_i32_1 = arith.constant 0 : i32
    %c0_i32_2 = arith.constant 0 : i32
    %c0_i32_3 = arith.constant 0 : i32
    return %c0_i32, %c0_i32_0, %c0_i32_1, %c0_i32_2 : i32, i32, i32, i32
  }
  func.func @transform_9(%arg0: i32) -> (i32, i32, i32, i32) {
    %c0_i32 = arith.constant 0 : i32
    %c0_i32_0 = arith.constant 0 : i32
    %c0_i32_1 = arith.constant 0 : i32
    %c0_i32_2 = arith.constant 0 : i32
    %c0_i32_3 = arith.constant 0 : i32
    return %c0_i32, %c0_i32_0, %c0_i32_1, %c0_i32_2 : i32, i32, i32, i32
  }
  func.func @transform_10(%arg0: i32) -> (i32, i32, i32, i32) {
    %c0_i32 = arith.constant 0 : i32
    %c0_i32_0 = arith.constant 0 : i32
    %c0_i32_1 = arith.constant 0 : i32
    %c0_i32_2 = arith.constant 0 : i32
    %c0_i32_3 = arith.constant 0 : i32
    return %c0_i32, %c0_i32_0, %c0_i32_1, %c0_i32_2 : i32, i32, i32, i32
  }
  func.func @transform_11(%arg0: i32) -> (i32, i32, i32, i32) {
    %c0_i32 = arith.constant 0 : i32
    %c0_i32_0 = arith.constant 0 : i32
    %c0_i32_1 = arith.constant 0 : i32
    %c0_i32_2 = arith.constant 0 : i32
    %c0_i32_3 = arith.constant 0 : i32
    return %c0_i32, %c0_i32_0, %c0_i32_1, %c0_i32_2 : i32, i32, i32, i32
  }
  func.func @transform_12(%arg0: i32) -> (i32, i32, i32, i32) {
    %c0_i32 = arith.constant 0 : i32
    %c0_i32_0 = arith.constant 0 : i32
    %c0_i32_1 = arith.constant 0 : i32
    %c0_i32_2 = arith.constant 0 : i32
    %c0_i32_3 = arith.constant 0 : i32
    return %c0_i32, %c0_i32_0, %c0_i32_1, %c0_i32_2 : i32, i32, i32, i32
  }
  func.func @transform_13(%arg0: i32) -> (i32, i32, i32, i32) {
    %c0_i32 = arith.constant 0 : i32
    %c0_i32_0 = arith.constant 0 : i32
    %c0_i32_1 = arith.constant 0 : i32
    %c0_i32_2 = arith.constant 0 : i32
    %c0_i32_3 = arith.constant 0 : i32
    return %c0_i32, %c0_i32_0, %c0_i32_1, %c0_i32_2 : i32, i32, i32, i32
  }
  func.func @transform_14(%arg0: i32) -> (i32, i32, i32) {
    %c0_i32 = arith.constant 0 : i32
    %c0_i32_0 = arith.constant 0 : i32
    %c0_i32_1 = arith.constant 0 : i32
    %c0_i32_2 = arith.constant 0 : i32
    return %c0_i32, %c0_i32_0, %c0_i32_1 : i32, i32, i32
  }
  func.func @transform_15(%arg0: i32) -> (i32, i32, i32) {
    %c0_i32 = arith.constant 0 : i32
    %c0_i32_0 = arith.constant 0 : i32
    %c0_i32_1 = arith.constant 0 : i32
    %c0_i32_2 = arith.constant 0 : i32
    return %c0_i32, %c0_i32_0, %c0_i32_1 : i32, i32, i32
  }
  func.func @transform_16(%arg0: i32) -> (i32, i32, i32) {
    %c0_i32 = arith.constant 0 : i32
    %c0_i32_0 = arith.constant 0 : i32
    %c0_i32_1 = arith.constant 0 : i32
    %c0_i32_2 = arith.constant 0 : i32
    return %c0_i32, %c0_i32_0, %c0_i32_1 : i32, i32, i32
  }
  func.func @transform_17(%arg0: i32) -> (i32, i32, i32) {
    %c0_i32 = arith.constant 0 : i32
    %c0_i32_0 = arith.constant 0 : i32
    %c0_i32_1 = arith.constant 0 : i32
    %c0_i32_2 = arith.constant 0 : i32
    return %c0_i32, %c0_i32_0, %c0_i32_1 : i32, i32, i32
  }
  func.func @transform_18(%arg0: i32) -> (i32, i32, i32) {
    %c0_i32 = arith.constant 0 : i32
    %c0_i32_0 = arith.constant 0 : i32
    %c0_i32_1 = arith.constant 0 : i32
    %c0_i32_2 = arith.constant 0 : i32
    return %c0_i32, %c0_i32_0, %c0_i32_1 : i32, i32, i32
  }
  func.func @transform_19(%arg0: i32) -> (i32, i32, i32) {
    %c0_i32 = arith.constant 0 : i32
    %c0_i32_0 = arith.constant 0 : i32
    %c0_i32_1 = arith.constant 0 : i32
    %c0_i32_2 = arith.constant 0 : i32
    return %c0_i32, %c0_i32_0, %c0_i32_1 : i32, i32, i32
  }
  func.func @transform_20(%arg0: i32) -> (i32, i32, i32) {
    %c0_i32 = arith.constant 0 : i32
    %c0_i32_0 = arith.constant 0 : i32
    %c0_i32_1 = arith.constant 0 : i32
    %c0_i32_2 = arith.constant 0 : i32
    return %c0_i32, %c0_i32_0, %c0_i32_1 : i32, i32, i32
  }
  func.func @transform_21(%arg0: i32) -> (i32, i32, i32) {
    %c0_i32 = arith.constant 0 : i32
    %c0_i32_0 = arith.constant 0 : i32
    %c0_i32_1 = arith.constant 0 : i32
    %c0_i32_2 = arith.constant 0 : i32
    return %c0_i32, %c0_i32_0, %c0_i32_1 : i32, i32, i32
  }
  func.func @transform_22(%arg0: i32) -> (i32, i32, i32) {
    %c0_i32 = arith.constant 0 : i32
    %c0_i32_0 = arith.constant 0 : i32
    %c0_i32_1 = arith.constant 0 : i32
    %c0_i32_2 = arith.constant 0 : i32
    return %c0_i32, %c0_i32_0, %c0_i32_1 : i32, i32, i32
  }
  func.func @transform_23(%arg0: i32) -> (i32, i32, i32, i32) {
    %c0_i32 = arith.constant 0 : i32
    %c0_i32_0 = arith.constant 0 : i32
    %c0_i32_1 = arith.constant 0 : i32
    %c0_i32_2 = arith.constant 0 : i32
    return %c0_i32, %arg0, %c0_i32_0, %c0_i32_1 : i32, i32, i32, i32
  }
}

</mosaic_0001>

<llo_original>
// kernel: forward.3
$region0: #{forward.3}
  #allocation0 [shape = 'u32[]', space=smem, size = 0x4, offset = 0x4, fixed_abs, tag = 'smem constant byte address 0x4 - core index']
  #allocation1 [shape = 'u32[144,128]{1,0:T(1,128)}', space=vmem, size = 0x12000, scoped, tag = 'internal scratch']
  %s0 = inlined_call_operand.vmem [shape: f32[2,79,10], index: 0, kind: input, shape index: {}]
  %s1 = inlined_call_operand.vmem [shape: bf16[10,32], index: 1, kind: input, shape index: {}]
  %s2 = inlined_call_operand.vmem [shape: f32[1,32], index: 2, kind: input, shape index: {}]
  %s3 = inlined_call_operand.vmem [shape: f32[1,32], index: 3, kind: input, shape index: {}]
  %s4 = inlined_call_operand.vmem [shape: f32[2,79,32], index: 4, kind: output, shape index: {}]
  %s5 = sld [smem:[#allocation0]]
  $region49: #{forward.3} parent=0
    _
  %s7 = ssub.s32 1, %s5
  %s8 = scalar_select 0, %s7, %s5
  loop: start=0, step=1, limit=4
  $region2: #{forward.3} parent=0 // loop_pre_header
    _
  $region3: #{forward.3} parent=0 // loop_header
    %s10 = sphi 0, %s14
    %p11 = scmp.ge.s32.totalorder %s10, 4
    %s20 = sphi 0, %s22
    %s23 = sphi 0, %s20
    %s24 = sphi 0, %s23
    %s40 = sphi 0, %s24
    %s44 = sphi 0, %s44
    %s46 = sphi 0, %s44
    %s47 = sphi 0, %s46
    %s61 = sphi 0, %s47
    %s65 = sphi 0, %s65
    %s67 = sphi 0, %s65
    %s68 = sphi 0, %s67
    %s82 = sphi 0, %s68
    %s86 = sphi 0, %s86
    %s88 = sphi 0, %s86
    %s89 = sphi 0, %s88
    %s103 = sphi 0, %s89
    %s109 = sphi 0, %s111
    %s112 = sphi 0, %s109
    %s113 = sphi 0, %s112
    %s129 = sphi 0, %s113
  $region4: #{forward.3} parent=0 // loop_header_branch
    %13 = sbr.rel (%p11) target = $region8
  $region5: #{forward.3} parent=0 // loop_body
    %s15 = ssub.s32 %s10, 1
    %s16 = ssub.s32 %s10, 2
    %s17 = sadd.s32 %s10, 1
    %s18 = ssub.s32 %s10, %s17
    %p19 = scmp.eq.s32.totalorder %s18, 0
    %s21 = sadd.s32 %s20, 1
    %s22 = scalar_select %p19, %s20, %s21
    %p25 = pneg %p19
    %p26 = scmp.eq.s32.totalorder %s10, 1
    %p27 = por %p25, %p26
    %p28 = scmp.ne.s32.totalorder %s20, %s23
    %p29 = scmp.eq.s32.totalorder %s10, 0
    %p30 = por %p28, %p29
    %p31 = scmp.ne.s32.totalorder %s20, %s23
    %p32 = scmp.eq.s32.totalorder %s15, 1
    %p33 = por %p31, %p32
    %p34 = scmp.ne.s32.totalorder %s23, %s24
    %p35 = scmp.eq.s32.totalorder %s15, 0
    %p36 = por %p34, %p35
    %p37 = scmp.ne.s32.totalorder %s23, %s24
    %p38 = scmp.eq.s32.totalorder %s16, 1
    %p39 = por %p37, %p38
    %p41 = scmp.ne.s32.totalorder %s24, %s40
    %p42 = scmp.eq.s32.totalorder %s16, 0
    %p43 = por %p41, %p42
    %s45 = sadd.s32 %s44, 1
    %p48 = scmp.eq.s32.totalorder %s10, 1
    %p49 = scmp.ne.s32.totalorder %s44, %s46
    %p50 = scmp.eq.s32.totalorder %s10, 0
    %p51 = por %p49, %p50
    %p52 = scmp.ne.s32.totalorder %s44, %s46
    %p53 = scmp.eq.s32.totalorder %s15, 1
    %p54 = por %p52, %p53
    %p55 = scmp.ne.s32.totalorder %s46, %s47
    %p56 = scmp.eq.s32.totalorder %s15, 0
    %p57 = por %p55, %p56
    %p58 = scmp.ne.s32.totalorder %s46, %s47
    %p59 = scmp.eq.s32.totalorder %s16, 1
    %p60 = por %p58, %p59
    %p62 = scmp.ne.s32.totalorder %s47, %s61
    %p63 = scmp.eq.s32.totalorder %s16, 0
    %p64 = por %p62, %p63
    %s66 = sadd.s32 %s65, 1
    %p69 = scmp.eq.s32.totalorder %s10, 1
    %p70 = scmp.ne.s32.totalorder %s65, %s67
    %p71 = scmp.eq.s32.totalorder %s10, 0
    %p72 = por %p70, %p71
    %p73 = scmp.ne.s32.totalorder %s65, %s67
    %p74 = scmp.eq.s32.totalorder %s15, 1
    %p75 = por %p73, %p74
    %p76 = scmp.ne.s32.totalorder %s67, %s68
    %p77 = scmp.eq.s32.totalorder %s15, 0
    %p78 = por %p76, %p77
    %p79 = scmp.ne.s32.totalorder %s67, %s68
    %p80 = scmp.eq.s32.totalorder %s16, 1
    %p81 = por %p79, %p80
    %p83 = scmp.ne.s32.totalorder %s68, %s82
    %p84 = scmp.eq.s32.totalorder %s16, 0
    %p85 = por %p83, %p84
    %s87 = sadd.s32 %s86, 1
    %p90 = scmp.eq.s32.totalorder %s10, 1
    %p91 = scmp.ne.s32.totalorder %s86, %s88
    %p92 = scmp.eq.s32.totalorder %s10, 0
    %p93 = por %p91, %p92
    %p94 = scmp.ne.s32.totalorder %s86, %s88
    %p95 = scmp.eq.s32.totalorder %s15, 1
    %p96 = por %p94, %p95
    %p97 = scmp.ne.s32.totalorder %s88, %s89
    %p98 = scmp.eq.s32.totalorder %s15, 0
    %p99 = por %p97, %p98
    %p100 = scmp.ne.s32.totalorder %s88, %s89
    %p101 = scmp.eq.s32.totalorder %s16, 1
    %p102 = por %p100, %p101
    %p104 = scmp.ne.s32.totalorder %s89, %s103
    %p105 = scmp.eq.s32.totalorder %s16, 0
    %p106 = por %p104, %p105
    %s107 = ssub.s32 %s10, %s17
    %p108 = scmp.eq.s32.totalorder %s107, 0
    %s110 = sadd.s32 %s109, 1
    %s111 = scalar_select %p108, %s109, %s110
    %p114 = pneg %p108
    %p115 = scmp.eq.s32.totalorder %s10, 1
    %p116 = por %p114, %p115
    %p117 = scmp.ne.s32.totalorder %s109, %s112
    %p118 = scmp.eq.s32.totalorder %s10, 0
    %p119 = por %p117, %p118
    %p120 = scmp.ne.s32.totalorder %s109, %s112
    %p121 = scmp.eq.s32.totalorder %s15, 1
    %p122 = por %p120, %p121
    %p123 = scmp.ne.s32.totalorder %s112, %s113
    %p124 = scmp.eq.s32.totalorder %s15, 0
    %p125 = por %p123, %p124
    %p126 = scmp.ne.s32.totalorder %s112, %s113
    %p127 = scmp.eq.s32.totalorder %s16, 1
    %p128 = por %p126, %p127
    %p130 = scmp.ne.s32.totalorder %s113, %s129
    %p131 = scmp.eq.s32.totalorder %s16, 0
    %p132 = por %p130, %p131
    %p133 = scmp.le.s32.totalorder 1, %s10
    %p134 = scmp.lt.s32.totalorder %s10, 3
    %p135 = pnand %p133, %p134
    %p136 = pneg %p135
    // Predicated region
    $region9: #{forward.3} parent=5 // pred_check
      _
    $region10: #{forward.3} parent=5 // pred_check_branch
      %138 = sbr.rel (%p135) target = $region12
    $region11: #{forward.3} parent=5 // pred_region
      %s139 = ssub.s32 %s10, 1
      // Predicated region
      $region13: #{forward.3} parent=11 // pred_check
        %p140 = pneg %p57
      $region14: #{forward.3} parent=11 // pred_check_branch
        %142 = sbr.rel (%p140) target = $region16
      $region15: #{forward.3} parent=11 // pred_region
        _
      $region16: #{forward.3} parent=11 // pred_fallthru
        _
      // Predicated region
      $region17: #{forward.3} parent=11 // pred_check
        %p143 = pneg %p78
      $region18: #{forward.3} parent=11 // pred_check_branch
        %145 = sbr.rel (%p143) target = $region20
      $region19: #{forward.3} parent=11 // pred_region
        _
      $region20: #{forward.3} parent=11 // pred_fallthru
        _
      // Predicated region
      $region21: #{forward.3} parent=11 // pred_check
        %p146 = pneg %p99
      $region22: #{forward.3} parent=11 // pred_check_branch
        %148 = sbr.rel (%p146) target = $region24
      $region23: #{forward.3} parent=11 // pred_region
        _
      $region24: #{forward.3} parent=11 // pred_fallthru
        _
    $region12: #{forward.3} parent=5 // pred_fallthru
      _
    %p149 = scmp.lt.s32.totalorder %s10, 2
    // Predicated region
    $region25: #{forward.3} parent=5 // pred_check
      %p150 = pneg %p149
    $region26: #{forward.3} parent=5 // pred_check_branch
      %152 = sbr.rel (%p150) target = $region28
    $region27: #{forward.3} parent=5 // pred_region
      // Predicated region
      $region29: #{forward.3} parent=27 // pred_check
        %p153 = pneg %p30
      $region30: #{forward.3} parent=27 // pred_check_branch
        %155 = sbr.rel (%p153) target = $region32
      $region31: #{forward.3} parent=27 // pred_region
        %p156 = scmp.lt.s32.totalorder %s10, 1
        %s157 = scalar_select %p156, %s10, 1
        %s158 = smul.addr %s157, 10
        %s159 = smul.addr %s158, 8
        %s160 = scalar_lea.vmem %s0, %s159
      $region32: #{forward.3} parent=27 // pred_fallthru
        _
    $region28: #{forward.3} parent=5 // pred_fallthru
      _
    %p161 = scmp.le.s32.totalorder 1, %s10
    %p162 = scmp.lt.s32.totalorder %s10, 3
    %p163 = pnand %p161, %p162
    %p164 = pneg %p163
    // Predicated region
    $region33: #{forward.3} parent=5 // pred_check
      _
    $region34: #{forward.3} parent=5 // pred_check_branch
      %166 = sbr.rel (%p163) target = $region36
    $region35: #{forward.3} parent=5 // pred_region
      %s167 = ssub.s32 %s10, 1
      %p168 = scmp.lt.s32.totalorder %s15, 1
      %s169 = scalar_select %p168, %s15, 1
      %s170 = smul.addr %s169, 10
      %s171 = smul.addr %s170, 8
      %s172 = scalar_lea.vmem %s0, %s171
      %p173 = pneg %p36
      %p174 = pneg %p33
      %p175 = pneg %p57
      %p176 = pneg %p54
      %p177 = pneg %p78
      %p178 = pneg %p75
      %p179 = pneg %p99
      %p180 = pneg %p96
      %p181 = pneg %p125
      %p182 = pneg %p122
      %p183 = scmp.lt.s32.totalorder %s15, 1
      %s184 = scalar_select %p183, %s15, 1
      %s185 = smul.addr %s184, 10
      %s186 = smul.addr %s185, 8
      %s187 = scalar_lea.vmem %s4, %s186
      %p188 = scmp.lt.s32.totalorder %s15, 1
      %s189 = scalar_select %p188, %s15, 1
      %s190 = smul.addr %s189, 10
      %s191 = smul.addr %s190, 8
      %s192 = scalar_lea.vmem %s0, %s191
      %p193 = scmp.lt.s32.totalorder %s15, 1
      %s194 = scalar_select %p193, %s15, 1
      %s195 = smul.addr %s194, 10
      %s196 = smul.addr %s195, 8
      %s197 = scalar_lea.vmem %s4, %s196
      %v199 = vld [vmem:[%s192] sm:$0xff]
      %v200 = vld [vmem:[%s192 + $0x8] sm:$0xff]
      %v201 = vld [vmem:[%s192 + $0x10] sm:$0xff]
      %v202 = vld [vmem:[%s192 + $0x18] sm:$0xff]
      %v203 = vld [vmem:[%s192 + $0x20] sm:$0xff]
      %v204 = vld [vmem:[%s192 + $0x28] sm:$0xff]
      %v205 = vld [vmem:[%s192 + $0x30] sm:$0xff]
      %v206 = vld [vmem:[%s192 + $0x38] sm:$0xff]
      %v207 = vld [vmem:[%s192 + $0x40] sm:$0xff]
      %v208 = vld [vmem:[%s192 + $0x48] sm:$0x7f]
      %v209 = vpack.c.bf16 %v200, %v199
      %v210 = vpack.c.bf16 %v202, %v201
      %v211 = vpack.c.bf16 %v204, %v203
      %v212 = vpack.c.bf16 %v206, %v205
      %v213 = vpack.c.bf16 %v208, %v207
      %v214 = vld [vmem:[%s1] sm:$0xf]
      %v215 = vld [vmem:[%s1 + $0x4] sm:$0x1]
      %v218 = vunpack.c.l.b16 %v214
      %v219 = vunpack.c.l.b16 %v215
      %v220 = vpack.c.b16 %v219, %v218
      %vm221 = vcmask 80896
      %v223 = vsel %vm221, %v209, 0
      %v226 = vsel %vm221, %v210, 0
      %v229 = vsel %vm221, %v211, 0
      %v232 = vsel %vm221, %v212, 0
      %v235 = vsel %vm221, %v213, 0
      %vm237 = vcmask 1044480
      %v239 = vsel %vm237, %v220, 0
      %241 = vmatprep.subr.bf16.mxu0 0
      %242 = vmatpush1.bf16.msra.mxu0 %v239
      %243 = vmatprep.subr.bf16.mxu0 0
      %244 = vmatpush1.bf16.msra.mxu0 0
      %245 = vmatprep.subr.bf16.mxu0 0
      %246 = vmatpush1.bf16.msra.mxu0 0
      %247 = vmatprep.subr.bf16.mxu0 0
      %248 = vmatpush1.bf16.msra.mxu0 0
      %249 = vmatprep.subr.bf16.mxu0 0
      %250 = vmatpush1.bf16.msra.mxu0 0
      %251 = vmatprep.subr.bf16.mxu0 0
      %252 = vmatpush1.bf16.msra.mxu0 0
      %253 = vmatprep.subr.bf16.mxu0 0
      %254 = vmatpush1.bf16.msra.mxu0 0
      %255 = vmatprep.subr.bf16.mxu0 0
      %256 = vmatpush1.bf16.msra.mxu0 0
      %257 = vmatprep.subr.bf16.mxu0 0
      %258 = vmatpush1.bf16.msra.mxu0 0
      %259 = vmatprep.subr.bf16.mxu0 0
      %260 = vmatpush1.bf16.msra.mxu0 0
      %261 = vmatprep.subr.bf16.mxu0 0
      %262 = vmatpush1.bf16.msra.mxu0 0
      %263 = vmatprep.subr.bf16.mxu0 0
      %264 = vmatpush1.bf16.msra.mxu0 0
      %265 = vmatprep.subr.bf16.mxu0 0
      %266 = vmatpush1.bf16.msra.mxu0 0
      %267 = vmatprep.subr.bf16.mxu0 0
      %268 = vmatpush1.bf16.msra.mxu0 0
      %269 = vmatprep.subr.bf16.mxu0 0
      %270 = vmatpush1.bf16.msra.mxu0 0
      %271 = vmatprep.subr.bf16.mxu0 0
      %272 = vmatpush1.bf16.msra.mxu0 0
      %273 = vmatprep.mubr.bf16.mxu0 0
      %274 = vmatmul.mubr.bf16.gmra.mrb[0].mxu0 %v223
      %v275 = vpop.f32.mrb[0].mxu0
      %v276 = vadd.f32 0.0, %v275
      %v277 = vpop.f32.mrb[0].mxu0
      %v278 = vpop.f32.mrb[0].mxu0
      %v279 = vadd.f32 0.0, %v278
      %v280 = vpop.f32.mrb[0].mxu0
      %281 = vmatprep.mubr.bf16.mxu0 0
      %282 = vmatmul.mubr.bf16.gmra.mrb[0].mxu0 %v226
      %v283 = vpop.f32.mrb[0].mxu0
      %v284 = vadd.f32 0.0, %v283
      %v285 = vpop.f32.mrb[0].mxu0
      %v286 = vpop.f32.mrb[0].mxu0
      %v287 = vadd.f32 0.0, %v286
      %v288 = vpop.f32.mrb[0].mxu0
      %289 = vmatprep.mubr.bf16.mxu0 0
      %290 = vmatmul.mubr.bf16.gmra.mrb[0].mxu0 %v229
      %v291 = vpop.f32.mrb[0].mxu0
      %v292 = vadd.f32 0.0, %v291
      %v293 = vpop.f32.mrb[0].mxu0
      %v294 = vpop.f32.mrb[0].mxu0
      %v295 = vadd.f32 0.0, %v294
      %v296 = vpop.f32.mrb[0].mxu0
      %297 = vmatprep.mubr.bf16.mxu0 0
      %298 = vmatmul.mubr.bf16.gmra.mrb[0].mxu0 %v232
      %v299 = vpop.f32.mrb[0].mxu0
      %v300 = vadd.f32 0.0, %v299
      %v301 = vpop.f32.mrb[0].mxu0
      %v302 = vpop.f32.mrb[0].mxu0
      %v303 = vadd.f32 0.0, %v302
      %v304 = vpop.f32.mrb[0].mxu0
      %305 = vmatprep.mubr.bf16.mxu0 0
      %306 = vmatmul.mubr.bf16.gmra.mrb[0].mxu0 %v235
      %v307 = vpop.f32.mrb[0].mxu0
      %v308 = vadd.f32 0.0, %v307
      %v309 = vpop.f32.mrb[0].mxu0
      %v310 = vpop.f32.mrb[0].mxu0
      %v311 = vadd.f32 0.0, %v310
      %v312 = vpop.f32.mrb[0].mxu0
      %313 = vdwg.mxu0
      %vm314 = vcmask 261120
      %v315 = vsel %vm314, %v276, 0.0
      %v316 = vsel %vm314, %v279, 0.0
      %v317 = vadd.f32 %v315, %v316
      %v318 = vsel %vm314, %v284, 0.0
      %v319 = vadd.f32 %v317, %v318
      %v320 = vsel %vm314, %v287, 0.0
      %v321 = vadd.f32 %v319, %v320
      %v322 = vsel %vm314, %v292, 0.0
      %v323 = vadd.f32 %v321, %v322
      %v324 = vsel %vm314, %v295, 0.0
      %v325 = vadd.f32 %v323, %v324
      %v326 = vsel %vm314, %v300, 0.0
      %v327 = vadd.f32 %v325, %v326
      %v328 = vsel %vm314, %v303, 0.0
      %v329 = vadd.f32 %v327, %v328
      %v330 = vsel %vm314, %v308, 0.0
      %v331 = vadd.f32 %v329, %v330
      %vm332 = vcmask 260096
      %v333 = vsel %vm332, %v311, 0.0
      %v334 = vadd.f32 %v331, %v333
      %v335 = vrot.slane %v334, 4
      %v336 = vadd.f32 %v334, %v335
      %v337 = vrot.slane %v336, 2
      %v338 = vadd.f32 %v336, %v337
      %v339 = vrot.slane %v338, 1
      %v340 = vadd.f32 %v338, %v339
      %v341 = vrcp.pop 79.0
      %v342 = vmul.f32 %v340, %v341
      %v343 = vsub.f32 %v276, %v342
      %v344 = vsub.f32 %v279, %v342
      %v345 = vsub.f32 %v284, %v342
      %v346 = vsub.f32 %v287, %v342
      %v347 = vsub.f32 %v292, %v342
      %v348 = vsub.f32 %v295, %v342
      %v349 = vsub.f32 %v300, %v342
      %v350 = vsub.f32 %v303, %v342
      %v351 = vsub.f32 %v308, %v342
      %v352 = vsub.f32 %v311, %v342
      %v353 = vmul.f32 %v343, %v343
      %v354 = vmul.f32 %v344, %v344
      %v355 = vmul.f32 %v345, %v345
      %v356 = vmul.f32 %v346, %v346
      %v357 = vmul.f32 %v347, %v347
      %v358 = vmul.f32 %v348, %v348
      %v359 = vmul.f32 %v349, %v349
      %v360 = vmul.f32 %v350, %v350
      %v361 = vmul.f32 %v351, %v351
      %v362 = vmul.f32 %v352, %v352
      %v363 = vsel %vm314, %v353, 0.0
      %v364 = vsel %vm314, %v354, 0.0
      %v365 = vadd.f32 %v363, %v364
      %v366 = vsel %vm314, %v355, 0.0
      %v367 = vadd.f32 %v365, %v366
      %v368 = vsel %vm314, %v356, 0.0
      %v369 = vadd.f32 %v367, %v368
      %v370 = vsel %vm314, %v357, 0.0
      %v371 = vadd.f32 %v369, %v370
      %v372 = vsel %vm314, %v358, 0.0
      %v373 = vadd.f32 %v371, %v372
      %v374 = vsel %vm314, %v359, 0.0
      %v375 = vadd.f32 %v373, %v374
      %v376 = vsel %vm314, %v360, 0.0
      %v377 = vadd.f32 %v375, %v376
      %v378 = vsel %vm314, %v361, 0.0
      %v379 = vadd.f32 %v377, %v378
      %v380 = vsel %vm332, %v362, 0.0
      %v381 = vadd.f32 %v379, %v380
      %v382 = vrot.slane %v381, 4
      %v383 = vadd.f32 %v381, %v382
      %v384 = vrot.slane %v383, 2
      %v385 = vadd.f32 %v383, %v384
      %v386 = vrot.slane %v385, 1
      %v387 = vadd.f32 %v385, %v386
      %v388 = vmul.f32 %v387, %v341
      %v389 = vadd.f32 %v388, 1e-05
      %v390 = vrsqrt.pop %v389
      %v391 = vmul.f32 %v343, %v390
      %v392 = vmul.f32 %v344, %v390
      %v393 = vmul.f32 %v345, %v390
      %v394 = vmul.f32 %v346, %v390
      %v395 = vmul.f32 %v347, %v390
      %v396 = vmul.f32 %v348, %v390
      %v397 = vmul.f32 %v349, %v390
      %v398 = vmul.f32 %v350, %v390
      %v399 = vmul.f32 %v351, %v390
      %v400 = vmul.f32 %v352, %v390
      %v401 = vld [vmem:[%s2] sm:$0x1]
      %v403 = vlaneseq
      %v404 = vshrl.u32 %v403, 7
      %v405 = vsub.s32 0, %v404
      %v406 = vrot.slane %v401, %v405
      %v408 = vmul.f32 %v391, %v406
      %v409 = vmul.f32 %v392, %v406
      %v410 = vmul.f32 %v393, %v406
      %v411 = vmul.f32 %v394, %v406
      %v412 = vmul.f32 %v395, %v406
      %v413 = vmul.f32 %v396, %v406
      %v414 = vmul.f32 %v397, %v406
      %v415 = vmul.f32 %v398, %v406
      %v416 = vmul.f32 %v399, %v406
      %v417 = vmul.f32 %v400, %v406
      %v418 = vld [vmem:[%s3] sm:$0x1]
      %v420 = vlaneseq
      %v421 = vshrl.u32 %v420, 7
      %v422 = vsub.s32 0, %v421
      %v423 = vrot.slane %v418, %v422
      %v425 = vadd.f32 %v408, %v423
      %v426 = vadd.f32 %v409, %v423
      %v427 = vadd.f32 %v410, %v423
      %v428 = vadd.f32 %v411, %v423
      %v429 = vadd.f32 %v412, %v423
      %v430 = vadd.f32 %v413, %v423
      %v431 = vadd.f32 %v414, %v423
      %v432 = vadd.f32 %v415, %v423
      %v433 = vadd.f32 %v416, %v423
      %v434 = vadd.f32 %v417, %v423
      %v435 = vmul.f32 %v425, %v425
      %v436 = vmul.f32 %v426, %v426
      %v437 = vmul.f32 %v427, %v427
      %v438 = vmul.f32 %v428, %v428
      %v439 = vmul.f32 %v429, %v429
      %v440 = vmul.f32 %v430, %v430
      %v441 = vmul.f32 %v431, %v431
      %v442 = vmul.f32 %v432, %v432
      %v443 = vmul.f32 %v433, %v433
      %v444 = vmul.f32 %v434, %v434
      %v445 = vmul.f32 %v425, %v435
      %v446 = vmul.f32 %v426, %v436
      %v447 = vmul.f32 %v427, %v437
      %v448 = vmul.f32 %v428, %v438
      %v449 = vmul.f32 %v429, %v439
      %v450 = vmul.f32 %v430, %v440
      %v451 = vmul.f32 %v431, %v441
      %v452 = vmul.f32 %v432, %v442
      %v453 = vmul.f32 %v433, %v443
      %v454 = vmul.f32 %v434, %v444
      %v455 = vmul.f32 %v445, 0.044715
      %v456 = vmul.f32 %v446, 0.044715
      %v457 = vmul.f32 %v447, 0.044715
      %v458 = vmul.f32 %v448, 0.044715
      %v459 = vmul.f32 %v449, 0.044715
      %v460 = vmul.f32 %v450, 0.044715
      %v461 = vmul.f32 %v451, 0.044715
      %v462 = vmul.f32 %v452, 0.044715
      %v463 = vmul.f32 %v453, 0.044715
      %v464 = vmul.f32 %v454, 0.044715
      %v465 = vadd.f32 %v425, %v455
      %v466 = vadd.f32 %v426, %v456
      %v467 = vadd.f32 %v427, %v457
      %v468 = vadd.f32 %v428, %v458
      %v469 = vadd.f32 %v429, %v459
      %v470 = vadd.f32 %v430, %v460
      %v471 = vadd.f32 %v431, %v461
      %v472 = vadd.f32 %v432, %v462
      %v473 = vadd.f32 %v433, %v463
      %v474 = vadd.f32 %v434, %v464
      %v475 = vmul.f32 %v465, 0.7978846
      %v476 = vmul.f32 %v466, 0.7978846
      %v477 = vmul.f32 %v467, 0.7978846
      %v478 = vmul.f32 %v468, 0.7978846
      %v479 = vmul.f32 %v469, 0.7978846
      %v480 = vmul.f32 %v470, 0.7978846
      %v481 = vmul.f32 %v471, 0.7978846
      %v482 = vmul.f32 %v472, 0.7978846
      %v483 = vmul.f32 %v473, 0.7978846
      %v484 = vmul.f32 %v474, 0.7978846
      %v485 = vtanh.pop %v475
      %v486 = vtanh.pop %v476
      %v487 = vtanh.pop %v477
      %v488 = vtanh.pop %v478
      %v489 = vtanh.pop %v479
      %v490 = vtanh.pop %v480
      %v491 = vtanh.pop %v481
      %v492 = vtanh.pop %v482
      %v493 = vtanh.pop %v483
      %v494 = vtanh.pop %v484
      %v495 = vadd.f32 %v485, 1.0
      %v496 = vadd.f32 %v486, 1.0
      %v497 = vadd.f32 %v487, 1.0
      %v498 = vadd.f32 %v488, 1.0
      %v499 = vadd.f32 %v489, 1.0
      %v500 = vadd.f32 %v490, 1.0
      %v501 = vadd.f32 %v491, 1.0
      %v502 = vadd.f32 %v492, 1.0
      %v503 = vadd.f32 %v493, 1.0
      %v504 = vadd.f32 %v494, 1.0
      %v505 = vmul.f32 %v495, 0.5
      %v506 = vmul.f32 %v496, 0.5
      %v507 = vmul.f32 %v497, 0.5
      %v508 = vmul.f32 %v498, 0.5
      %v509 = vmul.f32 %v499, 0.5
      %v510 = vmul.f32 %v500, 0.5
      %v511 = vmul.f32 %v501, 0.5
      %v512 = vmul.f32 %v502, 0.5
      %v513 = vmul.f32 %v503, 0.5
      %v514 = vmul.f32 %v504, 0.5
      %v515 = vmul.f32 %v425, %v505
      %v516 = vmul.f32 %v426, %v506
      %v517 = vmul.f32 %v427, %v507
      %v518 = vmul.f32 %v428, %v508
      %v519 = vmul.f32 %v429, %v509
      %v520 = vmul.f32 %v430, %v510
      %v521 = vmul.f32 %v431, %v511
      %v522 = vmul.f32 %v432, %v512
      %v523 = vmul.f32 %v433, %v513
      %v524 = vmul.f32 %v434, %v514
      %525 = vst.msk [vmem:[%s197] sm:$0xff] %vm314, %v515
      %526 = vst.msk [vmem:[%s197 + $0x8] sm:$0xff] %vm314, %v516
      %527 = vst.msk [vmem:[%s197 + $0x10] sm:$0xff] %vm314, %v517
      %528 = vst.msk [vmem:[%s197 + $0x18] sm:$0xff] %vm314, %v518
      %529 = vst.msk [vmem:[%s197 + $0x20] sm:$0xff] %vm314, %v519
      %530 = vst.msk [vmem:[%s197 + $0x28] sm:$0xff] %vm314, %v520
      %531 = vst.msk [vmem:[%s197 + $0x30] sm:$0xff] %vm314, %v521
      %532 = vst.msk [vmem:[%s197 + $0x38] sm:$0xff] %vm314, %v522
      %533 = vst.msk [vmem:[%s197 + $0x40] sm:$0xff] %vm314, %v523
      %534 = vst.msk [vmem:[%s197 + $0x48] sm:$0x7f] %vm332, %v524
      %p535 = scmp.lt.s32.totalorder %s15, 1
      %s536 = scalar_select %p535, %s15, 1
      %s537 = smul.addr %s536, 10
      %s538 = smul.addr %s537, 8
      %s539 = scalar_lea.vmem %s4, %s538
      // Predicated region
      $region37: #{forward.3} parent=35 // pred_check
        %p540 = pneg %p122
      $region38: #{forward.3} parent=35 // pred_check_branch
        %542 = sbr.rel (%p540) target = $region40
      $region39: #{forward.3} parent=35 // pred_region
        _
      $region40: #{forward.3} parent=35 // pred_fallthru
        _
    $region36: #{forward.3} parent=5 // pred_fallthru
      _
    %p543 = scmp.le.s32.totalorder 2, %s10
    // Predicated region
    $region41: #{forward.3} parent=5 // pred_check
      %p544 = pneg %p543
    $region42: #{forward.3} parent=5 // pred_check_branch
      %546 = sbr.rel (%p544) target = $region44
    $region43: #{forward.3} parent=5 // pred_region
      %s547 = ssub.s32 %s10, 2
      // Predicated region
      $region45: #{forward.3} parent=43 // pred_check
        %p548 = pneg %p128
      $region46: #{forward.3} parent=43 // pred_check_branch
        %550 = sbr.rel (%p548) target = $region48
      $region47: #{forward.3} parent=43 // pred_region
        %p551 = scmp.lt.s32.totalorder %s16, 1
        %s552 = scalar_select %p551, %s16, 1
        %s553 = smul.addr %s552, 10
        %s554 = smul.addr %s553, 8
        %s555 = scalar_lea.vmem %s4, %s554
      $region48: #{forward.3} parent=43 // pred_fallthru
        _
    $region44: #{forward.3} parent=5 // pred_fallthru
      _
  $region6: #{forward.3} parent=0 // loop_footer
    %s14 = sadd.s32 1, %s10
  $region7: #{forward.3} parent=0 // loop_footer_branch
    %9 = sbr.rel target = $region3
  $region8: #{forward.3} parent=0 // loop_exit
    _

// kernel: forward.4
$region0: #{forward.4}
  #allocation0 [shape = 'u32[]', space=smem, size = 0x4, offset = 0x4, fixed_abs, tag = 'smem constant byte address 0x4 - core index']
  #allocation1 [shape = 'u32[144,128]{1,0:T(1,128)}', space=vmem, size = 0x12000, scoped, tag = 'internal scratch']
  %s0 = inlined_call_operand.vmem [shape: f32[2,39,96], index: 0, kind: input, shape index: {}]
  %s1 = inlined_call_operand.vmem [shape: bf16[96,32], index: 1, kind: input, shape index: {}]
  %s2 = inlined_call_operand.vmem [shape: f32[2,39,32], index: 2, kind: output, shape index: {}]
  %s3 = sld [smem:[#allocation0]]
  $region41: #{forward.4} parent=0
    _
  %s5 = ssub.s32 1, %s3
  %s6 = scalar_select 0, %s5, %s3
  loop: start=0, step=1, limit=4
  $region2: #{forward.4} parent=0 // loop_pre_header
    _
  $region3: #{forward.4} parent=0 // loop_header
    %s8 = sphi 0, %s12
    %p9 = scmp.ge.s32.totalorder %s8, 4
    %s18 = sphi 0, %s20
    %s21 = sphi 0, %s18
    %s22 = sphi 0, %s21
    %s38 = sphi 0, %s22
    %s42 = sphi 0, %s42
    %s44 = sphi 0, %s42
    %s45 = sphi 0, %s44
    %s59 = sphi 0, %s45
    %s65 = sphi 0, %s67
    %s68 = sphi 0, %s65
    %s69 = sphi 0, %s68
    %s85 = sphi 0, %s69
  $region4: #{forward.4} parent=0 // loop_header_branch
    %11 = sbr.rel (%p9) target = $region8
  $region5: #{forward.4} parent=0 // loop_body
    %s13 = ssub.s32 %s8, 1
    %s14 = ssub.s32 %s8, 2
    %s15 = sadd.s32 %s8, 1
    %s16 = ssub.s32 %s8, %s15
    %p17 = scmp.eq.s32.totalorder %s16, 0
    %s19 = sadd.s32 %s18, 1
    %s20 = scalar_select %p17, %s18, %s19
    %p23 = pneg %p17
    %p24 = scmp.eq.s32.totalorder %s8, 1
    %p25 = por %p23, %p24
    %p26 = scmp.ne.s32.totalorder %s18, %s21
    %p27 = scmp.eq.s32.totalorder %s8, 0
    %p28 = por %p26, %p27
    %p29 = scmp.ne.s32.totalorder %s18, %s21
    %p30 = scmp.eq.s32.totalorder %s13, 1
    %p31 = por %p29, %p30
    %p32 = scmp.ne.s32.totalorder %s21, %s22
    %p33 = scmp.eq.s32.totalorder %s13, 0
    %p34 = por %p32, %p33
    %p35 = scmp.ne.s32.totalorder %s21, %s22
    %p36 = scmp.eq.s32.totalorder %s14, 1
    %p37 = por %p35, %p36
    %p39 = scmp.ne.s32.totalorder %s22, %s38
    %p40 = scmp.eq.s32.totalorder %s14, 0
    %p41 = por %p39, %p40
    %s43 = sadd.s32 %s42, 1
    %p46 = scmp.eq.s32.totalorder %s8, 1
    %p47 = scmp.ne.s32.totalorder %s42, %s44
    %p48 = scmp.eq.s32.totalorder %s8, 0
    %p49 = por %p47, %p48
    %p50 = scmp.ne.s32.totalorder %s42, %s44
    %p51 = scmp.eq.s32.totalorder %s13, 1
    %p52 = por %p50, %p51
    %p53 = scmp.ne.s32.totalorder %s44, %s45
    %p54 = scmp.eq.s32.totalorder %s13, 0
    %p55 = por %p53, %p54
    %p56 = scmp.ne.s32.totalorder %s44, %s45
    %p57 = scmp.eq.s32.totalorder %s14, 1
    %p58 = por %p56, %p57
    %p60 = scmp.ne.s32.totalorder %s45, %s59
    %p61 = scmp.eq.s32.totalorder %s14, 0
    %p62 = por %p60, %p61
    %s63 = ssub.s32 %s8, %s15
    %p64 = scmp.eq.s32.totalorder %s63, 0
    %s66 = sadd.s32 %s65, 1
    %s67 = scalar_select %p64, %s65, %s66
    %p70 = pneg %p64
    %p71 = scmp.eq.s32.totalorder %s8, 1
    %p72 = por %p70, %p71
    %p73 = scmp.ne.s32.totalorder %s65, %s68
    %p74 = scmp.eq.s32.totalorder %s8, 0
    %p75 = por %p73, %p74
    %p76 = scmp.ne.s32.totalorder %s65, %s68
    %p77 = scmp.eq.s32.totalorder %s13, 1
    %p78 = por %p76, %p77
    %p79 = scmp.ne.s32.totalorder %s68, %s69
    %p80 = scmp.eq.s32.totalorder %s13, 0
    %p81 = por %p79, %p80
    %p82 = scmp.ne.s32.totalorder %s68, %s69
    %p83 = scmp.eq.s32.totalorder %s14, 1
    %p84 = por %p82, %p83
    %p86 = scmp.ne.s32.totalorder %s69, %s85
    %p87 = scmp.eq.s32.totalorder %s14, 0
    %p88 = por %p86, %p87
    %p89 = scmp.le.s32.totalorder 1, %s8
    %p90 = scmp.lt.s32.totalorder %s8, 3
    %p91 = pnand %p89, %p90
    %p92 = pneg %p91
    // Predicated region
    $region9: #{forward.4} parent=5 // pred_check
      _
    $region10: #{forward.4} parent=5 // pred_check_branch
      %94 = sbr.rel (%p91) target = $region12
    $region11: #{forward.4} parent=5 // pred_region
      %s95 = ssub.s32 %s8, 1
      // Predicated region
      $region13: #{forward.4} parent=11 // pred_check
        %p96 = pneg %p55
      $region14: #{forward.4} parent=11 // pred_check_branch
        %98 = sbr.rel (%p96) target = $region16
      $region15: #{forward.4} parent=11 // pred_region
        _
      $region16: #{forward.4} parent=11 // pred_fallthru
        _
    $region12: #{forward.4} parent=5 // pred_fallthru
      _
    %p99 = scmp.lt.s32.totalorder %s8, 2
    // Predicated region
    $region17: #{forward.4} parent=5 // pred_check
      %p100 = pneg %p99
    $region18: #{forward.4} parent=5 // pred_check_branch
      %102 = sbr.rel (%p100) target = $region20
    $region19: #{forward.4} parent=5 // pred_region
      // Predicated region
      $region21: #{forward.4} parent=19 // pred_check
        %p103 = pneg %p28
      $region22: #{forward.4} parent=19 // pred_check_branch
        %105 = sbr.rel (%p103) target = $region24
      $region23: #{forward.4} parent=19 // pred_region
        %p106 = scmp.lt.s32.totalorder %s8, 1
        %s107 = scalar_select %p106, %s8, 1
        %s108 = smul.addr %s107, 5
        %s109 = smul.addr %s108, 8
        %s110 = scalar_lea.vmem %s0, %s109
      $region24: #{forward.4} parent=19 // pred_fallthru
        _
    $region20: #{forward.4} parent=5 // pred_fallthru
      _
    %p111 = scmp.le.s32.totalorder 1, %s8
    %p112 = scmp.lt.s32.totalorder %s8, 3
    %p113 = pnand %p111, %p112
    %p114 = pneg %p113
    // Predicated region
    $region25: #{forward.4} parent=5 // pred_check
      _
    $region26: #{forward.4} parent=5 // pred_check_branch
      %116 = sbr.rel (%p113) target = $region28
    $region27: #{forward.4} parent=5 // pred_region
      %s117 = ssub.s32 %s8, 1
      %p118 = scmp.lt.s32.totalorder %s13, 1
      %s119 = scalar_select %p118, %s13, 1
      %s120 = smul.addr %s119, 5
      %s121 = smul.addr %s120, 8
      %s122 = scalar_lea.vmem %s0, %s121
      %p123 = pneg %p34
      %p124 = pneg %p31
      %p125 = pneg %p55
      %p126 = pneg %p52
      %p127 = pneg %p81
      %p128 = pneg %p78
      %p129 = scmp.lt.s32.totalorder %s13, 1
      %s130 = scalar_select %p129, %s13, 1
      %s131 = smul.addr %s130, 5
      %s132 = smul.addr %s131, 8
      %s133 = scalar_lea.vmem %s2, %s132
      %p134 = scmp.lt.s32.totalorder %s13, 1
      %s135 = scalar_select %p134, %s13, 1
      %s136 = smul.addr %s135, 5
      %s137 = smul.addr %s136, 8
      %s138 = scalar_lea.vmem %s0, %s137
      %p139 = scmp.lt.s32.totalorder %s13, 1
      %s140 = scalar_select %p139, %s13, 1
      %s141 = smul.addr %s140, 5
      %s142 = smul.addr %s141, 8
      %s143 = scalar_lea.vmem %s2, %s142
      %v145 = vld [vmem:[%s138] sm:$0xff]
      %v146 = vld [vmem:[%s138 + $0x8] sm:$0xff]
      %v147 = vld [vmem:[%s138 + $0x10] sm:$0xff]
      %v148 = vld [vmem:[%s138 + $0x18] sm:$0xff]
      %v149 = vld [vmem:[%s138 + $0x20] sm:$0x7f]
      %v150 = vpack.c.bf16 %v146, %v145
      %v151 = vpack.c.bf16 %v148, %v147
      %v152 = vpack.c.bf16 %v149, %v149
      %v153 = vld [vmem:[%s1] sm:$0xf]
      %v154 = vld [vmem:[%s1 + $0x4] sm:$0xf]
      %v155 = vld [vmem:[%s1 + $0x8] sm:$0xf]
      %v156 = vld [vmem:[%s1 + $0xc] sm:$0xf]
      %v157 = vld [vmem:[%s1 + $0x10] sm:$0xf]
      %v158 = vld [vmem:[%s1 + $0x14] sm:$0xf]
      %v159 = vld [vmem:[%s1 + $0x18] sm:$0xf]
      %v160 = vld [vmem:[%s1 + $0x1c] sm:$0xf]
      %v161 = vld [vmem:[%s1 + $0x20] sm:$0xf]
      %v162 = vld [vmem:[%s1 + $0x24] sm:$0xf]
      %v163 = vld [vmem:[%s1 + $0x28] sm:$0xf]
      %v164 = vld [vmem:[%s1 + $0x2c] sm:$0xf]
      %v177 = vunpack.c.l.b16 %v153
      %v178 = vunpack.c.l.b16 %v154
      %v179 = vunpack.c.l.b16 %v155
      %v180 = vunpack.c.l.b16 %v156
      %v181 = vunpack.c.l.b16 %v157
      %v182 = vunpack.c.l.b16 %v158
      %v183 = vunpack.c.l.b16 %v159
      %v184 = vunpack.c.l.b16 %v160
      %v185 = vunpack.c.l.b16 %v161
      %v186 = vunpack.c.l.b16 %v162
      %v187 = vunpack.c.l.b16 %v163
      %v188 = vunpack.c.l.b16 %v164
      %v189 = vpack.c.b16 %v178, %v177
      %v190 = vpack.c.b16 %v180, %v179
      %v191 = vpack.c.b16 %v182, %v181
      %v192 = vpack.c.b16 %v184, %v183
      %v193 = vpack.c.b16 %v186, %v185
      %v194 = vpack.c.b16 %v188, %v187
      %vm201 = vcmask 785408
      %v203 = vsel %vm201, %v150, 0
      %v206 = vsel %vm201, %v151, 0
      %v209 = vsel %vm201, %v152, 0
      %211 = vmatprep.subr.bf16.mxu0 0
      %212 = vmatpush1.bf16.msra.mxu0 %v189
      %213 = vmatprep.subr.bf16.mxu0 0
      %214 = vmatpush1.bf16.msra.mxu0 %v190
      %215 = vmatprep.subr.bf16.mxu0 0
      %216 = vmatpush1.bf16.msra.mxu0 %v191
      %217 = vmatprep.subr.bf16.mxu0 0
      %218 = vmatpush1.bf16.msra.mxu0 %v192
      %219 = vmatprep.subr.bf16.mxu0 0
      %220 = vmatpush1.bf16.msra.mxu0 %v193
      %221 = vmatprep.subr.bf16.mxu0 0
      %222 = vmatpush1.bf16.msra.mxu0 %v194
      %223 = vmatprep.subr.bf16.mxu0 0
      %224 = vmatpush1.bf16.msra.mxu0 0
      %225 = vmatprep.subr.bf16.mxu0 0
      %226 = vmatpush1.bf16.msra.mxu0 0
      %227 = vmatprep.subr.bf16.mxu0 0
      %228 = vmatpush1.bf16.msra.mxu0 0
      %229 = vmatprep.subr.bf16.mxu0 0
      %230 = vmatpush1.bf16.msra.mxu0 0
      %231 = vmatprep.subr.bf16.mxu0 0
      %232 = vmatpush1.bf16.msra.mxu0 0
      %233 = vmatprep.subr.bf16.mxu0 0
      %234 = vmatpush1.bf16.msra.mxu0 0
      %235 = vmatprep.subr.bf16.mxu0 0
      %236 = vmatpush1.bf16.msra.mxu0 0
      %237 = vmatprep.subr.bf16.mxu0 0
      %238 = vmatpush1.bf16.msra.mxu0 0
      %239 = vmatprep.subr.bf16.mxu0 0
      %240 = vmatpush1.bf16.msra.mxu0 0
      %241 = vmatprep.subr.bf16.mxu0 0
      %242 = vmatpush1.bf16.msra.mxu0 0
      %243 = vmatprep.mubr.bf16.mxu0 0
      %244 = vmatmul.mubr.bf16.gmra.mrb[0].mxu0 %v203
      %v245 = vpop.f32.mrb[0].mxu0
      %v246 = vadd.f32 0.0, %v245
      %v247 = vpop.f32.mrb[0].mxu0
      %v248 = vpop.f32.mrb[0].mxu0
      %v249 = vadd.f32 0.0, %v248
      %v250 = vpop.f32.mrb[0].mxu0
      %251 = vmatprep.mubr.bf16.mxu0 0
      %252 = vmatmul.mubr.bf16.gmra.mrb[0].mxu0 %v206
      %v253 = vpop.f32.mrb[0].mxu0
      %v254 = vadd.f32 0.0, %v253
      %v255 = vpop.f32.mrb[0].mxu0
      %v256 = vpop.f32.mrb[0].mxu0
      %v257 = vadd.f32 0.0, %v256
      %v258 = vpop.f32.mrb[0].mxu0
      %259 = vmatprep.mubr.bf16.mxu0 0
      %260 = vmatmul.mubr.bf16.gmra.mrb[0].mxu0 %v209
      %v261 = vpop.f32.mrb[0].mxu0
      %v262 = vadd.f32 0.0, %v261
      %v263 = vpop.f32.mrb[0].mxu0
      %v264 = vpop.f32.mrb[0].mxu0
      %v265 = vpop.f32.mrb[0].mxu0
      %266 = vdwg.mxu0
      %v267 = vmul.f32 %v246, %v246
      %v268 = vmul.f32 %v249, %v249
      %v269 = vmul.f32 %v254, %v254
      %v270 = vmul.f32 %v257, %v257
      %v271 = vmul.f32 %v262, %v262
      %v272 = vmul.f32 %v246, %v267
      %v273 = vmul.f32 %v249, %v268
      %v274 = vmul.f32 %v254, %v269
      %v275 = vmul.f32 %v257, %v270
      %v276 = vmul.f32 %v262, %v271
      %v277 = vmul.f32 %v272, 0.044715
      %v278 = vmul.f32 %v273, 0.044715
      %v279 = vmul.f32 %v274, 0.044715
      %v280 = vmul.f32 %v275, 0.044715
      %v281 = vmul.f32 %v276, 0.044715
      %v282 = vadd.f32 %v246, %v277
      %v283 = vadd.f32 %v249, %v278
      %v284 = vadd.f32 %v254, %v279
      %v285 = vadd.f32 %v257, %v280
      %v286 = vadd.f32 %v262, %v281
      %v287 = vmul.f32 %v282, 0.7978846
      %v288 = vmul.f32 %v283, 0.7978846
      %v289 = vmul.f32 %v284, 0.7978846
      %v290 = vmul.f32 %v285, 0.7978846
      %v291 = vmul.f32 %v286, 0.7978846
      %v292 = vtanh.pop %v287
      %v293 = vtanh.pop %v288
      %v294 = vtanh.pop %v289
      %v295 = vtanh.pop %v290
      %v296 = vtanh.pop %v291
      %v297 = vadd.f32 %v292, 1.0
      %v298 = vadd.f32 %v293, 1.0
      %v299 = vadd.f32 %v294, 1.0
      %v300 = vadd.f32 %v295, 1.0
      %v301 = vadd.f32 %v296, 1.0
      %v302 = vmul.f32 %v297, 0.5
      %v303 = vmul.f32 %v298, 0.5
      %v304 = vmul.f32 %v299, 0.5
      %v305 = vmul.f32 %v300, 0.5
      %v306 = vmul.f32 %v301, 0.5
      %v307 = vmul.f32 %v246, %v302
      %v308 = vmul.f32 %v249, %v303
      %v309 = vmul.f32 %v254, %v304
      %v310 = vmul.f32 %v257, %v305
      %v311 = vmul.f32 %v262, %v306
      %vm312 = vcmask 261120
      %313 = vst.msk [vmem:[%s143] sm:$0xff] %vm312, %v307
      %314 = vst.msk [vmem:[%s143 + $0x8] sm:$0xff] %vm312, %v308
      %315 = vst.msk [vmem:[%s143 + $0x10] sm:$0xff] %vm312, %v309
      %316 = vst.msk [vmem:[%s143 + $0x18] sm:$0xff] %vm312, %v310
      %vm317 = vcmask 260096
      %318 = vst.msk [vmem:[%s143 + $0x20] sm:$0x7f] %vm317, %v311
      %p319 = scmp.lt.s32.totalorder %s13, 1
      %s320 = scalar_select %p319, %s13, 1
      %s321 = smul.addr %s320, 5
      %s322 = smul.addr %s321, 8
      %s323 = scalar_lea.vmem %s2, %s322
      // Predicated region
      $region29: #{forward.4} parent=27 // pred_check
        %p324 = pneg %p78
      $region30: #{forward.4} parent=27 // pred_check_branch
        %326 = sbr.rel (%p324) target = $region32
      $region31: #{forward.4} parent=27 // pred_region
        _
      $region32: #{forward.4} parent=27 // pred_fallthru
        _
    $region28: #{forward.4} parent=5 // pred_fallthru
      _
    %p327 = scmp.le.s32.totalorder 2, %s8
    // Predicated region
    $region33: #{forward.4} parent=5 // pred_check
      %p328 = pneg %p327
    $region34: #{forward.4} parent=5 // pred_check_branch
      %330 = sbr.rel (%p328) target = $region36
    $region35: #{forward.4} parent=5 // pred_region
      %s331 = ssub.s32 %s8, 2
      // Predicated region
      $region37: #{forward.4} parent=35 // pred_check
        %p332 = pneg %p84
      $region38: #{forward.4} parent=35 // pred_check_branch
        %334 = sbr.rel (%p332) target = $region40
      $region39: #{forward.4} parent=35 // pred_region
        %p335 = scmp.lt.s32.totalorder %s14, 1
        %s336 = scalar_select %p335, %s14, 1
        %s337 = smul.addr %s336, 5
        %s338 = smul.addr %s337, 8
        %s339 = scalar_lea.vmem %s2, %s338
      $region40: #{forward.4} parent=35 // pred_fallthru
        _
    $region36: #{forward.4} parent=5 // pred_fallthru
      _
  $region6: #{forward.4} parent=0 // loop_footer
    %s12 = sadd.s32 1, %s8
  $region7: #{forward.4} parent=0 // loop_footer_branch
    %7 = sbr.rel target = $region3
  $region8: #{forward.4} parent=0 // loop_exit
    _

// kernel: forward.5
$region0: #{forward.5}
  #allocation0 [shape = 'u32[]', space=smem, size = 0x4, offset = 0x4, fixed_abs, tag = 'smem constant byte address 0x4 - core index']
  #allocation1 [shape = 'u32[144,128]{1,0:T(1,128)}', space=vmem, size = 0x12000, scoped, tag = 'internal scratch']
  %s0 = inlined_call_operand.vmem [shape: f32[2,39,32], index: 0, kind: input, shape index: {}]
  %s1 = inlined_call_operand.vmem [shape: f32[1,32], index: 1, kind: input, shape index: {}]
  %s2 = inlined_call_operand.vmem [shape: f32[1,32], index: 2, kind: input, shape index: {}]
  %s3 = inlined_call_operand.vmem [shape: bf16[32,64], index: 3, kind: input, shape index: {}]
  %s4 = inlined_call_operand.vmem [shape: f32[1,64], index: 4, kind: input, shape index: {}]
  %s5 = inlined_call_operand.vmem [shape: f32[1,64], index: 5, kind: input, shape index: {}]
  %s6 = inlined_call_operand.vmem [shape: f32[1,64], index: 6, kind: input, shape index: {}]
  %s7 = inlined_call_operand.vmem [shape: bf16[2,4,64,16], index: 7, kind: input, shape index: {}]
  %s8 = inlined_call_operand.vmem [shape: f32[2,4,1,16], index: 8, kind: input, shape index: {}]
  %s9 = inlined_call_operand.vmem [shape: bf16[2,4,64,16], index: 9, kind: input, shape index: {}]
  %s10 = inlined_call_operand.vmem [shape: f32[2,4,1,16], index: 10, kind: input, shape index: {}]
  %s11 = inlined_call_operand.vmem [shape: bf16[2,4,64,16], index: 11, kind: input, shape index: {}]
  %s12 = inlined_call_operand.vmem [shape: f32[2,4,1,16], index: 12, kind: input, shape index: {}]
  %s13 = inlined_call_operand.vmem [shape: bf16[2,4,16,64], index: 13, kind: input, shape index: {}]
  %s14 = inlined_call_operand.vmem [shape: f32[2,1,64], index: 14, kind: input, shape index: {}]
  %s15 = inlined_call_operand.vmem [shape: f32[2,1,64], index: 15, kind: input, shape index: {}]
  %s16 = inlined_call_operand.vmem [shape: f32[2,1,64], index: 16, kind: input, shape index: {}]
  %s17 = inlined_call_operand.vmem [shape: bf16[2,64,128], index: 17, kind: input, shape index: {}]
  %s18 = inlined_call_operand.vmem [shape: f32[2,1,128], index: 18, kind: input, shape index: {}]
  %s19 = inlined_call_operand.vmem [shape: bf16[2,128,64], index: 19, kind: input, shape index: {}]
  %s20 = inlined_call_operand.vmem [shape: f32[2,1,64], index: 20, kind: input, shape index: {}]
  %s21 = inlined_call_operand.vmem [shape: f32[2,1,64], index: 21, kind: input, shape index: {}]
  %s22 = inlined_call_operand.vmem [shape: f32[2,1,64], index: 22, kind: input, shape index: {}]
  %s23 = inlined_call_operand.vmem [shape: f32[3,2,39,64], index: 23, kind: output, shape index: {}]
  %s24 = sld [smem:[#allocation0]]
  $region159: #{forward.5} parent=0
    _
  %s26 = ssub.s32 1, %s24
  %s27 = scalar_select 0, %s26, %s24
  $region1: #{forward.5} parent=0
    #allocation2 [shape = 'u8[122880]{0}', space=vmem, size = 0x1e000, scoped, tag = 'output window, operand 0']
    loop: start=0, step=1, limit=4
    $region2: #{forward.5} parent=1 // loop_pre_header
      _
    $region3: #{forward.5} parent=1 // loop_header
      %s29 = sphi 0, %s33
      %p30 = scmp.ge.s32.totalorder %s29, 4
      %s39 = sphi 0, %s41
      %s42 = sphi 0, %s39
      %s43 = sphi 0, %s42
      %s59 = sphi 0, %s43
      %s63 = sphi 0, %s63
      %s65 = sphi 0, %s63
      %s66 = sphi 0, %s65
      %s80 = sphi 0, %s66
      %s84 = sphi 0, %s84
      %s86 = sphi 0, %s84
      %s87 = sphi 0, %s86
      %s101 = sphi 0, %s87
      %s105 = sphi 0, %s105
      %s107 = sphi 0, %s105
      %s108 = sphi 0, %s107
      %s122 = sphi 0, %s108
      %s126 = sphi 0, %s126
      %s128 = sphi 0, %s126
      %s129 = sphi 0, %s128
      %s143 = sphi 0, %s129
      %s147 = sphi 0, %s147
      %s149 = sphi 0, %s147
      %s150 = sphi 0, %s149
      %s164 = sphi 0, %s150
      %s168 = sphi 0, %s168
      %s170 = sphi 0, %s168
      %s171 = sphi 0, %s170
      %s185 = sphi 0, %s171
      %s189 = sphi 0, %s189
      %s191 = sphi 0, %s189
      %s192 = sphi 0, %s191
      %s206 = sphi 0, %s192
      %s210 = sphi 0, %s210
      %s212 = sphi 0, %s210
      %s213 = sphi 0, %s212
      %s227 = sphi 0, %s213
      %s231 = sphi 0, %s231
      %s233 = sphi 0, %s231
      %s234 = sphi 0, %s233
      %s248 = sphi 0, %s234
      %s252 = sphi 0, %s252
      %s254 = sphi 0, %s252
      %s255 = sphi 0, %s254
      %s269 = sphi 0, %s255
      %s273 = sphi 0, %s273
      %s275 = sphi 0, %s273
      %s276 = sphi 0, %s275
      %s290 = sphi 0, %s276
      %s294 = sphi 0, %s294
      %s296 = sphi 0, %s294
      %s297 = sphi 0, %s296
      %s311 = sphi 0, %s297
      %s315 = sphi 0, %s315
      %s317 = sphi 0, %s315
      %s318 = sphi 0, %s317
      %s332 = sphi 0, %s318
      %s336 = sphi 0, %s336
      %s338 = sphi 0, %s336
      %s339 = sphi 0, %s338
      %s353 = sphi 0, %s339
      %s357 = sphi 0, %s357
      %s359 = sphi 0, %s357
      %s360 = sphi 0, %s359
      %s374 = sphi 0, %s360
      %s378 = sphi 0, %s378
      %s380 = sphi 0, %s378
      %s381 = sphi 0, %s380
      %s395 = sphi 0, %s381
      %s399 = sphi 0, %s399
      %s401 = sphi 0, %s399
      %s402 = sphi 0, %s401
      %s416 = sphi 0, %s402
      %s420 = sphi 0, %s420
      %s422 = sphi 0, %s420
      %s423 = sphi 0, %s422
      %s437 = sphi 0, %s423
      %s441 = sphi 0, %s441
      %s443 = sphi 0, %s441
      %s444 = sphi 0, %s443
      %s458 = sphi 0, %s444
      %s462 = sphi 0, %s462
      %s464 = sphi 0, %s462
      %s465 = sphi 0, %s464
      %s479 = sphi 0, %s465
      %s483 = sphi 0, %s483
      %s485 = sphi 0, %s483
      %s486 = sphi 0, %s485
      %s500 = sphi 0, %s486
      %s504 = sphi 0, %s504
      %s506 = sphi 0, %s504
      %s507 = sphi 0, %s506
      %s521 = sphi 0, %s507
      %s527 = sphi 0, %s529
      %s530 = sphi 0, %s527
      %s531 = sphi 0, %s530
      %s547 = sphi 0, %s531
    $region4: #{forward.5} parent=1 // loop_header_branch
      %32 = sbr.rel (%p30) target = $region8
    $region5: #{forward.5} parent=1 // loop_body
      %s34 = ssub.s32 %s29, 1
      %s35 = ssub.s32 %s29, 2
      %s36 = sadd.s32 %s29, 1
      %s37 = ssub.s32 %s29, %s36
      %p38 = scmp.eq.s32.totalorder %s37, 0
      %s40 = sadd.s32 %s39, 1
      %s41 = scalar_select %p38, %s39, %s40
      %p44 = pneg %p38
      %p45 = scmp.eq.s32.totalorder %s29, 1
      %p46 = por %p44, %p45
      %p47 = scmp.ne.s32.totalorder %s39, %s42
      %p48 = scmp.eq.s32.totalorder %s29, 0
      %p49 = por %p47, %p48
      %p50 = scmp.ne.s32.totalorder %s39, %s42
      %p51 = scmp.eq.s32.totalorder %s34, 1
      %p52 = por %p50, %p51
      %p53 = scmp.ne.s32.totalorder %s42, %s43
      %p54 = scmp.eq.s32.totalorder %s34, 0
      %p55 = por %p53, %p54
      %p56 = scmp.ne.s32.totalorder %s42, %s43
      %p57 = scmp.eq.s32.totalorder %s35, 1
      %p58 = por %p56, %p57
      %p60 = scmp.ne.s32.totalorder %s43, %s59
      %p61 = scmp.eq.s32.totalorder %s35, 0
      %p62 = por %p60, %p61
      %s64 = sadd.s32 %s63, 1
      %p67 = scmp.eq.s32.totalorder %s29, 1
      %p68 = scmp.ne.s32.totalorder %s63, %s65
      %p69 = scmp.eq.s32.totalorder %s29, 0
      %p70 = por %p68, %p69
      %p71 = scmp.ne.s32.totalorder %s63, %s65
      %p72 = scmp.eq.s32.totalorder %s34, 1
      %p73 = por %p71, %p72
      %p74 = scmp.ne.s32.totalorder %s65, %s66
      %p75 = scmp.eq.s32.totalorder %s34, 0
      %p76 = por %p74, %p75
      %p77 = scmp.ne.s32.totalorder %s65, %s66
      %p78 = scmp.eq.s32.totalorder %s35, 1
      %p79 = por %p77, %p78
      %p81 = scmp.ne.s32.totalorder %s66, %s80
      %p82 = scmp.eq.s32.totalorder %s35, 0
      %p83 = por %p81, %p82
      %s85 = sadd.s32 %s84, 1
      %p88 = scmp.eq.s32.totalorder %s29, 1
      %p89 = scmp.ne.s32.totalorder %s84, %s86
      %p90 = scmp.eq.s32.totalorder %s29, 0
      %p91 = por %p89, %p90
      %p92 = scmp.ne.s32.totalorder %s84, %s86
      %p93 = scmp.eq.s32.totalorder %s34, 1
      %p94 = por %p92, %p93
      %p95 = scmp.ne.s32.totalorder %s86, %s87
      %p96 = scmp.eq.s32.totalorder %s34, 0
      %p97 = por %p95, %p96
      %p98 = scmp.ne.s32.totalorder %s86, %s87
      %p99 = scmp.eq.s32.totalorder %s35, 1
      %p100 = por %p98, %p99
      %p102 = scmp.ne.s32.totalorder %s87, %s101
      %p103 = scmp.eq.s32.totalorder %s35, 0
      %p104 = por %p102, %p103
      %s106 = sadd.s32 %s105, 1
      %p109 = scmp.eq.s32.totalorder %s29, 1
      %p110 = scmp.ne.s32.totalorder %s105, %s107
      %p111 = scmp.eq.s32.totalorder %s29, 0
      %p112 = por %p110, %p111
      %p113 = scmp.ne.s32.totalorder %s105, %s107
      %p114 = scmp.eq.s32.totalorder %s34, 1
      %p115 = por %p113, %p114
      %p116 = scmp.ne.s32.totalorder %s107, %s108
      %p117 = scmp.eq.s32.totalorder %s34, 0
      %p118 = por %p116, %p117
      %p119 = scmp.ne.s32.totalorder %s107, %s108
      %p120 = scmp.eq.s32.totalorder %s35, 1
      %p121 = por %p119, %p120
      %p123 = scmp.ne.s32.totalorder %s108, %s122
      %p124 = scmp.eq.s32.totalorder %s35, 0
      %p125 = por %p123, %p124
      %s127 = sadd.s32 %s126, 1
      %p130 = scmp.eq.s32.totalorder %s29, 1
      %p131 = scmp.ne.s32.totalorder %s126, %s128
      %p132 = scmp.eq.s32.totalorder %s29, 0
      %p133 = por %p131, %p132
      %p134 = scmp.ne.s32.totalorder %s126, %s128
      %p135 = scmp.eq.s32.totalorder %s34, 1
      %p136 = por %p134, %p135
      %p137 = scmp.ne.s32.totalorder %s128, %s129
      %p138 = scmp.eq.s32.totalorder %s34, 0
      %p139 = por %p137, %p138
      %p140 = scmp.ne.s32.totalorder %s128, %s129
      %p141 = scmp.eq.s32.totalorder %s35, 1
      %p142 = por %p140, %p141
      %p144 = scmp.ne.s32.totalorder %s129, %s143
      %p145 = scmp.eq.s32.totalorder %s35, 0
      %p146 = por %p144, %p145
      %s148 = sadd.s32 %s147, 1
      %p151 = scmp.eq.s32.totalorder %s29, 1
      %p152 = scmp.ne.s32.totalorder %s147, %s149
      %p153 = scmp.eq.s32.totalorder %s29, 0
      %p154 = por %p152, %p153
      %p155 = scmp.ne.s32.totalorder %s147, %s149
      %p156 = scmp.eq.s32.totalorder %s34, 1
      %p157 = por %p155, %p156
      %p158 = scmp.ne.s32.totalorder %s149, %s150
      %p159 = scmp.eq.s32.totalorder %s34, 0
      %p160 = por %p158, %p159
      %p161 = scmp.ne.s32.totalorder %s149, %s150
      %p162 = scmp.eq.s32.totalorder %s35, 1
      %p163 = por %p161, %p162
      %p165 = scmp.ne.s32.totalorder %s150, %s164
      %p166 = scmp.eq.s32.totalorder %s35, 0
      %p167 = por %p165, %p166
      %s169 = sadd.s32 %s168, 1
      %p172 = scmp.eq.s32.totalorder %s29, 1
      %p173 = scmp.ne.s32.totalorder %s168, %s170
      %p174 = scmp.eq.s32.totalorder %s29, 0
      %p175 = por %p173, %p174
      %p176 = scmp.ne.s32.totalorder %s168, %s170
      %p177 = scmp.eq.s32.totalorder %s34, 1
      %p178 = por %p176, %p177
      %p179 = scmp.ne.s32.totalorder %s170, %s171
      %p180 = scmp.eq.s32.totalorder %s34, 0
      %p181 = por %p179, %p180
      %p182 = scmp.ne.s32.totalorder %s170, %s171
      %p183 = scmp.eq.s32.totalorder %s35, 1
      %p184 = por %p182, %p183
      %p186 = scmp.ne.s32.totalorder %s171, %s185
      %p187 = scmp.eq.s32.totalorder %s35, 0
      %p188 = por %p186, %p187
      %s190 = sadd.s32 %s189, 1
      %p193 = scmp.eq.s32.totalorder %s29, 1
      %p194 = scmp.ne.s32.totalorder %s189, %s191
      %p195 = scmp.eq.s32.totalorder %s29, 0
      %p196 = por %p194, %p195
      %p197 = scmp.ne.s32.totalorder %s189, %s191
      %p198 = scmp.eq.s32.totalorder %s34, 1
      %p199 = por %p197, %p198
      %p200 = scmp.ne.s32.totalorder %s191, %s192
      %p201 = scmp.eq.s32.totalorder %s34, 0
      %p202 = por %p200, %p201
      %p203 = scmp.ne.s32.totalorder %s191, %s192
      %p204 = scmp.eq.s32.totalorder %s35, 1
      %p205 = por %p203, %p204
      %p207 = scmp.ne.s32.totalorder %s192, %s206
      %p208 = scmp.eq.s32.totalorder %s35, 0
      %p209 = por %p207, %p208
      %s211 = sadd.s32 %s210, 1
      %p214 = scmp.eq.s32.totalorder %s29, 1
      %p215 = scmp.ne.s32.totalorder %s210, %s212
      %p216 = scmp.eq.s32.totalorder %s29, 0
      %p217 = por %p215, %p216
      %p218 = scmp.ne.s32.totalorder %s210, %s212
      %p219 = scmp.eq.s32.totalorder %s34, 1
      %p220 = por %p218, %p219
      %p221 = scmp.ne.s32.totalorder %s212, %s213
      %p222 = scmp.eq.s32.totalorder %s34, 0
      %p223 = por %p221, %p222
      %p224 = scmp.ne.s32.totalorder %s212, %s213
      %p225 = scmp.eq.s32.totalorder %s35, 1
      %p226 = por %p224, %p225
      %p228 = scmp.ne.s32.totalorder %s213, %s227
      %p229 = scmp.eq.s32.totalorder %s35, 0
      %p230 = por %p228, %p229
      %s232 = sadd.s32 %s231, 1
      %p235 = scmp.eq.s32.totalorder %s29, 1
      %p236 = scmp.ne.s32.totalorder %s231, %s233
      %p237 = scmp.eq.s32.totalorder %s29, 0
      %p238 = por %p236, %p237
      %p239 = scmp.ne.s32.totalorder %s231, %s233
      %p240 = scmp.eq.s32.totalorder %s34, 1
      %p241 = por %p239, %p240
      %p242 = scmp.ne.s32.totalorder %s233, %s234
      %p243 = scmp.eq.s32.totalorder %s34, 0
      %p244 = por %p242, %p243
      %p245 = scmp.ne.s32.totalorder %s233, %s234
      %p246 = scmp.eq.s32.totalorder %s35, 1
      %p247 = por %p245, %p246
      %p249 = scmp.ne.s32.totalorder %s234, %s248
      %p250 = scmp.eq.s32.totalorder %s35, 0
      %p251 = por %p249, %p250
      %s253 = sadd.s32 %s252, 1
      %p256 = scmp.eq.s32.totalorder %s29, 1
      %p257 = scmp.ne.s32.totalorder %s252, %s254
      %p258 = scmp.eq.s32.totalorder %s29, 0
      %p259 = por %p257, %p258
      %p260 = scmp.ne.s32.totalorder %s252, %s254
      %p261 = scmp.eq.s32.totalorder %s34, 1
      %p262 = por %p260, %p261
      %p263 = scmp.ne.s32.totalorder %s254, %s255
      %p264 = scmp.eq.s32.totalorder %s34, 0
      %p265 = por %p263, %p264
      %p266 = scmp.ne.s32.totalorder %s254, %s255
      %p267 = scmp.eq.s32.totalorder %s35, 1
      %p268 = por %p266, %p267
      %p270 = scmp.ne.s32.totalorder %s255, %s269
      %p271 = scmp.eq.s32.totalorder %s35, 0
      %p272 = por %p270, %p271
      %s274 = sadd.s32 %s273, 1
      %p277 = scmp.eq.s32.totalorder %s29, 1
      %p278 = scmp.ne.s32.totalorder %s273, %s275
      %p279 = scmp.eq.s32.totalorder %s29, 0
      %p280 = por %p278, %p279
      %p281 = scmp.ne.s32.totalorder %s273, %s275
      %p282 = scmp.eq.s32.totalorder %s34, 1
      %p283 = por %p281, %p282
      %p284 = scmp.ne.s32.totalorder %s275, %s276
      %p285 = scmp.eq.s32.totalorder %s34, 0
      %p286 = por %p284, %p285
      %p287 = scmp.ne.s32.totalorder %s275, %s276
      %p288 = scmp.eq.s32.totalorder %s35, 1
      %p289 = por %p287, %p288
      %p291 = scmp.ne.s32.totalorder %s276, %s290
      %p292 = scmp.eq.s32.totalorder %s35, 0
      %p293 = por %p291, %p292
      %s295 = sadd.s32 %s294, 1
      %p298 = scmp.eq.s32.totalorder %s29, 1
      %p299 = scmp.ne.s32.totalorder %s294, %s296
      %p300 = scmp.eq.s32.totalorder %s29, 0
      %p301 = por %p299, %p300
      %p302 = scmp.ne.s32.totalorder %s294, %s296
      %p303 = scmp.eq.s32.totalorder %s34, 1
      %p304 = por %p302, %p303
      %p305 = scmp.ne.s32.totalorder %s296, %s297
      %p306 = scmp.eq.s32.totalorder %s34, 0
      %p307 = por %p305, %p306
      %p308 = scmp.ne.s32.totalorder %s296, %s297
      %p309 = scmp.eq.s32.totalorder %s35, 1
      %p310 = por %p308, %p309
      %p312 = scmp.ne.s32.totalorder %s297, %s311
      %p313 = scmp.eq.s32.totalorder %s35, 0
      %p314 = por %p312, %p313
      %s316 = sadd.s32 %s315, 1
      %p319 = scmp.eq.s32.totalorder %s29, 1
      %p320 = scmp.ne.s32.totalorder %s315, %s317
      %p321 = scmp.eq.s32.totalorder %s29, 0
      %p322 = por %p320, %p321
      %p323 = scmp.ne.s32.totalorder %s315, %s317
      %p324 = scmp.eq.s32.totalorder %s34, 1
      %p325 = por %p323, %p324
      %p326 = scmp.ne.s32.totalorder %s317, %s318
      %p327 = scmp.eq.s32.totalorder %s34, 0
      %p328 = por %p326, %p327
      %p329 = scmp.ne.s32.totalorder %s317, %s318
      %p330 = scmp.eq.s32.totalorder %s35, 1
      %p331 = por %p329, %p330
      %p333 = scmp.ne.s32.totalorder %s318, %s332
      %p334 = scmp.eq.s32.totalorder %s35, 0
      %p335 = por %p333, %p334
      %s337 = sadd.s32 %s336, 1
      %p340 = scmp.eq.s32.totalorder %s29, 1
      %p341 = scmp.ne.s32.totalorder %s336, %s338
      %p342 = scmp.eq.s32.totalorder %s29, 0
      %p343 = por %p341, %p342
      %p344 = scmp.ne.s32.totalorder %s336, %s338
      %p345 = scmp.eq.s32.totalorder %s34, 1
      %p346 = por %p344, %p345
      %p347 = scmp.ne.s32.totalorder %s338, %s339
      %p348 = scmp.eq.s32.totalorder %s34, 0
      %p349 = por %p347, %p348
      %p350 = scmp.ne.s32.totalorder %s338, %s339
      %p351 = scmp.eq.s32.totalorder %s35, 1
      %p352 = por %p350, %p351
      %p354 = scmp.ne.s32.totalorder %s339, %s353
      %p355 = scmp.eq.s32.totalorder %s35, 0
      %p356 = por %p354, %p355
      %s358 = sadd.s32 %s357, 1
      %p361 = scmp.eq.s32.totalorder %s29, 1
      %p362 = scmp.ne.s32.totalorder %s357, %s359
      %p363 = scmp.eq.s32.totalorder %s29, 0
      %p364 = por %p362, %p363
      %p365 = scmp.ne.s32.totalorder %s357, %s359
      %p366 = scmp.eq.s32.totalorder %s34, 1
      %p367 = por %p365, %p366
      %p368 = scmp.ne.s32.totalorder %s359, %s360
      %p369 = scmp.eq.s32.totalorder %s34, 0
      %p370 = por %p368, %p369
      %p371 = scmp.ne.s32.totalorder %s359, %s360
      %p372 = scmp.eq.s32.totalorder %s35, 1
      %p373 = por %p371, %p372
      %p375 = scmp.ne.s32.totalorder %s360, %s374
      %p376 = scmp.eq.s32.totalorder %s35, 0
      %p377 = por %p375, %p376
      %s379 = sadd.s32 %s378, 1
      %p382 = scmp.eq.s32.totalorder %s29, 1
      %p383 = scmp.ne.s32.totalorder %s378, %s380
      %p384 = scmp.eq.s32.totalorder %s29, 0
      %p385 = por %p383, %p384
      %p386 = scmp.ne.s32.totalorder %s378, %s380
      %p387 = scmp.eq.s32.totalorder %s34, 1
      %p388 = por %p386, %p387
      %p389 = scmp.ne.s32.totalorder %s380, %s381
      %p390 = scmp.eq.s32.totalorder %s34, 0
      %p391 = por %p389, %p390
      %p392 = scmp.ne.s32.totalorder %s380, %s381
      %p393 = scmp.eq.s32.totalorder %s35, 1
      %p394 = por %p392, %p393
      %p396 = scmp.ne.s32.totalorder %s381, %s395
      %p397 = scmp.eq.s32.totalorder %s35, 0
      %p398 = por %p396, %p397
      %s400 = sadd.s32 %s399, 1
      %p403 = scmp.eq.s32.totalorder %s29, 1
      %p404 = scmp.ne.s32.totalorder %s399, %s401
      %p405 = scmp.eq.s32.totalorder %s29, 0
      %p406 = por %p404, %p405
      %p407 = scmp.ne.s32.totalorder %s399, %s401
      %p408 = scmp.eq.s32.totalorder %s34, 1
      %p409 = por %p407, %p408
      %p410 = scmp.ne.s32.totalorder %s401, %s402
      %p411 = scmp.eq.s32.totalorder %s34, 0
      %p412 = por %p410, %p411
      %p413 = scmp.ne.s32.totalorder %s401, %s402
      %p414 = scmp.eq.s32.totalorder %s35, 1
      %p415 = por %p413, %p414
      %p417 = scmp.ne.s32.totalorder %s402, %s416
      %p418 = scmp.eq.s32.totalorder %s35, 0
      %p419 = por %p417, %p418
      %s421 = sadd.s32 %s420, 1
      %p424 = scmp.eq.s32.totalorder %s29, 1
      %p425 = scmp.ne.s32.totalorder %s420, %s422
      %p426 = scmp.eq.s32.totalorder %s29, 0
      %p427 = por %p425, %p426
      %p428 = scmp.ne.s32.totalorder %s420, %s422
      %p429 = scmp.eq.s32.totalorder %s34, 1
      %p430 = por %p428, %p429
      %p431 = scmp.ne.s32.totalorder %s422, %s423
      %p432 = scmp.eq.s32.totalorder %s34, 0
      %p433 = por %p431, %p432
      %p434 = scmp.ne.s32.totalorder %s422, %s423
      %p435 = scmp.eq.s32.totalorder %s35, 1
      %p436 = por %p434, %p435
      %p438 = scmp.ne.s32.totalorder %s423, %s437
      %p439 = scmp.eq.s32.totalorder %s35, 0
      %p440 = por %p438, %p439
      %s442 = sadd.s32 %s441, 1
      %p445 = scmp.eq.s32.totalorder %s29, 1
      %p446 = scmp.ne.s32.totalorder %s441, %s443
      %p447 = scmp.eq.s32.totalorder %s29, 0
      %p448 = por %p446, %p447
      %p449 = scmp.ne.s32.totalorder %s441, %s443
      %p450 = scmp.eq.s32.totalorder %s34, 1
      %p451 = por %p449, %p450
      %p452 = scmp.ne.s32.totalorder %s443, %s444
      %p453 = scmp.eq.s32.totalorder %s34, 0
      %p454 = por %p452, %p453
      %p455 = scmp.ne.s32.totalorder %s443, %s444
      %p456 = scmp.eq.s32.totalorder %s35, 1
      %p457 = por %p455, %p456
      %p459 = scmp.ne.s32.totalorder %s444, %s458
      %p460 = scmp.eq.s32.totalorder %s35, 0
      %p461 = por %p459, %p460
      %s463 = sadd.s32 %s462, 1
      %p466 = scmp.eq.s32.totalorder %s29, 1
      %p467 = scmp.ne.s32.totalorder %s462, %s464
      %p468 = scmp.eq.s32.totalorder %s29, 0
      %p469 = por %p467, %p468
      %p470 = scmp.ne.s32.totalorder %s462, %s464
      %p471 = scmp.eq.s32.totalorder %s34, 1
      %p472 = por %p470, %p471
      %p473 = scmp.ne.s32.totalorder %s464, %s465
      %p474 = scmp.eq.s32.totalorder %s34, 0
      %p475 = por %p473, %p474
      %p476 = scmp.ne.s32.totalorder %s464, %s465
      %p477 = scmp.eq.s32.totalorder %s35, 1
      %p478 = por %p476, %p477
      %p480 = scmp.ne.s32.totalorder %s465, %s479
      %p481 = scmp.eq.s32.totalorder %s35, 0
      %p482 = por %p480, %p481
      %s484 = sadd.s32 %s483, 1
      %p487 = scmp.eq.s32.totalorder %s29, 1
      %p488 = scmp.ne.s32.totalorder %s483, %s485
      %p489 = scmp.eq.s32.totalorder %s29, 0
      %p490 = por %p488, %p489
      %p491 = scmp.ne.s32.totalorder %s483, %s485
      %p492 = scmp.eq.s32.totalorder %s34, 1
      %p493 = por %p491, %p492
      %p494 = scmp.ne.s32.totalorder %s485, %s486
      %p495 = scmp.eq.s32.totalorder %s34, 0
      %p496 = por %p494, %p495
      %p497 = scmp.ne.s32.totalorder %s485, %s486
      %p498 = scmp.eq.s32.totalorder %s35, 1
      %p499 = por %p497, %p498
      %p501 = scmp.ne.s32.totalorder %s486, %s500
      %p502 = scmp.eq.s32.totalorder %s35, 0
      %p503 = por %p501, %p502
      %s505 = sadd.s32 %s504, 1
      %p508 = scmp.eq.s32.totalorder %s29, 1
      %p509 = scmp.ne.s32.totalorder %s504, %s506
      %p510 = scmp.eq.s32.totalorder %s29, 0
      %p511 = por %p509, %p510
      %p512 = scmp.ne.s32.totalorder %s504, %s506
      %p513 = scmp.eq.s32.totalorder %s34, 1
      %p514 = por %p512, %p513
      %p515 = scmp.ne.s32.totalorder %s506, %s507
      %p516 = scmp.eq.s32.totalorder %s34, 0
      %p517 = por %p515, %p516
      %p518 = scmp.ne.s32.totalorder %s506, %s507
      %p519 = scmp.eq.s32.totalorder %s35, 1
      %p520 = por %p518, %p519
      %p522 = scmp.ne.s32.totalorder %s507, %s521
      %p523 = scmp.eq.s32.totalorder %s35, 0
      %p524 = por %p522, %p523
      %s525 = ssub.s32 %s29, %s36
      %p526 = scmp.eq.s32.totalorder %s525, 0
      %s528 = sadd.s32 %s527, 1
      %s529 = scalar_select %p526, %s527, %s528
      %p532 = pneg %p526
      %p533 = scmp.eq.s32.totalorder %s29, 1
      %p534 = por %p532, %p533
      %p535 = scmp.ne.s32.totalorder %s527, %s530
      %p536 = scmp.eq.s32.totalorder %s29, 0
      %p537 = por %p535, %p536
      %p538 = scmp.ne.s32.totalorder %s527, %s530
      %p539 = scmp.eq.s32.totalorder %s34, 1
      %p540 = por %p538, %p539
      %p541 = scmp.ne.s32.totalorder %s530, %s531
      %p542 = scmp.eq.s32.totalorder %s34, 0
      %p543 = por %p541, %p542
      %p544 = scmp.ne.s32.totalorder %s530, %s531
      %p545 = scmp.eq.s32.totalorder %s35, 1
      %p546 = por %p544, %p545
      %p548 = scmp.ne.s32.totalorder %s531, %s547
      %p549 = scmp.eq.s32.totalorder %s35, 0
      %p550 = por %p548, %p549
      %p551 = scmp.le.s32.totalorder 1, %s29
      %p552 = scmp.lt.s32.totalorder %s29, 3
      %p553 = pnand %p551, %p552
      %p554 = pneg %p553
      // Predicated region
      $region9: #{forward.5} parent=5 // pred_check
        _
      $region10: #{forward.5} parent=5 // pred_check_branch
        %556 = sbr.rel (%p553) target = $region12
      $region11: #{forward.5} parent=5 // pred_region
        %s557 = ssub.s32 %s29, 1
        // Predicated region
        $region13: #{forward.5} parent=11 // pred_check
          %p558 = pneg %p76
        $region14: #{forward.5} parent=11 // pred_check_branch
          %560 = sbr.rel (%p558) target = $region16
        $region15: #{forward.5} parent=11 // pred_region
          _
        $region16: #{forward.5} parent=11 // pred_fallthru
          _
        // Predicated region
        $region17: #{forward.5} parent=11 // pred_check
          %p561 = pneg %p97
        $region18: #{forward.5} parent=11 // pred_check_branch
          %563 = sbr.rel (%p561) target = $region20
        $region19: #{forward.5} parent=11 // pred_region
          _
        $region20: #{forward.5} parent=11 // pred_fallthru
          _
        // Predicated region
        $region21: #{forward.5} parent=11 // pred_check
          %p564 = pneg %p118
        $region22: #{forward.5} parent=11 // pred_check_branch
          %566 = sbr.rel (%p564) target = $region24
        $region23: #{forward.5} parent=11 // pred_region
          _
        $region24: #{forward.5} parent=11 // pred_fallthru
          _
        // Predicated region
        $region25: #{forward.5} parent=11 // pred_check
          %p567 = pneg %p139
        $region26: #{forward.5} parent=11 // pred_check_branch
          %569 = sbr.rel (%p567) target = $region28
        $region27: #{forward.5} parent=11 // pred_region
          _
        $region28: #{forward.5} parent=11 // pred_fallthru
          _
        // Predicated region
        $region29: #{forward.5} parent=11 // pred_check
          %p570 = pneg %p160
        $region30: #{forward.5} parent=11 // pred_check_branch
          %572 = sbr.rel (%p570) target = $region32
        $region31: #{forward.5} parent=11 // pred_region
          _
        $region32: #{forward.5} parent=11 // pred_fallthru
          _
        // Predicated region
        $region33: #{forward.5} parent=11 // pred_check
          %p573 = pneg %p181
        $region34: #{forward.5} parent=11 // pred_check_branch
          %575 = sbr.rel (%p573) target = $region36
        $region35: #{forward.5} parent=11 // pred_region
          _
        $region36: #{forward.5} parent=11 // pred_fallthru
          _
        // Predicated region
        $region37: #{forward.5} parent=11 // pred_check
          %p576 = pneg %p202
        $region38: #{forward.5} parent=11 // pred_check_branch
          %578 = sbr.rel (%p576) target = $region40
        $region39: #{forward.5} parent=11 // pred_region
          _
        $region40: #{forward.5} parent=11 // pred_fallthru
          _
        // Predicated region
        $region41: #{forward.5} parent=11 // pred_check
          %p579 = pneg %p223
        $region42: #{forward.5} parent=11 // pred_check_branch
          %581 = sbr.rel (%p579) target = $region44
        $region43: #{forward.5} parent=11 // pred_region
          _
        $region44: #{forward.5} parent=11 // pred_fallthru
          _
        // Predicated region
        $region45: #{forward.5} parent=11 // pred_check
          %p582 = pneg %p244
        $region46: #{forward.5} parent=11 // pred_check_branch
          %584 = sbr.rel (%p582) target = $region48
        $region47: #{forward.5} parent=11 // pred_region
          _
        $region48: #{forward.5} parent=11 // pred_fallthru
          _
        // Predicated region
        $region49: #{forward.5} parent=11 // pred_check
          %p585 = pneg %p265
        $region50: #{forward.5} parent=11 // pred_check_branch
          %587 = sbr.rel (%p585) target = $region52
        $region51: #{forward.5} parent=11 // pred_region
          _
        $region52: #{forward.5} parent=11 // pred_fallthru
          _
        // Predicated region
        $region53: #{forward.5} parent=11 // pred_check
          %p588 = pneg %p286
        $region54: #{forward.5} parent=11 // pred_check_branch
          %590 = sbr.rel (%p588) target = $region56
        $region55: #{forward.5} parent=11 // pred_region
          _
        $region56: #{forward.5} parent=11 // pred_fallthru
          _
        // Predicated region
        $region57: #{forward.5} parent=11 // pred_check
          %p591 = pneg %p307
        $region58: #{forward.5} parent=11 // pred_check_branch
          %593 = sbr.rel (%p591) target = $region60
        $region59: #{forward.5} parent=11 // pred_region
          _
        $region60: #{forward.5} parent=11 // pred_fallthru
          _
        // Predicated region
        $region61: #{forward.5} parent=11 // pred_check
          %p594 = pneg %p328
        $region62: #{forward.5} parent=11 // pred_check_branch
          %596 = sbr.rel (%p594) target = $region64
        $region63: #{forward.5} parent=11 // pred_region
          _
        $region64: #{forward.5} parent=11 // pred_fallthru
          _
        // Predicated region
        $region65: #{forward.5} parent=11 // pred_check
          %p597 = pneg %p349
        $region66: #{forward.5} parent=11 // pred_check_branch
          %599 = sbr.rel (%p597) target = $region68
        $region67: #{forward.5} parent=11 // pred_region
          _
        $region68: #{forward.5} parent=11 // pred_fallthru
          _
        // Predicated region
        $region69: #{forward.5} parent=11 // pred_check
          %p600 = pneg %p370
        $region70: #{forward.5} parent=11 // pred_check_branch
          %602 = sbr.rel (%p600) target = $region72
        $region71: #{forward.5} parent=11 // pred_region
          _
        $region72: #{forward.5} parent=11 // pred_fallthru
          _
        // Predicated region
        $region73: #{forward.5} parent=11 // pred_check
          %p603 = pneg %p391
        $region74: #{forward.5} parent=11 // pred_check_branch
          %605 = sbr.rel (%p603) target = $region76
        $region75: #{forward.5} parent=11 // pred_region
          _
        $region76: #{forward.5} parent=11 // pred_fallthru
          _
        // Predicated region
        $region77: #{forward.5} parent=11 // pred_check
          %p606 = pneg %p412
        $region78: #{forward.5} parent=11 // pred_check_branch
          %608 = sbr.rel (%p606) target = $region80
        $region79: #{forward.5} parent=11 // pred_region
          _
        $region80: #{forward.5} parent=11 // pred_fallthru
          _
        // Predicated region
        $region81: #{forward.5} parent=11 // pred_check
          %p609 = pneg %p433
        $region82: #{forward.5} parent=11 // pred_check_branch
          %611 = sbr.rel (%p609) target = $region84
        $region83: #{forward.5} parent=11 // pred_region
          _
        $region84: #{forward.5} parent=11 // pred_fallthru
          _
        // Predicated region
        $region85: #{forward.5} parent=11 // pred_check
          %p612 = pneg %p454
        $region86: #{forward.5} parent=11 // pred_check_branch
          %614 = sbr.rel (%p612) target = $region88
        $region87: #{forward.5} parent=11 // pred_region
          _
        $region88: #{forward.5} parent=11 // pred_fallthru
          _
        // Predicated region
        $region89: #{forward.5} parent=11 // pred_check
          %p615 = pneg %p475
        $region90: #{forward.5} parent=11 // pred_check_branch
          %617 = sbr.rel (%p615) target = $region92
        $region91: #{forward.5} parent=11 // pred_region
          _
        $region92: #{forward.5} parent=11 // pred_fallthru
          _
        // Predicated region
        $region93: #{forward.5} parent=11 // pred_check
          %p618 = pneg %p496
        $region94: #{forward.5} parent=11 // pred_check_branch
          %620 = sbr.rel (%p618) target = $region96
        $region95: #{forward.5} parent=11 // pred_region
          _
        $region96: #{forward.5} parent=11 // pred_fallthru
          _
        // Predicated region
        $region97: #{forward.5} parent=11 // pred_check
          %p621 = pneg %p517
        $region98: #{forward.5} parent=11 // pred_check_branch
          %623 = sbr.rel (%p621) target = $region100
        $region99: #{forward.5} parent=11 // pred_region
          _
        $region100: #{forward.5} parent=11 // pred_fallthru
          _
      $region12: #{forward.5} parent=5 // pred_fallthru
        _
      %p624 = scmp.lt.s32.totalorder %s29, 2
      // Predicated region
      $region101: #{forward.5} parent=5 // pred_check
        %p625 = pneg %p624
      $region102: #{forward.5} parent=5 // pred_check_branch
        %627 = sbr.rel (%p625) target = $region104
      $region103: #{forward.5} parent=5 // pred_region
        // Predicated region
        $region105: #{forward.5} parent=103 // pred_check
          %p628 = pneg %p49
        $region106: #{forward.5} parent=103 // pred_check_branch
          %630 = sbr.rel (%p628) target = $region108
        $region107: #{forward.5} parent=103 // pred_region
          %p631 = scmp.lt.s32.totalorder %s29, 1
          %s632 = scalar_select %p631, %s29, 1
          %s633 = smul.addr %s632, 5
          %s634 = smul.addr %s633, 8
          %s635 = scalar_lea.vmem %s0, %s634
        $region108: #{forward.5} parent=103 // pred_fallthru
          _
      $region104: #{forward.5} parent=5 // pred_fallthru
        _
      %p636 = scmp.le.s32.totalorder 1, %s29
      %p637 = scmp.lt.s32.totalorder %s29, 3
      %p638 = pnand %p636, %p637
      %p639 = pneg %p638
      // Predicated region
      $region109: #{forward.5} parent=5 // pred_check
        _
      $region110: #{forward.5} parent=5 // pred_check_branch
        %641 = sbr.rel (%p638) target = $region112
      $region111: #{forward.5} parent=5 // pred_region
        %s642 = ssub.s32 %s29, 1
        %p643 = scmp.lt.s32.totalorder %s34, 1
        %s644 = scalar_select %p643, %s34, 1
        %s645 = smul.addr %s644, 5
        %s646 = smul.addr %s645, 8
        %s647 = scalar_lea.vmem %s0, %s646
        %p648 = pneg %p55
        %p649 = pneg %p52
        %p650 = pneg %p76
        %p651 = pneg %p73
        %p652 = pneg %p97
        %p653 = pneg %p94
        %p654 = pneg %p118
        %p655 = pneg %p115
        %p656 = pneg %p139
        %p657 = pneg %p136
        %p658 = pneg %p160
        %p659 = pneg %p157
        %p660 = pneg %p181
        %p661 = pneg %p178
        %p662 = pneg %p202
        %p663 = pneg %p199
        %p664 = pneg %p223
        %p665 = pneg %p220
        %p666 = pneg %p244
        %p667 = pneg %p241
        %p668 = pneg %p265
        %p669 = pneg %p262
        %p670 = pneg %p286
        %p671 = pneg %p283
        %p672 = pneg %p307
        %p673 = pneg %p304
        %p674 = pneg %p328
        %p675 = pneg %p325
        %p676 = pneg %p349
        %p677 = pneg %p346
        %p678 = pneg %p370
        %p679 = pneg %p367
        %p680 = pneg %p391
        %p681 = pneg %p388
        %p682 = pneg %p412
        %p683 = pneg %p409
        %p684 = pneg %p433
        %p685 = pneg %p430
        %p686 = pneg %p454
        %p687 = pneg %p451
        %p688 = pneg %p475
        %p689 = pneg %p472
        %p690 = pneg %p496
        %p691 = pneg %p493
        %p692 = pneg %p517
        %p693 = pneg %p514
        %p694 = pneg %p543
        %p695 = pneg %p540
        %s696 = sand.u32 %s530, 1
        %s697 = sand.u32 %s530, 1
        %s698 = smul.addr %s697, 120
        %s699 = scalar_lea.vmem [#allocation2], %s698
        %p700 = scmp.lt.s32.totalorder %s34, 1
        %s701 = scalar_select %p700, %s34, 1
        %s702 = smul.addr %s701, 5
        %s703 = smul.addr %s702, 8
        %s704 = scalar_lea.vmem %s0, %s703
        %v706 = vld [vmem:[%s704] sm:$0xff]
        %v707 = vld [vmem:[%s704 + $0x8] sm:$0xff]
        %v708 = vld [vmem:[%s704 + $0x10] sm:$0xff]
        %v709 = vld [vmem:[%s704 + $0x18] sm:$0xff]
        %v710 = vld [vmem:[%s704 + $0x20] sm:$0x7f]
        %v711 = vld [vmem:[%s1] sm:$0x1]
        %v712 = vld [vmem:[%s2] sm:$0x1]
        %vm713 = vcmask 261120
        %v714 = vsel %vm713, %v706, 0.0
        %715 = vadd.xlane.f32.xlu0 %v714
        %v716 = vpop.xlane.xlu0 %715
        %v717 = vsel %vm713, %v707, 0.0
        %718 = vadd.xlane.f32.xlu0 %v717
        %v719 = vpop.xlane.xlu0 %718
        %v720 = vsel %vm713, %v708, 0.0
        %721 = vadd.xlane.f32.xlu0 %v720
        %v722 = vpop.xlane.xlu0 %721
        %v723 = vsel %vm713, %v709, 0.0
        %724 = vadd.xlane.f32.xlu0 %v723
        %v725 = vpop.xlane.xlu0 %724
        %vm726 = vcmask 260096
        %v727 = vsel %vm726, %v710, 0.0
        %728 = vadd.xlane.f32.xlu0 %v727
        %v729 = vpop.xlane.xlu0 %728
        %v730 = vrcp.pop 32.0
        %v731 = vmul.f32 %v716, %v730
        %v732 = vmul.f32 %v719, %v730
        %v733 = vmul.f32 %v722, %v730
        %v734 = vmul.f32 %v725, %v730
        %v735 = vmul.f32 %v729, %v730
        %v736 = vsub.f32 %v706, %v731
        %v737 = vsub.f32 %v707, %v732
        %v738 = vsub.f32 %v708, %v733
        %v739 = vsub.f32 %v709, %v734
        %v740 = vsub.f32 %v710, %v735
        %v741 = vmul.f32 %v736, %v736
        %v742 = vmul.f32 %v737, %v737
        %v743 = vmul.f32 %v738, %v738
        %v744 = vmul.f32 %v739, %v739
        %v745 = vmul.f32 %v740, %v740
        %v746 = vsel %vm713, %v741, 0.0
        %747 = vadd.xlane.f32.xlu0 %v746
        %v748 = vpop.xlane.xlu0 %747
        %v749 = vsel %vm713, %v742, 0.0
        %750 = vadd.xlane.f32.xlu0 %v749
        %v751 = vpop.xlane.xlu0 %750
        %v752 = vsel %vm713, %v743, 0.0
        %753 = vadd.xlane.f32.xlu0 %v752
        %v754 = vpop.xlane.xlu0 %753
        %v755 = vsel %vm713, %v744, 0.0
        %756 = vadd.xlane.f32.xlu0 %v755
        %v757 = vpop.xlane.xlu0 %756
        %v758 = vsel %vm726, %v745, 0.0
        %759 = vadd.xlane.f32.xlu0 %v758
        %v760 = vpop.xlane.xlu0 %759
        %v761 = vmul.f32 %v748, %v730
        %v762 = vmul.f32 %v751, %v730
        %v763 = vmul.f32 %v754, %v730
        %v764 = vmul.f32 %v757, %v730
        %v765 = vmul.f32 %v760, %v730
        %v766 = vadd.f32 %v761, 1e-05
        %v767 = vadd.f32 %v762, 1e-05
        %v768 = vadd.f32 %v763, 1e-05
        %v769 = vadd.f32 %v764, 1e-05
        %v770 = vadd.f32 %v765, 1e-05
        %v771 = vrsqrt.pop %v766
        %v772 = vrsqrt.pop %v767
        %v773 = vrsqrt.pop %v768
        %v774 = vrsqrt.pop %v769
        %v775 = vrsqrt.pop %v770
        %v776 = vmul.f32 %v736, %v771
        %v777 = vmul.f32 %v737, %v772
        %v778 = vmul.f32 %v738, %v773
        %v779 = vmul.f32 %v739, %v774
        %v780 = vmul.f32 %v740, %v775
        %v782 = vlaneseq
        %v783 = vshrl.u32 %v782, 7
        %v784 = vsub.s32 0, %v783
        %v785 = vrot.slane %v711, %v784
        %v787 = vmul.f32 %v776, %v785
        %v788 = vmul.f32 %v777, %v785
        %v789 = vmul.f32 %v778, %v785
        %v790 = vmul.f32 %v779, %v785
        %v791 = vmul.f32 %v780, %v785
        %v793 = vlaneseq
        %v794 = vshrl.u32 %v793, 7
        %v795 = vsub.s32 0, %v794
        %v796 = vrot.slane %v712, %v795
        %v798 = vadd.f32 %v787, %v796
        %v799 = vadd.f32 %v788, %v796
        %v800 = vadd.f32 %v789, %v796
        %v801 = vadd.f32 %v790, %v796
        %v802 = vadd.f32 %v791, %v796
        %v803 = vpack.c.bf16 %v799, %v798
        %v804 = vpack.c.bf16 %v801, %v800
        %v805 = vpack.c.bf16 %v802, %v802
        %v806 = vld [vmem:[%s3] sm:$0xf]
        %v807 = vld [vmem:[%s3 + $0x4] sm:$0xf]
        %v808 = vld [vmem:[%s3 + $0x8] sm:$0xf]
        %v809 = vld [vmem:[%s3 + $0xc] sm:$0xf]
        %v810 = vld [vmem:[%s4] sm:$0x1]
        %v812 = vlaneseq
        %v813 = vshrl.u32 %v812, 7
        %v814 = vsub.s32 0, %v813
        %v815 = vrot.slane %v810, %v814
        %v821 = vunpack.c.l.b16 %v806
        %v822 = vunpack.c.l.b16 %v807
        %v823 = vunpack.c.l.b16 %v808
        %v824 = vunpack.c.l.b16 %v809
        %v825 = vpack.c.b16 %v822, %v821
        %v826 = vpack.c.b16 %v824, %v823
        %v830 = vsel %vm713, %v803, 0
        %v833 = vsel %vm713, %v804, 0
        %v836 = vsel %vm713, %v805, 0
        %838 = vmatprep.subr.bf16.mxu0 0
        %839 = vmatpush1.bf16.msra.mxu0 %v825
        %840 = vmatprep.subr.bf16.mxu0 0
        %841 = vmatpush1.bf16.msra.mxu0 %v826
        %842 = vmatprep.subr.bf16.mxu0 0
        %843 = vmatpush1.bf16.msra.mxu0 0
        %844 = vmatprep.subr.bf16.mxu0 0
        %845 = vmatpush1.bf16.msra.mxu0 0
        %846 = vmatprep.subr.bf16.mxu0 0
        %847 = vmatpush1.bf16.msra.mxu0 0
        %848 = vmatprep.subr.bf16.mxu0 0
        %849 = vmatpush1.bf16.msra.mxu0 0
        %850 = vmatprep.subr.bf16.mxu0 0
        %851 = vmatpush1.bf16.msra.mxu0 0
        %852 = vmatprep.subr.bf16.mxu0 0
        %853 = vmatpush1.bf16.msra.mxu0 0
        %854 = vmatprep.subr.bf16.mxu0 0
        %855 = vmatpush1.bf16.msra.mxu0 0
        %856 = vmatprep.subr.bf16.mxu0 0
        %857 = vmatpush1.bf16.msra.mxu0 0
        %858 = vmatprep.subr.bf16.mxu0 0
        %859 = vmatpush1.bf16.msra.mxu0 0
        %860 = vmatprep.subr.bf16.mxu0 0
        %861 = vmatpush1.bf16.msra.mxu0 0
        %862 = vmatprep.subr.bf16.mxu0 0
        %863 = vmatpush1.bf16.msra.mxu0 0
        %864 = vmatprep.subr.bf16.mxu0 0
        %865 = vmatpush1.bf16.msra.mxu0 0
        %866 = vmatprep.subr.bf16.mxu0 0
        %867 = vmatpush1.bf16.msra.mxu0 0
        %868 = vmatprep.subr.bf16.mxu0 0
        %869 = vmatpush1.bf16.msra.mxu0 0
        %870 = vmatprep.mubr.bf16.mxu0 0
        %871 = vmatmul.mubr.bf16.gmra.mrb[0].mxu0 %v830
        %v872 = vpop.f32.mrb[0].mxu0
        %v873 = vadd.f32 %v815, %v872
        %v874 = vpop.f32.mrb[0].mxu0
        %v875 = vpop.f32.mrb[0].mxu0
        %v876 = vadd.f32 %v815, %v875
        %v877 = vpop.f32.mrb[0].mxu0
        %878 = vmatprep.mubr.bf16.mxu0 0
        %879 = vmatmul.mubr.bf16.gmra.mrb[0].mxu0 %v833
        %v880 = vpop.f32.mrb[0].mxu0
        %v881 = vadd.f32 %v815, %v880
        %v882 = vpop.f32.mrb[0].mxu0
        %v883 = vpop.f32.mrb[0].mxu0
        %v884 = vadd.f32 %v815, %v883
        %v885 = vpop.f32.mrb[0].mxu0
        %886 = vmatprep.mubr.bf16.mxu0 0
        %887 = vmatmul.mubr.bf16.gmra.mrb[0].mxu0 %v836
        %v888 = vpop.f32.mrb[0].mxu0
        %v889 = vadd.f32 %v815, %v888
        %v890 = vpop.f32.mrb[0].mxu0
        %v891 = vpop.f32.mrb[0].mxu0
        %v892 = vpop.f32.mrb[0].mxu0
        %893 = vdwg.mxu0
        %v894 = vld [vmem:[%s5] sm:$0x1]
        %v895 = vld [vmem:[%s6] sm:$0x1]
        %vm896 = vcmask 523264
        %v897 = vsel %vm896, %v873, 0.0
        %898 = vadd.xlane.f32.xlu0 %v897
        %v899 = vpop.xlane.xlu0 %898
        %v900 = vsel %vm896, %v876, 0.0
        %901 = vadd.xlane.f32.xlu0 %v900
        %v902 = vpop.xlane.xlu0 %901
        %v903 = vsel %vm896, %v881, 0.0
        %904 = vadd.xlane.f32.xlu0 %v903
        %v905 = vpop.xlane.xlu0 %904
        %v906 = vsel %vm896, %v884, 0.0
        %907 = vadd.xlane.f32.xlu0 %v906
        %v908 = vpop.xlane.xlu0 %907
        %vm909 = vcmask 522240
        %v910 = vsel %vm909, %v889, 0.0
        %911 = vadd.xlane.f32.xlu0 %v910
        %v912 = vpop.xlane.xlu0 %911
        %v913 = vrcp.pop 64.0
        %v914 = vmul.f32 %v899, %v913
        %v915 = vmul.f32 %v902, %v913
        %v916 = vmul.f32 %v905, %v913
        %v917 = vmul.f32 %v908, %v913
        %v918 = vmul.f32 %v912, %v913
        %v919 = vsub.f32 %v873, %v914
        %v920 = vsub.f32 %v876, %v915
        %v921 = vsub.f32 %v881, %v916
        %v922 = vsub.f32 %v884, %v917
        %v923 = vsub.f32 %v889, %v918
        %v924 = vmul.f32 %v919, %v919
        %v925 = vmul.f32 %v920, %v920
        %v926 = vmul.f32 %v921, %v921
        %v927 = vmul.f32 %v922, %v922
        %v928 = vmul.f32 %v923, %v923
        %v929 = vsel %vm896, %v924, 0.0
        %930 = vadd.xlane.f32.xlu0 %v929
        %v931 = vpop.xlane.xlu0 %930
        %v932 = vsel %vm896, %v925, 0.0
        %933 = vadd.xlane.f32.xlu0 %v932
        %v934 = vpop.xlane.xlu0 %933
        %v935 = vsel %vm896, %v926, 0.0
        %936 = vadd.xlane.f32.xlu0 %v935
        %v937 = vpop.xlane.xlu0 %936
        %v938 = vsel %vm896, %v927, 0.0
        %939 = vadd.xlane.f32.xlu0 %v938
        %v940 = vpop.xlane.xlu0 %939
        %v941 = vsel %vm909, %v928, 0.0
        %942 = vadd.xlane.f32.xlu0 %v941
        %v943 = vpop.xlane.xlu0 %942
        %v944 = vmul.f32 %v931, %v913
        %v945 = vmul.f32 %v934, %v913
        %v946 = vmul.f32 %v937, %v913
        %v947 = vmul.f32 %v940, %v913
        %v948 = vmul.f32 %v943, %v913
        %v949 = vadd.f32 %v944, 1e-05
        %v950 = vadd.f32 %v945, 1e-05
        %v951 = vadd.f32 %v946, 1e-05
        %v952 = vadd.f32 %v947, 1e-05
        %v953 = vadd.f32 %v948, 1e-05
        %v954 = vrsqrt.pop %v949
        %v955 = vrsqrt.pop %v950
        %v956 = vrsqrt.pop %v951
        %v957 = vrsqrt.pop %v952
        %v958 = vrsqrt.pop %v953
        %v959 = vmul.f32 %v919, %v954
        %v960 = vmul.f32 %v920, %v955
        %v961 = vmul.f32 %v921, %v956
        %v962 = vmul.f32 %v922, %v957
        %v963 = vmul.f32 %v923, %v958
        %v965 = vlaneseq
        %v966 = vshrl.u32 %v965, 7
        %v967 = vsub.s32 0, %v966
        %v968 = vrot.slane %v894, %v967
        %v970 = vmul.f32 %v959, %v968
        %v971 = vmul.f32 %v960, %v968
        %v972 = vmul.f32 %v961, %v968
        %v973 = vmul.f32 %v962, %v968
        %v974 = vmul.f32 %v963, %v968
        %v976 = vlaneseq
        %v977 = vshrl.u32 %v976, 7
        %v978 = vsub.s32 0, %v977
        %v979 = vrot.slane %v895, %v978
        %v981 = vadd.f32 %v970, %v979
        %v982 = vadd.f32 %v971, %v979
        %v983 = vadd.f32 %v972, %v979
        %v984 = vadd.f32 %v973, %v979
        %v985 = vadd.f32 %v974, %v979
        %986 = vst.msk [vmem:[%s699] sm:$0xff] %vm896, %v981
        %987 = vst.msk [vmem:[%s699 + $0x8] sm:$0xff] %vm896, %v982
        %988 = vst.msk [vmem:[%s699 + $0x10] sm:$0xff] %vm896, %v983
        %989 = vst.msk [vmem:[%s699 + $0x18] sm:$0xff] %vm896, %v984
        %990 = vst.msk [vmem:[%s699 + $0x20] sm:$0x7f] %vm909, %v985
        %v991 = vpack.c.bf16 %v982, %v981
        %v992 = vpack.c.bf16 %v984, %v983
        %v993 = vpack.c.bf16 %v985, %v985
        %v994 = vld [vmem:[%s14] sm:$0x1]
        %v996 = vlaneseq
        %v997 = vshrl.u32 %v996, 7
        %v998 = vsub.s32 0, %v997
        %v999 = vrot.slane %v994, %v998
        %v1001 = vadd.f32 %v981, %v999
        %v1002 = vadd.f32 %v982, %v999
        %v1003 = vadd.f32 %v983, %v999
        %v1004 = vadd.f32 %v984, %v999
        %v1005 = vadd.f32 %v985, %v999
        %v1006 = vld [vmem:[%s7] sm:$0xf]
        %v1007 = vld [vmem:[%s7 + $0x4] sm:$0xf]
        %v1008 = vld [vmem:[%s7 + $0x8] sm:$0xf]
        %v1009 = vld [vmem:[%s7 + $0xc] sm:$0xf]
        %v1010 = vld [vmem:[%s7 + $0x10] sm:$0xf]
        %v1011 = vld [vmem:[%s7 + $0x14] sm:$0xf]
        %v1012 = vld [vmem:[%s7 + $0x18] sm:$0xf]
        %v1013 = vld [vmem:[%s7 + $0x1c] sm:$0xf]
        %v1014 = vld [vmem:[%s8] sm:$0x1]
        %v1016 = vlaneseq
        %v1017 = vshrl.u32 %v1016, 7
        %v1018 = vsub.s32 0, %v1017
        %v1019 = vrot.slane %v1014, %v1018
        %v1029 = vunpack.c.l.b16 %v1006
        %v1030 = vunpack.c.l.b16 %v1007
        %v1031 = vunpack.c.l.b16 %v1008
        %v1032 = vunpack.c.l.b16 %v1009
        %v1033 = vunpack.c.l.b16 %v1010
        %v1034 = vunpack.c.l.b16 %v1011
        %v1035 = vunpack.c.l.b16 %v1012
        %v1036 = vunpack.c.l.b16 %v1013
        %v1037 = vpack.c.b16 %v1030, %v1029
        %v1038 = vpack.c.b16 %v1032, %v1031
        %v1039 = vpack.c.b16 %v1034, %v1033
        %v1040 = vpack.c.b16 %v1036, %v1035
        %v1046 = vsel %vm896, %v991, 0
        %v1049 = vsel %vm896, %v992, 0
        %v1052 = vsel %vm896, %v993, 0
        %1054 = vmatprep.subr.bf16.mxu0 0
        %1055 = vmatpush1.bf16.msra.mxu0 %v1037
        %1056 = vmatprep.subr.bf16.mxu0 0
        %1057 = vmatpush1.bf16.msra.mxu0 %v1038
        %1058 = vmatprep.subr.bf16.mxu0 0
        %1059 = vmatpush1.bf16.msra.mxu0 %v1039
        %1060 = vmatprep.subr.bf16.mxu0 0
        %1061 = vmatpush1.bf16.msra.mxu0 %v1040
        %1062 = vmatprep.subr.bf16.mxu0 0
        %1063 = vmatpush1.bf16.msra.mxu0 0
        %1064 = vmatprep.subr.bf16.mxu0 0
        %1065 = vmatpush1.bf16.msra.mxu0 0
        %1066 = vmatprep.subr.bf16.mxu0 0
        %1067 = vmatpush1.bf16.msra.mxu0 0
        %1068 = vmatprep.subr.bf16.mxu0 0
        %1069 = vmatpush1.bf16.msra.mxu0 0
        %1070 = vmatprep.subr.bf16.mxu0 0
        %1071 = vmatpush1.bf16.msra.mxu0 0
        %1072 = vmatprep.subr.bf16.mxu0 0
        %1073 = vmatpush1.bf16.msra.mxu0 0
        %1074 = vmatprep.subr.bf16.mxu0 0
        %1075 = vmatpush1.bf16.msra.mxu0 0
        %1076 = vmatprep.subr.bf16.mxu0 0
        %1077 = vmatpush1.bf16.msra.mxu0 0
        %1078 = vmatprep.subr.bf16.mxu0 0
        %1079 = vmatpush1.bf16.msra.mxu0 0
        %1080 = vmatprep.subr.bf16.mxu0 0
        %1081 = vmatpush1.bf16.msra.mxu0 0
        %1082 = vmatprep.subr.bf16.mxu0 0
        %1083 = vmatpush1.bf16.msra.mxu0 0
        %1084 = vmatprep.subr.bf16.mxu0 0
        %1085 = vmatpush1.bf16.msra.mxu0 0
        %1086 = vmatprep.mubr.bf16.mxu0 0
        %1087 = vmatmul.mubr.bf16.gmra.mrb[0].mxu0 %v1046
        %v1088 = vpop.f32.mrb[0].mxu0
        %v1089 = vadd.f32 %v1019, %v1088
        %v1090 = vpop.f32.mrb[0].mxu0
        %v1091 = vpop.f32.mrb[0].mxu0
        %v1092 = vadd.f32 %v1019, %v1091
        %v1093 = vpop.f32.mrb[0].mxu0
        %1094 = vmatprep.mubr.bf16.mxu0 0
        %1095 = vmatmul.mubr.bf16.gmra.mrb[0].mxu0 %v1049
        %v1096 = vpop.f32.mrb[0].mxu0
        %v1097 = vadd.f32 %v1019, %v1096
        %v1098 = vpop.f32.mrb[0].mxu0
        %v1099 = vpop.f32.mrb[0].mxu0
        %v1100 = vadd.f32 %v1019, %v1099
        %v1101 = vpop.f32.mrb[0].mxu0
        %1102 = vmatprep.mubr.bf16.mxu0 0
        %1103 = vmatmul.mubr.bf16.gmra.mrb[0].mxu0 %v1052
        %v1104 = vpop.f32.mrb[0].mxu0
        %v1105 = vadd.f32 %v1019, %v1104
        %v1106 = vpop.f32.mrb[0].mxu0
        %v1107 = vpop.f32.mrb[0].mxu0
        %v1108 = vpop.f32.mrb[0].mxu0
        %1109 = vdwg.mxu0
        %v1110 = vld [vmem:[%s9] sm:$0xf]
        %v1111 = vld [vmem:[%s9 + $0x4] sm:$0xf]
        %v1112 = vld [vmem:[%s9 + $0x8] sm:$0xf]
        %v1113 = vld [vmem:[%s9 + $0xc] sm:$0xf]
        %v1114 = vld [vmem:[%s9 + $0x10] sm:$0xf]
        %v1115 = vld [vmem:[%s9 + $0x14] sm:$0xf]
        %v1116 = vld [vmem:[%s9 + $0x18] sm:$0xf]
        %v1117 = vld [vmem:[%s9 + $0x1c] sm:$0xf]
        %v1118 = vld [vmem:[%s10] sm:$0x1]
        %v1120 = vlaneseq
        %v1121 = vshrl.u32 %v1120, 7
        %v1122 = vsub.s32 0, %v1121
        %v1123 = vrot.slane %v1118, %v1122
        %v1133 = vunpack.c.l.b16 %v1110
        %v1134 = vunpack.c.l.b16 %v1111
        %v1135 = vunpack.c.l.b16 %v1112
        %v1136 = vunpack.c.l.b16 %v1113
        %v1137 = vunpack.c.l.b16 %v1114
        %v1138 = vunpack.c.l.b16 %v1115
        %v1139 = vunpack.c.l.b16 %v1116
        %v1140 = vunpack.c.l.b16 %v1117
        %v1141 = vpack.c.b16 %v1134, %v1133
        %v1142 = vpack.c.b16 %v1136, %v1135
        %v1143 = vpack.c.b16 %v1138, %v1137
        %v1144 = vpack.c.b16 %v1140, %v1139
        %1149 = vmatprep.subr.bf16.mxu0 0
        %1150 = vmatpush1.bf16.msra.mxu0 %v1141
        %1151 = vmatprep.subr.bf16.mxu0 0
        %1152 = vmatpush1.bf16.msra.mxu0 %v1142
        %1153 = vmatprep.subr.bf16.mxu0 0
        %1154 = vmatpush1.bf16.msra.mxu0 %v1143
        %1155 = vmatprep.subr.bf16.mxu0 0
        %1156 = vmatpush1.bf16.msra.mxu0 %v1144
        %1157 = vmatprep.subr.bf16.mxu0 0
        %1158 = vmatpush1.bf16.msra.mxu0 0
        %1159 = vmatprep.subr.bf16.mxu0 0
        %1160 = vmatpush1.bf16.msra.mxu0 0
        %1161 = vmatprep.subr.bf16.mxu0 0
        %1162 = vmatpush1.bf16.msra.mxu0 0
        %1163 = vmatprep.subr.bf16.mxu0 0
        %1164 = vmatpush1.bf16.msra.mxu0 0
        %1165 = vmatprep.subr.bf16.mxu0 0
        %1166 = vmatpush1.bf16.msra.mxu0 0
        %1167 = vmatprep.subr.bf16.mxu0 0
        %1168 = vmatpush1.bf16.msra.mxu0 0
        %1169 = vmatprep.subr.bf16.mxu0 0
        %1170 = vmatpush1.bf16.msra.mxu0 0
        %1171 = vmatprep.subr.bf16.mxu0 0
        %1172 = vmatpush1.bf16.msra.mxu0 0
        %1173 = vmatprep.subr.bf16.mxu0 0
        %1174 = vmatpush1.bf16.msra.mxu0 0
        %1175 = vmatprep.subr.bf16.mxu0 0
        %1176 = vmatpush1.bf16.msra.mxu0 0
        %1177 = vmatprep.subr.bf16.mxu0 0
        %1178 = vmatpush1.bf16.msra.mxu0 0
        %1179 = vmatprep.subr.bf16.mxu0 0
        %1180 = vmatpush1.bf16.msra.mxu0 0
        %1181 = vmatprep.mubr.bf16.mxu0 0
        %1182 = vmatmul.mubr.bf16.gmra.mrb[0].mxu0 %v1046
        %v1183 = vpop.f32.mrb[0].mxu0
        %v1184 = vadd.f32 %v1123, %v1183
        %v1185 = vpop.f32.mrb[0].mxu0
        %v1186 = vpop.f32.mrb[0].mxu0
        %v1187 = vadd.f32 %v1123, %v1186
        %v1188 = vpop.f32.mrb[0].mxu0
        %1189 = vmatprep.mubr.bf16.mxu0 0
        %1190 = vmatmul.mubr.bf16.gmra.mrb[0].mxu0 %v1049
        %v1191 = vpop.f32.mrb[0].mxu0
        %v1192 = vadd.f32 %v1123, %v1191
        %v1193 = vpop.f32.mrb[0].mxu0
        %v1194 = vpop.f32.mrb[0].mxu0
        %v1195 = vadd.f32 %v1123, %v1194
        %v1196 = vpop.f32.mrb[0].mxu0
        %1197 = vmatprep.mubr.bf16.mxu0 0
        %1198 = vmatmul.mubr.bf16.gmra.mrb[0].mxu0 %v1052
        %v1199 = vpop.f32.mrb[0].mxu0
        %v1200 = vadd.f32 %v1123, %v1199
        %v1201 = vpop.f32.mrb[0].mxu0
        %v1202 = vpop.f32.mrb[0].mxu0
        %v1203 = vpop.f32.mrb[0].mxu0
        %1204 = vdwg.mxu0
        %v1205 = vld [vmem:[%s11] sm:$0xf]
        %v1206 = vld [vmem:[%s11 + $0x4] sm:$0xf]
        %v1207 = vld [vmem:[%s11 + $0x8] sm:$0xf]
        %v1208 = vld [vmem:[%s11 + $0xc] sm:$0xf]
        %v1209 = vld [vmem:[%s11 + $0x10] sm:$0xf]
        %v1210 = vld [vmem:[%s11 + $0x14] sm:$0xf]
        %v1211 = vld [vmem:[%s11 + $0x18] sm:$0xf]
        %v1212 = vld [vmem:[%s11 + $0x1c] sm:$0xf]
        %v1213 = vld [vmem:[%s12] sm:$0x1]
        %v1215 = vlaneseq
        %v1216 = vshrl.u32 %v1215, 7
        %v1217 = vsub.s32 0, %v1216
        %v1218 = vrot.slane %v1213, %v1217
        %v1228 = vunpack.c.l.b16 %v1205
        %v1229 = vunpack.c.l.b16 %v1206
        %v1230 = vunpack.c.l.b16 %v1207
        %v1231 = vunpack.c.l.b16 %v1208
        %v1232 = vunpack.c.l.b16 %v1209
        %v1233 = vunpack.c.l.b16 %v1210
        %v1234 = vunpack.c.l.b16 %v1211
        %v1235 = vunpack.c.l.b16 %v1212
        %v1236 = vpack.c.b16 %v1229, %v1228
        %v1237 = vpack.c.b16 %v1231, %v1230
        %v1238 = vpack.c.b16 %v1233, %v1232
        %v1239 = vpack.c.b16 %v1235, %v1234
        %1244 = vmatprep.subr.bf16.mxu0 0
        %1245 = vmatpush1.bf16.msra.mxu0 %v1236
        %1246 = vmatprep.subr.bf16.mxu0 0
        %1247 = vmatpush1.bf16.msra.mxu0 %v1237
        %1248 = vmatprep.subr.bf16.mxu0 0
        %1249 = vmatpush1.bf16.msra.mxu0 %v1238
        %1250 = vmatprep.subr.bf16.mxu0 0
        %1251 = vmatpush1.bf16.msra.mxu0 %v1239
        %1252 = vmatprep.subr.bf16.mxu0 0
        %1253 = vmatpush1.bf16.msra.mxu0 0
        %1254 = vmatprep.subr.bf16.mxu0 0
        %1255 = vmatpush1.bf16.msra.mxu0 0
        %1256 = vmatprep.subr.bf16.mxu0 0
        %1257 = vmatpush1.bf16.msra.mxu0 0
        %1258 = vmatprep.subr.bf16.mxu0 0
        %1259 = vmatpush1.bf16.msra.mxu0 0
        %1260 = vmatprep.subr.bf16.mxu0 0
        %1261 = vmatpush1.bf16.msra.mxu0 0
        %1262 = vmatprep.subr.bf16.mxu0 0
        %1263 = vmatpush1.bf16.msra.mxu0 0
        %1264 = vmatprep.subr.bf16.mxu0 0
        %1265 = vmatpush1.bf16.msra.mxu0 0
        %1266 = vmatprep.subr.bf16.mxu0 0
        %1267 = vmatpush1.bf16.msra.mxu0 0
        %1268 = vmatprep.subr.bf16.mxu0 0
        %1269 = vmatpush1.bf16.msra.mxu0 0
        %1270 = vmatprep.subr.bf16.mxu0 0
        %1271 = vmatpush1.bf16.msra.mxu0 0
        %1272 = vmatprep.subr.bf16.mxu0 0
        %1273 = vmatpush1.bf16.msra.mxu0 0
        %1274 = vmatprep.subr.bf16.mxu0 0
        %1275 = vmatpush1.bf16.msra.mxu0 0
        %1276 = vmatprep.mubr.bf16.mxu0 0
        %1277 = vmatmul.mubr.bf16.gmra.mrb[0].mxu0 %v1046
        %v1278 = vpop.f32.mrb[0].mxu0
        %v1279 = vadd.f32 %v1218, %v1278
        %v1280 = vpop.f32.mrb[0].mxu0
        %v1281 = vpop.f32.mrb[0].mxu0
        %v1282 = vadd.f32 %v1218, %v1281
        %v1283 = vpop.f32.mrb[0].mxu0
        %1284 = vmatprep.mubr.bf16.mxu0 0
        %1285 = vmatmul.mubr.bf16.gmra.mrb[0].mxu0 %v1049
        %v1286 = vpop.f32.mrb[0].mxu0
        %v1287 = vadd.f32 %v1218, %v1286
        %v1288 = vpop.f32.mrb[0].mxu0
        %v1289 = vpop.f32.mrb[0].mxu0
        %v1290 = vadd.f32 %v1218, %v1289
        %v1291 = vpop.f32.mrb[0].mxu0
        %1292 = vmatprep.mubr.bf16.mxu0 0
        %1293 = vmatmul.mubr.bf16.gmra.mrb[0].mxu0 %v1052
        %v1294 = vpop.f32.mrb[0].mxu0
        %v1295 = vadd.f32 %v1218, %v1294
        %v1296 = vpop.f32.mrb[0].mxu0
        %v1297 = vpop.f32.mrb[0].mxu0
        %v1298 = vpop.f32.mrb[0].mxu0
        %1299 = vdwg.mxu0
        %v1300 = vpack.c.bf16 %v1092, %v1089
        %v1301 = vpack.c.bf16 %v1100, %v1097
        %v1302 = vpack.c.bf16 %v1105, %v1105
        %v1303 = vpack.c.bf16 %v1187, %v1184
        %v1304 = vpack.c.bf16 %v1195, %v1192
        %v1305 = vpack.c.bf16 %v1200, %v1200
        %vm1306 = vcmask 130048
        %v1308 = vsel %vm1306, %v1300, 0
        %v1311 = vsel %vm1306, %v1301, 0
        %v1314 = vsel %vm1306, %v1302, 0
        %v1317 = vsel %vm1306, %v1303, 0
        %v1320 = vsel %vm1306, %v1304, 0
        %v1323 = vsel %vm1306, %v1305, 0
        %1325 = vmatprep.subr.bf16.mxu0 0
        %1326 = vmatpush1.bf16.xpose.msra.mxu0 %v1317
        %1327 = vmatprep.subr.bf16.mxu0 0
        %1328 = vmatpush1.bf16.xpose.msra.mxu0 %v1320
        %1329 = vmatprep.subr.bf16.mxu0 0
        %1330 = vmatpush1.bf16.xpose.msra.mxu0 %v1323
        %1331 = vmatprep.subr.bf16.mxu0 0
        %1332 = vmatpush1.bf16.xpose.msra.mxu0 0
        %1333 = vmatprep.subr.bf16.mxu0 0
        %1334 = vmatpush1.bf16.xpose.msra.mxu0 0
        %1335 = vmatprep.subr.bf16.mxu0 0
        %1336 = vmatpush1.bf16.xpose.msra.mxu0 0
        %1337 = vmatprep.subr.bf16.mxu0 0
        %1338 = vmatpush1.bf16.xpose.msra.mxu0 0
        %1339 = vmatprep.subr.bf16.mxu0 0
        %1340 = vmatpush1.bf16.xpose.msra.mxu0 0
        %1341 = vmatprep.subr.bf16.mxu0 0
        %1342 = vmatpush1.bf16.xpose.msra.mxu0 0
        %1343 = vmatprep.subr.bf16.mxu0 0
        %1344 = vmatpush1.bf16.xpose.msra.mxu0 0
        %1345 = vmatprep.subr.bf16.mxu0 0
        %1346 = vmatpush1.bf16.xpose.msra.mxu0 0
        %1347 = vmatprep.subr.bf16.mxu0 0
        %1348 = vmatpush1.bf16.xpose.msra.mxu0 0
        %1349 = vmatprep.subr.bf16.mxu0 0
        %1350 = vmatpush1.bf16.xpose.msra.mxu0 0
        %1351 = vmatprep.subr.bf16.mxu0 0
        %1352 = vmatpush1.bf16.xpose.msra.mxu0 0
        %1353 = vmatprep.subr.bf16.mxu0 0
        %1354 = vmatpush1.bf16.xpose.msra.mxu0 0
        %1355 = vmatprep.subr.bf16.mxu0 0
        %1356 = vmatpush1.bf16.xpose.msra.mxu0 0
        %1357 = vmatprep.mubr.bf16.mxu0 0
        %1358 = vmatmul.mubr.bf16.gmra.mrb[0].mxu0 %v1308
        %v1359 = vpop.f32.mrb[0].mxu0
        %v1360 = vadd.f32 0.0, %v1359
        %v1361 = vpop.f32.mrb[0].mxu0
        %v1362 = vpop.f32.mrb[0].mxu0
        %v1363 = vadd.f32 0.0, %v1362
        %v1364 = vpop.f32.mrb[0].mxu0
        %1365 = vmatprep.mubr.bf16.mxu0 0
        %1366 = vmatmul.mubr.bf16.gmra.mrb[0].mxu0 %v1311
        %v1367 = vpop.f32.mrb[0].mxu0
        %v1368 = vadd.f32 0.0, %v1367
        %v1369 = vpop.f32.mrb[0].mxu0
        %v1370 = vpop.f32.mrb[0].mxu0
        %v1371 = vadd.f32 0.0, %v1370
        %v1372 = vpop.f32.mrb[0].mxu0
        %1373 = vmatprep.mubr.bf16.mxu0 0
        %1374 = vmatmul.mubr.bf16.gmra.mrb[0].mxu0 %v1314
        %v1375 = vpop.f32.mrb[0].mxu0
        %v1376 = vadd.f32 0.0, %v1375
        %v1377 = vpop.f32.mrb[0].mxu0
        %v1378 = vpop.f32.mrb[0].mxu0
        %v1379 = vpop.f32.mrb[0].mxu0
        %1380 = vdwg.mxu0
        %vm1381 = vcmask 318464
        %v1382 = vsel %vm1381, %v1360, -inf
        %1383 = vmax.xlane.f32.xlu0 %v1382
        %v1384 = vpop.xlane.xlu0 %1383
        %v1385 = vsel %vm1381, %v1363, -inf
        %1386 = vmax.xlane.f32.xlu0 %v1385
        %v1387 = vpop.xlane.xlu0 %1386
        %v1388 = vsel %vm1381, %v1368, -inf
        %1389 = vmax.xlane.f32.xlu0 %v1388
        %v1390 = vpop.xlane.xlu0 %1389
        %v1391 = vsel %vm1381, %v1371, -inf
        %1392 = vmax.xlane.f32.xlu0 %v1391
        %v1393 = vpop.xlane.xlu0 %1392
        %vm1394 = vcmask 317440
        %v1395 = vsel %vm1394, %v1376, -inf
        %1396 = vmax.xlane.f32.xlu0 %v1395
        %v1397 = vpop.xlane.xlu0 %1396
        %v1398 = vsub.f32 %v1360, %v1384
        %v1399 = vsub.f32 %v1363, %v1387
        %v1400 = vsub.f32 %v1368, %v1390
        %v1401 = vsub.f32 %v1371, %v1393
        %v1402 = vsub.f32 %v1376, %v1397
        %v1403 = vmul.f32 %v1398, 1.442695
        %v1404 = vpow.pop %v1403
        %v1405 = vmul.f32 %v1399, 1.442695
        %v1406 = vpow.pop %v1405
        %v1407 = vmul.f32 %v1400, 1.442695
        %v1408 = vpow.pop %v1407
        %v1409 = vmul.f32 %v1401, 1.442695
        %v1410 = vpow.pop %v1409
        %v1411 = vmul.f32 %v1402, 1.442695
        %v1412 = vpow.pop %v1411
        %v1413 = vsel %vm1381, %v1404, 0.0
        %1414 = vadd.xlane.f32.xlu0 %v1413
        %v1415 = vpop.xlane.xlu0 %1414
        %v1416 = vsel %vm1381, %v1406, 0.0
        %1417 = vadd.xlane.f32.xlu0 %v1416
        %v1418 = vpop.xlane.xlu0 %1417
        %v1419 = vsel %vm1381, %v1408, 0.0
        %1420 = vadd.xlane.f32.xlu0 %v1419
        %v1421 = vpop.xlane.xlu0 %1420
        %v1422 = vsel %vm1381, %v1410, 0.0
        %1423 = vadd.xlane.f32.xlu0 %v1422
        %v1424 = vpop.xlane.xlu0 %1423
        %v1425 = vsel %vm1394, %v1412, 0.0
        %1426 = vadd.xlane.f32.xlu0 %v1425
        %v1427 = vpop.xlane.xlu0 %1426
        %v1428 = vrcp.pop %v1415
        %v1429 = vrcp.pop %v1418
        %v1430 = vrcp.pop %v1421
        %v1431 = vrcp.pop %v1424
        %v1432 = vrcp.pop %v1427
        %v1433 = vmul.f32 %v1404, %v1428
        %v1434 = vmul.f32 %v1406, %v1429
        %v1435 = vmul.f32 %v1408, %v1430
        %v1436 = vmul.f32 %v1410, %v1431
        %v1437 = vmul.f32 %v1412, %v1432
        %v1438 = vpack.c.bf16 %v1434, %v1433
        %v1439 = vpack.c.bf16 %v1436, %v1435
        %v1440 = vpack.c.bf16 %v1437, %v1437
        %v1441 = vpack.c.bf16 %v1282, %v1279
        %v1442 = vpack.c.bf16 %v1290, %v1287
        %v1443 = vpack.c.bf16 %v1295, %v1295
        %v1445 = vsel %vm1381, %v1438, 0
        %v1448 = vsel %vm1381, %v1439, 0
        %v1451 = vsel %vm1381, %v1440, 0
        %vm1453 = vcmask 1042432
        %vm1454 = vcmask 1043456
        %v1455 = vsel %vm1453, 4294967295, 65535
        %v1456 = vsel %vm1454, %v1455, 0
        %v1458 = vand.u32 %v1443, %v1456
        %1460 = vmatprep.subr.bf16.mxu0 0
        %1461 = vmatpush1.bf16.msra.mxu0 %v1441
        %1462 = vmatprep.subr.bf16.mxu0 0
        %1463 = vmatpush1.bf16.msra.mxu0 %v1442
        %1464 = vmatprep.subr.bf16.mxu0 0
        %1465 = vmatpush1.bf16.msra.mxu0 %v1458
        %1466 = vmatprep.subr.bf16.mxu0 0
        %1467 = vmatpush1.bf16.msra.mxu0 0
        %1468 = vmatprep.subr.bf16.mxu0 0
        %1469 = vmatpush1.bf16.msra.mxu0 0
        %1470 = vmatprep.subr.bf16.mxu0 0
        %1471 = vmatpush1.bf16.msra.mxu0 0
        %1472 = vmatprep.subr.bf16.mxu0 0
        %1473 = vmatpush1.bf16.msra.mxu0 0
        %1474 = vmatprep.subr.bf16.mxu0 0
        %1475 = vmatpush1.bf16.msra.mxu0 0
        %1476 = vmatprep.subr.bf16.mxu0 0
        %1477 = vmatpush1.bf16.msra.mxu0 0
        %1478 = vmatprep.subr.bf16.mxu0 0
        %1479 = vmatpush1.bf16.msra.mxu0 0
        %1480 = vmatprep.subr.bf16.mxu0 0
        %1481 = vmatpush1.bf16.msra.mxu0 0
        %1482 = vmatprep.subr.bf16.mxu0 0
        %1483 = vmatpush1.bf16.msra.mxu0 0
        %1484 = vmatprep.subr.bf16.mxu0 0
        %1485 = vmatpush1.bf16.msra.mxu0 0
        %1486 = vmatprep.subr.bf16.mxu0 0
        %1487 = vmatpush1.bf16.msra.mxu0 0
        %1488 = vmatprep.subr.bf16.mxu0 0
        %1489 = vmatpush1.bf16.msra.mxu0 0
        %1490 = vmatprep.subr.bf16.mxu0 0
        %1491 = vmatpush1.bf16.msra.mxu0 0
        %1492 = vmatprep.mubr.bf16.mxu0 0
        %1493 = vmatmul.mubr.bf16.gmra.mrb[0].mxu0 %v1445
        %v1494 = vpop.f32.mrb[0].mxu0
        %v1495 = vadd.f32 0.0, %v1494
        %v1496 = vpop.f32.mrb[0].mxu0
        %v1497 = vpop.f32.mrb[0].mxu0
        %v1498 = vadd.f32 0.0, %v1497
        %v1499 = vpop.f32.mrb[0].mxu0
        %1500 = vmatprep.mubr.bf16.mxu0 0
        %1501 = vmatmul.mubr.bf16.gmra.mrb[0].mxu0 %v1448
        %v1502 = vpop.f32.mrb[0].mxu0
        %v1503 = vadd.f32 0.0, %v1502
        %v1504 = vpop.f32.mrb[0].mxu0
        %v1505 = vpop.f32.mrb[0].mxu0
        %v1506 = vadd.f32 0.0, %v1505
        %v1507 = vpop.f32.mrb[0].mxu0
        %1508 = vmatprep.mubr.bf16.mxu0 0
        %1509 = vmatmul.mubr.bf16.gmra.mrb[0].mxu0 %v1451
        %v1510 = vpop.f32.mrb[0].mxu0
        %v1511 = vadd.f32 0.0, %v1510
        %v1512 = vpop.f32.mrb[0].mxu0
        %v1513 = vpop.f32.mrb[0].mxu0
        %v1514 = vpop.f32.mrb[0].mxu0
        %1515 = vdwg.mxu0
        %v1516 = vpack.c.bf16 %v1498, %v1495
        %v1517 = vpack.c.bf16 %v1506, %v1503
        %v1518 = vpack.c.bf16 %v1511, %v1511
        %v1519 = vld [vmem:[%s13] sm:$0xf]
        %v1520 = vld [vmem:[%s13 + $0x4] sm:$0xf]
        %v1523 = vunpack.c.l.b16 %v1519
        %v1524 = vunpack.c.l.b16 %v1520
        %v1525 = vpack.c.b16 %v1524, %v1523
        %v1528 = vsel %vm1306, %v1516, 0
        %v1531 = vsel %vm1306, %v1517, 0
        %v1534 = vsel %vm1306, %v1518, 0
        %1536 = vmatprep.subr.bf16.mxu0 0
        %1537 = vmatpush1.bf16.msra.mxu0 %v1525
        %1538 = vmatprep.subr.bf16.mxu0 0
        %1539 = vmatpush1.bf16.msra.mxu0 0
        %1540 = vmatprep.subr.bf16.mxu0 0
        %1541 = vmatpush1.bf16.msra.mxu0 0
        %1542 = vmatprep.subr.bf16.mxu0 0
        %1543 = vmatpush1.bf16.msra.mxu0 0
        %1544 = vmatprep.subr.bf16.mxu0 0
        %1545 = vmatpush1.bf16.msra.mxu0 0
        %1546 = vmatprep.subr.bf16.mxu0 0
        %1547 = vmatpush1.bf16.msra.mxu0 0
        %1548 = vmatprep.subr.bf16.mxu0 0
        %1549 = vmatpush1.bf16.msra.mxu0 0
        %1550 = vmatprep.subr.bf16.mxu0 0
        %1551 = vmatpush1.bf16.msra.mxu0 0
        %1552 = vmatprep.subr.bf16.mxu0 0
        %1553 = vmatpush1.bf16.msra.mxu0 0
        %1554 = vmatprep.subr.bf16.mxu0 0
        %1555 = vmatpush1.bf16.msra.mxu0 0
        %1556 = vmatprep.subr.bf16.mxu0 0
        %1557 = vmatpush1.bf16.msra.mxu0 0
        %1558 = vmatprep.subr.bf16.mxu0 0
        %1559 = vmatpush1.bf16.msra.mxu0 0
        %1560 = vmatprep.subr.bf16.mxu0 0
        %1561 = vmatpush1.bf16.msra.mxu0 0
        %1562 = vmatprep.subr.bf16.mxu0 0
        %1563 = vmatpush1.bf16.msra.mxu0 0
        %1564 = vmatprep.subr.bf16.mxu0 0
        %1565 = vmatpush1.bf16.msra.mxu0 0
        %1566 = vmatprep.subr.bf16.mxu0 0
        %1567 = vmatpush1.bf16.msra.mxu0 0
        %1568 = vmatprep.mubr.bf16.mxu0 0
        %1569 = vmatmul.mubr.bf16.gmra.mrb[0].mxu0 %v1528
        %v1570 = vpop.f32.mrb[0].mxu0
        %v1571 = vadd.f32 0.0, %v1570
        %v1572 = vpop.f32.mrb[0].mxu0
        %v1573 = vpop.f32.mrb[0].mxu0
        %v1574 = vadd.f32 0.0, %v1573
        %v1575 = vpop.f32.mrb[0].mxu0
        %1576 = vmatprep.mubr.bf16.mxu0 0
        %1577 = vmatmul.mubr.bf16.gmra.mrb[0].mxu0 %v1531
        %v1578 = vpop.f32.mrb[0].mxu0
        %v1579 = vadd.f32 0.0, %v1578
        %v1580 = vpop.f32.mrb[0].mxu0
        %v1581 = vpop.f32.mrb[0].mxu0
        %v1582 = vadd.f32 0.0, %v1581
        %v1583 = vpop.f32.mrb[0].mxu0
        %1584 = vmatprep.mubr.bf16.mxu0 0
        %1585 = vmatmul.mubr.bf16.gmra.mrb[0].mxu0 %v1534
        %v1586 = vpop.f32.mrb[0].mxu0
        %v1587 = vadd.f32 0.0, %v1586
        %v1588 = vpop.f32.mrb[0].mxu0
        %v1589 = vpop.f32.mrb[0].mxu0
        %v1590 = vpop.f32.mrb[0].mxu0
        %1591 = vdwg.mxu0
        %v1592 = vadd.f32 %v1001, %v1571
        %v1593 = vadd.f32 %v1002, %v1574
        %v1594 = vadd.f32 %v1003, %v1579
        %v1595 = vadd.f32 %v1004, %v1582
        %v1596 = vadd.f32 %v1005, %v1587
        %s1597 = scalar_lea.vmem %s7, 32
        %v1598 = vld [vmem:[%s1597] sm:$0xf]
        %v1599 = vld [vmem:[%s1597 + $0x4] sm:$0xf]
        %v1600 = vld [vmem:[%s1597 + $0x8] sm:$0xf]
        %v1601 = vld [vmem:[%s1597 + $0xc] sm:$0xf]
        %v1602 = vld [vmem:[%s1597 + $0x10] sm:$0xf]
        %v1603 = vld [vmem:[%s1597 + $0x14] sm:$0xf]
        %v1604 = vld [vmem:[%s1597 + $0x18] sm:$0xf]
        %v1605 = vld [vmem:[%s1597 + $0x1c] sm:$0xf]
        %s1606 = scalar_lea.vmem %s8, 1
        %v1607 = vld [vmem:[%s1606] sm:$0x1]
        %v1609 = vlaneseq
        %v1610 = vshrl.u32 %v1609, 7
        %v1611 = vsub.s32 0, %v1610
        %v1612 = vrot.slane %v1607, %v1611
        %v1622 = vunpack.c.l.b16 %v1598
        %v1623 = vunpack.c.l.b16 %v1599
        %v1624 = vunpack.c.l.b16 %v1600
        %v1625 = vunpack.c.l.b16 %v1601
        %v1626 = vunpack.c.l.b16 %v1602
        %v1627 = vunpack.c.l.b16 %v1603
        %v1628 = vunpack.c.l.b16 %v1604
        %v1629 = vunpack.c.l.b16 %v1605
        %v1630 = vpack.c.b16 %v1623, %v1622
        %v1631 = vpack.c.b16 %v1625, %v1624
        %v1632 = vpack.c.b16 %v1627, %v1626
        %v1633 = vpack.c.b16 %v1629, %v1628
        %1638 = vmatprep.subr.bf16.mxu0 0
        %1639 = vmatpush1.bf16.msra.mxu0 %v1630
        %1640 = vmatprep.subr.bf16.mxu0 0
        %1641 = vmatpush1.bf16.msra.mxu0 %v1631
        %1642 = vmatprep.subr.bf16.mxu0 0
        %1643 = vmatpush1.bf16.msra.mxu0 %v1632
        %1644 = vmatprep.subr.bf16.mxu0 0
        %1645 = vmatpush1.bf16.msra.mxu0 %v1633
        %1646 = vmatprep.subr.bf16.mxu0 0
        %1647 = vmatpush1.bf16.msra.mxu0 0
        %1648 = vmatprep.subr.bf16.mxu0 0
        %1649 = vmatpush1.bf16.msra.mxu0 0
        %1650 = vmatprep.subr.bf16.mxu0 0
        %1651 = vmatpush1.bf16.msra.mxu0 0
        %1652 = vmatprep.subr.bf16.mxu0 0
        %1653 = vmatpush1.bf16.msra.mxu0 0
        %1654 = vmatprep.subr.bf16.mxu0 0
        %1655 = vmatpush1.bf16.msra.mxu0 0
        %1656 = vmatprep.subr.bf16.mxu0 0
        %1657 = vmatpush1.bf16.msra.mxu0 0
        %1658 = vmatprep.subr.bf16.mxu0 0
        %1659 = vmatpush1.bf16.msra.mxu0 0
        %1660 = vmatprep.subr.bf16.mxu0 0
        %1661 = vmatpush1.bf16.msra.mxu0 0
        %1662 = vmatprep.subr.bf16.mxu0 0
        %1663 = vmatpush1.bf16.msra.mxu0 0
        %1664 = vmatprep.subr.bf16.mxu0 0
        %1665 = vmatpush1.bf16.msra.mxu0 0
        %1666 = vmatprep.subr.bf16.mxu0 0
        %1667 = vmatpush1.bf16.msra.mxu0 0
        %1668 = vmatprep.subr.bf16.mxu0 0
        %1669 = vmatpush1.bf16.msra.mxu0 0
        %1670 = vmatprep.mubr.bf16.mxu0 0
        %1671 = vmatmul.mubr.bf16.gmra.mrb[0].mxu0 %v1046
        %v1672 = vpop.f32.mrb[0].mxu0
        %v1673 = vadd.f32 %v1612, %v1672
        %v1674 = vpop.f32.mrb[0].mxu0
        %v1675 = vpop.f32.mrb[0].mxu0
        %v1676 = vadd.f32 %v1612, %v1675
        %v1677 = vpop.f32.mrb[0].mxu0
        %1678 = vmatprep.mubr.bf16.mxu0 0
        %1679 = vmatmul.mubr.bf16.gmra.mrb[0].mxu0 %v1049
        %v1680 = vpop.f32.mrb[0].mxu0
        %v1681 = vadd.f32 %v1612, %v1680
        %v1682 = vpop.f32.mrb[0].mxu0
        %v1683 = vpop.f32.mrb[0].mxu0
        %v1684 = vadd.f32 %v1612, %v1683
        %v1685 = vpop.f32.mrb[0].mxu0
        %1686 = vmatprep.mubr.bf16.mxu0 0
        %1687 = vmatmul.mubr.bf16.gmra.mrb[0].mxu0 %v1052
        %v1688 = vpop.f32.mrb[0].mxu0
        %v1689 = vadd.f32 %v1612, %v1688
        %v1690 = vpop.f32.mrb[0].mxu0
        %v1691 = vpop.f32.mrb[0].mxu0
        %v1692 = vpop.f32.mrb[0].mxu0
        %1693 = vdwg.mxu0
        %s1694 = scalar_lea.vmem %s9, 32
        %v1695 = vld [vmem:[%s1694] sm:$0xf]
        %v1696 = vld [vmem:[%s1694 + $0x4] sm:$0xf]
        %v1697 = vld [vmem:[%s1694 + $0x8] sm:$0xf]
        %v1698 = vld [vmem:[%s1694 + $0xc] sm:$0xf]
        %v1699 = vld [vmem:[%s1694 + $0x10] sm:$0xf]
        %v1700 = vld [vmem:[%s1694 + $0x14] sm:$0xf]
        %v1701 = vld [vmem:[%s1694 + $0x18] sm:$0xf]
        %v1702 = vld [vmem:[%s1694 + $0x1c] sm:$0xf]
        %s1703 = scalar_lea.vmem %s10, 1
        %v1704 = vld [vmem:[%s1703] sm:$0x1]
        %v1706 = vlaneseq
        %v1707 = vshrl.u32 %v1706, 7
        %v1708 = vsub.s32 0, %v1707
        %v1709 = vrot.slane %v1704, %v1708
        %v1719 = vunpack.c.l.b16 %v1695
        %v1720 = vunpack.c.l.b16 %v1696
        %v1721 = vunpack.c.l.b16 %v1697
        %v1722 = vunpack.c.l.b16 %v1698
        %v1723 = vunpack.c.l.b16 %v1699
        %v1724 = vunpack.c.l.b16 %v1700
        %v1725 = vunpack.c.l.b16 %v1701
        %v1726 = vunpack.c.l.b16 %v1702
        %v1727 = vpack.c.b16 %v1720, %v1719
        %v1728 = vpack.c.b16 %v1722, %v1721
        %v1729 = vpack.c.b16 %v1724, %v1723
        %v1730 = vpack.c.b16 %v1726, %v1725
        %1735 = vmatprep.subr.bf16.mxu0 0
        %1736 = vmatpush1.bf16.msra.mxu0 %v1727
        %1737 = vmatprep.subr.bf16.mxu0 0
        %1738 = vmatpush1.bf16.msra.mxu0 %v1728
        %1739 = vmatprep.subr.bf16.mxu0 0
        %1740 = vmatpush1.bf16.msra.mxu0 %v1729
        %1741 = vmatprep.subr.bf16.mxu0 0
        %1742 = vmatpush1.bf16.msra.mxu0 %v1730
        %1743 = vmatprep.subr.bf16.mxu0 0
        %1744 = vmatpush1.bf16.msra.mxu0 0
        %1745 = vmatprep.subr.bf16.mxu0 0
        %1746 = vmatpush1.bf16.msra.mxu0 0
        %1747 = vmatprep.subr.bf16.mxu0 0
        %1748 = vmatpush1.bf16.msra.mxu0 0
        %1749 = vmatprep.subr.bf16.mxu0 0
        %1750 = vmatpush1.bf16.msra.mxu0 0
        %1751 = vmatprep.subr.bf16.mxu0 0
        %1752 = vmatpush1.bf16.msra.mxu0 0
        %1753 = vmatprep.subr.bf16.mxu0 0
        %1754 = vmatpush1.bf16.msra.mxu0 0
        %1755 = vmatprep.subr.bf16.mxu0 0
        %1756 = vmatpush1.bf16.msra.mxu0 0
        %1757 = vmatprep.subr.bf16.mxu0 0
        %1758 = vmatpush1.bf16.msra.mxu0 0
        %1759 = vmatprep.subr.bf16.mxu0 0
        %1760 = vmatpush1.bf16.msra.mxu0 0
        %1761 = vmatprep.subr.bf16.mxu0 0
        %1762 = vmatpush1.bf16.msra.mxu0 0
        %1763 = vmatprep.subr.bf16.mxu0 0
        %1764 = vmatpush1.bf16.msra.mxu0 0
        %1765 = vmatprep.subr.bf16.mxu0 0
        %1766 = vmatpush1.bf16.msra.mxu0 0
        %1767 = vmatprep.mubr.bf16.mxu0 0
        %1768 = vmatmul.mubr.bf16.gmra.mrb[0].mxu0 %v1046
        %v1769 = vpop.f32.mrb[0].mxu0
        %v1770 = vadd.f32 %v1709, %v1769
        %v1771 = vpop.f32.mrb[0].mxu0
        %v1772 = vpop.f32.mrb[0].mxu0
        %v1773 = vadd.f32 %v1709, %v1772
        %v1774 = vpop.f32.mrb[0].mxu0
        %1775 = vmatprep.mubr.bf16.mxu0 0
        %1776 = vmatmul.mubr.bf16.gmra.mrb[0].mxu0 %v1049
        %v1777 = vpop.f32.mrb[0].mxu0
        %v1778 = vadd.f32 %v1709, %v1777
        %v1779 = vpop.f32.mrb[0].mxu0
        %v1780 = vpop.f32.mrb[0].mxu0
        %v1781 = vadd.f32 %v1709, %v1780
        %v1782 = vpop.f32.mrb[0].mxu0
        %1783 = vmatprep.mubr.bf16.mxu0 0
        %1784 = vmatmul.mubr.bf16.gmra.mrb[0].mxu0 %v1052
        %v1785 = vpop.f32.mrb[0].mxu0
        %v1786 = vadd.f32 %v1709, %v1785
        %v1787 = vpop.f32.mrb[0].mxu0
        %v1788 = vpop.f32.mrb[0].mxu0
        %v1789 = vpop.f32.mrb[0].mxu0
        %1790 = vdwg.mxu0
        %s1791 = scalar_lea.vmem %s11, 32
        %v1792 = vld [vmem:[%s1791] sm:$0xf]
        %v1793 = vld [vmem:[%s1791 + $0x4] sm:$0xf]
        %v1794 = vld [vmem:[%s1791 + $0x8] sm:$0xf]
        %v1795 = vld [vmem:[%s1791 + $0xc] sm:$0xf]
        %v1796 = vld [vmem:[%s1791 + $0x10] sm:$0xf]
        %v1797 = vld [vmem:[%s1791 + $0x14] sm:$0xf]
        %v1798 = vld [vmem:[%s1791 + $0x18] sm:$0xf]
        %v1799 = vld [vmem:[%s1791 + $0x1c] sm:$0xf]
        %s1800 = scalar_lea.vmem %s12, 1
        %v1801 = vld [vmem:[%s1800] sm:$0x1]
        %v1803 = vlaneseq
        %v1804 = vshrl.u32 %v1803, 7
        %v1805 = vsub.s32 0, %v1804
        %v1806 = vrot.slane %v1801, %v1805
        %v1816 = vunpack.c.l.b16 %v1792
        %v1817 = vunpack.c.l.b16 %v1793
        %v1818 = vunpack.c.l.b16 %v1794
        %v1819 = vunpack.c.l.b16 %v1795
        %v1820 = vunpack.c.l.b16 %v1796
        %v1821 = vunpack.c.l.b16 %v1797
        %v1822 = vunpack.c.l.b16 %v1798
        %v1823 = vunpack.c.l.b16 %v1799
        %v1824 = vpack.c.b16 %v1817, %v1816
        %v1825 = vpack.c.b16 %v1819, %v1818
        %v1826 = vpack.c.b16 %v1821, %v1820
        %v1827 = vpack.c.b16 %v1823, %v1822
        %1832 = vmatprep.subr.bf16.mxu0 0
        %1833 = vmatpush1.bf16.msra.mxu0 %v1824
        %1834 = vmatprep.subr.bf16.mxu0 0
        %1835 = vmatpush1.bf16.msra.mxu0 %v1825
        %1836 = vmatprep.subr.bf16.mxu0 0
        %1837 = vmatpush1.bf16.msra.mxu0 %v1826
        %1838 = vmatprep.subr.bf16.mxu0 0
        %1839 = vmatpush1.bf16.msra.mxu0 %v1827
        %1840 = vmatprep.subr.bf16.mxu0 0
        %1841 = vmatpush1.bf16.msra.mxu0 0
        %1842 = vmatprep.subr.bf16.mxu0 0
        %1843 = vmatpush1.bf16.msra.mxu0 0
        %1844 = vmatprep.subr.bf16.mxu0 0
        %1845 = vmatpush1.bf16.msra.mxu0 0
        %1846 = vmatprep.subr.bf16.mxu0 0
        %1847 = vmatpush1.bf16.msra.mxu0 0
        %1848 = vmatprep.subr.bf16.mxu0 0
        %1849 = vmatpush1.bf16.msra.mxu0 0
        %1850 = vmatprep.subr.bf16.mxu0 0
        %1851 = vmatpush1.bf16.msra.mxu0 0
        %1852 = vmatprep.subr.bf16.mxu0 0
        %1853 = vmatpush1.bf16.msra.mxu0 0
        %1854 = vmatprep.subr.bf16.mxu0 0
        %1855 = vmatpush1.bf16.msra.mxu0 0
        %1856 = vmatprep.subr.bf16.mxu0 0
        %1857 = vmatpush1.bf16.msra.mxu0 0
        %1858 = vmatprep.subr.bf16.mxu0 0
        %1859 = vmatpush1.bf16.msra.mxu0 0
        %1860 = vmatprep.subr.bf16.mxu0 0
        %1861 = vmatpush1.bf16.msra.mxu0 0
        %1862 = vmatprep.subr.bf16.mxu0 0
        %1863 = vmatpush1.bf16.msra.mxu0 0
        %1864 = vmatprep.mubr.bf16.mxu0 0
        %1865 = vmatmul.mubr.bf16.gmra.mrb[0].mxu0 %v1046
        %v1866 = vpop.f32.mrb[0].mxu0
        %v1867 = vadd.f32 %v1806, %v1866
        %v1868 = vpop.f32.mrb[0].mxu0
        %v1869 = vpop.f32.mrb[0].mxu0
        %v1870 = vadd.f32 %v1806, %v1869
        %v1871 = vpop.f32.mrb[0].mxu0
        %1872 = vmatprep.mubr.bf16.mxu0 0
        %1873 = vmatmul.mubr.bf16.gmra.mrb[0].mxu0 %v1049
        %v1874 = vpop.f32.mrb[0].mxu0
        %v1875 = vadd.f32 %v1806, %v1874
        %v1876 = vpop.f32.mrb[0].mxu0
        %v1877 = vpop.f32.mrb[0].mxu0
        %v1878 = vadd.f32 %v1806, %v1877
        %v1879 = vpop.f32.mrb[0].mxu0
        %1880 = vmatprep.mubr.bf16.mxu0 0
        %1881 = vmatmul.mubr.bf16.gmra.mrb[0].mxu0 %v1052
        %v1882 = vpop.f32.mrb[0].mxu0
        %v1883 = vadd.f32 %v1806, %v1882
        %v1884 = vpop.f32.mrb[0].mxu0
        %v1885 = vpop.f32.mrb[0].mxu0
        %v1886 = vpop.f32.mrb[0].mxu0
        %1887 = vdwg.mxu0
        %v1888 = vpack.c.bf16 %v1676, %v1673
        %v1889 = vpack.c.bf16 %v1684, %v1681
        %v1890 = vpack.c.bf16 %v1689, %v1689
        %v1891 = vpack.c.bf16 %v1773, %v1770
        %v1892 = vpack.c.bf16 %v1781, %v1778
        %v1893 = vpack.c.bf16 %v1786, %v1786
        %v1895 = vsel %vm1306, %v1888, 0
        %v1898 = vsel %vm1306, %v1889, 0
        %v1901 = vsel %vm1306, %v1890, 0
        %v1904 = vsel %vm1306, %v1891, 0
        %v1907 = vsel %vm1306, %v1892, 0
        %v1910 = vsel %vm1306, %v1893, 0
        %1912 = vmatprep.subr.bf16.mxu0 0
        %1913 = vmatpush1.bf16.xpose.msra.mxu0 %v1904
        %1914 = vmatprep.subr.bf16.mxu0 0
        %1915 = vmatpush1.bf16.xpose.msra.mxu0 %v1907
        %1916 = vmatprep.subr.bf16.mxu0 0
        %1917 = vmatpush1.bf16.xpose.msra.mxu0 %v1910
        %1918 = vmatprep.subr.bf16.mxu0 0
        %1919 = vmatpush1.bf16.xpose.msra.mxu0 0
        %1920 = vmatprep.subr.bf16.mxu0 0
        %1921 = vmatpush1.bf16.xpose.msra.mxu0 0
        %1922 = vmatprep.subr.bf16.mxu0 0
        %1923 = vmatpush1.bf16.xpose.msra.mxu0 0
        %1924 = vmatprep.subr.bf16.mxu0 0
        %1925 = vmatpush1.bf16.xpose.msra.mxu0 0
        %1926 = vmatprep.subr.bf16.mxu0 0
        %1927 = vmatpush1.bf16.xpose.msra.mxu0 0
        %1928 = vmatprep.subr.bf16.mxu0 0
        %1929 = vmatpush1.bf16.xpose.msra.mxu0 0
        %1930 = vmatprep.subr.bf16.mxu0 0
        %1931 = vmatpush1.bf16.xpose.msra.mxu0 0
        %1932 = vmatprep.subr.bf16.mxu0 0
        %1933 = vmatpush1.bf16.xpose.msra.mxu0 0
        %1934 = vmatprep.subr.bf16.mxu0 0
        %1935 = vmatpush1.bf16.xpose.msra.mxu0 0
        %1936 = vmatprep.subr.bf16.mxu0 0
        %1937 = vmatpush1.bf16.xpose.msra.mxu0 0
        %1938 = vmatprep.subr.bf16.mxu0 0
        %1939 = vmatpush1.bf16.xpose.msra.mxu0 0
        %1940 = vmatprep.subr.bf16.mxu0 0
        %1941 = vmatpush1.bf16.xpose.msra.mxu0 0
        %1942 = vmatprep.subr.bf16.mxu0 0
        %1943 = vmatpush1.bf16.xpose.msra.mxu0 0
        %1944 = vmatprep.mubr.bf16.mxu0 0
        %1945 = vmatmul.mubr.bf16.gmra.mrb[0].mxu0 %v1895
        %v1946 = vpop.f32.mrb[0].mxu0
        %v1947 = vadd.f32 0.0, %v1946
        %v1948 = vpop.f32.mrb[0].mxu0
        %v1949 = vpop.f32.mrb[0].mxu0
        %v1950 = vadd.f32 0.0, %v1949
        %v1951 = vpop.f32.mrb[0].mxu0
        %1952 = vmatprep.mubr.bf16.mxu0 0
        %1953 = vmatmul.mubr.bf16.gmra.mrb[0].mxu0 %v1898
        %v1954 = vpop.f32.mrb[0].mxu0
        %v1955 = vadd.f32 0.0, %v1954
        %v1956 = vpop.f32.mrb[0].mxu0
        %v1957 = vpop.f32.mrb[0].mxu0
        %v1958 = vadd.f32 0.0, %v1957
        %v1959 = vpop.f32.mrb[0].mxu0
        %1960 = vmatprep.mubr.bf16.mxu0 0
        %1961 = vmatmul.mubr.bf16.gmra.mrb[0].mxu0 %v1901
        %v1962 = vpop.f32.mrb[0].mxu0
        %v1963 = vadd.f32 0.0, %v1962
        %v1964 = vpop.f32.mrb[0].mxu0
        %v1965 = vpop.f32.mrb[0].mxu0
        %v1966 = vpop.f32.mrb[0].mxu0
        %1967 = vdwg.mxu0
        %v1968 = vsel %vm1381, %v1947, -inf
        %1969 = vmax.xlane.f32.xlu0 %v1968
        %v1970 = vpop.xlane.xlu0 %1969
        %v1971 = vsel %vm1381, %v1950, -inf
        %1972 = vmax.xlane.f32.xlu0 %v1971
        %v1973 = vpop.xlane.xlu0 %1972
        %v1974 = vsel %vm1381, %v1955, -inf
        %1975 = vmax.xlane.f32.xlu0 %v1974
        %v1976 = vpop.xlane.xlu0 %1975
        %v1977 = vsel %vm1381, %v1958, -inf
        %1978 = vmax.xlane.f32.xlu0 %v1977
        %v1979 = vpop.xlane.xlu0 %1978
        %v1980 = vsel %vm1394, %v1963, -inf
        %1981 = vmax.xlane.f32.xlu0 %v1980
        %v1982 = vpop.xlane.xlu0 %1981
        %v1983 = vsub.f32 %v1947, %v1970
        %v1984 = vsub.f32 %v1950, %v1973
        %v1985 = vsub.f32 %v1955, %v1976
        %v1986 = vsub.f32 %v1958, %v1979
        %v1987 = vsub.f32 %v1963, %v1982
        %v1988 = vmul.f32 %v1983, 1.442695
        %v1989 = vpow.pop %v1988
        %v1990 = vmul.f32 %v1984, 1.442695
        %v1991 = vpow.pop %v1990
        %v1992 = vmul.f32 %v1985, 1.442695
        %v1993 = vpow.pop %v1992
        %v1994 = vmul.f32 %v1986, 1.442695
        %v1995 = vpow.pop %v1994
        %v1996 = vmul.f32 %v1987, 1.442695
        %v1997 = vpow.pop %v1996
        %v1998 = vsel %vm1381, %v1989, 0.0
        %1999 = vadd.xlane.f32.xlu0 %v1998
        %v2000 = vpop.xlane.xlu0 %1999
        %v2001 = vsel %vm1381, %v1991, 0.0
        %2002 = vadd.xlane.f32.xlu0 %v2001
        %v2003 = vpop.xlane.xlu0 %2002
        %v2004 = vsel %vm1381, %v1993, 0.0
        %2005 = vadd.xlane.f32.xlu0 %v2004
        %v2006 = vpop.xlane.xlu0 %2005
        %v2007 = vsel %vm1381, %v1995, 0.0
        %2008 = vadd.xlane.f32.xlu0 %v2007
        %v2009 = vpop.xlane.xlu0 %2008
        %v2010 = vsel %vm1394, %v1997, 0.0
        %2011 = vadd.xlane.f32.xlu0 %v2010
        %v2012 = vpop.xlane.xlu0 %2011
        %v2013 = vrcp.pop %v2000
        %v2014 = vrcp.pop %v2003
        %v2015 = vrcp.pop %v2006
        %v2016 = vrcp.pop %v2009
        %v2017 = vrcp.pop %v2012
        %v2018 = vmul.f32 %v1989, %v2013
        %v2019 = vmul.f32 %v1991, %v2014
        %v2020 = vmul.f32 %v1993, %v2015
        %v2021 = vmul.f32 %v1995, %v2016
        %v2022 = vmul.f32 %v1997, %v2017
        %v2023 = vpack.c.bf16 %v2019, %v2018
        %v2024 = vpack.c.bf16 %v2021, %v2020
        %v2025 = vpack.c.bf16 %v2022, %v2022
        %v2026 = vpack.c.bf16 %v1870, %v1867
        %v2027 = vpack.c.bf16 %v1878, %v1875
        %v2028 = vpack.c.bf16 %v1883, %v1883
        %v2030 = vsel %vm1381, %v2023, 0
        %v2033 = vsel %vm1381, %v2024, 0
        %v2036 = vsel %vm1381, %v2025, 0
        %v2039 = vand.u32 %v2028, %v1456
        %2041 = vmatprep.subr.bf16.mxu0 0
        %2042 = vmatpush1.bf16.msra.mxu0 %v2026
        %2043 = vmatprep.subr.bf16.mxu0 0
        %2044 = vmatpush1.bf16.msra.mxu0 %v2027
        %2045 = vmatprep.subr.bf16.mxu0 0
        %2046 = vmatpush1.bf16.msra.mxu0 %v2039
        %2047 = vmatprep.subr.bf16.mxu0 0
        %2048 = vmatpush1.bf16.msra.mxu0 0
        %2049 = vmatprep.subr.bf16.mxu0 0
        %2050 = vmatpush1.bf16.msra.mxu0 0
        %2051 = vmatprep.subr.bf16.mxu0 0
        %2052 = vmatpush1.bf16.msra.mxu0 0
        %2053 = vmatprep.subr.bf16.mxu0 0
        %2054 = vmatpush1.bf16.msra.mxu0 0
        %2055 = vmatprep.subr.bf16.mxu0 0
        %2056 = vmatpush1.bf16.msra.mxu0 0
        %2057 = vmatprep.subr.bf16.mxu0 0
        %2058 = vmatpush1.bf16.msra.mxu0 0
        %2059 = vmatprep.subr.bf16.mxu0 0
        %2060 = vmatpush1.bf16.msra.mxu0 0
        %2061 = vmatprep.subr.bf16.mxu0 0
        %2062 = vmatpush1.bf16.msra.mxu0 0
        %2063 = vmatprep.subr.bf16.mxu0 0
        %2064 = vmatpush1.bf16.msra.mxu0 0
        %2065 = vmatprep.subr.bf16.mxu0 0
        %2066 = vmatpush1.bf16.msra.mxu0 0
        %2067 = vmatprep.subr.bf16.mxu0 0
        %2068 = vmatpush1.bf16.msra.mxu0 0
        %2069 = vmatprep.subr.bf16.mxu0 0
        %2070 = vmatpush1.bf16.msra.mxu0 0
        %2071 = vmatprep.subr.bf16.mxu0 0
        %2072 = vmatpush1.bf16.msra.mxu0 0
        %2073 = vmatprep.mubr.bf16.mxu0 0
        %2074 = vmatmul.mubr.bf16.gmra.mrb[0].mxu0 %v2030
        %v2075 = vpop.f32.mrb[0].mxu0
        %v2076 = vadd.f32 0.0, %v2075
        %v2077 = vpop.f32.mrb[0].mxu0
        %v2078 = vpop.f32.mrb[0].mxu0
        %v2079 = vadd.f32 0.0, %v2078
        %v2080 = vpop.f32.mrb[0].mxu0
        %2081 = vmatprep.mubr.bf16.mxu0 0
        %2082 = vmatmul.mubr.bf16.gmra.mrb[0].mxu0 %v2033
        %v2083 = vpop.f32.mrb[0].mxu0
        %v2084 = vadd.f32 0.0, %v2083
        %v2085 = vpop.f32.mrb[0].mxu0
        %v2086 = vpop.f32.mrb[0].mxu0
        %v2087 = vadd.f32 0.0, %v2086
        %v2088 = vpop.f32.mrb[0].mxu0
        %2089 = vmatprep.mubr.bf16.mxu0 0
        %2090 = vmatmul.mubr.bf16.gmra.mrb[0].mxu0 %v2036
        %v2091 = vpop.f32.mrb[0].mxu0
        %v2092 = vadd.f32 0.0, %v2091
        %v2093 = vpop.f32.mrb[0].mxu0
        %v2094 = vpop.f32.mrb[0].mxu0
        %v2095 = vpop.f32.mrb[0].mxu0
        %2096 = vdwg.mxu0
        %v2097 = vpack.c.bf16 %v2079, %v2076
        %v2098 = vpack.c.bf16 %v2087, %v2084
        %v2099 = vpack.c.bf16 %v2092, %v2092
        %s2100 = scalar_lea.vmem %s13, 8
        %v2101 = vld [vmem:[%s2100] sm:$0xf]
        %v2102 = vld [vmem:[%s2100 + $0x4] sm:$0xf]
        %v2105 = vunpack.c.l.b16 %v2101
        %v2106 = vunpack.c.l.b16 %v2102
        %v2107 = vpack.c.b16 %v2106, %v2105
        %v2110 = vsel %vm1306, %v2097, 0
        %v2113 = vsel %vm1306, %v2098, 0
        %v2116 = vsel %vm1306, %v2099, 0
        %2118 = vmatprep.subr.bf16.mxu0 0
        %2119 = vmatpush1.bf16.msra.mxu0 %v2107
        %2120 = vmatprep.subr.bf16.mxu0 0
        %2121 = vmatpush1.bf16.msra.mxu0 0
        %2122 = vmatprep.subr.bf16.mxu0 0
        %2123 = vmatpush1.bf16.msra.mxu0 0
        %2124 = vmatprep.subr.bf16.mxu0 0
        %2125 = vmatpush1.bf16.msra.mxu0 0
        %2126 = vmatprep.subr.bf16.mxu0 0
        %2127 = vmatpush1.bf16.msra.mxu0 0
        %2128 = vmatprep.subr.bf16.mxu0 0
        %2129 = vmatpush1.bf16.msra.mxu0 0
        %2130 = vmatprep.subr.bf16.mxu0 0
        %2131 = vmatpush1.bf16.msra.mxu0 0
        %2132 = vmatprep.subr.bf16.mxu0 0
        %2133 = vmatpush1.bf16.msra.mxu0 0
        %2134 = vmatprep.subr.bf16.mxu0 0
        %2135 = vmatpush1.bf16.msra.mxu0 0
        %2136 = vmatprep.subr.bf16.mxu0 0
        %2137 = vmatpush1.bf16.msra.mxu0 0
        %2138 = vmatprep.subr.bf16.mxu0 0
        %2139 = vmatpush1.bf16.msra.mxu0 0
        %2140 = vmatprep.subr.bf16.mxu0 0
        %2141 = vmatpush1.bf16.msra.mxu0 0
        %2142 = vmatprep.subr.bf16.mxu0 0
        %2143 = vmatpush1.bf16.msra.mxu0 0
        %2144 = vmatprep.subr.bf16.mxu0 0
        %2145 = vmatpush1.bf16.msra.mxu0 0
        %2146 = vmatprep.subr.bf16.mxu0 0
        %2147 = vmatpush1.bf16.msra.mxu0 0
        %2148 = vmatprep.subr.bf16.mxu0 0
        %2149 = vmatpush1.bf16.msra.mxu0 0
        %2150 = vmatprep.mubr.bf16.mxu0 0
        %2151 = vmatmul.mubr.bf16.gmra.mrb[0].mxu0 %v2110
        %v2152 = vpop.f32.mrb[0].mxu0
        %v2153 = vadd.f32 0.0, %v2152
        %v2154 = vpop.f32.mrb[0].mxu0
        %v2155 = vpop.f32.mrb[0].mxu0
        %v2156 = vadd.f32 0.0, %v2155
        %v2157 = vpop.f32.mrb[0].mxu0
        %2158 = vmatprep.mubr.bf16.mxu0 0
        %2159 = vmatmul.mubr.bf16.gmra.mrb[0].mxu0 %v2113
        %v2160 = vpop.f32.mrb[0].mxu0
        %v2161 = vadd.f32 0.0, %v2160
        %v2162 = vpop.f32.mrb[0].mxu0
        %v2163 = vpop.f32.mrb[0].mxu0
        %v2164 = vadd.f32 0.0, %v2163
        %v2165 = vpop.f32.mrb[0].mxu0
        %2166 = vmatprep.mubr.bf16.mxu0 0
        %2167 = vmatmul.mubr.bf16.gmra.mrb[0].mxu0 %v2116
        %v2168 = vpop.f32.mrb[0].mxu0
        %v2169 = vadd.f32 0.0, %v2168
        %v2170 = vpop.f32.mrb[0].mxu0
        %v2171 = vpop.f32.mrb[0].mxu0
        %v2172 = vpop.f32.mrb[0].mxu0
        %2173 = vdwg.mxu0
        %v2174 = vadd.f32 %v1592, %v2153
        %v2175 = vadd.f32 %v1593, %v2156
        %v2176 = vadd.f32 %v1594, %v2161
        %v2177 = vadd.f32 %v1595, %v2164
        %v2178 = vadd.f32 %v1596, %v2169
        %s2179 = scalar_lea.vmem %s7, 64
        %v2180 = vld [vmem:[%s2179] sm:$0xf]
        %v2181 = vld [vmem:[%s2179 + $0x4] sm:$0xf]
        %v2182 = vld [vmem:[%s2179 + $0x8] sm:$0xf]
        %v2183 = vld [vmem:[%s2179 + $0xc] sm:$0xf]
        %v2184 = vld [vmem:[%s2179 + $0x10] sm:$0xf]
        %v2185 = vld [vmem:[%s2179 + $0x14] sm:$0xf]
        %v2186 = vld [vmem:[%s2179 + $0x18] sm:$0xf]
        %v2187 = vld [vmem:[%s2179 + $0x1c] sm:$0xf]
        %s2188 = scalar_lea.vmem %s8, 2
        %v2189 = vld [vmem:[%s2188] sm:$0x1]
        %v2191 = vlaneseq
        %v2192 = vshrl.u32 %v2191, 7
        %v2193 = vsub.s32 0, %v2192
        %v2194 = vrot.slane %v2189, %v2193
        %v2204 = vunpack.c.l.b16 %v2180
        %v2205 = vunpack.c.l.b16 %v2181
        %v2206 = vunpack.c.l.b16 %v2182
        %v2207 = vunpack.c.l.b16 %v2183
        %v2208 = vunpack.c.l.b16 %v2184
        %v2209 = vunpack.c.l.b16 %v2185
        %v2210 = vunpack.c.l.b16 %v2186
        %v2211 = vunpack.c.l.b16 %v2187
        %v2212 = vpack.c.b16 %v2205, %v2204
        %v2213 = vpack.c.b16 %v2207, %v2206
        %v2214 = vpack.c.b16 %v2209, %v2208
        %v2215 = vpack.c.b16 %v2211, %v2210
        %2220 = vmatprep.subr.bf16.mxu0 0
        %2221 = vmatpush1.bf16.msra.mxu0 %v2212
        %2222 = vmatprep.subr.bf16.mxu0 0
        %2223 = vmatpush1.bf16.msra.mxu0 %v2213
        %2224 = vmatprep.subr.bf16.mxu0 0
        %2225 = vmatpush1.bf16.msra.mxu0 %v2214
        %2226 = vmatprep.subr.bf16.mxu0 0
        %2227 = vmatpush1.bf16.msra.mxu0 %v2215
        %2228 = vmatprep.subr.bf16.mxu0 0
        %2229 = vmatpush1.bf16.msra.mxu0 0
        %2230 = vmatprep.subr.bf16.mxu0 0
        %2231 = vmatpush1.bf16.msra.mxu0 0
        %2232 = vmatprep.subr.bf16.mxu0 0
        %2233 = vmatpush1.bf16.msra.mxu0 0
        %2234 = vmatprep.subr.bf16.mxu0 0
        %2235 = vmatpush1.bf16.msra.mxu0 0
        %2236 = vmatprep.subr.bf16.mxu0 0
        %2237 = vmatpush1.bf16.msra.mxu0 0
        %2238 = vmatprep.subr.bf16.mxu0 0
        %2239 = vmatpush1.bf16.msra.mxu0 0
        %2240 = vmatprep.subr.bf16.mxu0 0
        %2241 = vmatpush1.bf16.msra.mxu0 0
        %2242 = vmatprep.subr.bf16.mxu0 0
        %2243 = vmatpush1.bf16.msra.mxu0 0
        %2244 = vmatprep.subr.bf16.mxu0 0
        %2245 = vmatpush1.bf16.msra.mxu0 0
        %2246 = vmatprep.subr.bf16.mxu0 0
        %2247 = vmatpush1.bf16.msra.mxu0 0
        %2248 = vmatprep.subr.bf16.mxu0 0
        %2249 = vmatpush1.bf16.msra.mxu0 0
        %2250 = vmatprep.subr.bf16.mxu0 0
        %2251 = vmatpush1.bf16.msra.mxu0 0
        %2252 = vmatprep.mubr.bf16.mxu0 0
        %2253 = vmatmul.mubr.bf16.gmra.mrb[0].mxu0 %v1046
        %v2254 = vpop.f32.mrb[0].mxu0
        %v2255 = vadd.f32 %v2194, %v2254
        %v2256 = vpop.f32.mrb[0].mxu0
        %v2257 = vpop.f32.mrb[0].mxu0
        %v2258 = vadd.f32 %v2194, %v2257
        %v2259 = vpop.f32.mrb[0].mxu0
        %2260 = vmatprep.mubr.bf16.mxu0 0
        %2261 = vmatmul.mubr.bf16.gmra.mrb[0].mxu0 %v1049
        %v2262 = vpop.f32.mrb[0].mxu0
        %v2263 = vadd.f32 %v2194, %v2262
        %v2264 = vpop.f32.mrb[0].mxu0
        %v2265 = vpop.f32.mrb[0].mxu0
        %v2266 = vadd.f32 %v2194, %v2265
        %v2267 = vpop.f32.mrb[0].mxu0
        %2268 = vmatprep.mubr.bf16.mxu0 0
        %2269 = vmatmul.mubr.bf16.gmra.mrb[0].mxu0 %v1052
        %v2270 = vpop.f32.mrb[0].mxu0
        %v2271 = vadd.f32 %v2194, %v2270
        %v2272 = vpop.f32.mrb[0].mxu0
        %v2273 = vpop.f32.mrb[0].mxu0
        %v2274 = vpop.f32.mrb[0].mxu0
        %2275 = vdwg.mxu0
        %s2276 = scalar_lea.vmem %s9, 64
        %v2277 = vld [vmem:[%s2276] sm:$0xf]
        %v2278 = vld [vmem:[%s2276 + $0x4] sm:$0xf]
        %v2279 = vld [vmem:[%s2276 + $0x8] sm:$0xf]
        %v2280 = vld [vmem:[%s2276 + $0xc] sm:$0xf]
        %v2281 = vld [vmem:[%s2276 + $0x10] sm:$0xf]
        %v2282 = vld [vmem:[%s2276 + $0x14] sm:$0xf]
        %v2283 = vld [vmem:[%s2276 + $0x18] sm:$0xf]
        %v2284 = vld [vmem:[%s2276 + $0x1c] sm:$0xf]
        %s2285 = scalar_lea.vmem %s10, 2
        %v2286 = vld [vmem:[%s2285] sm:$0x1]
        %v2288 = vlaneseq
        %v2289 = vshrl.u32 %v2288, 7
        %v2290 = vsub.s32 0, %v2289
        %v2291 = vrot.slane %v2286, %v2290
        %v2301 = vunpack.c.l.b16 %v2277
        %v2302 = vunpack.c.l.b16 %v2278
        %v2303 = vunpack.c.l.b16 %v2279
        %v2304 = vunpack.c.l.b16 %v2280
        %v2305 = vunpack.c.l.b16 %v2281
        %v2306 = vunpack.c.l.b16 %v2282
        %v2307 = vunpack.c.l.b16 %v2283
        %v2308 = vunpack.c.l.b16 %v2284
        %v2309 = vpack.c.b16 %v2302, %v2301
        %v2310 = vpack.c.b16 %v2304, %v2303
        %v2311 = vpack.c.b16 %v2306, %v2305
        %v2312 = vpack.c.b16 %v2308, %v2307
        %2317 = vmatprep.subr.bf16.mxu0 0
        %2318 = vmatpush1.bf16.msra.mxu0 %v2309
        %2319 = vmatprep.subr.bf16.mxu0 0
        %2320 = vmatpush1.bf16.msra.mxu0 %v2310
        %2321 = vmatprep.subr.bf16.mxu0 0
        %2322 = vmatpush1.bf16.msra.mxu0 %v2311
        %2323 = vmatprep.subr.bf16.mxu0 0
        %2324 = vmatpush1.bf16.msra.mxu0 %v2312
        %2325 = vmatprep.subr.bf16.mxu0 0
        %2326 = vmatpush1.bf16.msra.mxu0 0
        %2327 = vmatprep.subr.bf16.mxu0 0
        %2328 = vmatpush1.bf16.msra.mxu0 0
        %2329 = vmatprep.subr.bf16.mxu0 0
        %2330 = vmatpush1.bf16.msra.mxu0 0
        %2331 = vmatprep.subr.bf16.mxu0 0
        %2332 = vmatpush1.bf16.msra.mxu0 0
        %2333 = vmatprep.subr.bf16.mxu0 0
        %2334 = vmatpush1.bf16.msra.mxu0 0
        %2335 = vmatprep.subr.bf16.mxu0 0
        %2336 = vmatpush1.bf16.msra.mxu0 0
        %2337 = vmatprep.subr.bf16.mxu0 0
        %2338 = vmatpush1.bf16.msra.mxu0 0
        %2339 = vmatprep.subr.bf16.mxu0 0
        %2340 = vmatpush1.bf16.msra.mxu0 0
        %2341 = vmatprep.subr.bf16.mxu0 0
        %2342 = vmatpush1.bf16.msra.mxu0 0
        %2343 = vmatprep.subr.bf16.mxu0 0
        %2344 = vmatpush1.bf16.msra.mxu0 0
        %2345 = vmatprep.subr.bf16.mxu0 0
        %2346 = vmatpush1.bf16.msra.mxu0 0
        %2347 = vmatprep.subr.bf16.mxu0 0
        %2348 = vmatpush1.bf16.msra.mxu0 0
        %2349 = vmatprep.mubr.bf16.mxu0 0
        %2350 = vmatmul.mubr.bf16.gmra.mrb[0].mxu0 %v1046
        %v2351 = vpop.f32.mrb[0].mxu0
        %v2352 = vadd.f32 %v2291, %v2351
        %v2353 = vpop.f32.mrb[0].mxu0
        %v2354 = vpop.f32.mrb[0].mxu0
        %v2355 = vadd.f32 %v2291, %v2354
        %v2356 = vpop.f32.mrb[0].mxu0
        %2357 = vmatprep.mubr.bf16.mxu0 0
        %2358 = vmatmul.mubr.bf16.gmra.mrb[0].mxu0 %v1049
        %v2359 = vpop.f32.mrb[0].mxu0
        %v2360 = vadd.f32 %v2291, %v2359
        %v2361 = vpop.f32.mrb[0].mxu0
        %v2362 = vpop.f32.mrb[0].mxu0
        %v2363 = vadd.f32 %v2291, %v2362
        %v2364 = vpop.f32.mrb[0].mxu0
        %2365 = vmatprep.mubr.bf16.mxu0 0
        %2366 = vmatmul.mubr.bf16.gmra.mrb[0].mxu0 %v1052
        %v2367 = vpop.f32.mrb[0].mxu0
        %v2368 = vadd.f32 %v2291, %v2367
        %v2369 = vpop.f32.mrb[0].mxu0
        %v2370 = vpop.f32.mrb[0].mxu0
        %v2371 = vpop.f32.mrb[0].mxu0
        %2372 = vdwg.mxu0
        %s2373 = scalar_lea.vmem %s11, 64
        %v2374 = vld [vmem:[%s2373] sm:$0xf]
        %v2375 = vld [vmem:[%s2373 + $0x4] sm:$0xf]
        %v2376 = vld [vmem:[%s2373 + $0x8] sm:$0xf]
        %v2377 = vld [vmem:[%s2373 + $0xc] sm:$0xf]
        %v2378 = vld [vmem:[%s2373 + $0x10] sm:$0xf]
        %v2379 = vld [vmem:[%s2373 + $0x14] sm:$0xf]
        %v2380 = vld [vmem:[%s2373 + $0x18] sm:$0xf]
        %v2381 = vld [vmem:[%s2373 + $0x1c] sm:$0xf]
        %s2382 = scalar_lea.vmem %s12, 2
        %v2383 = vld [vmem:[%s2382] sm:$0x1]
        %v2385 = vlaneseq
        %v2386 = vshrl.u32 %v2385, 7
        %v2387 = vsub.s32 0, %v2386
        %v2388 = vrot.slane %v2383, %v2387
        %v2398 = vunpack.c.l.b16 %v2374
        %v2399 = vunpack.c.l.b16 %v2375
        %v2400 = vunpack.c.l.b16 %v2376
        %v2401 = vunpack.c.l.b16 %v2377
        %v2402 = vunpack.c.l.b16 %v2378
        %v2403 = vunpack.c.l.b16 %v2379
        %v2404 = vunpack.c.l.b16 %v2380
        %v2405 = vunpack.c.l.b16 %v2381
        %v2406 = vpack.c.b16 %v2399, %v2398
        %v2407 = vpack.c.b16 %v2401, %v2400
        %v2408 = vpack.c.b16 %v2403, %v2402
        %v2409 = vpack.c.b16 %v2405, %v2404
        %2414 = vmatprep.subr.bf16.mxu0 0
        %2415 = vmatpush1.bf16.msra.mxu0 %v2406
        %2416 = vmatprep.subr.bf16.mxu0 0
        %2417 = vmatpush1.bf16.msra.mxu0 %v2407
        %2418 = vmatprep.subr.bf16.mxu0 0
        %2419 = vmatpush1.bf16.msra.mxu0 %v2408
        %2420 = vmatprep.subr.bf16.mxu0 0
        %2421 = vmatpush1.bf16.msra.mxu0 %v2409
        %2422 = vmatprep.subr.bf16.mxu0 0
        %2423 = vmatpush1.bf16.msra.mxu0 0
        %2424 = vmatprep.subr.bf16.mxu0 0
        %2425 = vmatpush1.bf16.msra.mxu0 0
        %2426 = vmatprep.subr.bf16.mxu0 0
        %2427 = vmatpush1.bf16.msra.mxu0 0
        %2428 = vmatprep.subr.bf16.mxu0 0
        %2429 = vmatpush1.bf16.msra.mxu0 0
        %2430 = vmatprep.subr.bf16.mxu0 0
        %2431 = vmatpush1.bf16.msra.mxu0 0
        %2432 = vmatprep.subr.bf16.mxu0 0
        %2433 = vmatpush1.bf16.msra.mxu0 0
        %2434 = vmatprep.subr.bf16.mxu0 0
        %2435 = vmatpush1.bf16.msra.mxu0 0
        %2436 = vmatprep.subr.bf16.mxu0 0
        %2437 = vmatpush1.bf16.msra.mxu0 0
        %2438 = vmatprep.subr.bf16.mxu0 0
        %2439 = vmatpush1.bf16.msra.mxu0 0
        %2440 = vmatprep.subr.bf16.mxu0 0
        %2441 = vmatpush1.bf16.msra.mxu0 0
        %2442 = vmatprep.subr.bf16.mxu0 0
        %2443 = vmatpush1.bf16.msra.mxu0 0
        %2444 = vmatprep.subr.bf16.mxu0 0
        %2445 = vmatpush1.bf16.msra.mxu0 0
        %2446 = vmatprep.mubr.bf16.mxu0 0
        %2447 = vmatmul.mubr.bf16.gmra.mrb[0].mxu0 %v1046
        %v2448 = vpop.f32.mrb[0].mxu0
        %v2449 = vadd.f32 %v2388, %v2448
        %v2450 = vpop.f32.mrb[0].mxu0
        %v2451 = vpop.f32.mrb[0].mxu0
        %v2452 = vadd.f32 %v2388, %v2451
        %v2453 = vpop.f32.mrb[0].mxu0
        %2454 = vmatprep.mubr.bf16.mxu0 0
        %2455 = vmatmul.mubr.bf16.gmra.mrb[0].mxu0 %v1049
        %v2456 = vpop.f32.mrb[0].mxu0
        %v2457 = vadd.f32 %v2388, %v2456
        %v2458 = vpop.f32.mrb[0].mxu0
        %v2459 = vpop.f32.mrb[0].mxu0
        %v2460 = vadd.f32 %v2388, %v2459
        %v2461 = vpop.f32.mrb[0].mxu0
        %2462 = vmatprep.mubr.bf16.mxu0 0
        %2463 = vmatmul.mubr.bf16.gmra.mrb[0].mxu0 %v1052
        %v2464 = vpop.f32.mrb[0].mxu0
        %v2465 = vadd.f32 %v2388, %v2464
        %v2466 = vpop.f32.mrb[0].mxu0
        %v2467 = vpop.f32.mrb[0].mxu0
        %v2468 = vpop.f32.mrb[0].mxu0
        %2469 = vdwg.mxu0
        %v2470 = vpack.c.bf16 %v2258, %v2255
        %v2471 = vpack.c.bf16 %v2266, %v2263
        %v2472 = vpack.c.bf16 %v2271, %v2271
        %v2473 = vpack.c.bf16 %v2355, %v2352
        %v2474 = vpack.c.bf16 %v2363, %v2360
        %v2475 = vpack.c.bf16 %v2368, %v2368
        %v2477 = vsel %vm1306, %v2470, 0
        %v2480 = vsel %vm1306, %v2471, 0
        %v2483 = vsel %vm1306, %v2472, 0
        %v2486 = vsel %vm1306, %v2473, 0
        %v2489 = vsel %vm1306, %v2474, 0
        %v2492 = vsel %vm1306, %v2475, 0
        %2494 = vmatprep.subr.bf16.mxu0 0
        %2495 = vmatpush1.bf16.xpose.msra.mxu0 %v2486
        %2496 = vmatprep.subr.bf16.mxu0 0
        %2497 = vmatpush1.bf16.xpose.msra.mxu0 %v2489
        %2498 = vmatprep.subr.bf16.mxu0 0
        %2499 = vmatpush1.bf16.xpose.msra.mxu0 %v2492
        %2500 = vmatprep.subr.bf16.mxu0 0
        %2501 = vmatpush1.bf16.xpose.msra.mxu0 0
        %2502 = vmatprep.subr.bf16.mxu0 0
        %2503 = vmatpush1.bf16.xpose.msra.mxu0 0
        %2504 = vmatprep.subr.bf16.mxu0 0
        %2505 = vmatpush1.bf16.xpose.msra.mxu0 0
        %2506 = vmatprep.subr.bf16.mxu0 0
        %2507 = vmatpush1.bf16.xpose.msra.mxu0 0
        %2508 = vmatprep.subr.bf16.mxu0 0
        %2509 = vmatpush1.bf16.xpose.msra.mxu0 0
        %2510 = vmatprep.subr.bf16.mxu0 0
        %2511 = vmatpush1.bf16.xpose.msra.mxu0 0
        %2512 = vmatprep.subr.bf16.mxu0 0
        %2513 = vmatpush1.bf16.xpose.msra.mxu0 0
        %2514 = vmatprep.subr.bf16.mxu0 0
        %2515 = vmatpush1.bf16.xpose.msra.mxu0 0
        %2516 = vmatprep.subr.bf16.mxu0 0
        %2517 = vmatpush1.bf16.xpose.msra.mxu0 0
        %2518 = vmatprep.subr.bf16.mxu0 0
        %2519 = vmatpush1.bf16.xpose.msra.mxu0 0
        %2520 = vmatprep.subr.bf16.mxu0 0
        %2521 = vmatpush1.bf16.xpose.msra.mxu0 0
        %2522 = vmatprep.subr.bf16.mxu0 0
        %2523 = vmatpush1.bf16.xpose.msra.mxu0 0
        %2524 = vmatprep.subr.bf16.mxu0 0
        %2525 = vmatpush1.bf16.xpose.msra.mxu0 0
        %2526 = vmatprep.mubr.bf16.mxu0 0
        %2527 = vmatmul.mubr.bf16.gmra.mrb[0].mxu0 %v2477
        %v2528 = vpop.f32.mrb[0].mxu0
        %v2529 = vadd.f32 0.0, %v2528
        %v2530 = vpop.f32.mrb[0].mxu0
        %v2531 = vpop.f32.mrb[0].mxu0
        %v2532 = vadd.f32 0.0, %v2531
        %v2533 = vpop.f32.mrb[0].mxu0
        %2534 = vmatprep.mubr.bf16.mxu0 0
        %2535 = vmatmul.mubr.bf16.gmra.mrb[0].mxu0 %v2480
        %v2536 = vpop.f32.mrb[0].mxu0
        %v2537 = vadd.f32 0.0, %v2536
        %v2538 = vpop.f32.mrb[0].mxu0
        %v2539 = vpop.f32.mrb[0].mxu0
        %v2540 = vadd.f32 0.0, %v2539
        %v2541 = vpop.f32.mrb[0].mxu0
        %2542 = vmatprep.mubr.bf16.mxu0 0
        %2543 = vmatmul.mubr.bf16.gmra.mrb[0].mxu0 %v2483
        %v2544 = vpop.f32.mrb[0].mxu0
        %v2545 = vadd.f32 0.0, %v2544
        %v2546 = vpop.f32.mrb[0].mxu0
        %v2547 = vpop.f32.mrb[0].mxu0
        %v2548 = vpop.f32.mrb[0].mxu0
        %2549 = vdwg.mxu0
        %v2550 = vsel %vm1381, %v2529, -inf
        %2551 = vmax.xlane.f32.xlu0 %v2550
        %v2552 = vpop.xlane.xlu0 %2551
        %v2553 = vsel %vm1381, %v2532, -inf
        %2554 = vmax.xlane.f32.xlu0 %v2553
        %v2555 = vpop.xlane.xlu0 %2554
        %v2556 = vsel %vm1381, %v2537, -inf
        %2557 = vmax.xlane.f32.xlu0 %v2556
        %v2558 = vpop.xlane.xlu0 %2557
        %v2559 = vsel %vm1381, %v2540, -inf
        %2560 = vmax.xlane.f32.xlu0 %v2559
        %v2561 = vpop.xlane.xlu0 %2560
        %v2562 = vsel %vm1394, %v2545, -inf
        %2563 = vmax.xlane.f32.xlu0 %v2562
        %v2564 = vpop.xlane.xlu0 %2563
        %v2565 = vsub.f32 %v2529, %v2552
        %v2566 = vsub.f32 %v2532, %v2555
        %v2567 = vsub.f32 %v2537, %v2558
        %v2568 = vsub.f32 %v2540, %v2561
        %v2569 = vsub.f32 %v2545, %v2564
        %v2570 = vmul.f32 %v2565, 1.442695
        %v2571 = vpow.pop %v2570
        %v2572 = vmul.f32 %v2566, 1.442695
        %v2573 = vpow.pop %v2572
        %v2574 = vmul.f32 %v2567, 1.442695
        %v2575 = vpow.pop %v2574
        %v2576 = vmul.f32 %v2568, 1.442695
        %v2577 = vpow.pop %v2576
        %v2578 = vmul.f32 %v2569, 1.442695
        %v2579 = vpow.pop %v2578
        %v2580 = vsel %vm1381, %v2571, 0.0
        %2581 = vadd.xlane.f32.xlu0 %v2580
        %v2582 = vpop.xlane.xlu0 %2581
        %v2583 = vsel %vm1381, %v2573, 0.0
        %2584 = vadd.xlane.f32.xlu0 %v2583
        %v2585 = vpop.xlane.xlu0 %2584
        %v2586 = vsel %vm1381, %v2575, 0.0
        %2587 = vadd.xlane.f32.xlu0 %v2586
        %v2588 = vpop.xlane.xlu0 %2587
        %v2589 = vsel %vm1381, %v2577, 0.0
        %2590 = vadd.xlane.f32.xlu0 %v2589
        %v2591 = vpop.xlane.xlu0 %2590
        %v2592 = vsel %vm1394, %v2579, 0.0
        %2593 = vadd.xlane.f32.xlu0 %v2592
        %v2594 = vpop.xlane.xlu0 %2593
        %v2595 = vrcp.pop %v2582
        %v2596 = vrcp.pop %v2585
        %v2597 = vrcp.pop %v2588
        %v2598 = vrcp.pop %v2591
        %v2599 = vrcp.pop %v2594
        %v2600 = vmul.f32 %v2571, %v2595
        %v2601 = vmul.f32 %v2573, %v2596
        %v2602 = vmul.f32 %v2575, %v2597
        %v2603 = vmul.f32 %v2577, %v2598
        %v2604 = vmul.f32 %v2579, %v2599
        %v2605 = vpack.c.bf16 %v2601, %v2600
        %v2606 = vpack.c.bf16 %v2603, %v2602
        %v2607 = vpack.c.bf16 %v2604, %v2604
        %v2608 = vpack.c.bf16 %v2452, %v2449
        %v2609 = vpack.c.bf16 %v2460, %v2457
        %v2610 = vpack.c.bf16 %v2465, %v2465
        %v2612 = vsel %vm1381, %v2605, 0
        %v2615 = vsel %vm1381, %v2606, 0
        %v2618 = vsel %vm1381, %v2607, 0
        %v2621 = vand.u32 %v2610, %v1456
        %2623 = vmatprep.subr.bf16.mxu0 0
        %2624 = vmatpush1.bf16.msra.mxu0 %v2608
        %2625 = vmatprep.subr.bf16.mxu0 0
        %2626 = vmatpush1.bf16.msra.mxu0 %v2609
        %2627 = vmatprep.subr.bf16.mxu0 0
        %2628 = vmatpush1.bf16.msra.mxu0 %v2621
        %2629 = vmatprep.subr.bf16.mxu0 0
        %2630 = vmatpush1.bf16.msra.mxu0 0
        %2631 = vmatprep.subr.bf16.mxu0 0
        %2632 = vmatpush1.bf16.msra.mxu0 0
        %2633 = vmatprep.subr.bf16.mxu0 0
        %2634 = vmatpush1.bf16.msra.mxu0 0
        %2635 = vmatprep.subr.bf16.mxu0 0
        %2636 = vmatpush1.bf16.msra.mxu0 0
        %2637 = vmatprep.subr.bf16.mxu0 0
        %2638 = vmatpush1.bf16.msra.mxu0 0
        %2639 = vmatprep.subr.bf16.mxu0 0
        %2640 = vmatpush1.bf16.msra.mxu0 0
        %2641 = vmatprep.subr.bf16.mxu0 0
        %2642 = vmatpush1.bf16.msra.mxu0 0
        %2643 = vmatprep.subr.bf16.mxu0 0
        %2644 = vmatpush1.bf16.msra.mxu0 0
        %2645 = vmatprep.subr.bf16.mxu0 0
        %2646 = vmatpush1.bf16.msra.mxu0 0
        %2647 = vmatprep.subr.bf16.mxu0 0
        %2648 = vmatpush1.bf16.msra.mxu0 0
        %2649 = vmatprep.subr.bf16.mxu0 0
        %2650 = vmatpush1.bf16.msra.mxu0 0
        %2651 = vmatprep.subr.bf16.mxu0 0
        %2652 = vmatpush1.bf16.msra.mxu0 0
        %2653 = vmatprep.subr.bf16.mxu0 0
        %2654 = vmatpush1.bf16.msra.mxu0 0
        %2655 = vmatprep.mubr.bf16.mxu0 0
        %2656 = vmatmul.mubr.bf16.gmra.mrb[0].mxu0 %v2612
        %v2657 = vpop.f32.mrb[0].mxu0
        %v2658 = vadd.f32 0.0, %v2657
        %v2659 = vpop.f32.mrb[0].mxu0
        %v2660 = vpop.f32.mrb[0].mxu0
        %v2661 = vadd.f32 0.0, %v2660
        %v2662 = vpop.f32.mrb[0].mxu0
        %2663 = vmatprep.mubr.bf16.mxu0 0
        %2664 = vmatmul.mubr.bf16.gmra.mrb[0].mxu0 %v2615
        %v2665 = vpop.f32.mrb[0].mxu0
        %v2666 = vadd.f32 0.0, %v2665
        %v2667 = vpop.f32.mrb[0].mxu0
        %v2668 = vpop.f32.mrb[0].mxu0
        %v2669 = vadd.f32 0.0, %v2668
        %v2670 = vpop.f32.mrb[0].mxu0
        %2671 = vmatprep.mubr.bf16.mxu0 0
        %2672 = vmatmul.mubr.bf16.gmra.mrb[0].mxu0 %v2618
        %v2673 = vpop.f32.mrb[0].mxu0
        %v2674 = vadd.f32 0.0, %v2673
        %v2675 = vpop.f32.mrb[0].mxu0
        %v2676 = vpop.f32.mrb[0].mxu0
        %v2677 = vpop.f32.mrb[0].mxu0
        %2678 = vdwg.mxu0
        %v2679 = vpack.c.bf16 %v2661, %v2658
        %v2680 = vpack.c.bf16 %v2669, %v2666
        %v2681 = vpack.c.bf16 %v2674, %v2674
        %s2682 = scalar_lea.vmem %s13, 16
        %v2683 = vld [vmem:[%s2682] sm:$0xf]
        %v2684 = vld [vmem:[%s2682 + $0x4] sm:$0xf]
        %v2687 = vunpack.c.l.b16 %v2683
        %v2688 = vunpack.c.l.b16 %v2684
        %v2689 = vpack.c.b16 %v2688, %v2687
        %v2692 = vsel %vm1306, %v2679, 0
        %v2695 = vsel %vm1306, %v2680, 0
        %v2698 = vsel %vm1306, %v2681, 0
        %2700 = vmatprep.subr.bf16.mxu0 0
        %2701 = vmatpush1.bf16.msra.mxu0 %v2689
        %2702 = vmatprep.subr.bf16.mxu0 0
        %2703 = vmatpush1.bf16.msra.mxu0 0
        %2704 = vmatprep.subr.bf16.mxu0 0
        %2705 = vmatpush1.bf16.msra.mxu0 0
        %2706 = vmatprep.subr.bf16.mxu0 0
        %2707 = vmatpush1.bf16.msra.mxu0 0
        %2708 = vmatprep.subr.bf16.mxu0 0
        %2709 = vmatpush1.bf16.msra.mxu0 0
        %2710 = vmatprep.subr.bf16.mxu0 0
        %2711 = vmatpush1.bf16.msra.mxu0 0
        %2712 = vmatprep.subr.bf16.mxu0 0
        %2713 = vmatpush1.bf16.msra.mxu0 0
        %2714 = vmatprep.subr.bf16.mxu0 0
        %2715 = vmatpush1.bf16.msra.mxu0 0
        %2716 = vmatprep.subr.bf16.mxu0 0
        %2717 = vmatpush1.bf16.msra.mxu0 0
        %2718 = vmatprep.subr.bf16.mxu0 0
        %2719 = vmatpush1.bf16.msra.mxu0 0
        %2720 = vmatprep.subr.bf16.mxu0 0
        %2721 = vmatpush1.bf16.msra.mxu0 0
        %2722 = vmatprep.subr.bf16.mxu0 0
        %2723 = vmatpush1.bf16.msra.mxu0 0
        %2724 = vmatprep.subr.bf16.mxu0 0
        %2725 = vmatpush1.bf16.msra.mxu0 0
        %2726 = vmatprep.subr.bf16.mxu0 0
        %2727 = vmatpush1.bf16.msra.mxu0 0
        %2728 = vmatprep.subr.bf16.mxu0 0
        %2729 = vmatpush1.bf16.msra.mxu0 0
        %2730 = vmatprep.subr.bf16.mxu0 0
        %2731 = vmatpush1.bf16.msra.mxu0 0
        %2732 = vmatprep.mubr.bf16.mxu0 0
        %2733 = vmatmul.mubr.bf16.gmra.mrb[0].mxu0 %v2692
        %v2734 = vpop.f32.mrb[0].mxu0
        %v2735 = vadd.f32 0.0, %v2734
        %v2736 = vpop.f32.mrb[0].mxu0
        %v2737 = vpop.f32.mrb[0].mxu0
        %v2738 = vadd.f32 0.0, %v2737
        %v2739 = vpop.f32.mrb[0].mxu0
        %2740 = vmatprep.mubr.bf16.mxu0 0
        %2741 = vmatmul.mubr.bf16.gmra.mrb[0].mxu0 %v2695
        %v2742 = vpop.f32.mrb[0].mxu0
        %v2743 = vadd.f32 0.0, %v2742
        %v2744 = vpop.f32.mrb[0].mxu0
        %v2745 = vpop.f32.mrb[0].mxu0
        %v2746 = vadd.f32 0.0, %v2745
        %v2747 = vpop.f32.mrb[0].mxu0
        %2748 = vmatprep.mubr.bf16.mxu0 0
        %2749 = vmatmul.mubr.bf16.gmra.mrb[0].mxu0 %v2698
        %v2750 = vpop.f32.mrb[0].mxu0
        %v2751 = vadd.f32 0.0, %v2750
        %v2752 = vpop.f32.mrb[0].mxu0
        %v2753 = vpop.f32.mrb[0].mxu0
        %v2754 = vpop.f32.mrb[0].mxu0
        %2755 = vdwg.mxu0
        %v2756 = vadd.f32 %v2174, %v2735
        %v2757 = vadd.f32 %v2175, %v2738
        %v2758 = vadd.f32 %v2176, %v2743
        %v2759 = vadd.f32 %v2177, %v2746
        %v2760 = vadd.f32 %v2178, %v2751
        %s2761 = scalar_lea.vmem %s7, 96
        %v2762 = vld [vmem:[%s2761] sm:$0xf]
        %v2763 = vld [vmem:[%s2761 + $0x4] sm:$0xf]
        %v2764 = vld [vmem:[%s2761 + $0x8] sm:$0xf]
        %v2765 = vld [vmem:[%s2761 + $0xc] sm:$0xf]
        %v2766 = vld [vmem:[%s2761 + $0x10] sm:$0xf]
        %v2767 = vld [vmem:[%s2761 + $0x14] sm:$0xf]
        %v2768 = vld [vmem:[%s2761 + $0x18] sm:$0xf]
        %v2769 = vld [vmem:[%s2761 + $0x1c] sm:$0xf]
        %s2770 = scalar_lea.vmem %s8, 3
        %v2771 = vld [vmem:[%s2770] sm:$0x1]
        %v2773 = vlaneseq
        %v2774 = vshrl.u32 %v2773, 7
        %v2775 = vsub.s32 0, %v2774
        %v2776 = vrot.slane %v2771, %v2775
        %v2786 = vunpack.c.l.b16 %v2762
        %v2787 = vunpack.c.l.b16 %v2763
        %v2788 = vunpack.c.l.b16 %v2764
        %v2789 = vunpack.c.l.b16 %v2765
        %v2790 = vunpack.c.l.b16 %v2766
        %v2791 = vunpack.c.l.b16 %v2767
        %v2792 = vunpack.c.l.b16 %v2768
        %v2793 = vunpack.c.l.b16 %v2769
        %v2794 = vpack.c.b16 %v2787, %v2786
        %v2795 = vpack.c.b16 %v2789, %v2788
        %v2796 = vpack.c.b16 %v2791, %v2790
        %v2797 = vpack.c.b16 %v2793, %v2792
        %2802 = vmatprep.subr.bf16.mxu0 0
        %2803 = vmatpush1.bf16.msra.mxu0 %v2794
        %2804 = vmatprep.subr.bf16.mxu0 0
        %2805 = vmatpush1.bf16.msra.mxu0 %v2795
        %2806 = vmatprep.subr.bf16.mxu0 0
        %2807 = vmatpush1.bf16.msra.mxu0 %v2796
        %2808 = vmatprep.subr.bf16.mxu0 0
        %2809 = vmatpush1.bf16.msra.mxu0 %v2797
        %2810 = vmatprep.subr.bf16.mxu0 0
        %2811 = vmatpush1.bf16.msra.mxu0 0
        %2812 = vmatprep.subr.bf16.mxu0 0
        %2813 = vmatpush1.bf16.msra.mxu0 0
        %2814 = vmatprep.subr.bf16.mxu0 0
        %2815 = vmatpush1.bf16.msra.mxu0 0
        %2816 = vmatprep.subr.bf16.mxu0 0
        %2817 = vmatpush1.bf16.msra.mxu0 0
        %2818 = vmatprep.subr.bf16.mxu0 0
        %2819 = vmatpush1.bf16.msra.mxu0 0
        %2820 = vmatprep.subr.bf16.mxu0 0
        %2821 = vmatpush1.bf16.msra.mxu0 0
        %2822 = vmatprep.subr.bf16.mxu0 0
        %2823 = vmatpush1.bf16.msra.mxu0 0
        %2824 = vmatprep.subr.bf16.mxu0 0
        %2825 = vmatpush1.bf16.msra.mxu0 0
        %2826 = vmatprep.subr.bf16.mxu0 0
        %2827 = vmatpush1.bf16.msra.mxu0 0
        %2828 = vmatprep.subr.bf16.mxu0 0
        %2829 = vmatpush1.bf16.msra.mxu0 0
        %2830 = vmatprep.subr.bf16.mxu0 0
        %2831 = vmatpush1.bf16.msra.mxu0 0
        %2832 = vmatprep.subr.bf16.mxu0 0
        %2833 = vmatpush1.bf16.msra.mxu0 0
        %2834 = vmatprep.mubr.bf16.mxu0 0
        %2835 = vmatmul.mubr.bf16.gmra.mrb[0].mxu0 %v1046
        %v2836 = vpop.f32.mrb[0].mxu0
        %v2837 = vadd.f32 %v2776, %v2836
        %v2838 = vpop.f32.mrb[0].mxu0
        %v2839 = vpop.f32.mrb[0].mxu0
        %v2840 = vadd.f32 %v2776, %v2839
        %v2841 = vpop.f32.mrb[0].mxu0
        %2842 = vmatprep.mubr.bf16.mxu0 0
        %2843 = vmatmul.mubr.bf16.gmra.mrb[0].mxu0 %v1049
        %v2844 = vpop.f32.mrb[0].mxu0
        %v2845 = vadd.f32 %v2776, %v2844
        %v2846 = vpop.f32.mrb[0].mxu0
        %v2847 = vpop.f32.mrb[0].mxu0
        %v2848 = vadd.f32 %v2776, %v2847
        %v2849 = vpop.f32.mrb[0].mxu0
        %2850 = vmatprep.mubr.bf16.mxu0 0
        %2851 = vmatmul.mubr.bf16.gmra.mrb[0].mxu0 %v1052
        %v2852 = vpop.f32.mrb[0].mxu0
        %v2853 = vadd.f32 %v2776, %v2852
        %v2854 = vpop.f32.mrb[0].mxu0
        %v2855 = vpop.f32.mrb[0].mxu0
        %v2856 = vpop.f32.mrb[0].mxu0
        %2857 = vdwg.mxu0
        %s2858 = scalar_lea.vmem %s9, 96
        %v2859 = vld [vmem:[%s2858] sm:$0xf]
        %v2860 = vld [vmem:[%s2858 + $0x4] sm:$0xf]
        %v2861 = vld [vmem:[%s2858 + $0x8] sm:$0xf]
        %v2862 = vld [vmem:[%s2858 + $0xc] sm:$0xf]
        %v2863 = vld [vmem:[%s2858 + $0x10] sm:$0xf]
        %v2864 = vld [vmem:[%s2858 + $0x14] sm:$0xf]
        %v2865 = vld [vmem:[%s2858 + $0x18] sm:$0xf]
        %v2866 = vld [vmem:[%s2858 + $0x1c] sm:$0xf]
        %s2867 = scalar_lea.vmem %s10, 3
        %v2868 = vld [vmem:[%s2867] sm:$0x1]
        %v2870 = vlaneseq
        %v2871 = vshrl.u32 %v2870, 7
        %v2872 = vsub.s32 0, %v2871
        %v2873 = vrot.slane %v2868, %v2872
        %v2883 = vunpack.c.l.b16 %v2859
        %v2884 = vunpack.c.l.b16 %v2860
        %v2885 = vunpack.c.l.b16 %v2861
        %v2886 = vunpack.c.l.b16 %v2862
        %v2887 = vunpack.c.l.b16 %v2863
        %v2888 = vunpack.c.l.b16 %v2864
        %v2889 = vunpack.c.l.b16 %v2865
        %v2890 = vunpack.c.l.b16 %v2866
        %v2891 = vpack.c.b16 %v2884, %v2883
        %v2892 = vpack.c.b16 %v2886, %v2885
        %v2893 = vpack.c.b16 %v2888, %v2887
        %v2894 = vpack.c.b16 %v2890, %v2889
        %2899 = vmatprep.subr.bf16.mxu0 0
        %2900 = vmatpush1.bf16.msra.mxu0 %v2891
        %2901 = vmatprep.subr.bf16.mxu0 0
        %2902 = vmatpush1.bf16.msra.mxu0 %v2892
        %2903 = vmatprep.subr.bf16.mxu0 0
        %2904 = vmatpush1.bf16.msra.mxu0 %v2893
        %2905 = vmatprep.subr.bf16.mxu0 0
        %2906 = vmatpush1.bf16.msra.mxu0 %v2894
        %2907 = vmatprep.subr.bf16.mxu0 0
        %2908 = vmatpush1.bf16.msra.mxu0 0
        %2909 = vmatprep.subr.bf16.mxu0 0
        %2910 = vmatpush1.bf16.msra.mxu0 0
        %2911 = vmatprep.subr.bf16.mxu0 0
        %2912 = vmatpush1.bf16.msra.mxu0 0
        %2913 = vmatprep.subr.bf16.mxu0 0
        %2914 = vmatpush1.bf16.msra.mxu0 0
        %2915 = vmatprep.subr.bf16.mxu0 0
        %2916 = vmatpush1.bf16.msra.mxu0 0
        %2917 = vmatprep.subr.bf16.mxu0 0
        %2918 = vmatpush1.bf16.msra.mxu0 0
        %2919 = vmatprep.subr.bf16.mxu0 0
        %2920 = vmatpush1.bf16.msra.mxu0 0
        %2921 = vmatprep.subr.bf16.mxu0 0
        %2922 = vmatpush1.bf16.msra.mxu0 0
        %2923 = vmatprep.subr.bf16.mxu0 0
        %2924 = vmatpush1.bf16.msra.mxu0 0
        %2925 = vmatprep.subr.bf16.mxu0 0
        %2926 = vmatpush1.bf16.msra.mxu0 0
        %2927 = vmatprep.subr.bf16.mxu0 0
        %2928 = vmatpush1.bf16.msra.mxu0 0
        %2929 = vmatprep.subr.bf16.mxu0 0
        %2930 = vmatpush1.bf16.msra.mxu0 0
        %2931 = vmatprep.mubr.bf16.mxu0 0
        %2932 = vmatmul.mubr.bf16.gmra.mrb[0].mxu0 %v1046
        %v2933 = vpop.f32.mrb[0].mxu0
        %v2934 = vadd.f32 %v2873, %v2933
        %v2935 = vpop.f32.mrb[0].mxu0
        %v2936 = vpop.f32.mrb[0].mxu0
        %v2937 = vadd.f32 %v2873, %v2936
        %v2938 = vpop.f32.mrb[0].mxu0
        %2939 = vmatprep.mubr.bf16.mxu0 0
        %2940 = vmatmul.mubr.bf16.gmra.mrb[0].mxu0 %v1049
        %v2941 = vpop.f32.mrb[0].mxu0
        %v2942 = vadd.f32 %v2873, %v2941
        %v2943 = vpop.f32.mrb[0].mxu0
        %v2944 = vpop.f32.mrb[0].mxu0
        %v2945 = vadd.f32 %v2873, %v2944
        %v2946 = vpop.f32.mrb[0].mxu0
        %2947 = vmatprep.mubr.bf16.mxu0 0
        %2948 = vmatmul.mubr.bf16.gmra.mrb[0].mxu0 %v1052
        %v2949 = vpop.f32.mrb[0].mxu0
        %v2950 = vadd.f32 %v2873, %v2949
        %v2951 = vpop.f32.mrb[0].mxu0
        %v2952 = vpop.f32.mrb[0].mxu0
        %v2953 = vpop.f32.mrb[0].mxu0
        %2954 = vdwg.mxu0
        %s2955 = scalar_lea.vmem %s11, 96
        %v2956 = vld [vmem:[%s2955] sm:$0xf]
        %v2957 = vld [vmem:[%s2955 + $0x4] sm:$0xf]
        %v2958 = vld [vmem:[%s2955 + $0x8] sm:$0xf]
        %v2959 = vld [vmem:[%s2955 + $0xc] sm:$0xf]
        %v2960 = vld [vmem:[%s2955 + $0x10] sm:$0xf]
        %v2961 = vld [vmem:[%s2955 + $0x14] sm:$0xf]
        %v2962 = vld [vmem:[%s2955 + $0x18] sm:$0xf]
        %v2963 = vld [vmem:[%s2955 + $0x1c] sm:$0xf]
        %s2964 = scalar_lea.vmem %s12, 3
        %v2965 = vld [vmem:[%s2964] sm:$0x1]
        %v2967 = vlaneseq
        %v2968 = vshrl.u32 %v2967, 7
        %v2969 = vsub.s32 0, %v2968
        %v2970 = vrot.slane %v2965, %v2969
        %v2980 = vunpack.c.l.b16 %v2956
        %v2981 = vunpack.c.l.b16 %v2957
        %v2982 = vunpack.c.l.b16 %v2958
        %v2983 = vunpack.c.l.b16 %v2959
        %v2984 = vunpack.c.l.b16 %v2960
        %v2985 = vunpack.c.l.b16 %v2961
        %v2986 = vunpack.c.l.b16 %v2962
        %v2987 = vunpack.c.l.b16 %v2963
        %v2988 = vpack.c.b16 %v2981, %v2980
        %v2989 = vpack.c.b16 %v2983, %v2982
        %v2990 = vpack.c.b16 %v2985, %v2984
        %v2991 = vpack.c.b16 %v2987, %v2986
        %2996 = vmatprep.subr.bf16.mxu0 0
        %2997 = vmatpush1.bf16.msra.mxu0 %v2988
        %2998 = vmatprep.subr.bf16.mxu0 0
        %2999 = vmatpush1.bf16.msra.mxu0 %v2989
        %3000 = vmatprep.subr.bf16.mxu0 0
        %3001 = vmatpush1.bf16.msra.mxu0 %v2990
        %3002 = vmatprep.subr.bf16.mxu0 0
        %3003 = vmatpush1.bf16.msra.mxu0 %v2991
        %3004 = vmatprep.subr.bf16.mxu0 0
        %3005 = vmatpush1.bf16.msra.mxu0 0
        %3006 = vmatprep.subr.bf16.mxu0 0
        %3007 = vmatpush1.bf16.msra.mxu0 0
        %3008 = vmatprep.subr.bf16.mxu0 0
        %3009 = vmatpush1.bf16.msra.mxu0 0
        %3010 = vmatprep.subr.bf16.mxu0 0
        %3011 = vmatpush1.bf16.msra.mxu0 0
        %3012 = vmatprep.subr.bf16.mxu0 0
        %3013 = vmatpush1.bf16.msra.mxu0 0
        %3014 = vmatprep.subr.bf16.mxu0 0
        %3015 = vmatpush1.bf16.msra.mxu0 0
        %3016 = vmatprep.subr.bf16.mxu0 0
        %3017 = vmatpush1.bf16.msra.mxu0 0
        %3018 = vmatprep.subr.bf16.mxu0 0
        %3019 = vmatpush1.bf16.msra.mxu0 0
        %3020 = vmatprep.subr.bf16.mxu0 0
        %3021 = vmatpush1.bf16.msra.mxu0 0
        %3022 = vmatprep.subr.bf16.mxu0 0
        %3023 = vmatpush1.bf16.msra.mxu0 0
        %3024 = vmatprep.subr.bf16.mxu0 0
        %3025 = vmatpush1.bf16.msra.mxu0 0
        %3026 = vmatprep.subr.bf16.mxu0 0
        %3027 = vmatpush1.bf16.msra.mxu0 0
        %3028 = vmatprep.mubr.bf16.mxu0 0
        %3029 = vmatmul.mubr.bf16.gmra.mrb[0].mxu0 %v1046
        %v3030 = vpop.f32.mrb[0].mxu0
        %v3031 = vadd.f32 %v2970, %v3030
        %v3032 = vpop.f32.mrb[0].mxu0
        %v3033 = vpop.f32.mrb[0].mxu0
        %v3034 = vadd.f32 %v2970, %v3033
        %v3035 = vpop.f32.mrb[0].mxu0
        %3036 = vmatprep.mubr.bf16.mxu0 0
        %3037 = vmatmul.mubr.bf16.gmra.mrb[0].mxu0 %v1049
        %v3038 = vpop.f32.mrb[0].mxu0
        %v3039 = vadd.f32 %v2970, %v3038
        %v3040 = vpop.f32.mrb[0].mxu0
        %v3041 = vpop.f32.mrb[0].mxu0
        %v3042 = vadd.f32 %v2970, %v3041
        %v3043 = vpop.f32.mrb[0].mxu0
        %3044 = vmatprep.mubr.bf16.mxu0 0
        %3045 = vmatmul.mubr.bf16.gmra.mrb[0].mxu0 %v1052
        %v3046 = vpop.f32.mrb[0].mxu0
        %v3047 = vadd.f32 %v2970, %v3046
        %v3048 = vpop.f32.mrb[0].mxu0
        %v3049 = vpop.f32.mrb[0].mxu0
        %v3050 = vpop.f32.mrb[0].mxu0
        %3051 = vdwg.mxu0
        %v3052 = vpack.c.bf16 %v2840, %v2837
        %v3053 = vpack.c.bf16 %v2848, %v2845
        %v3054 = vpack.c.bf16 %v2853, %v2853
        %v3055 = vpack.c.bf16 %v2937, %v2934
        %v3056 = vpack.c.bf16 %v2945, %v2942
        %v3057 = vpack.c.bf16 %v2950, %v2950
        %v3059 = vsel %vm1306, %v3052, 0
        %v3062 = vsel %vm1306, %v3053, 0
        %v3065 = vsel %vm1306, %v3054, 0
        %v3068 = vsel %vm1306, %v3055, 0
        %v3071 = vsel %vm1306, %v3056, 0
        %v3074 = vsel %vm1306, %v3057, 0
        %3076 = vmatprep.subr.bf16.mxu0 0
        %3077 = vmatpush1.bf16.xpose.msra.mxu0 %v3068
        %3078 = vmatprep.subr.bf16.mxu0 0
        %3079 = vmatpush1.bf16.xpose.msra.mxu0 %v3071
        %3080 = vmatprep.subr.bf16.mxu0 0
        %3081 = vmatpush1.bf16.xpose.msra.mxu0 %v3074
        %3082 = vmatprep.subr.bf16.mxu0 0
        %3083 = vmatpush1.bf16.xpose.msra.mxu0 0
        %3084 = vmatprep.subr.bf16.mxu0 0
        %3085 = vmatpush1.bf16.xpose.msra.mxu0 0
        %3086 = vmatprep.subr.bf16.mxu0 0
        %3087 = vmatpush1.bf16.xpose.msra.mxu0 0
        %3088 = vmatprep.subr.bf16.mxu0 0
        %3089 = vmatpush1.bf16.xpose.msra.mxu0 0
        %3090 = vmatprep.subr.bf16.mxu0 0
        %3091 = vmatpush1.bf16.xpose.msra.mxu0 0
        %3092 = vmatprep.subr.bf16.mxu0 0
        %3093 = vmatpush1.bf16.xpose.msra.mxu0 0
        %3094 = vmatprep.subr.bf16.mxu0 0
        %3095 = vmatpush1.bf16.xpose.msra.mxu0 0
        %3096 = vmatprep.subr.bf16.mxu0 0
        %3097 = vmatpush1.bf16.xpose.msra.mxu0 0
        %3098 = vmatprep.subr.bf16.mxu0 0
        %3099 = vmatpush1.bf16.xpose.msra.mxu0 0
        %3100 = vmatprep.subr.bf16.mxu0 0
        %3101 = vmatpush1.bf16.xpose.msra.mxu0 0
        %3102 = vmatprep.subr.bf16.mxu0 0
        %3103 = vmatpush1.bf16.xpose.msra.mxu0 0
        %3104 = vmatprep.subr.bf16.mxu0 0
        %3105 = vmatpush1.bf16.xpose.msra.mxu0 0
        %3106 = vmatprep.subr.bf16.mxu0 0
        %3107 = vmatpush1.bf16.xpose.msra.mxu0 0
        %3108 = vmatprep.mubr.bf16.mxu0 0
        %3109 = vmatmul.mubr.bf16.gmra.mrb[0].mxu0 %v3059
        %v3110 = vpop.f32.mrb[0].mxu0
        %v3111 = vadd.f32 0.0, %v3110
        %v3112 = vpop.f32.mrb[0].mxu0
        %v3113 = vpop.f32.mrb[0].mxu0
        %v3114 = vadd.f32 0.0, %v3113
        %v3115 = vpop.f32.mrb[0].mxu0
        %3116 = vmatprep.mubr.bf16.mxu0 0
        %3117 = vmatmul.mubr.bf16.gmra.mrb[0].mxu0 %v3062
        %v3118 = vpop.f32.mrb[0].mxu0
        %v3119 = vadd.f32 0.0, %v3118
        %v3120 = vpop.f32.mrb[0].mxu0
        %v3121 = vpop.f32.mrb[0].mxu0
        %v3122 = vadd.f32 0.0, %v3121
        %v3123 = vpop.f32.mrb[0].mxu0
        %3124 = vmatprep.mubr.bf16.mxu0 0
        %3125 = vmatmul.mubr.bf16.gmra.mrb[0].mxu0 %v3065
        %v3126 = vpop.f32.mrb[0].mxu0
        %v3127 = vadd.f32 0.0, %v3126
        %v3128 = vpop.f32.mrb[0].mxu0
        %v3129 = vpop.f32.mrb[0].mxu0
        %v3130 = vpop.f32.mrb[0].mxu0
        %3131 = vdwg.mxu0
        %v3132 = vsel %vm1381, %v3111, -inf
        %3133 = vmax.xlane.f32.xlu0 %v3132
        %v3134 = vpop.xlane.xlu0 %3133
        %v3135 = vsel %vm1381, %v3114, -inf
        %3136 = vmax.xlane.f32.xlu0 %v3135
        %v3137 = vpop.xlane.xlu0 %3136
        %v3138 = vsel %vm1381, %v3119, -inf
        %3139 = vmax.xlane.f32.xlu0 %v3138
        %v3140 = vpop.xlane.xlu0 %3139
        %v3141 = vsel %vm1381, %v3122, -inf
        %3142 = vmax.xlane.f32.xlu0 %v3141
        %v3143 = vpop.xlane.xlu0 %3142
        %v3144 = vsel %vm1394, %v3127, -inf
        %3145 = vmax.xlane.f32.xlu0 %v3144
        %v3146 = vpop.xlane.xlu0 %3145
        %v3147 = vsub.f32 %v3111, %v3134
        %v3148 = vsub.f32 %v3114, %v3137
        %v3149 = vsub.f32 %v3119, %v3140
        %v3150 = vsub.f32 %v3122, %v3143
        %v3151 = vsub.f32 %v3127, %v3146
        %v3152 = vmul.f32 %v3147, 1.442695
        %v3153 = vpow.pop %v3152
        %v3154 = vmul.f32 %v3148, 1.442695
        %v3155 = vpow.pop %v3154
        %v3156 = vmul.f32 %v3149, 1.442695
        %v3157 = vpow.pop %v3156
        %v3158 = vmul.f32 %v3150, 1.442695
        %v3159 = vpow.pop %v3158
        %v3160 = vmul.f32 %v3151, 1.442695
        %v3161 = vpow.pop %v3160
        %v3162 = vsel %vm1381, %v3153, 0.0
        %3163 = vadd.xlane.f32.xlu0 %v3162
        %v3164 = vpop.xlane.xlu0 %3163
        %v3165 = vsel %vm1381, %v3155, 0.0
        %3166 = vadd.xlane.f32.xlu0 %v3165
        %v3167 = vpop.xlane.xlu0 %3166
        %v3168 = vsel %vm1381, %v3157, 0.0
        %3169 = vadd.xlane.f32.xlu0 %v3168
        %v3170 = vpop.xlane.xlu0 %3169
        %v3171 = vsel %vm1381, %v3159, 0.0
        %3172 = vadd.xlane.f32.xlu0 %v3171
        %v3173 = vpop.xlane.xlu0 %3172
        %v3174 = vsel %vm1394, %v3161, 0.0
        %3175 = vadd.xlane.f32.xlu0 %v3174
        %v3176 = vpop.xlane.xlu0 %3175
        %v3177 = vrcp.pop %v3164
        %v3178 = vrcp.pop %v3167
        %v3179 = vrcp.pop %v3170
        %v3180 = vrcp.pop %v3173
        %v3181 = vrcp.pop %v3176
        %v3182 = vmul.f32 %v3153, %v3177
        %v3183 = vmul.f32 %v3155, %v3178
        %v3184 = vmul.f32 %v3157, %v3179
        %v3185 = vmul.f32 %v3159, %v3180
        %v3186 = vmul.f32 %v3161, %v3181
        %v3187 = vpack.c.bf16 %v3183, %v3182
        %v3188 = vpack.c.bf16 %v3185, %v3184
        %v3189 = vpack.c.bf16 %v3186, %v3186
        %v3190 = vpack.c.bf16 %v3034, %v3031
        %v3191 = vpack.c.bf16 %v3042, %v3039
        %v3192 = vpack.c.bf16 %v3047, %v3047
        %v3194 = vsel %vm1381, %v3187, 0
        %v3197 = vsel %vm1381, %v3188, 0
        %v3200 = vsel %vm1381, %v3189, 0
        %v3203 = vand.u32 %v3192, %v1456
        %3205 = vmatprep.subr.bf16.mxu0 0
        %3206 = vmatpush1.bf16.msra.mxu0 %v3190
        %3207 = vmatprep.subr.bf16.mxu0 0
        %3208 = vmatpush1.bf16.msra.mxu0 %v3191
        %3209 = vmatprep.subr.bf16.mxu0 0
        %3210 = vmatpush1.bf16.msra.mxu0 %v3203
        %3211 = vmatprep.subr.bf16.mxu0 0
        %3212 = vmatpush1.bf16.msra.mxu0 0
        %3213 = vmatprep.subr.bf16.mxu0 0
        %3214 = vmatpush1.bf16.msra.mxu0 0
        %3215 = vmatprep.subr.bf16.mxu0 0
        %3216 = vmatpush1.bf16.msra.mxu0 0
        %3217 = vmatprep.subr.bf16.mxu0 0
        %3218 = vmatpush1.bf16.msra.mxu0 0
        %3219 = vmatprep.subr.bf16.mxu0 0
        %3220 = vmatpush1.bf16.msra.mxu0 0
        %3221 = vmatprep.subr.bf16.mxu0 0
        %3222 = vmatpush1.bf16.msra.mxu0 0
        %3223 = vmatprep.subr.bf16.mxu0 0
        %3224 = vmatpush1.bf16.msra.mxu0 0
        %3225 = vmatprep.subr.bf16.mxu0 0
        %3226 = vmatpush1.bf16.msra.mxu0 0
        %3227 = vmatprep.subr.bf16.mxu0 0
        %3228 = vmatpush1.bf16.msra.mxu0 0
        %3229 = vmatprep.subr.bf16.mxu0 0
        %3230 = vmatpush1.bf16.msra.mxu0 0
        %3231 = vmatprep.subr.bf16.mxu0 0
        %3232 = vmatpush1.bf16.msra.mxu0 0
        %3233 = vmatprep.subr.bf16.mxu0 0
        %3234 = vmatpush1.bf16.msra.mxu0 0
        %3235 = vmatprep.subr.bf16.mxu0 0
        %3236 = vmatpush1.bf16.msra.mxu0 0
        %3237 = vmatprep.mubr.bf16.mxu0 0
        %3238 = vmatmul.mubr.bf16.gmra.mrb[0].mxu0 %v3194
        %v3239 = vpop.f32.mrb[0].mxu0
        %v3240 = vadd.f32 0.0, %v3239
        %v3241 = vpop.f32.mrb[0].mxu0
        %v3242 = vpop.f32.mrb[0].mxu0
        %v3243 = vadd.f32 0.0, %v3242
        %v3244 = vpop.f32.mrb[0].mxu0
        %3245 = vmatprep.mubr.bf16.mxu0 0
        %3246 = vmatmul.mubr.bf16.gmra.mrb[0].mxu0 %v3197
        %v3247 = vpop.f32.mrb[0].mxu0
        %v3248 = vadd.f32 0.0, %v3247
        %v3249 = vpop.f32.mrb[0].mxu0
        %v3250 = vpop.f32.mrb[0].mxu0
        %v3251 = vadd.f32 0.0, %v3250
        %v3252 = vpop.f32.mrb[0].mxu0
        %3253 = vmatprep.mubr.bf16.mxu0 0
        %3254 = vmatmul.mubr.bf16.gmra.mrb[0].mxu0 %v3200
        %v3255 = vpop.f32.mrb[0].mxu0
        %v3256 = vadd.f32 0.0, %v3255
        %v3257 = vpop.f32.mrb[0].mxu0
        %v3258 = vpop.f32.mrb[0].mxu0
        %v3259 = vpop.f32.mrb[0].mxu0
        %3260 = vdwg.mxu0
        %v3261 = vpack.c.bf16 %v3243, %v3240
        %v3262 = vpack.c.bf16 %v3251, %v3248
        %v3263 = vpack.c.bf16 %v3256, %v3256
        %s3264 = scalar_lea.vmem %s13, 24
        %v3265 = vld [vmem:[%s3264] sm:$0xf]
        %v3266 = vld [vmem:[%s3264 + $0x4] sm:$0xf]
        %v3269 = vunpack.c.l.b16 %v3265
        %v3270 = vunpack.c.l.b16 %v3266
        %v3271 = vpack.c.b16 %v3270, %v3269
        %v3274 = vsel %vm1306, %v3261, 0
        %v3277 = vsel %vm1306, %v3262, 0
        %v3280 = vsel %vm1306, %v3263, 0
        %3282 = vmatprep.subr.bf16.mxu0 0
        %3283 = vmatpush1.bf16.msra.mxu0 %v3271
        %3284 = vmatprep.subr.bf16.mxu0 0
        %3285 = vmatpush1.bf16.msra.mxu0 0
        %3286 = vmatprep.subr.bf16.mxu0 0
        %3287 = vmatpush1.bf16.msra.mxu0 0
        %3288 = vmatprep.subr.bf16.mxu0 0
        %3289 = vmatpush1.bf16.msra.mxu0 0
        %3290 = vmatprep.subr.bf16.mxu0 0
        %3291 = vmatpush1.bf16.msra.mxu0 0
        %3292 = vmatprep.subr.bf16.mxu0 0
        %3293 = vmatpush1.bf16.msra.mxu0 0
        %3294 = vmatprep.subr.bf16.mxu0 0
        %3295 = vmatpush1.bf16.msra.mxu0 0
        %3296 = vmatprep.subr.bf16.mxu0 0
        %3297 = vmatpush1.bf16.msra.mxu0 0
        %3298 = vmatprep.subr.bf16.mxu0 0
        %3299 = vmatpush1.bf16.msra.mxu0 0
        %3300 = vmatprep.subr.bf16.mxu0 0
        %3301 = vmatpush1.bf16.msra.mxu0 0
        %3302 = vmatprep.subr.bf16.mxu0 0
        %3303 = vmatpush1.bf16.msra.mxu0 0
        %3304 = vmatprep.subr.bf16.mxu0 0
        %3305 = vmatpush1.bf16.msra.mxu0 0
        %3306 = vmatprep.subr.bf16.mxu0 0
        %3307 = vmatpush1.bf16.msra.mxu0 0
        %3308 = vmatprep.subr.bf16.mxu0 0
        %3309 = vmatpush1.bf16.msra.mxu0 0
        %3310 = vmatprep.subr.bf16.mxu0 0
        %3311 = vmatpush1.bf16.msra.mxu0 0
        %3312 = vmatprep.subr.bf16.mxu0 0
        %3313 = vmatpush1.bf16.msra.mxu0 0
        %3314 = vmatprep.mubr.bf16.mxu0 0
        %3315 = vmatmul.mubr.bf16.gmra.mrb[0].mxu0 %v3274
        %v3316 = vpop.f32.mrb[0].mxu0
        %v3317 = vadd.f32 0.0, %v3316
        %v3318 = vpop.f32.mrb[0].mxu0
        %v3319 = vpop.f32.mrb[0].mxu0
        %v3320 = vadd.f32 0.0, %v3319
        %v3321 = vpop.f32.mrb[0].mxu0
        %3322 = vmatprep.mubr.bf16.mxu0 0
        %3323 = vmatmul.mubr.bf16.gmra.mrb[0].mxu0 %v3277
        %v3324 = vpop.f32.mrb[0].mxu0
        %v3325 = vadd.f32 0.0, %v3324
        %v3326 = vpop.f32.mrb[0].mxu0
        %v3327 = vpop.f32.mrb[0].mxu0
        %v3328 = vadd.f32 0.0, %v3327
        %v3329 = vpop.f32.mrb[0].mxu0
        %3330 = vmatprep.mubr.bf16.mxu0 0
        %3331 = vmatmul.mubr.bf16.gmra.mrb[0].mxu0 %v3280
        %v3332 = vpop.f32.mrb[0].mxu0
        %v3333 = vadd.f32 0.0, %v3332
        %v3334 = vpop.f32.mrb[0].mxu0
        %v3335 = vpop.f32.mrb[0].mxu0
        %v3336 = vpop.f32.mrb[0].mxu0
        %3337 = vdwg.mxu0
        %v3338 = vadd.f32 %v2756, %v3317
        %v3339 = vadd.f32 %v2757, %v3320
        %v3340 = vadd.f32 %v2758, %v3325
        %v3341 = vadd.f32 %v2759, %v3328
        %v3342 = vadd.f32 %v2760, %v3333
        %v3343 = vld [vmem:[%s15] sm:$0x1]
        %v3344 = vld [vmem:[%s16] sm:$0x1]
        %v3345 = vsel %vm896, %v3338, 0.0
        %3346 = vadd.xlane.f32.xlu0 %v3345
        %v3347 = vpop.xlane.xlu0 %3346
        %v3348 = vsel %vm896, %v3339, 0.0
        %3349 = vadd.xlane.f32.xlu0 %v3348
        %v3350 = vpop.xlane.xlu0 %3349
        %v3351 = vsel %vm896, %v3340, 0.0
        %3352 = vadd.xlane.f32.xlu0 %v3351
        %v3353 = vpop.xlane.xlu0 %3352
        %v3354 = vsel %vm896, %v3341, 0.0
        %3355 = vadd.xlane.f32.xlu0 %v3354
        %v3356 = vpop.xlane.xlu0 %3355
        %v3357 = vsel %vm909, %v3342, 0.0
        %3358 = vadd.xlane.f32.xlu0 %v3357
        %v3359 = vpop.xlane.xlu0 %3358
        %v3360 = vmul.f32 %v3347, %v913
        %v3361 = vmul.f32 %v3350, %v913
        %v3362 = vmul.f32 %v3353, %v913
        %v3363 = vmul.f32 %v3356, %v913
        %v3364 = vmul.f32 %v3359, %v913
        %v3365 = vsub.f32 %v3338, %v3360
        %v3366 = vsub.f32 %v3339, %v3361
        %v3367 = vsub.f32 %v3340, %v3362
        %v3368 = vsub.f32 %v3341, %v3363
        %v3369 = vsub.f32 %v3342, %v3364
        %v3370 = vmul.f32 %v3365, %v3365
        %v3371 = vmul.f32 %v3366, %v3366
        %v3372 = vmul.f32 %v3367, %v3367
        %v3373 = vmul.f32 %v3368, %v3368
        %v3374 = vmul.f32 %v3369, %v3369
        %v3375 = vsel %vm896, %v3370, 0.0
        %3376 = vadd.xlane.f32.xlu0 %v3375
        %v3377 = vpop.xlane.xlu0 %3376
        %v3378 = vsel %vm896, %v3371, 0.0
        %3379 = vadd.xlane.f32.xlu0 %v3378
        %v3380 = vpop.xlane.xlu0 %3379
        %v3381 = vsel %vm896, %v3372, 0.0
        %3382 = vadd.xlane.f32.xlu0 %v3381
        %v3383 = vpop.xlane.xlu0 %3382
        %v3384 = vsel %vm896, %v3373, 0.0
        %3385 = vadd.xlane.f32.xlu0 %v3384
        %v3386 = vpop.xlane.xlu0 %3385
        %v3387 = vsel %vm909, %v3374, 0.0
        %3388 = vadd.xlane.f32.xlu0 %v3387
        %v3389 = vpop.xlane.xlu0 %3388
        %v3390 = vmul.f32 %v3377, %v913
        %v3391 = vmul.f32 %v3380, %v913
        %v3392 = vmul.f32 %v3383, %v913
        %v3393 = vmul.f32 %v3386, %v913
        %v3394 = vmul.f32 %v3389, %v913
        %v3395 = vadd.f32 %v3390, 1e-05
        %v3396 = vadd.f32 %v3391, 1e-05
        %v3397 = vadd.f32 %v3392, 1e-05
        %v3398 = vadd.f32 %v3393, 1e-05
        %v3399 = vadd.f32 %v3394, 1e-05
        %v3400 = vrsqrt.pop %v3395
        %v3401 = vrsqrt.pop %v3396
        %v3402 = vrsqrt.pop %v3397
        %v3403 = vrsqrt.pop %v3398
        %v3404 = vrsqrt.pop %v3399
        %v3405 = vmul.f32 %v3365, %v3400
        %v3406 = vmul.f32 %v3366, %v3401
        %v3407 = vmul.f32 %v3367, %v3402
        %v3408 = vmul.f32 %v3368, %v3403
        %v3409 = vmul.f32 %v3369, %v3404
        %v3411 = vlaneseq
        %v3412 = vshrl.u32 %v3411, 7
        %v3413 = vsub.s32 0, %v3412
        %v3414 = vrot.slane %v3343, %v3413
        %v3416 = vmul.f32 %v3405, %v3414
        %v3417 = vmul.f32 %v3406, %v3414
        %v3418 = vmul.f32 %v3407, %v3414
        %v3419 = vmul.f32 %v3408, %v3414
        %v3420 = vmul.f32 %v3409, %v3414
        %v3422 = vlaneseq
        %v3423 = vshrl.u32 %v3422, 7
        %v3424 = vsub.s32 0, %v3423
        %v3425 = vrot.slane %v3344, %v3424
        %v3427 = vadd.f32 %v3416, %v3425
        %v3428 = vadd.f32 %v3417, %v3425
        %v3429 = vadd.f32 %v3418, %v3425
        %v3430 = vadd.f32 %v3419, %v3425
        %v3431 = vadd.f32 %v3420, %v3425
        %v3432 = vpack.c.bf16 %v3428, %v3427
        %v3433 = vpack.c.bf16 %v3430, %v3429
        %v3434 = vpack.c.bf16 %v3431, %v3431
        %v3435 = vld [vmem:[%s17] sm:$0xf]
        %v3436 = vld [vmem:[%s17 + $0x4] sm:$0xf]
        %v3437 = vld [vmem:[%s17 + $0x8] sm:$0xf]
        %v3438 = vld [vmem:[%s17 + $0xc] sm:$0xf]
        %v3439 = vld [vmem:[%s17 + $0x10] sm:$0xf]
        %v3440 = vld [vmem:[%s17 + $0x14] sm:$0xf]
        %v3441 = vld [vmem:[%s17 + $0x18] sm:$0xf]
        %v3442 = vld [vmem:[%s17 + $0x1c] sm:$0xf]
        %v3443 = vld [vmem:[%s18] sm:$0x1]
        %v3445 = vlaneseq
        %v3446 = vshrl.u32 %v3445, 7
        %v3447 = vsub.s32 0, %v3446
        %v3448 = vrot.slane %v3443, %v3447
        %v3458 = vunpack.c.l.b16 %v3435
        %v3459 = vunpack.c.l.b16 %v3436
        %v3460 = vunpack.c.l.b16 %v3437
        %v3461 = vunpack.c.l.b16 %v3438
        %v3462 = vunpack.c.l.b16 %v3439
        %v3463 = vunpack.c.l.b16 %v3440
        %v3464 = vunpack.c.l.b16 %v3441
        %v3465 = vunpack.c.l.b16 %v3442
        %v3466 = vpack.c.b16 %v3459, %v3458
        %v3467 = vpack.c.b16 %v3461, %v3460
        %v3468 = vpack.c.b16 %v3463, %v3462
        %v3469 = vpack.c.b16 %v3465, %v3464
        %v3475 = vsel %vm896, %v3432, 0
        %v3478 = vsel %vm896, %v3433, 0
        %v3481 = vsel %vm896, %v3434, 0
        %3483 = vmatprep.subr.bf16.mxu0 0
        %3484 = vmatpush1.bf16.msra.mxu0 %v3466
        %3485 = vmatprep.subr.bf16.mxu0 0
        %3486 = vmatpush1.bf16.msra.mxu0 %v3467
        %3487 = vmatprep.subr.bf16.mxu0 0
        %3488 = vmatpush1.bf16.msra.mxu0 %v3468
        %3489 = vmatprep.subr.bf16.mxu0 0
        %3490 = vmatpush1.bf16.msra.mxu0 %v3469
        %3491 = vmatprep.subr.bf16.mxu0 0
        %3492 = vmatpush1.bf16.msra.mxu0 0
        %3493 = vmatprep.subr.bf16.mxu0 0
        %3494 = vmatpush1.bf16.msra.mxu0 0
        %3495 = vmatprep.subr.bf16.mxu0 0
        %3496 = vmatpush1.bf16.msra.mxu0 0
        %3497 = vmatprep.subr.bf16.mxu0 0
        %3498 = vmatpush1.bf16.msra.mxu0 0
        %3499 = vmatprep.subr.bf16.mxu0 0
        %3500 = vmatpush1.bf16.msra.mxu0 0
        %3501 = vmatprep.subr.bf16.mxu0 0
        %3502 = vmatpush1.bf16.msra.mxu0 0
        %3503 = vmatprep.subr.bf16.mxu0 0
        %3504 = vmatpush1.bf16.msra.mxu0 0
        %3505 = vmatprep.subr.bf16.mxu0 0
        %3506 = vmatpush1.bf16.msra.mxu0 0
        %3507 = vmatprep.subr.bf16.mxu0 0
        %3508 = vmatpush1.bf16.msra.mxu0 0
        %3509 = vmatprep.subr.bf16.mxu0 0
        %3510 = vmatpush1.bf16.msra.mxu0 0
        %3511 = vmatprep.subr.bf16.mxu0 0
        %3512 = vmatpush1.bf16.msra.mxu0 0
        %3513 = vmatprep.subr.bf16.mxu0 0
        %3514 = vmatpush1.bf16.msra.mxu0 0
        %3515 = vmatprep.mubr.bf16.mxu0 0
        %3516 = vmatmul.mubr.bf16.gmra.mrb[0].mxu0 %v3475
        %v3517 = vpop.f32.mrb[0].mxu0
        %v3518 = vadd.f32 %v3448, %v3517
        %v3519 = vpop.f32.mrb[0].mxu0
        %v3520 = vpop.f32.mrb[0].mxu0
        %v3521 = vadd.f32 %v3448, %v3520
        %v3522 = vpop.f32.mrb[0].mxu0
        %3523 = vmatprep.mubr.bf16.mxu0 0
        %3524 = vmatmul.mubr.bf16.gmra.mrb[0].mxu0 %v3478
        %v3525 = vpop.f32.mrb[0].mxu0
        %v3526 = vadd.f32 %v3448, %v3525
        %v3527 = vpop.f32.mrb[0].mxu0
        %v3528 = vpop.f32.mrb[0].mxu0
        %v3529 = vadd.f32 %v3448, %v3528
        %v3530 = vpop.f32.mrb[0].mxu0
        %3531 = vmatprep.mubr.bf16.mxu0 0
        %3532 = vmatmul.mubr.bf16.gmra.mrb[0].mxu0 %v3481
        %v3533 = vpop.f32.mrb[0].mxu0
        %v3534 = vadd.f32 %v3448, %v3533
        %v3535 = vpop.f32.mrb[0].mxu0
        %v3536 = vpop.f32.mrb[0].mxu0
        %v3537 = vpop.f32.mrb[0].mxu0
        %3538 = vdwg.mxu0
        %v3539 = vmul.f32 %v3518, %v3518
        %v3540 = vmul.f32 %v3521, %v3521
        %v3541 = vmul.f32 %v3526, %v3526
        %v3542 = vmul.f32 %v3529, %v3529
        %v3543 = vmul.f32 %v3534, %v3534
        %v3544 = vmul.f32 %v3518, %v3539
        %v3545 = vmul.f32 %v3521, %v3540
        %v3546 = vmul.f32 %v3526, %v3541
        %v3547 = vmul.f32 %v3529, %v3542
        %v3548 = vmul.f32 %v3534, %v3543
        %v3549 = vmul.f32 %v3544, 0.044715
        %v3550 = vmul.f32 %v3545, 0.044715
        %v3551 = vmul.f32 %v3546, 0.044715
        %v3552 = vmul.f32 %v3547, 0.044715
        %v3553 = vmul.f32 %v3548, 0.044715
        %v3554 = vadd.f32 %v3518, %v3549
        %v3555 = vadd.f32 %v3521, %v3550
        %v3556 = vadd.f32 %v3526, %v3551
        %v3557 = vadd.f32 %v3529, %v3552
        %v3558 = vadd.f32 %v3534, %v3553
        %v3559 = vmul.f32 %v3554, 0.7978846
        %v3560 = vmul.f32 %v3555, 0.7978846
        %v3561 = vmul.f32 %v3556, 0.7978846
        %v3562 = vmul.f32 %v3557, 0.7978846
        %v3563 = vmul.f32 %v3558, 0.7978846
        %v3564 = vtanh.pop %v3559
        %v3565 = vtanh.pop %v3560
        %v3566 = vtanh.pop %v3561
        %v3567 = vtanh.pop %v3562
        %v3568 = vtanh.pop %v3563
        %v3569 = vadd.f32 %v3564, 1.0
        %v3570 = vadd.f32 %v3565, 1.0
        %v3571 = vadd.f32 %v3566, 1.0
        %v3572 = vadd.f32 %v3567, 1.0
        %v3573 = vadd.f32 %v3568, 1.0
        %v3574 = vmul.f32 %v3569, 0.5
        %v3575 = vmul.f32 %v3570, 0.5
        %v3576 = vmul.f32 %v3571, 0.5
        %v3577 = vmul.f32 %v3572, 0.5
        %v3578 = vmul.f32 %v3573, 0.5
        %v3579 = vmul.f32 %v3518, %v3574
        %v3580 = vmul.f32 %v3521, %v3575
        %v3581 = vmul.f32 %v3526, %v3576
        %v3582 = vmul.f32 %v3529, %v3577
        %v3583 = vmul.f32 %v3534, %v3578
        %v3584 = vpack.c.bf16 %v3580, %v3579
        %v3585 = vpack.c.bf16 %v3582, %v3581
        %v3586 = vpack.c.bf16 %v3583, %v3583
        %v3587 = vld [vmem:[%s19] sm:$0xf]
        %v3588 = vld [vmem:[%s19 + $0x4] sm:$0xf]
        %v3589 = vld [vmem:[%s19 + $0x8] sm:$0xf]
        %v3590 = vld [vmem:[%s19 + $0xc] sm:$0xf]
        %v3591 = vld [vmem:[%s19 + $0x10] sm:$0xf]
        %v3592 = vld [vmem:[%s19 + $0x14] sm:$0xf]
        %v3593 = vld [vmem:[%s19 + $0x18] sm:$0xf]
        %v3594 = vld [vmem:[%s19 + $0x1c] sm:$0xf]
        %v3595 = vld [vmem:[%s19 + $0x20] sm:$0xf]
        %v3596 = vld [vmem:[%s19 + $0x24] sm:$0xf]
        %v3597 = vld [vmem:[%s19 + $0x28] sm:$0xf]
        %v3598 = vld [vmem:[%s19 + $0x2c] sm:$0xf]
        %v3599 = vld [vmem:[%s19 + $0x30] sm:$0xf]
        %v3600 = vld [vmem:[%s19 + $0x34] sm:$0xf]
        %v3601 = vld [vmem:[%s19 + $0x38] sm:$0xf]
        %v3602 = vld [vmem:[%s19 + $0x3c] sm:$0xf]
        %v3603 = vld [vmem:[%s20] sm:$0x1]
        %v3605 = vlaneseq
        %v3606 = vshrl.u32 %v3605, 7
        %v3607 = vsub.s32 0, %v3606
        %v3608 = vrot.slane %v3603, %v3607
        %v3626 = vunpack.c.l.b16 %v3587
        %v3627 = vunpack.c.l.b16 %v3588
        %v3628 = vunpack.c.l.b16 %v3589
        %v3629 = vunpack.c.l.b16 %v3590
        %v3630 = vunpack.c.l.b16 %v3591
        %v3631 = vunpack.c.l.b16 %v3592
        %v3632 = vunpack.c.l.b16 %v3593
        %v3633 = vunpack.c.l.b16 %v3594
        %v3634 = vunpack.c.l.b16 %v3595
        %v3635 = vunpack.c.l.b16 %v3596
        %v3636 = vunpack.c.l.b16 %v3597
        %v3637 = vunpack.c.l.b16 %v3598
        %v3638 = vunpack.c.l.b16 %v3599
        %v3639 = vunpack.c.l.b16 %v3600
        %v3640 = vunpack.c.l.b16 %v3601
        %v3641 = vunpack.c.l.b16 %v3602
        %v3642 = vpack.c.b16 %v3627, %v3626
        %v3643 = vpack.c.b16 %v3629, %v3628
        %v3644 = vpack.c.b16 %v3631, %v3630
        %v3645 = vpack.c.b16 %v3633, %v3632
        %v3646 = vpack.c.b16 %v3635, %v3634
        %v3647 = vpack.c.b16 %v3637, %v3636
        %v3648 = vpack.c.b16 %v3639, %v3638
        %v3649 = vpack.c.b16 %v3641, %v3640
        %3658 = vmatprep.subr.bf16.mxu0 0
        %3659 = vmatpush1.bf16.msra.mxu0 %v3642
        %3660 = vmatprep.subr.bf16.mxu0 0
        %3661 = vmatpush1.bf16.msra.mxu0 %v3643
        %3662 = vmatprep.subr.bf16.mxu0 0
        %3663 = vmatpush1.bf16.msra.mxu0 %v3644
        %3664 = vmatprep.subr.bf16.mxu0 0
        %3665 = vmatpush1.bf16.msra.mxu0 %v3645
        %3666 = vmatprep.subr.bf16.mxu0 0
        %3667 = vmatpush1.bf16.msra.mxu0 %v3646
        %3668 = vmatprep.subr.bf16.mxu0 0
        %3669 = vmatpush1.bf16.msra.mxu0 %v3647
        %3670 = vmatprep.subr.bf16.mxu0 0
        %3671 = vmatpush1.bf16.msra.mxu0 %v3648
        %3672 = vmatprep.subr.bf16.mxu0 0
        %3673 = vmatpush1.bf16.msra.mxu0 %v3649
        %3674 = vmatprep.subr.bf16.mxu0 0
        %3675 = vmatpush1.bf16.msra.mxu0 0
        %3676 = vmatprep.subr.bf16.mxu0 0
        %3677 = vmatpush1.bf16.msra.mxu0 0
        %3678 = vmatprep.subr.bf16.mxu0 0
        %3679 = vmatpush1.bf16.msra.mxu0 0
        %3680 = vmatprep.subr.bf16.mxu0 0
        %3681 = vmatpush1.bf16.msra.mxu0 0
        %3682 = vmatprep.subr.bf16.mxu0 0
        %3683 = vmatpush1.bf16.msra.mxu0 0
        %3684 = vmatprep.subr.bf16.mxu0 0
        %3685 = vmatpush1.bf16.msra.mxu0 0
        %3686 = vmatprep.subr.bf16.mxu0 0
        %3687 = vmatpush1.bf16.msra.mxu0 0
        %3688 = vmatprep.subr.bf16.mxu0 0
        %3689 = vmatpush1.bf16.msra.mxu0 0
        %3690 = vmatprep.mubr.bf16.mxu0 0
        %3691 = vmatmul.mubr.bf16.gmra.mrb[0].mxu0 %v3584
        %v3692 = vpop.f32.mrb[0].mxu0
        %v3693 = vadd.f32 %v3608, %v3692
        %v3694 = vpop.f32.mrb[0].mxu0
        %v3695 = vpop.f32.mrb[0].mxu0
        %v3696 = vadd.f32 %v3608, %v3695
        %v3697 = vpop.f32.mrb[0].mxu0
        %3698 = vmatprep.mubr.bf16.mxu0 0
        %3699 = vmatmul.mubr.bf16.gmra.mrb[0].mxu0 %v3585
        %v3700 = vpop.f32.mrb[0].mxu0
        %v3701 = vadd.f32 %v3608, %v3700
        %v3702 = vpop.f32.mrb[0].mxu0
        %v3703 = vpop.f32.mrb[0].mxu0
        %v3704 = vadd.f32 %v3608, %v3703
        %v3705 = vpop.f32.mrb[0].mxu0
        %3706 = vmatprep.mubr.bf16.mxu0 0
        %3707 = vmatmul.mubr.bf16.gmra.mrb[0].mxu0 %v3586
        %v3708 = vpop.f32.mrb[0].mxu0
        %v3709 = vadd.f32 %v3608, %v3708
        %v3710 = vpop.f32.mrb[0].mxu0
        %v3711 = vpop.f32.mrb[0].mxu0
        %v3712 = vpop.f32.mrb[0].mxu0
        %3713 = vdwg.mxu0
        %v3714 = vadd.f32 %v3427, %v3693
        %v3715 = vadd.f32 %v3428, %v3696
        %v3716 = vadd.f32 %v3429, %v3701
        %v3717 = vadd.f32 %v3430, %v3704
        %v3718 = vadd.f32 %v3431, %v3709
        %v3719 = vld [vmem:[%s21] sm:$0x1]
        %v3720 = vld [vmem:[%s22] sm:$0x1]
        %v3721 = vsel %vm896, %v3714, 0.0
        %3722 = vadd.xlane.f32.xlu0 %v3721
        %v3723 = vpop.xlane.xlu0 %3722
        %v3724 = vsel %vm896, %v3715, 0.0
        %3725 = vadd.xlane.f32.xlu0 %v3724
        %v3726 = vpop.xlane.xlu0 %3725
        %v3727 = vsel %vm896, %v3716, 0.0
        %3728 = vadd.xlane.f32.xlu0 %v3727
        %v3729 = vpop.xlane.xlu0 %3728
        %v3730 = vsel %vm896, %v3717, 0.0
        %3731 = vadd.xlane.f32.xlu0 %v3730
        %v3732 = vpop.xlane.xlu0 %3731
        %v3733 = vsel %vm909, %v3718, 0.0
        %3734 = vadd.xlane.f32.xlu0 %v3733
        %v3735 = vpop.xlane.xlu0 %3734
        %v3736 = vmul.f32 %v3723, %v913
        %v3737 = vmul.f32 %v3726, %v913
        %v3738 = vmul.f32 %v3729, %v913
        %v3739 = vmul.f32 %v3732, %v913
        %v3740 = vmul.f32 %v3735, %v913
        %v3741 = vsub.f32 %v3714, %v3736
        %v3742 = vsub.f32 %v3715, %v3737
        %v3743 = vsub.f32 %v3716, %v3738
        %v3744 = vsub.f32 %v3717, %v3739
        %v3745 = vsub.f32 %v3718, %v3740
        %v3746 = vmul.f32 %v3741, %v3741
        %v3747 = vmul.f32 %v3742, %v3742
        %v3748 = vmul.f32 %v3743, %v3743
        %v3749 = vmul.f32 %v3744, %v3744
        %v3750 = vmul.f32 %v3745, %v3745
        %v3751 = vsel %vm896, %v3746, 0.0
        %3752 = vadd.xlane.f32.xlu0 %v3751
        %v3753 = vpop.xlane.xlu0 %3752
        %v3754 = vsel %vm896, %v3747, 0.0
        %3755 = vadd.xlane.f32.xlu0 %v3754
        %v3756 = vpop.xlane.xlu0 %3755
        %v3757 = vsel %vm896, %v3748, 0.0
        %3758 = vadd.xlane.f32.xlu0 %v3757
        %v3759 = vpop.xlane.xlu0 %3758
        %v3760 = vsel %vm896, %v3749, 0.0
        %3761 = vadd.xlane.f32.xlu0 %v3760
        %v3762 = vpop.xlane.xlu0 %3761
        %v3763 = vsel %vm909, %v3750, 0.0
        %3764 = vadd.xlane.f32.xlu0 %v3763
        %v3765 = vpop.xlane.xlu0 %3764
        %v3766 = vmul.f32 %v3753, %v913
        %v3767 = vmul.f32 %v3756, %v913
        %v3768 = vmul.f32 %v3759, %v913
        %v3769 = vmul.f32 %v3762, %v913
        %v3770 = vmul.f32 %v3765, %v913
        %v3771 = vadd.f32 %v3766, 1e-05
        %v3772 = vadd.f32 %v3767, 1e-05
        %v3773 = vadd.f32 %v3768, 1e-05
        %v3774 = vadd.f32 %v3769, 1e-05
        %v3775 = vadd.f32 %v3770, 1e-05
        %v3776 = vrsqrt.pop %v3771
        %v3777 = vrsqrt.pop %v3772
        %v3778 = vrsqrt.pop %v3773
        %v3779 = vrsqrt.pop %v3774
        %v3780 = vrsqrt.pop %v3775
        %v3781 = vmul.f32 %v3741, %v3776
        %v3782 = vmul.f32 %v3742, %v3777
        %v3783 = vmul.f32 %v3743, %v3778
        %v3784 = vmul.f32 %v3744, %v3779
        %v3785 = vmul.f32 %v3745, %v3780
        %v3787 = vlaneseq
        %v3788 = vshrl.u32 %v3787, 7
        %v3789 = vsub.s32 0, %v3788
        %v3790 = vrot.slane %v3719, %v3789
        %v3792 = vmul.f32 %v3781, %v3790
        %v3793 = vmul.f32 %v3782, %v3790
        %v3794 = vmul.f32 %v3783, %v3790
        %v3795 = vmul.f32 %v3784, %v3790
        %v3796 = vmul.f32 %v3785, %v3790
        %v3798 = vlaneseq
        %v3799 = vshrl.u32 %v3798, 7
        %v3800 = vsub.s32 0, %v3799
        %v3801 = vrot.slane %v3720, %v3800
        %v3803 = vadd.f32 %v3792, %v3801
        %v3804 = vadd.f32 %v3793, %v3801
        %v3805 = vadd.f32 %v3794, %v3801
        %v3806 = vadd.f32 %v3795, %v3801
        %v3807 = vadd.f32 %v3796, %v3801
        %s3808 = scalar_lea.vmem %s699, 40 [#allocation2]
        %3809 = vst.msk [vmem:[%s3808] sm:$0xff] %vm896, %v3803
        %3810 = vst.msk [vmem:[%s3808 + $0x8] sm:$0xff] %vm896, %v3804
        %3811 = vst.msk [vmem:[%s3808 + $0x10] sm:$0xff] %vm896, %v3805
        %3812 = vst.msk [vmem:[%s3808 + $0x18] sm:$0xff] %vm896, %v3806
        %3813 = vst.msk [vmem:[%s3808 + $0x20] sm:$0x7f] %vm909, %v3807
        %v3814 = vpack.c.bf16 %v3804, %v3803
        %v3815 = vpack.c.bf16 %v3806, %v3805
        %v3816 = vpack.c.bf16 %v3807, %v3807
        %s3817 = scalar_lea.vmem %s14, 1
        %v3818 = vld [vmem:[%s3817] sm:$0x1]
        %v3820 = vlaneseq
        %v3821 = vshrl.u32 %v3820, 7
        %v3822 = vsub.s32 0, %v3821
        %v3823 = vrot.slane %v3818, %v3822
        %v3825 = vadd.f32 %v3803, %v3823
        %v3826 = vadd.f32 %v3804, %v3823
        %v3827 = vadd.f32 %v3805, %v3823
        %v3828 = vadd.f32 %v3806, %v3823
        %v3829 = vadd.f32 %v3807, %v3823
        %s3830 = scalar_lea.vmem %s7, 128
        %v3831 = vld [vmem:[%s3830] sm:$0xf]
        %v3832 = vld [vmem:[%s3830 + $0x4] sm:$0xf]
        %v3833 = vld [vmem:[%s3830 + $0x8] sm:$0xf]
        %v3834 = vld [vmem:[%s3830 + $0xc] sm:$0xf]
        %v3835 = vld [vmem:[%s3830 + $0x10] sm:$0xf]
        %v3836 = vld [vmem:[%s3830 + $0x14] sm:$0xf]
        %v3837 = vld [vmem:[%s3830 + $0x18] sm:$0xf]
        %v3838 = vld [vmem:[%s3830 + $0x1c] sm:$0xf]
        %s3839 = scalar_lea.vmem %s8, 4
        %v3840 = vld [vmem:[%s3839] sm:$0x1]
        %v3842 = vlaneseq
        %v3843 = vshrl.u32 %v3842, 7
        %v3844 = vsub.s32 0, %v3843
        %v3845 = vrot.slane %v3840, %v3844
        %v3855 = vunpack.c.l.b16 %v3831
        %v3856 = vunpack.c.l.b16 %v3832
        %v3857 = vunpack.c.l.b16 %v3833
        %v3858 = vunpack.c.l.b16 %v3834
        %v3859 = vunpack.c.l.b16 %v3835
        %v3860 = vunpack.c.l.b16 %v3836
        %v3861 = vunpack.c.l.b16 %v3837
        %v3862 = vunpack.c.l.b16 %v3838
        %v3863 = vpack.c.b16 %v3856, %v3855
        %v3864 = vpack.c.b16 %v3858, %v3857
        %v3865 = vpack.c.b16 %v3860, %v3859
        %v3866 = vpack.c.b16 %v3862, %v3861
        %v3872 = vsel %vm896, %v3814, 0
        %v3875 = vsel %vm896, %v3815, 0
        %v3878 = vsel %vm896, %v3816, 0
        %3880 = vmatprep.subr.bf16.mxu0 0
        %3881 = vmatpush1.bf16.msra.mxu0 %v3863
        %3882 = vmatprep.subr.bf16.mxu0 0
        %3883 = vmatpush1.bf16.msra.mxu0 %v3864
        %3884 = vmatprep.subr.bf16.mxu0 0
        %3885 = vmatpush1.bf16.msra.mxu0 %v3865
        %3886 = vmatprep.subr.bf16.mxu0 0
        %3887 = vmatpush1.bf16.msra.mxu0 %v3866
        %3888 = vmatprep.subr.bf16.mxu0 0
        %3889 = vmatpush1.bf16.msra.mxu0 0
        %3890 = vmatprep.subr.bf16.mxu0 0
        %3891 = vmatpush1.bf16.msra.mxu0 0
        %3892 = vmatprep.subr.bf16.mxu0 0
        %3893 = vmatpush1.bf16.msra.mxu0 0
        %3894 = vmatprep.subr.bf16.mxu0 0
        %3895 = vmatpush1.bf16.msra.mxu0 0
        %3896 = vmatprep.subr.bf16.mxu0 0
        %3897 = vmatpush1.bf16.msra.mxu0 0
        %3898 = vmatprep.subr.bf16.mxu0 0
        %3899 = vmatpush1.bf16.msra.mxu0 0
        %3900 = vmatprep.subr.bf16.mxu0 0
        %3901 = vmatpush1.bf16.msra.mxu0 0
        %3902 = vmatprep.subr.bf16.mxu0 0
        %3903 = vmatpush1.bf16.msra.mxu0 0
        %3904 = vmatprep.subr.bf16.mxu0 0
        %3905 = vmatpush1.bf16.msra.mxu0 0
        %3906 = vmatprep.subr.bf16.mxu0 0
        %3907 = vmatpush1.bf16.msra.mxu0 0
        %3908 = vmatprep.subr.bf16.mxu0 0
        %3909 = vmatpush1.bf16.msra.mxu0 0
        %3910 = vmatprep.subr.bf16.mxu0 0
        %3911 = vmatpush1.bf16.msra.mxu0 0
        %3912 = vmatprep.mubr.bf16.mxu0 0
        %3913 = vmatmul.mubr.bf16.gmra.mrb[0].mxu0 %v3872
        %v3914 = vpop.f32.mrb[0].mxu0
        %v3915 = vadd.f32 %v3845, %v3914
        %v3916 = vpop.f32.mrb[0].mxu0
        %v3917 = vpop.f32.mrb[0].mxu0
        %v3918 = vadd.f32 %v3845, %v3917
        %v3919 = vpop.f32.mrb[0].mxu0
        %3920 = vmatprep.mubr.bf16.mxu0 0
        %3921 = vmatmul.mubr.bf16.gmra.mrb[0].mxu0 %v3875
        %v3922 = vpop.f32.mrb[0].mxu0
        %v3923 = vadd.f32 %v3845, %v3922
        %v3924 = vpop.f32.mrb[0].mxu0
        %v3925 = vpop.f32.mrb[0].mxu0
        %v3926 = vadd.f32 %v3845, %v3925
        %v3927 = vpop.f32.mrb[0].mxu0
        %3928 = vmatprep.mubr.bf16.mxu0 0
        %3929 = vmatmul.mubr.bf16.gmra.mrb[0].mxu0 %v3878
        %v3930 = vpop.f32.mrb[0].mxu0
        %v3931 = vadd.f32 %v3845, %v3930
        %v3932 = vpop.f32.mrb[0].mxu0
        %v3933 = vpop.f32.mrb[0].mxu0
        %v3934 = vpop.f32.mrb[0].mxu0
        %3935 = vdwg.mxu0
        %s3936 = scalar_lea.vmem %s9, 128
        %v3937 = vld [vmem:[%s3936] sm:$0xf]
        %v3938 = vld [vmem:[%s3936 + $0x4] sm:$0xf]
        %v3939 = vld [vmem:[%s3936 + $0x8] sm:$0xf]
        %v3940 = vld [vmem:[%s3936 + $0xc] sm:$0xf]
        %v3941 = vld [vmem:[%s3936 + $0x10] sm:$0xf]
        %v3942 = vld [vmem:[%s3936 + $0x14] sm:$0xf]
        %v3943 = vld [vmem:[%s3936 + $0x18] sm:$0xf]
        %v3944 = vld [vmem:[%s3936 + $0x1c] sm:$0xf]
        %s3945 = scalar_lea.vmem %s10, 4
        %v3946 = vld [vmem:[%s3945] sm:$0x1]
        %v3948 = vlaneseq
        %v3949 = vshrl.u32 %v3948, 7
        %v3950 = vsub.s32 0, %v3949
        %v3951 = vrot.slane %v3946, %v3950
        %v3961 = vunpack.c.l.b16 %v3937
        %v3962 = vunpack.c.l.b16 %v3938
        %v3963 = vunpack.c.l.b16 %v3939
        %v3964 = vunpack.c.l.b16 %v3940
        %v3965 = vunpack.c.l.b16 %v3941
        %v3966 = vunpack.c.l.b16 %v3942
        %v3967 = vunpack.c.l.b16 %v3943
        %v3968 = vunpack.c.l.b16 %v3944
        %v3969 = vpack.c.b16 %v3962, %v3961
        %v3970 = vpack.c.b16 %v3964, %v3963
        %v3971 = vpack.c.b16 %v3966, %v3965
        %v3972 = vpack.c.b16 %v3968, %v3967
        %3977 = vmatprep.subr.bf16.mxu0 0
        %3978 = vmatpush1.bf16.msra.mxu0 %v3969
        %3979 = vmatprep.subr.bf16.mxu0 0
        %3980 = vmatpush1.bf16.msra.mxu0 %v3970
        %3981 = vmatprep.subr.bf16.mxu0 0
        %3982 = vmatpush1.bf16.msra.mxu0 %v3971
        %3983 = vmatprep.subr.bf16.mxu0 0
        %3984 = vmatpush1.bf16.msra.mxu0 %v3972
        %3985 = vmatprep.subr.bf16.mxu0 0
        %3986 = vmatpush1.bf16.msra.mxu0 0
        %3987 = vmatprep.subr.bf16.mxu0 0
        %3988 = vmatpush1.bf16.msra.mxu0 0
        %3989 = vmatprep.subr.bf16.mxu0 0
        %3990 = vmatpush1.bf16.msra.mxu0 0
        %3991 = vmatprep.subr.bf16.mxu0 0
        %3992 = vmatpush1.bf16.msra.mxu0 0
        %3993 = vmatprep.subr.bf16.mxu0 0
        %3994 = vmatpush1.bf16.msra.mxu0 0
        %3995 = vmatprep.subr.bf16.mxu0 0
        %3996 = vmatpush1.bf16.msra.mxu0 0
        %3997 = vmatprep.subr.bf16.mxu0 0
        %3998 = vmatpush1.bf16.msra.mxu0 0
        %3999 = vmatprep.subr.bf16.mxu0 0
        %4000 = vmatpush1.bf16.msra.mxu0 0
        %4001 = vmatprep.subr.bf16.mxu0 0
        %4002 = vmatpush1.bf16.msra.mxu0 0
        %4003 = vmatprep.subr.bf16.mxu0 0
        %4004 = vmatpush1.bf16.msra.mxu0 0
        %4005 = vmatprep.subr.bf16.mxu0 0
        %4006 = vmatpush1.bf16.msra.mxu0 0
        %4007 = vmatprep.subr.bf16.mxu0 0
        %4008 = vmatpush1.bf16.msra.mxu0 0
        %4009 = vmatprep.mubr.bf16.mxu0 0
        %4010 = vmatmul.mubr.bf16.gmra.mrb[0].mxu0 %v3872
        %v4011 = vpop.f32.mrb[0].mxu0
        %v4012 = vadd.f32 %v3951, %v4011
        %v4013 = vpop.f32.mrb[0].mxu0
        %v4014 = vpop.f32.mrb[0].mxu0
        %v4015 = vadd.f32 %v3951, %v4014
        %v4016 = vpop.f32.mrb[0].mxu0
        %4017 = vmatprep.mubr.bf16.mxu0 0
        %4018 = vmatmul.mubr.bf16.gmra.mrb[0].mxu0 %v3875
        %v4019 = vpop.f32.mrb[0].mxu0
        %v4020 = vadd.f32 %v3951, %v4019
        %v4021 = vpop.f32.mrb[0].mxu0
        %v4022 = vpop.f32.mrb[0].mxu0
        %v4023 = vadd.f32 %v3951, %v4022
        %v4024 = vpop.f32.mrb[0].mxu0
        %4025 = vmatprep.mubr.bf16.mxu0 0
        %4026 = vmatmul.mubr.bf16.gmra.mrb[0].mxu0 %v3878
        %v4027 = vpop.f32.mrb[0].mxu0
        %v4028 = vadd.f32 %v3951, %v4027
        %v4029 = vpop.f32.mrb[0].mxu0
        %v4030 = vpop.f32.mrb[0].mxu0
        %v4031 = vpop.f32.mrb[0].mxu0
        %4032 = vdwg.mxu0
        %s4033 = scalar_lea.vmem %s11, 128
        %v4034 = vld [vmem:[%s4033] sm:$0xf]
        %v4035 = vld [vmem:[%s4033 + $0x4] sm:$0xf]
        %v4036 = vld [vmem:[%s4033 + $0x8] sm:$0xf]
        %v4037 = vld [vmem:[%s4033 + $0xc] sm:$0xf]
        %v4038 = vld [vmem:[%s4033 + $0x10] sm:$0xf]
        %v4039 = vld [vmem:[%s4033 + $0x14] sm:$0xf]
        %v4040 = vld [vmem:[%s4033 + $0x18] sm:$0xf]
        %v4041 = vld [vmem:[%s4033 + $0x1c] sm:$0xf]
        %s4042 = scalar_lea.vmem %s12, 4
        %v4043 = vld [vmem:[%s4042] sm:$0x1]
        %v4045 = vlaneseq
        %v4046 = vshrl.u32 %v4045, 7
        %v4047 = vsub.s32 0, %v4046
        %v4048 = vrot.slane %v4043, %v4047
        %v4058 = vunpack.c.l.b16 %v4034
        %v4059 = vunpack.c.l.b16 %v4035
        %v4060 = vunpack.c.l.b16 %v4036
        %v4061 = vunpack.c.l.b16 %v4037
        %v4062 = vunpack.c.l.b16 %v4038
        %v4063 = vunpack.c.l.b16 %v4039
        %v4064 = vunpack.c.l.b16 %v4040
        %v4065 = vunpack.c.l.b16 %v4041
        %v4066 = vpack.c.b16 %v4059, %v4058
        %v4067 = vpack.c.b16 %v4061, %v4060
        %v4068 = vpack.c.b16 %v4063, %v4062
        %v4069 = vpack.c.b16 %v4065, %v4064
        %4074 = vmatprep.subr.bf16.mxu0 0
        %4075 = vmatpush1.bf16.msra.mxu0 %v4066
        %4076 = vmatprep.subr.bf16.mxu0 0
        %4077 = vmatpush1.bf16.msra.mxu0 %v4067
        %4078 = vmatprep.subr.bf16.mxu0 0
        %4079 = vmatpush1.bf16.msra.mxu0 %v4068
        %4080 = vmatprep.subr.bf16.mxu0 0
        %4081 = vmatpush1.bf16.msra.mxu0 %v4069
        %4082 = vmatprep.subr.bf16.mxu0 0
        %4083 = vmatpush1.bf16.msra.mxu0 0
        %4084 = vmatprep.subr.bf16.mxu0 0
        %4085 = vmatpush1.bf16.msra.mxu0 0
        %4086 = vmatprep.subr.bf16.mxu0 0
        %4087 = vmatpush1.bf16.msra.mxu0 0
        %4088 = vmatprep.subr.bf16.mxu0 0
        %4089 = vmatpush1.bf16.msra.mxu0 0
        %4090 = vmatprep.subr.bf16.mxu0 0
        %4091 = vmatpush1.bf16.msra.mxu0 0
        %4092 = vmatprep.subr.bf16.mxu0 0
        %4093 = vmatpush1.bf16.msra.mxu0 0
        %4094 = vmatprep.subr.bf16.mxu0 0
        %4095 = vmatpush1.bf16.msra.mxu0 0
        %4096 = vmatprep.subr.bf16.mxu0 0
        %4097 = vmatpush1.bf16.msra.mxu0 0
        %4098 = vmatprep.subr.bf16.mxu0 0
        %4099 = vmatpush1.bf16.msra.mxu0 0
        %4100 = vmatprep.subr.bf16.mxu0 0
        %4101 = vmatpush1.bf16.msra.mxu0 0
        %4102 = vmatprep.subr.bf16.mxu0 0
        %4103 = vmatpush1.bf16.msra.mxu0 0
        %4104 = vmatprep.subr.bf16.mxu0 0
        %4105 = vmatpush1.bf16.msra.mxu0 0
        %4106 = vmatprep.mubr.bf16.mxu0 0
        %4107 = vmatmul.mubr.bf16.gmra.mrb[0].mxu0 %v3872
        %v4108 = vpop.f32.mrb[0].mxu0
        %v4109 = vadd.f32 %v4048, %v4108
        %v4110 = vpop.f32.mrb[0].mxu0
        %v4111 = vpop.f32.mrb[0].mxu0
        %v4112 = vadd.f32 %v4048, %v4111
        %v4113 = vpop.f32.mrb[0].mxu0
        %4114 = vmatprep.mubr.bf16.mxu0 0
        %4115 = vmatmul.mubr.bf16.gmra.mrb[0].mxu0 %v3875
        %v4116 = vpop.f32.mrb[0].mxu0
        %v4117 = vadd.f32 %v4048, %v4116
        %v4118 = vpop.f32.mrb[0].mxu0
        %v4119 = vpop.f32.mrb[0].mxu0
        %v4120 = vadd.f32 %v4048, %v4119
        %v4121 = vpop.f32.mrb[0].mxu0
        %4122 = vmatprep.mubr.bf16.mxu0 0
        %4123 = vmatmul.mubr.bf16.gmra.mrb[0].mxu0 %v3878
        %v4124 = vpop.f32.mrb[0].mxu0
        %v4125 = vadd.f32 %v4048, %v4124
        %v4126 = vpop.f32.mrb[0].mxu0
        %v4127 = vpop.f32.mrb[0].mxu0
        %v4128 = vpop.f32.mrb[0].mxu0
        %4129 = vdwg.mxu0
        %v4130 = vpack.c.bf16 %v3918, %v3915
        %v4131 = vpack.c.bf16 %v3926, %v3923
        %v4132 = vpack.c.bf16 %v3931, %v3931
        %v4133 = vpack.c.bf16 %v4015, %v4012
        %v4134 = vpack.c.bf16 %v4023, %v4020
        %v4135 = vpack.c.bf16 %v4028, %v4028
        %v4137 = vsel %vm1306, %v4130, 0
        %v4140 = vsel %vm1306, %v4131, 0
        %v4143 = vsel %vm1306, %v4132, 0
        %v4146 = vsel %vm1306, %v4133, 0
        %v4149 = vsel %vm1306, %v4134, 0
        %v4152 = vsel %vm1306, %v4135, 0
        %4154 = vmatprep.subr.bf16.mxu0 0
        %4155 = vmatpush1.bf16.xpose.msra.mxu0 %v4146
        %4156 = vmatprep.subr.bf16.mxu0 0
        %4157 = vmatpush1.bf16.xpose.msra.mxu0 %v4149
        %4158 = vmatprep.subr.bf16.mxu0 0
        %4159 = vmatpush1.bf16.xpose.msra.mxu0 %v4152
        %4160 = vmatprep.subr.bf16.mxu0 0
        %4161 = vmatpush1.bf16.xpose.msra.mxu0 0
        %4162 = vmatprep.subr.bf16.mxu0 0
        %4163 = vmatpush1.bf16.xpose.msra.mxu0 0
        %4164 = vmatprep.subr.bf16.mxu0 0
        %4165 = vmatpush1.bf16.xpose.msra.mxu0 0
        %4166 = vmatprep.subr.bf16.mxu0 0
        %4167 = vmatpush1.bf16.xpose.msra.mxu0 0
        %4168 = vmatprep.subr.bf16.mxu0 0
        %4169 = vmatpush1.bf16.xpose.msra.mxu0 0
        %4170 = vmatprep.subr.bf16.mxu0 0
        %4171 = vmatpush1.bf16.xpose.msra.mxu0 0
        %4172 = vmatprep.subr.bf16.mxu0 0
        %4173 = vmatpush1.bf16.xpose.msra.mxu0 0
        %4174 = vmatprep.subr.bf16.mxu0 0
        %4175 = vmatpush1.bf16.xpose.msra.mxu0 0
        %4176 = vmatprep.subr.bf16.mxu0 0
        %4177 = vmatpush1.bf16.xpose.msra.mxu0 0
        %4178 = vmatprep.subr.bf16.mxu0 0
        %4179 = vmatpush1.bf16.xpose.msra.mxu0 0
        %4180 = vmatprep.subr.bf16.mxu0 0
        %4181 = vmatpush1.bf16.xpose.msra.mxu0 0
        %4182 = vmatprep.subr.bf16.mxu0 0
        %4183 = vmatpush1.bf16.xpose.msra.mxu0 0
        %4184 = vmatprep.subr.bf16.mxu0 0
        %4185 = vmatpush1.bf16.xpose.msra.mxu0 0
        %4186 = vmatprep.mubr.bf16.mxu0 0
        %4187 = vmatmul.mubr.bf16.gmra.mrb[0].mxu0 %v4137
        %v4188 = vpop.f32.mrb[0].mxu0
        %v4189 = vadd.f32 0.0, %v4188
        %v4190 = vpop.f32.mrb[0].mxu0
        %v4191 = vpop.f32.mrb[0].mxu0
        %v4192 = vadd.f32 0.0, %v4191
        %v4193 = vpop.f32.mrb[0].mxu0
        %4194 = vmatprep.mubr.bf16.mxu0 0
        %4195 = vmatmul.mubr.bf16.gmra.mrb[0].mxu0 %v4140
        %v4196 = vpop.f32.mrb[0].mxu0
        %v4197 = vadd.f32 0.0, %v4196
        %v4198 = vpop.f32.mrb[0].mxu0
        %v4199 = vpop.f32.mrb[0].mxu0
        %v4200 = vadd.f32 0.0, %v4199
        %v4201 = vpop.f32.mrb[0].mxu0
        %4202 = vmatprep.mubr.bf16.mxu0 0
        %4203 = vmatmul.mubr.bf16.gmra.mrb[0].mxu0 %v4143
        %v4204 = vpop.f32.mrb[0].mxu0
        %v4205 = vadd.f32 0.0, %v4204
        %v4206 = vpop.f32.mrb[0].mxu0
        %v4207 = vpop.f32.mrb[0].mxu0
        %v4208 = vpop.f32.mrb[0].mxu0
        %4209 = vdwg.mxu0
        %v4210 = vsel %vm1381, %v4189, -inf
        %4211 = vmax.xlane.f32.xlu0 %v4210
        %v4212 = vpop.xlane.xlu0 %4211
        %v4213 = vsel %vm1381, %v4192, -inf
        %4214 = vmax.xlane.f32.xlu0 %v4213
        %v4215 = vpop.xlane.xlu0 %4214
        %v4216 = vsel %vm1381, %v4197, -inf
        %4217 = vmax.xlane.f32.xlu0 %v4216
        %v4218 = vpop.xlane.xlu0 %4217
        %v4219 = vsel %vm1381, %v4200, -inf
        %4220 = vmax.xlane.f32.xlu0 %v4219
        %v4221 = vpop.xlane.xlu0 %4220
        %v4222 = vsel %vm1394, %v4205, -inf
        %4223 = vmax.xlane.f32.xlu0 %v4222
        %v4224 = vpop.xlane.xlu0 %4223
        %v4225 = vsub.f32 %v4189, %v4212
        %v4226 = vsub.f32 %v4192, %v4215
        %v4227 = vsub.f32 %v4197, %v4218
        %v4228 = vsub.f32 %v4200, %v4221
        %v4229 = vsub.f32 %v4205, %v4224
        %v4230 = vmul.f32 %v4225, 1.442695
        %v4231 = vpow.pop %v4230
        %v4232 = vmul.f32 %v4226, 1.442695
        %v4233 = vpow.pop %v4232
        %v4234 = vmul.f32 %v4227, 1.442695
        %v4235 = vpow.pop %v4234
        %v4236 = vmul.f32 %v4228, 1.442695
        %v4237 = vpow.pop %v4236
        %v4238 = vmul.f32 %v4229, 1.442695
        %v4239 = vpow.pop %v4238
        %v4240 = vsel %vm1381, %v4231, 0.0
        %4241 = vadd.xlane.f32.xlu0 %v4240
        %v4242 = vpop.xlane.xlu0 %4241
        %v4243 = vsel %vm1381, %v4233, 0.0
        %4244 = vadd.xlane.f32.xlu0 %v4243
        %v4245 = vpop.xlane.xlu0 %4244
        %v4246 = vsel %vm1381, %v4235, 0.0
        %4247 = vadd.xlane.f32.xlu0 %v4246
        %v4248 = vpop.xlane.xlu0 %4247
        %v4249 = vsel %vm1381, %v4237, 0.0
        %4250 = vadd.xlane.f32.xlu0 %v4249
        %v4251 = vpop.xlane.xlu0 %4250
        %v4252 = vsel %vm1394, %v4239, 0.0
        %4253 = vadd.xlane.f32.xlu0 %v4252
        %v4254 = vpop.xlane.xlu0 %4253
        %v4255 = vrcp.pop %v4242
        %v4256 = vrcp.pop %v4245
        %v4257 = vrcp.pop %v4248
        %v4258 = vrcp.pop %v4251
        %v4259 = vrcp.pop %v4254
        %v4260 = vmul.f32 %v4231, %v4255
        %v4261 = vmul.f32 %v4233, %v4256
        %v4262 = vmul.f32 %v4235, %v4257
        %v4263 = vmul.f32 %v4237, %v4258
        %v4264 = vmul.f32 %v4239, %v4259
        %v4265 = vpack.c.bf16 %v4261, %v4260
        %v4266 = vpack.c.bf16 %v4263, %v4262
        %v4267 = vpack.c.bf16 %v4264, %v4264
        %v4268 = vpack.c.bf16 %v4112, %v4109
        %v4269 = vpack.c.bf16 %v4120, %v4117
        %v4270 = vpack.c.bf16 %v4125, %v4125
        %v4272 = vsel %vm1381, %v4265, 0
        %v4275 = vsel %vm1381, %v4266, 0
        %v4278 = vsel %vm1381, %v4267, 0
        %v4281 = vand.u32 %v4270, %v1456
        %4283 = vmatprep.subr.bf16.mxu0 0
        %4284 = vmatpush1.bf16.msra.mxu0 %v4268
        %4285 = vmatprep.subr.bf16.mxu0 0
        %4286 = vmatpush1.bf16.msra.mxu0 %v4269
        %4287 = vmatprep.subr.bf16.mxu0 0
        %4288 = vmatpush1.bf16.msra.mxu0 %v4281
        %4289 = vmatprep.subr.bf16.mxu0 0
        %4290 = vmatpush1.bf16.msra.mxu0 0
        %4291 = vmatprep.subr.bf16.mxu0 0
        %4292 = vmatpush1.bf16.msra.mxu0 0
        %4293 = vmatprep.subr.bf16.mxu0 0
        %4294 = vmatpush1.bf16.msra.mxu0 0
        %4295 = vmatprep.subr.bf16.mxu0 0
        %4296 = vmatpush1.bf16.msra.mxu0 0
        %4297 = vmatprep.subr.bf16.mxu0 0
        %4298 = vmatpush1.bf16.msra.mxu0 0
        %4299 = vmatprep.subr.bf16.mxu0 0
        %4300 = vmatpush1.bf16.msra.mxu0 0
        %4301 = vmatprep.subr.bf16.mxu0 0
        %4302 = vmatpush1.bf16.msra.mxu0 0
        %4303 = vmatprep.subr.bf16.mxu0 0
        %4304 = vmatpush1.bf16.msra.mxu0 0
        %4305 = vmatprep.subr.bf16.mxu0 0
        %4306 = vmatpush1.bf16.msra.mxu0 0
        %4307 = vmatprep.subr.bf16.mxu0 0
        %4308 = vmatpush1.bf16.msra.mxu0 0
        %4309 = vmatprep.subr.bf16.mxu0 0
        %4310 = vmatpush1.bf16.msra.mxu0 0
        %4311 = vmatprep.subr.bf16.mxu0 0
        %4312 = vmatpush1.bf16.msra.mxu0 0
        %4313 = vmatprep.subr.bf16.mxu0 0
        %4314 = vmatpush1.bf16.msra.mxu0 0
        %4315 = vmatprep.mubr.bf16.mxu0 0
        %4316 = vmatmul.mubr.bf16.gmra.mrb[0].mxu0 %v4272
        %v4317 = vpop.f32.mrb[0].mxu0
        %v4318 = vadd.f32 0.0, %v4317
        %v4319 = vpop.f32.mrb[0].mxu0
        %v4320 = vpop.f32.mrb[0].mxu0
        %v4321 = vadd.f32 0.0, %v4320
        %v4322 = vpop.f32.mrb[0].mxu0
        %4323 = vmatprep.mubr.bf16.mxu0 0
        %4324 = vmatmul.mubr.bf16.gmra.mrb[0].mxu0 %v4275
        %v4325 = vpop.f32.mrb[0].mxu0
        %v4326 = vadd.f32 0.0, %v4325
        %v4327 = vpop.f32.mrb[0].mxu0
        %v4328 = vpop.f32.mrb[0].mxu0
        %v4329 = vadd.f32 0.0, %v4328
        %v4330 = vpop.f32.mrb[0].mxu0
        %4331 = vmatprep.mubr.bf16.mxu0 0
        %4332 = vmatmul.mubr.bf16.gmra.mrb[0].mxu0 %v4278
        %v4333 = vpop.f32.mrb[0].mxu0
        %v4334 = vadd.f32 0.0, %v4333
        %v4335 = vpop.f32.mrb[0].mxu0
        %v4336 = vpop.f32.mrb[0].mxu0
        %v4337 = vpop.f32.mrb[0].mxu0
        %4338 = vdwg.mxu0
        %v4339 = vpack.c.bf16 %v4321, %v4318
        %v4340 = vpack.c.bf16 %v4329, %v4326
        %v4341 = vpack.c.bf16 %v4334, %v4334
        %s4342 = scalar_lea.vmem %s13, 32
        %v4343 = vld [vmem:[%s4342] sm:$0xf]
        %v4344 = vld [vmem:[%s4342 + $0x4] sm:$0xf]
        %v4347 = vunpack.c.l.b16 %v4343
        %v4348 = vunpack.c.l.b16 %v4344
        %v4349 = vpack.c.b16 %v4348, %v4347
        %v4352 = vsel %vm1306, %v4339, 0
        %v4355 = vsel %vm1306, %v4340, 0
        %v4358 = vsel %vm1306, %v4341, 0
        %4360 = vmatprep.subr.bf16.mxu0 0
        %4361 = vmatpush1.bf16.msra.mxu0 %v4349
        %4362 = vmatprep.subr.bf16.mxu0 0
        %4363 = vmatpush1.bf16.msra.mxu0 0
        %4364 = vmatprep.subr.bf16.mxu0 0
        %4365 = vmatpush1.bf16.msra.mxu0 0
        %4366 = vmatprep.subr.bf16.mxu0 0
        %4367 = vmatpush1.bf16.msra.mxu0 0
        %4368 = vmatprep.subr.bf16.mxu0 0
        %4369 = vmatpush1.bf16.msra.mxu0 0
        %4370 = vmatprep.subr.bf16.mxu0 0
        %4371 = vmatpush1.bf16.msra.mxu0 0
        %4372 = vmatprep.subr.bf16.mxu0 0
        %4373 = vmatpush1.bf16.msra.mxu0 0
        %4374 = vmatprep.subr.bf16.mxu0 0
        %4375 = vmatpush1.bf16.msra.mxu0 0
        %4376 = vmatprep.subr.bf16.mxu0 0
        %4377 = vmatpush1.bf16.msra.mxu0 0
        %4378 = vmatprep.subr.bf16.mxu0 0
        %4379 = vmatpush1.bf16.msra.mxu0 0
        %4380 = vmatprep.subr.bf16.mxu0 0
        %4381 = vmatpush1.bf16.msra.mxu0 0
        %4382 = vmatprep.subr.bf16.mxu0 0
        %4383 = vmatpush1.bf16.msra.mxu0 0
        %4384 = vmatprep.subr.bf16.mxu0 0
        %4385 = vmatpush1.bf16.msra.mxu0 0
        %4386 = vmatprep.subr.bf16.mxu0 0
        %4387 = vmatpush1.bf16.msra.mxu0 0
        %4388 = vmatprep.subr.bf16.mxu0 0
        %4389 = vmatpush1.bf16.msra.mxu0 0
        %4390 = vmatprep.subr.bf16.mxu0 0
        %4391 = vmatpush1.bf16.msra.mxu0 0
        %4392 = vmatprep.mubr.bf16.mxu0 0
        %4393 = vmatmul.mubr.bf16.gmra.mrb[0].mxu0 %v4352
        %v4394 = vpop.f32.mrb[0].mxu0
        %v4395 = vadd.f32 0.0, %v4394
        %v4396 = vpop.f32.mrb[0].mxu0
        %v4397 = vpop.f32.mrb[0].mxu0
        %v4398 = vadd.f32 0.0, %v4397
        %v4399 = vpop.f32.mrb[0].mxu0
        %4400 = vmatprep.mubr.bf16.mxu0 0
        %4401 = vmatmul.mubr.bf16.gmra.mrb[0].mxu0 %v4355
        %v4402 = vpop.f32.mrb[0].mxu0
        %v4403 = vadd.f32 0.0, %v4402
        %v4404 = vpop.f32.mrb[0].mxu0
        %v4405 = vpop.f32.mrb[0].mxu0
        %v4406 = vadd.f32 0.0, %v4405
        %v4407 = vpop.f32.mrb[0].mxu0
        %4408 = vmatprep.mubr.bf16.mxu0 0
        %4409 = vmatmul.mubr.bf16.gmra.mrb[0].mxu0 %v4358
        %v4410 = vpop.f32.mrb[0].mxu0
        %v4411 = vadd.f32 0.0, %v4410
        %v4412 = vpop.f32.mrb[0].mxu0
        %v4413 = vpop.f32.mrb[0].mxu0
        %v4414 = vpop.f32.mrb[0].mxu0
        %4415 = vdwg.mxu0
        %v4416 = vadd.f32 %v3825, %v4395
        %v4417 = vadd.f32 %v3826, %v4398
        %v4418 = vadd.f32 %v3827, %v4403
        %v4419 = vadd.f32 %v3828, %v4406
        %v4420 = vadd.f32 %v3829, %v4411
        %s4421 = scalar_lea.vmem %s7, 160
        %v4422 = vld [vmem:[%s4421] sm:$0xf]
        %v4423 = vld [vmem:[%s4421 + $0x4] sm:$0xf]
        %v4424 = vld [vmem:[%s4421 + $0x8] sm:$0xf]
        %v4425 = vld [vmem:[%s4421 + $0xc] sm:$0xf]
        %v4426 = vld [vmem:[%s4421 + $0x10] sm:$0xf]
        %v4427 = vld [vmem:[%s4421 + $0x14] sm:$0xf]
        %v4428 = vld [vmem:[%s4421 + $0x18] sm:$0xf]
        %v4429 = vld [vmem:[%s4421 + $0x1c] sm:$0xf]
        %s4430 = scalar_lea.vmem %s8, 5
        %v4431 = vld [vmem:[%s4430] sm:$0x1]
        %v4433 = vlaneseq
        %v4434 = vshrl.u32 %v4433, 7
        %v4435 = vsub.s32 0, %v4434
        %v4436 = vrot.slane %v4431, %v4435
        %v4446 = vunpack.c.l.b16 %v4422
        %v4447 = vunpack.c.l.b16 %v4423
        %v4448 = vunpack.c.l.b16 %v4424
        %v4449 = vunpack.c.l.b16 %v4425
        %v4450 = vunpack.c.l.b16 %v4426
        %v4451 = vunpack.c.l.b16 %v4427
        %v4452 = vunpack.c.l.b16 %v4428
        %v4453 = vunpack.c.l.b16 %v4429
        %v4454 = vpack.c.b16 %v4447, %v4446
        %v4455 = vpack.c.b16 %v4449, %v4448
        %v4456 = vpack.c.b16 %v4451, %v4450
        %v4457 = vpack.c.b16 %v4453, %v4452
        %4462 = vmatprep.subr.bf16.mxu0 0
        %4463 = vmatpush1.bf16.msra.mxu0 %v4454
        %4464 = vmatprep.subr.bf16.mxu0 0
        %4465 = vmatpush1.bf16.msra.mxu0 %v4455
        %4466 = vmatprep.subr.bf16.mxu0 0
        %4467 = vmatpush1.bf16.msra.mxu0 %v4456
        %4468 = vmatprep.subr.bf16.mxu0 0
        %4469 = vmatpush1.bf16.msra.mxu0 %v4457
        %4470 = vmatprep.subr.bf16.mxu0 0
        %4471 = vmatpush1.bf16.msra.mxu0 0
        %4472 = vmatprep.subr.bf16.mxu0 0
        %4473 = vmatpush1.bf16.msra.mxu0 0
        %4474 = vmatprep.subr.bf16.mxu0 0
        %4475 = vmatpush1.bf16.msra.mxu0 0
        %4476 = vmatprep.subr.bf16.mxu0 0
        %4477 = vmatpush1.bf16.msra.mxu0 0
        %4478 = vmatprep.subr.bf16.mxu0 0
        %4479 = vmatpush1.bf16.msra.mxu0 0
        %4480 = vmatprep.subr.bf16.mxu0 0
        %4481 = vmatpush1.bf16.msra.mxu0 0
        %4482 = vmatprep.subr.bf16.mxu0 0
        %4483 = vmatpush1.bf16.msra.mxu0 0
        %4484 = vmatprep.subr.bf16.mxu0 0
        %4485 = vmatpush1.bf16.msra.mxu0 0
        %4486 = vmatprep.subr.bf16.mxu0 0
        %4487 = vmatpush1.bf16.msra.mxu0 0
        %4488 = vmatprep.subr.bf16.mxu0 0
        %4489 = vmatpush1.bf16.msra.mxu0 0
        %4490 = vmatprep.subr.bf16.mxu0 0
        %4491 = vmatpush1.bf16.msra.mxu0 0
        %4492 = vmatprep.subr.bf16.mxu0 0
        %4493 = vmatpush1.bf16.msra.mxu0 0
        %4494 = vmatprep.mubr.bf16.mxu0 0
        %4495 = vmatmul.mubr.bf16.gmra.mrb[0].mxu0 %v3872
        %v4496 = vpop.f32.mrb[0].mxu0
        %v4497 = vadd.f32 %v4436, %v4496
        %v4498 = vpop.f32.mrb[0].mxu0
        %v4499 = vpop.f32.mrb[0].mxu0
        %v4500 = vadd.f32 %v4436, %v4499
        %v4501 = vpop.f32.mrb[0].mxu0
        %4502 = vmatprep.mubr.bf16.mxu0 0
        %4503 = vmatmul.mubr.bf16.gmra.mrb[0].mxu0 %v3875
        %v4504 = vpop.f32.mrb[0].mxu0
        %v4505 = vadd.f32 %v4436, %v4504
        %v4506 = vpop.f32.mrb[0].mxu0
        %v4507 = vpop.f32.mrb[0].mxu0
        %v4508 = vadd.f32 %v4436, %v4507
        %v4509 = vpop.f32.mrb[0].mxu0
        %4510 = vmatprep.mubr.bf16.mxu0 0
        %4511 = vmatmul.mubr.bf16.gmra.mrb[0].mxu0 %v3878
        %v4512 = vpop.f32.mrb[0].mxu0
        %v4513 = vadd.f32 %v4436, %v4512
        %v4514 = vpop.f32.mrb[0].mxu0
        %v4515 = vpop.f32.mrb[0].mxu0
        %v4516 = vpop.f32.mrb[0].mxu0
        %4517 = vdwg.mxu0
        %s4518 = scalar_lea.vmem %s9, 160
        %v4519 = vld [vmem:[%s4518] sm:$0xf]
        %v4520 = vld [vmem:[%s4518 + $0x4] sm:$0xf]
        %v4521 = vld [vmem:[%s4518 + $0x8] sm:$0xf]
        %v4522 = vld [vmem:[%s4518 + $0xc] sm:$0xf]
        %v4523 = vld [vmem:[%s4518 + $0x10] sm:$0xf]
        %v4524 = vld [vmem:[%s4518 + $0x14] sm:$0xf]
        %v4525 = vld [vmem:[%s4518 + $0x18] sm:$0xf]
        %v4526 = vld [vmem:[%s4518 + $0x1c] sm:$0xf]
        %s4527 = scalar_lea.vmem %s10, 5
        %v4528 = vld [vmem:[%s4527] sm:$0x1]
        %v4530 = vlaneseq
        %v4531 = vshrl.u32 %v4530, 7
        %v4532 = vsub.s32 0, %v4531
        %v4533 = vrot.slane %v4528, %v4532
        %v4543 = vunpack.c.l.b16 %v4519
        %v4544 = vunpack.c.l.b16 %v4520
        %v4545 = vunpack.c.l.b16 %v4521
        %v4546 = vunpack.c.l.b16 %v4522
        %v4547 = vunpack.c.l.b16 %v4523
        %v4548 = vunpack.c.l.b16 %v4524
        %v4549 = vunpack.c.l.b16 %v4525
        %v4550 = vunpack.c.l.b16 %v4526
        %v4551 = vpack.c.b16 %v4544, %v4543
        %v4552 = vpack.c.b16 %v4546, %v4545
        %v4553 = vpack.c.b16 %v4548, %v4547
        %v4554 = vpack.c.b16 %v4550, %v4549
        %4559 = vmatprep.subr.bf16.mxu0 0
        %4560 = vmatpush1.bf16.msra.mxu0 %v4551
        %4561 = vmatprep.subr.bf16.mxu0 0
        %4562 = vmatpush1.bf16.msra.mxu0 %v4552
        %4563 = vmatprep.subr.bf16.mxu0 0
        %4564 = vmatpush1.bf16.msra.mxu0 %v4553
        %4565 = vmatprep.subr.bf16.mxu0 0
        %4566 = vmatpush1.bf16.msra.mxu0 %v4554
        %4567 = vmatprep.subr.bf16.mxu0 0
        %4568 = vmatpush1.bf16.msra.mxu0 0
        %4569 = vmatprep.subr.bf16.mxu0 0
        %4570 = vmatpush1.bf16.msra.mxu0 0
        %4571 = vmatprep.subr.bf16.mxu0 0
        %4572 = vmatpush1.bf16.msra.mxu0 0
        %4573 = vmatprep.subr.bf16.mxu0 0
        %4574 = vmatpush1.bf16.msra.mxu0 0
        %4575 = vmatprep.subr.bf16.mxu0 0
        %4576 = vmatpush1.bf16.msra.mxu0 0
        %4577 = vmatprep.subr.bf16.mxu0 0
        %4578 = vmatpush1.bf16.msra.mxu0 0
        %4579 = vmatprep.subr.bf16.mxu0 0
        %4580 = vmatpush1.bf16.msra.mxu0 0
        %4581 = vmatprep.subr.bf16.mxu0 0
        %4582 = vmatpush1.bf16.msra.mxu0 0
        %4583 = vmatprep.subr.bf16.mxu0 0
        %4584 = vmatpush1.bf16.msra.mxu0 0
        %4585 = vmatprep.subr.bf16.mxu0 0
        %4586 = vmatpush1.bf16.msra.mxu0 0
        %4587 = vmatprep.subr.bf16.mxu0 0
        %4588 = vmatpush1.bf16.msra.mxu0 0
        %4589 = vmatprep.subr.bf16.mxu0 0
        %4590 = vmatpush1.bf16.msra.mxu0 0
        %4591 = vmatprep.mubr.bf16.mxu0 0
        %4592 = vmatmul.mubr.bf16.gmra.mrb[0].mxu0 %v3872
        %v4593 = vpop.f32.mrb[0].mxu0
        %v4594 = vadd.f32 %v4533, %v4593
        %v4595 = vpop.f32.mrb[0].mxu0
        %v4596 = vpop.f32.mrb[0].mxu0
        %v4597 = vadd.f32 %v4533, %v4596
        %v4598 = vpop.f32.mrb[0].mxu0
        %4599 = vmatprep.mubr.bf16.mxu0 0
        %4600 = vmatmul.mubr.bf16.gmra.mrb[0].mxu0 %v3875
        %v4601 = vpop.f32.mrb[0].mxu0
        %v4602 = vadd.f32 %v4533, %v4601
        %v4603 = vpop.f32.mrb[0].mxu0
        %v4604 = vpop.f32.mrb[0].mxu0
        %v4605 = vadd.f32 %v4533, %v4604
        %v4606 = vpop.f32.mrb[0].mxu0
        %4607 = vmatprep.mubr.bf16.mxu0 0
        %4608 = vmatmul.mubr.bf16.gmra.mrb[0].mxu0 %v3878
        %v4609 = vpop.f32.mrb[0].mxu0
        %v4610 = vadd.f32 %v4533, %v4609
        %v4611 = vpop.f32.mrb[0].mxu0
        %v4612 = vpop.f32.mrb[0].mxu0
        %v4613 = vpop.f32.mrb[0].mxu0
        %4614 = vdwg.mxu0
        %s4615 = scalar_lea.vmem %s11, 160
        %v4616 = vld [vmem:[%s4615] sm:$0xf]
        %v4617 = vld [vmem:[%s4615 + $0x4] sm:$0xf]
        %v4618 = vld [vmem:[%s4615 + $0x8] sm:$0xf]
        %v4619 = vld [vmem:[%s4615 + $0xc] sm:$0xf]
        %v4620 = vld [vmem:[%s4615 + $0x10] sm:$0xf]
        %v4621 = vld [vmem:[%s4615 + $0x14] sm:$0xf]
        %v4622 = vld [vmem:[%s4615 + $0x18] sm:$0xf]
        %v4623 = vld [vmem:[%s4615 + $0x1c] sm:$0xf]
        %s4624 = scalar_lea.vmem %s12, 5
        %v4625 = vld [vmem:[%s4624] sm:$0x1]
        %v4627 = vlaneseq
        %v4628 = vshrl.u32 %v4627, 7
        %v4629 = vsub.s32 0, %v4628
        %v4630 = vrot.slane %v4625, %v4629
        %v4640 = vunpack.c.l.b16 %v4616
        %v4641 = vunpack.c.l.b16 %v4617
        %v4642 = vunpack.c.l.b16 %v4618
        %v4643 = vunpack.c.l.b16 %v4619
        %v4644 = vunpack.c.l.b16 %v4620
        %v4645 = vunpack.c.l.b16 %v4621
        %v4646 = vunpack.c.l.b16 %v4622
        %v4647 = vunpack.c.l.b16 %v4623
        %v4648 = vpack.c.b16 %v4641, %v4640
        %v4649 = vpack.c.b16 %v4643, %v4642
        %v4650 = vpack.c.b16 %v4645, %v4644
        %v4651 = vpack.c.b16 %v4647, %v4646
        %4656 = vmatprep.subr.bf16.mxu0 0
        %4657 = vmatpush1.bf16.msra.mxu0 %v4648
        %4658 = vmatprep.subr.bf16.mxu0 0
        %4659 = vmatpush1.bf16.msra.mxu0 %v4649
        %4660 = vmatprep.subr.bf16.mxu0 0
        %4661 = vmatpush1.bf16.msra.mxu0 %v4650
        %4662 = vmatprep.subr.bf16.mxu0 0
        %4663 = vmatpush1.bf16.msra.mxu0 %v4651
        %4664 = vmatprep.subr.bf16.mxu0 0
        %4665 = vmatpush1.bf16.msra.mxu0 0
        %4666 = vmatprep.subr.bf16.mxu0 0
        %4667 = vmatpush1.bf16.msra.mxu0 0
        %4668 = vmatprep.subr.bf16.mxu0 0
        %4669 = vmatpush1.bf16.msra.mxu0 0
        %4670 = vmatprep.subr.bf16.mxu0 0
        %4671 = vmatpush1.bf16.msra.mxu0 0
        %4672 = vmatprep.subr.bf16.mxu0 0
        %4673 = vmatpush1.bf16.msra.mxu0 0
        %4674 = vmatprep.subr.bf16.mxu0 0
        %4675 = vmatpush1.bf16.msra.mxu0 0
        %4676 = vmatprep.subr.bf16.mxu0 0
        %4677 = vmatpush1.bf16.msra.mxu0 0
        %4678 = vmatprep.subr.bf16.mxu0 0
        %4679 = vmatpush1.bf16.msra.mxu0 0
        %4680 = vmatprep.subr.bf16.mxu0 0
        %4681 = vmatpush1.bf16.msra.mxu0 0
        %4682 = vmatprep.subr.bf16.mxu0 0
        %4683 = vmatpush1.bf16.msra.mxu0 0
        %4684 = vmatprep.subr.bf16.mxu0 0
        %4685 = vmatpush1.bf16.msra.mxu0 0
        %4686 = vmatprep.subr.bf16.mxu0 0
        %4687 = vmatpush1.bf16.msra.mxu0 0
        %4688 = vmatprep.mubr.bf16.mxu0 0
        %4689 = vmatmul.mubr.bf16.gmra.mrb[0].mxu0 %v3872
        %v4690 = vpop.f32.mrb[0].mxu0
        %v4691 = vadd.f32 %v4630, %v4690
        %v4692 = vpop.f32.mrb[0].mxu0
        %v4693 = vpop.f32.mrb[0].mxu0
        %v4694 = vadd.f32 %v4630, %v4693
        %v4695 = vpop.f32.mrb[0].mxu0
        %4696 = vmatprep.mubr.bf16.mxu0 0
        %4697 = vmatmul.mubr.bf16.gmra.mrb[0].mxu0 %v3875
        %v4698 = vpop.f32.mrb[0].mxu0
        %v4699 = vadd.f32 %v4630, %v4698
        %v4700 = vpop.f32.mrb[0].mxu0
        %v4701 = vpop.f32.mrb[0].mxu0
        %v4702 = vadd.f32 %v4630, %v4701
        %v4703 = vpop.f32.mrb[0].mxu0
        %4704 = vmatprep.mubr.bf16.mxu0 0
        %4705 = vmatmul.mubr.bf16.gmra.mrb[0].mxu0 %v3878
        %v4706 = vpop.f32.mrb[0].mxu0
        %v4707 = vadd.f32 %v4630, %v4706
        %v4708 = vpop.f32.mrb[0].mxu0
        %v4709 = vpop.f32.mrb[0].mxu0
        %v4710 = vpop.f32.mrb[0].mxu0
        %4711 = vdwg.mxu0
        %v4712 = vpack.c.bf16 %v4500, %v4497
        %v4713 = vpack.c.bf16 %v4508, %v4505
        %v4714 = vpack.c.bf16 %v4513, %v4513
        %v4715 = vpack.c.bf16 %v4597, %v4594
        %v4716 = vpack.c.bf16 %v4605, %v4602
        %v4717 = vpack.c.bf16 %v4610, %v4610
        %v4719 = vsel %vm1306, %v4712, 0
        %v4722 = vsel %vm1306, %v4713, 0
        %v4725 = vsel %vm1306, %v4714, 0
        %v4728 = vsel %vm1306, %v4715, 0
        %v4731 = vsel %vm1306, %v4716, 0
        %v4734 = vsel %vm1306, %v4717, 0
        %4736 = vmatprep.subr.bf16.mxu0 0
        %4737 = vmatpush1.bf16.xpose.msra.mxu0 %v4728
        %4738 = vmatprep.subr.bf16.mxu0 0
        %4739 = vmatpush1.bf16.xpose.msra.mxu0 %v4731
        %4740 = vmatprep.subr.bf16.mxu0 0
        %4741 = vmatpush1.bf16.xpose.msra.mxu0 %v4734
        %4742 = vmatprep.subr.bf16.mxu0 0
        %4743 = vmatpush1.bf16.xpose.msra.mxu0 0
        %4744 = vmatprep.subr.bf16.mxu0 0
        %4745 = vmatpush1.bf16.xpose.msra.mxu0 0
        %4746 = vmatprep.subr.bf16.mxu0 0
        %4747 = vmatpush1.bf16.xpose.msra.mxu0 0
        %4748 = vmatprep.subr.bf16.mxu0 0
        %4749 = vmatpush1.bf16.xpose.msra.mxu0 0
        %4750 = vmatprep.subr.bf16.mxu0 0
        %4751 = vmatpush1.bf16.xpose.msra.mxu0 0
        %4752 = vmatprep.subr.bf16.mxu0 0
        %4753 = vmatpush1.bf16.xpose.msra.mxu0 0
        %4754 = vmatprep.subr.bf16.mxu0 0
        %4755 = vmatpush1.bf16.xpose.msra.mxu0 0
        %4756 = vmatprep.subr.bf16.mxu0 0
        %4757 = vmatpush1.bf16.xpose.msra.mxu0 0
        %4758 = vmatprep.subr.bf16.mxu0 0
        %4759 = vmatpush1.bf16.xpose.msra.mxu0 0
        %4760 = vmatprep.subr.bf16.mxu0 0
        %4761 = vmatpush1.bf16.xpose.msra.mxu0 0
        %4762 = vmatprep.subr.bf16.mxu0 0
        %4763 = vmatpush1.bf16.xpose.msra.mxu0 0
        %4764 = vmatprep.subr.bf16.mxu0 0
        %4765 = vmatpush1.bf16.xpose.msra.mxu0 0
        %4766 = vmatprep.subr.bf16.mxu0 0
        %4767 = vmatpush1.bf16.xpose.msra.mxu0 0
        %4768 = vmatprep.mubr.bf16.mxu0 0
        %4769 = vmatmul.mubr.bf16.gmra.mrb[0].mxu0 %v4719
        %v4770 = vpop.f32.mrb[0].mxu0
        %v4771 = vadd.f32 0.0, %v4770
        %v4772 = vpop.f32.mrb[0].mxu0
        %v4773 = vpop.f32.mrb[0].mxu0
        %v4774 = vadd.f32 0.0, %v4773
        %v4775 = vpop.f32.mrb[0].mxu0
        %4776 = vmatprep.mubr.bf16.mxu0 0
        %4777 = vmatmul.mubr.bf16.gmra.mrb[0].mxu0 %v4722
        %v4778 = vpop.f32.mrb[0].mxu0
        %v4779 = vadd.f32 0.0, %v4778
        %v4780 = vpop.f32.mrb[0].mxu0
        %v4781 = vpop.f32.mrb[0].mxu0
        %v4782 = vadd.f32 0.0, %v4781
        %v4783 = vpop.f32.mrb[0].mxu0
        %4784 = vmatprep.mubr.bf16.mxu0 0
        %4785 = vmatmul.mubr.bf16.gmra.mrb[0].mxu0 %v4725
        %v4786 = vpop.f32.mrb[0].mxu0
        %v4787 = vadd.f32 0.0, %v4786
        %v4788 = vpop.f32.mrb[0].mxu0
        %v4789 = vpop.f32.mrb[0].mxu0
        %v4790 = vpop.f32.mrb[0].mxu0
        %4791 = vdwg.mxu0
        %v4792 = vsel %vm1381, %v4771, -inf
        %4793 = vmax.xlane.f32.xlu0 %v4792
        %v4794 = vpop.xlane.xlu0 %4793
        %v4795 = vsel %vm1381, %v4774, -inf
        %4796 = vmax.xlane.f32.xlu0 %v4795
        %v4797 = vpop.xlane.xlu0 %4796
        %v4798 = vsel %vm1381, %v4779, -inf
        %4799 = vmax.xlane.f32.xlu0 %v4798
        %v4800 = vpop.xlane.xlu0 %4799
        %v4801 = vsel %vm1381, %v4782, -inf
        %4802 = vmax.xlane.f32.xlu0 %v4801
        %v4803 = vpop.xlane.xlu0 %4802
        %v4804 = vsel %vm1394, %v4787, -inf
        %4805 = vmax.xlane.f32.xlu0 %v4804
        %v4806 = vpop.xlane.xlu0 %4805
        %v4807 = vsub.f32 %v4771, %v4794
        %v4808 = vsub.f32 %v4774, %v4797
        %v4809 = vsub.f32 %v4779, %v4800
        %v4810 = vsub.f32 %v4782, %v4803
        %v4811 = vsub.f32 %v4787, %v4806
        %v4812 = vmul.f32 %v4807, 1.442695
        %v4813 = vpow.pop %v4812
        %v4814 = vmul.f32 %v4808, 1.442695
        %v4815 = vpow.pop %v4814
        %v4816 = vmul.f32 %v4809, 1.442695
        %v4817 = vpow.pop %v4816
        %v4818 = vmul.f32 %v4810, 1.442695
        %v4819 = vpow.pop %v4818
        %v4820 = vmul.f32 %v4811, 1.442695
        %v4821 = vpow.pop %v4820
        %v4822 = vsel %vm1381, %v4813, 0.0
        %4823 = vadd.xlane.f32.xlu0 %v4822
        %v4824 = vpop.xlane.xlu0 %4823
        %v4825 = vsel %vm1381, %v4815, 0.0
        %4826 = vadd.xlane.f32.xlu0 %v4825
        %v4827 = vpop.xlane.xlu0 %4826
        %v4828 = vsel %vm1381, %v4817, 0.0
        %4829 = vadd.xlane.f32.xlu0 %v4828
        %v4830 = vpop.xlane.xlu0 %4829
        %v4831 = vsel %vm1381, %v4819, 0.0
        %4832 = vadd.xlane.f32.xlu0 %v4831
        %v4833 = vpop.xlane.xlu0 %4832
        %v4834 = vsel %vm1394, %v4821, 0.0
        %4835 = vadd.xlane.f32.xlu0 %v4834
        %v4836 = vpop.xlane.xlu0 %4835
        %v4837 = vrcp.pop %v4824
        %v4838 = vrcp.pop %v4827
        %v4839 = vrcp.pop %v4830
        %v4840 = vrcp.pop %v4833
        %v4841 = vrcp.pop %v4836
        %v4842 = vmul.f32 %v4813, %v4837
        %v4843 = vmul.f32 %v4815, %v4838
        %v4844 = vmul.f32 %v4817, %v4839
        %v4845 = vmul.f32 %v4819, %v4840
        %v4846 = vmul.f32 %v4821, %v4841
        %v4847 = vpack.c.bf16 %v4843, %v4842
        %v4848 = vpack.c.bf16 %v4845, %v4844
        %v4849 = vpack.c.bf16 %v4846, %v4846
        %v4850 = vpack.c.bf16 %v4694, %v4691
        %v4851 = vpack.c.bf16 %v4702, %v4699
        %v4852 = vpack.c.bf16 %v4707, %v4707
        %v4854 = vsel %vm1381, %v4847, 0
        %v4857 = vsel %vm1381, %v4848, 0
        %v4860 = vsel %vm1381, %v4849, 0
        %v4863 = vand.u32 %v4852, %v1456
        %4865 = vmatprep.subr.bf16.mxu0 0
        %4866 = vmatpush1.bf16.msra.mxu0 %v4850
        %4867 = vmatprep.subr.bf16.mxu0 0
        %4868 = vmatpush1.bf16.msra.mxu0 %v4851
        %4869 = vmatprep.subr.bf16.mxu0 0
        %4870 = vmatpush1.bf16.msra.mxu0 %v4863
        %4871 = vmatprep.subr.bf16.mxu0 0
        %4872 = vmatpush1.bf16.msra.mxu0 0
        %4873 = vmatprep.subr.bf16.mxu0 0
        %4874 = vmatpush1.bf16.msra.mxu0 0
        %4875 = vmatprep.subr.bf16.mxu0 0
        %4876 = vmatpush1.bf16.msra.mxu0 0
        %4877 = vmatprep.subr.bf16.mxu0 0
        %4878 = vmatpush1.bf16.msra.mxu0 0
        %4879 = vmatprep.subr.bf16.mxu0 0
        %4880 = vmatpush1.bf16.msra.mxu0 0
        %4881 = vmatprep.subr.bf16.mxu0 0
        %4882 = vmatpush1.bf16.msra.mxu0 0
        %4883 = vmatprep.subr.bf16.mxu0 0
        %4884 = vmatpush1.bf16.msra.mxu0 0
        %4885 = vmatprep.subr.bf16.mxu0 0
        %4886 = vmatpush1.bf16.msra.mxu0 0
        %4887 = vmatprep.subr.bf16.mxu0 0
        %4888 = vmatpush1.bf16.msra.mxu0 0
        %4889 = vmatprep.subr.bf16.mxu0 0
        %4890 = vmatpush1.bf16.msra.mxu0 0
        %4891 = vmatprep.subr.bf16.mxu0 0
        %4892 = vmatpush1.bf16.msra.mxu0 0
        %4893 = vmatprep.subr.bf16.mxu0 0
        %4894 = vmatpush1.bf16.msra.mxu0 0
        %4895 = vmatprep.subr.bf16.mxu0 0
        %4896 = vmatpush1.bf16.msra.mxu0 0
        %4897 = vmatprep.mubr.bf16.mxu0 0
        %4898 = vmatmul.mubr.bf16.gmra.mrb[0].mxu0 %v4854
        %v4899 = vpop.f32.mrb[0].mxu0
        %v4900 = vadd.f32 0.0, %v4899
        %v4901 = vpop.f32.mrb[0].mxu0
        %v4902 = vpop.f32.mrb[0].mxu0
        %v4903 = vadd.f32 0.0, %v4902
        %v4904 = vpop.f32.mrb[0].mxu0
        %4905 = vmatprep.mubr.bf16.mxu0 0
        %4906 = vmatmul.mubr.bf16.gmra.mrb[0].mxu0 %v4857
        %v4907 = vpop.f32.mrb[0].mxu0
        %v4908 = vadd.f32 0.0, %v4907
        %v4909 = vpop.f32.mrb[0].mxu0
        %v4910 = vpop.f32.mrb[0].mxu0
        %v4911 = vadd.f32 0.0, %v4910
        %v4912 = vpop.f32.mrb[0].mxu0
        %4913 = vmatprep.mubr.bf16.mxu0 0
        %4914 = vmatmul.mubr.bf16.gmra.mrb[0].mxu0 %v4860
        %v4915 = vpop.f32.mrb[0].mxu0
        %v4916 = vadd.f32 0.0, %v4915
        %v4917 = vpop.f32.mrb[0].mxu0
        %v4918 = vpop.f32.mrb[0].mxu0
        %v4919 = vpop.f32.mrb[0].mxu0
        %4920 = vdwg.mxu0
        %v4921 = vpack.c.bf16 %v4903, %v4900
        %v4922 = vpack.c.bf16 %v4911, %v4908
        %v4923 = vpack.c.bf16 %v4916, %v4916
        %s4924 = scalar_lea.vmem %s13, 40
        %v4925 = vld [vmem:[%s4924] sm:$0xf]
        %v4926 = vld [vmem:[%s4924 + $0x4] sm:$0xf]
        %v4929 = vunpack.c.l.b16 %v4925
        %v4930 = vunpack.c.l.b16 %v4926
        %v4931 = vpack.c.b16 %v4930, %v4929
        %v4934 = vsel %vm1306, %v4921, 0
        %v4937 = vsel %vm1306, %v4922, 0
        %v4940 = vsel %vm1306, %v4923, 0
        %4942 = vmatprep.subr.bf16.mxu0 0
        %4943 = vmatpush1.bf16.msra.mxu0 %v4931
        %4944 = vmatprep.subr.bf16.mxu0 0
        %4945 = vmatpush1.bf16.msra.mxu0 0
        %4946 = vmatprep.subr.bf16.mxu0 0
        %4947 = vmatpush1.bf16.msra.mxu0 0
        %4948 = vmatprep.subr.bf16.mxu0 0
        %4949 = vmatpush1.bf16.msra.mxu0 0
        %4950 = vmatprep.subr.bf16.mxu0 0
        %4951 = vmatpush1.bf16.msra.mxu0 0
        %4952 = vmatprep.subr.bf16.mxu0 0
        %4953 = vmatpush1.bf16.msra.mxu0 0
        %4954 = vmatprep.subr.bf16.mxu0 0
        %4955 = vmatpush1.bf16.msra.mxu0 0
        %4956 = vmatprep.subr.bf16.mxu0 0
        %4957 = vmatpush1.bf16.msra.mxu0 0
        %4958 = vmatprep.subr.bf16.mxu0 0
        %4959 = vmatpush1.bf16.msra.mxu0 0
        %4960 = vmatprep.subr.bf16.mxu0 0
        %4961 = vmatpush1.bf16.msra.mxu0 0
        %4962 = vmatprep.subr.bf16.mxu0 0
        %4963 = vmatpush1.bf16.msra.mxu0 0
        %4964 = vmatprep.subr.bf16.mxu0 0
        %4965 = vmatpush1.bf16.msra.mxu0 0
        %4966 = vmatprep.subr.bf16.mxu0 0
        %4967 = vmatpush1.bf16.msra.mxu0 0
        %4968 = vmatprep.subr.bf16.mxu0 0
        %4969 = vmatpush1.bf16.msra.mxu0 0
        %4970 = vmatprep.subr.bf16.mxu0 0
        %4971 = vmatpush1.bf16.msra.mxu0 0
        %4972 = vmatprep.subr.bf16.mxu0 0
        %4973 = vmatpush1.bf16.msra.mxu0 0
        %4974 = vmatprep.mubr.bf16.mxu0 0
        %4975 = vmatmul.mubr.bf16.gmra.mrb[0].mxu0 %v4934
        %v4976 = vpop.f32.mrb[0].mxu0
        %v4977 = vadd.f32 0.0, %v4976
        %v4978 = vpop.f32.mrb[0].mxu0
        %v4979 = vpop.f32.mrb[0].mxu0
        %v4980 = vadd.f32 0.0, %v4979
        %v4981 = vpop.f32.mrb[0].mxu0
        %4982 = vmatprep.mubr.bf16.mxu0 0
        %4983 = vmatmul.mubr.bf16.gmra.mrb[0].mxu0 %v4937
        %v4984 = vpop.f32.mrb[0].mxu0
        %v4985 = vadd.f32 0.0, %v4984
        %v4986 = vpop.f32.mrb[0].mxu0
        %v4987 = vpop.f32.mrb[0].mxu0
        %v4988 = vadd.f32 0.0, %v4987
        %v4989 = vpop.f32.mrb[0].mxu0
        %4990 = vmatprep.mubr.bf16.mxu0 0
        %4991 = vmatmul.mubr.bf16.gmra.mrb[0].mxu0 %v4940
        %v4992 = vpop.f32.mrb[0].mxu0
        %v4993 = vadd.f32 0.0, %v4992
        %v4994 = vpop.f32.mrb[0].mxu0
        %v4995 = vpop.f32.mrb[0].mxu0
        %v4996 = vpop.f32.mrb[0].mxu0
        %4997 = vdwg.mxu0
        %v4998 = vadd.f32 %v4416, %v4977
        %v4999 = vadd.f32 %v4417, %v4980
        %v5000 = vadd.f32 %v4418, %v4985
        %v5001 = vadd.f32 %v4419, %v4988
        %v5002 = vadd.f32 %v4420, %v4993
        %s5003 = scalar_lea.vmem %s7, 192
        %v5004 = vld [vmem:[%s5003] sm:$0xf]
        %v5005 = vld [vmem:[%s5003 + $0x4] sm:$0xf]
        %v5006 = vld [vmem:[%s5003 + $0x8] sm:$0xf]
        %v5007 = vld [vmem:[%s5003 + $0xc] sm:$0xf]
        %v5008 = vld [vmem:[%s5003 + $0x10] sm:$0xf]
        %v5009 = vld [vmem:[%s5003 + $0x14] sm:$0xf]
        %v5010 = vld [vmem:[%s5003 + $0x18] sm:$0xf]
        %v5011 = vld [vmem:[%s5003 + $0x1c] sm:$0xf]
        %s5012 = scalar_lea.vmem %s8, 6
        %v5013 = vld [vmem:[%s5012] sm:$0x1]
        %v5015 = vlaneseq
        %v5016 = vshrl.u32 %v5015, 7
        %v5017 = vsub.s32 0, %v5016
        %v5018 = vrot.slane %v5013, %v5017
        %v5028 = vunpack.c.l.b16 %v5004
        %v5029 = vunpack.c.l.b16 %v5005
        %v5030 = vunpack.c.l.b16 %v5006
        %v5031 = vunpack.c.l.b16 %v5007
        %v5032 = vunpack.c.l.b16 %v5008
        %v5033 = vunpack.c.l.b16 %v5009
        %v5034 = vunpack.c.l.b16 %v5010
        %v5035 = vunpack.c.l.b16 %v5011
        %v5036 = vpack.c.b16 %v5029, %v5028
        %v5037 = vpack.c.b16 %v5031, %v5030
        %v5038 = vpack.c.b16 %v5033, %v5032
        %v5039 = vpack.c.b16 %v5035, %v5034
        %5044 = vmatprep.subr.bf16.mxu0 0
        %5045 = vmatpush1.bf16.msra.mxu0 %v5036
        %5046 = vmatprep.subr.bf16.mxu0 0
        %5047 = vmatpush1.bf16.msra.mxu0 %v5037
        %5048 = vmatprep.subr.bf16.mxu0 0
        %5049 = vmatpush1.bf16.msra.mxu0 %v5038
        %5050 = vmatprep.subr.bf16.mxu0 0
        %5051 = vmatpush1.bf16.msra.mxu0 %v5039
        %5052 = vmatprep.subr.bf16.mxu0 0
        %5053 = vmatpush1.bf16.msra.mxu0 0
        %5054 = vmatprep.subr.bf16.mxu0 0
        %5055 = vmatpush1.bf16.msra.mxu0 0
        %5056 = vmatprep.subr.bf16.mxu0 0
        %5057 = vmatpush1.bf16.msra.mxu0 0
        %5058 = vmatprep.subr.bf16.mxu0 0
        %5059 = vmatpush1.bf16.msra.mxu0 0
        %5060 = vmatprep.subr.bf16.mxu0 0
        %5061 = vmatpush1.bf16.msra.mxu0 0
        %5062 = vmatprep.subr.bf16.mxu0 0
        %5063 = vmatpush1.bf16.msra.mxu0 0
        %5064 = vmatprep.subr.bf16.mxu0 0
        %5065 = vmatpush1.bf16.msra.mxu0 0
        %5066 = vmatprep.subr.bf16.mxu0 0
        %5067 = vmatpush1.bf16.msra.mxu0 0
        %5068 = vmatprep.subr.bf16.mxu0 0
        %5069 = vmatpush1.bf16.msra.mxu0 0
        %5070 = vmatprep.subr.bf16.mxu0 0
        %5071 = vmatpush1.bf16.msra.mxu0 0
        %5072 = vmatprep.subr.bf16.mxu0 0
        %5073 = vmatpush1.bf16.msra.mxu0 0
        %5074 = vmatprep.subr.bf16.mxu0 0
        %5075 = vmatpush1.bf16.msra.mxu0 0
        %5076 = vmatprep.mubr.bf16.mxu0 0
        %5077 = vmatmul.mubr.bf16.gmra.mrb[0].mxu0 %v3872
        %v5078 = vpop.f32.mrb[0].mxu0
        %v5079 = vadd.f32 %v5018, %v5078
        %v5080 = vpop.f32.mrb[0].mxu0
        %v5081 = vpop.f32.mrb[0].mxu0
        %v5082 = vadd.f32 %v5018, %v5081
        %v5083 = vpop.f32.mrb[0].mxu0
        %5084 = vmatprep.mubr.bf16.mxu0 0
        %5085 = vmatmul.mubr.bf16.gmra.mrb[0].mxu0 %v3875
        %v5086 = vpop.f32.mrb[0].mxu0
        %v5087 = vadd.f32 %v5018, %v5086
        %v5088 = vpop.f32.mrb[0].mxu0
        %v5089 = vpop.f32.mrb[0].mxu0
        %v5090 = vadd.f32 %v5018, %v5089
        %v5091 = vpop.f32.mrb[0].mxu0
        %5092 = vmatprep.mubr.bf16.mxu0 0
        %5093 = vmatmul.mubr.bf16.gmra.mrb[0].mxu0 %v3878
        %v5094 = vpop.f32.mrb[0].mxu0
        %v5095 = vadd.f32 %v5018, %v5094
        %v5096 = vpop.f32.mrb[0].mxu0
        %v5097 = vpop.f32.mrb[0].mxu0
        %v5098 = vpop.f32.mrb[0].mxu0
        %5099 = vdwg.mxu0
        %s5100 = scalar_lea.vmem %s9, 192
        %v5101 = vld [vmem:[%s5100] sm:$0xf]
        %v5102 = vld [vmem:[%s5100 + $0x4] sm:$0xf]
        %v5103 = vld [vmem:[%s5100 + $0x8] sm:$0xf]
        %v5104 = vld [vmem:[%s5100 + $0xc] sm:$0xf]
        %v5105 = vld [vmem:[%s5100 + $0x10] sm:$0xf]
        %v5106 = vld [vmem:[%s5100 + $0x14] sm:$0xf]
        %v5107 = vld [vmem:[%s5100 + $0x18] sm:$0xf]
        %v5108 = vld [vmem:[%s5100 + $0x1c] sm:$0xf]
        %s5109 = scalar_lea.vmem %s10, 6
        %v5110 = vld [vmem:[%s5109] sm:$0x1]
        %v5112 = vlaneseq
        %v5113 = vshrl.u32 %v5112, 7
        %v5114 = vsub.s32 0, %v5113
        %v5115 = vrot.slane %v5110, %v5114
        %v5125 = vunpack.c.l.b16 %v5101
        %v5126 = vunpack.c.l.b16 %v5102
        %v5127 = vunpack.c.l.b16 %v5103
        %v5128 = vunpack.c.l.b16 %v5104
        %v5129 = vunpack.c.l.b16 %v5105
        %v5130 = vunpack.c.l.b16 %v5106
        %v5131 = vunpack.c.l.b16 %v5107
        %v5132 = vunpack.c.l.b16 %v5108
        %v5133 = vpack.c.b16 %v5126, %v5125
        %v5134 = vpack.c.b16 %v5128, %v5127
        %v5135 = vpack.c.b16 %v5130, %v5129
        %v5136 = vpack.c.b16 %v5132, %v5131
        %5141 = vmatprep.subr.bf16.mxu0 0
        %5142 = vmatpush1.bf16.msra.mxu0 %v5133
        %5143 = vmatprep.subr.bf16.mxu0 0
        %5144 = vmatpush1.bf16.msra.mxu0 %v5134
        %5145 = vmatprep.subr.bf16.mxu0 0
        %5146 = vmatpush1.bf16.msra.mxu0 %v5135
        %5147 = vmatprep.subr.bf16.mxu0 0
        %5148 = vmatpush1.bf16.msra.mxu0 %v5136
        %5149 = vmatprep.subr.bf16.mxu0 0
        %5150 = vmatpush1.bf16.msra.mxu0 0
        %5151 = vmatprep.subr.bf16.mxu0 0
        %5152 = vmatpush1.bf16.msra.mxu0 0
        %5153 = vmatprep.subr.bf16.mxu0 0
        %5154 = vmatpush1.bf16.msra.mxu0 0
        %5155 = vmatprep.subr.bf16.mxu0 0
        %5156 = vmatpush1.bf16.msra.mxu0 0
        %5157 = vmatprep.subr.bf16.mxu0 0
        %5158 = vmatpush1.bf16.msra.mxu0 0
        %5159 = vmatprep.subr.bf16.mxu0 0
        %5160 = vmatpush1.bf16.msra.mxu0 0
        %5161 = vmatprep.subr.bf16.mxu0 0
        %5162 = vmatpush1.bf16.msra.mxu0 0
        %5163 = vmatprep.subr.bf16.mxu0 0
        %5164 = vmatpush1.bf16.msra.mxu0 0
        %5165 = vmatprep.subr.bf16.mxu0 0
        %5166 = vmatpush1.bf16.msra.mxu0 0
        %5167 = vmatprep.subr.bf16.mxu0 0
        %5168 = vmatpush1.bf16.msra.mxu0 0
        %5169 = vmatprep.subr.bf16.mxu0 0
        %5170 = vmatpush1.bf16.msra.mxu0 0
        %5171 = vmatprep.subr.bf16.mxu0 0
        %5172 = vmatpush1.bf16.msra.mxu0 0
        %5173 = vmatprep.mubr.bf16.mxu0 0
        %5174 = vmatmul.mubr.bf16.gmra.mrb[0].mxu0 %v3872
        %v5175 = vpop.f32.mrb[0].mxu0
        %v5176 = vadd.f32 %v5115, %v5175
        %v5177 = vpop.f32.mrb[0].mxu0
        %v5178 = vpop.f32.mrb[0].mxu0
        %v5179 = vadd.f32 %v5115, %v5178
        %v5180 = vpop.f32.mrb[0].mxu0
        %5181 = vmatprep.mubr.bf16.mxu0 0
        %5182 = vmatmul.mubr.bf16.gmra.mrb[0].mxu0 %v3875
        %v5183 = vpop.f32.mrb[0].mxu0
        %v5184 = vadd.f32 %v5115, %v5183
        %v5185 = vpop.f32.mrb[0].mxu0
        %v5186 = vpop.f32.mrb[0].mxu0
        %v5187 = vadd.f32 %v5115, %v5186
        %v5188 = vpop.f32.mrb[0].mxu0
        %5189 = vmatprep.mubr.bf16.mxu0 0
        %5190 = vmatmul.mubr.bf16.gmra.mrb[0].mxu0 %v3878
        %v5191 = vpop.f32.mrb[0].mxu0
        %v5192 = vadd.f32 %v5115, %v5191
        %v5193 = vpop.f32.mrb[0].mxu0
        %v5194 = vpop.f32.mrb[0].mxu0
        %v5195 = vpop.f32.mrb[0].mxu0
        %5196 = vdwg.mxu0
        %s5197 = scalar_lea.vmem %s11, 192
        %v5198 = vld [vmem:[%s5197] sm:$0xf]
        %v5199 = vld [vmem:[%s5197 + $0x4] sm:$0xf]
        %v5200 = vld [vmem:[%s5197 + $0x8] sm:$0xf]
        %v5201 = vld [vmem:[%s5197 + $0xc] sm:$0xf]
        %v5202 = vld [vmem:[%s5197 + $0x10] sm:$0xf]
        %v5203 = vld [vmem:[%s5197 + $0x14] sm:$0xf]
        %v5204 = vld [vmem:[%s5197 + $0x18] sm:$0xf]
        %v5205 = vld [vmem:[%s5197 + $0x1c] sm:$0xf]
        %s5206 = scalar_lea.vmem %s12, 6
        %v5207 = vld [vmem:[%s5206] sm:$0x1]
        %v5209 = vlaneseq
        %v5210 = vshrl.u32 %v5209, 7
        %v5211 = vsub.s32 0, %v5210
        %v5212 = vrot.slane %v5207, %v5211
        %v5222 = vunpack.c.l.b16 %v5198
        %v5223 = vunpack.c.l.b16 %v5199
        %v5224 = vunpack.c.l.b16 %v5200
        %v5225 = vunpack.c.l.b16 %v5201
        %v5226 = vunpack.c.l.b16 %v5202
        %v5227 = vunpack.c.l.b16 %v5203
        %v5228 = vunpack.c.l.b16 %v5204
        %v5229 = vunpack.c.l.b16 %v5205
        %v5230 = vpack.c.b16 %v5223, %v5222
        %v5231 = vpack.c.b16 %v5225, %v5224
        %v5232 = vpack.c.b16 %v5227, %v5226
        %v5233 = vpack.c.b16 %v5229, %v5228
        %5238 = vmatprep.subr.bf16.mxu0 0
        %5239 = vmatpush1.bf16.msra.mxu0 %v5230
        %5240 = vmatprep.subr.bf16.mxu0 0
        %5241 = vmatpush1.bf16.msra.mxu0 %v5231
        %5242 = vmatprep.subr.bf16.mxu0 0
        %5243 = vmatpush1.bf16.msra.mxu0 %v5232
        %5244 = vmatprep.subr.bf16.mxu0 0
        %5245 = vmatpush1.bf16.msra.mxu0 %v5233
        %5246 = vmatprep.subr.bf16.mxu0 0
        %5247 = vmatpush1.bf16.msra.mxu0 0
        %5248 = vmatprep.subr.bf16.mxu0 0
        %5249 = vmatpush1.bf16.msra.mxu0 0
        %5250 = vmatprep.subr.bf16.mxu0 0
        %5251 = vmatpush1.bf16.msra.mxu0 0
        %5252 = vmatprep.subr.bf16.mxu0 0
        %5253 = vmatpush1.bf16.msra.mxu0 0
        %5254 = vmatprep.subr.bf16.mxu0 0
        %5255 = vmatpush1.bf16.msra.mxu0 0
        %5256 = vmatprep.subr.bf16.mxu0 0
        %5257 = vmatpush1.bf16.msra.mxu0 0
        %5258 = vmatprep.subr.bf16.mxu0 0
        %5259 = vmatpush1.bf16.msra.mxu0 0
        %5260 = vmatprep.subr.bf16.mxu0 0
        %5261 = vmatpush1.bf16.msra.mxu0 0
        %5262 = vmatprep.subr.bf16.mxu0 0
        %5263 = vmatpush1.bf16.msra.mxu0 0
        %5264 = vmatprep.subr.bf16.mxu0 0
        %5265 = vmatpush1.bf16.msra.mxu0 0
        %5266 = vmatprep.subr.bf16.mxu0 0
        %5267 = vmatpush1.bf16.msra.mxu0 0
        %5268 = vmatprep.subr.bf16.mxu0 0
        %5269 = vmatpush1.bf16.msra.mxu0 0
        %5270 = vmatprep.mubr.bf16.mxu0 0
        %5271 = vmatmul.mubr.bf16.gmra.mrb[0].mxu0 %v3872
        %v5272 = vpop.f32.mrb[0].mxu0
        %v5273 = vadd.f32 %v5212, %v5272
        %v5274 = vpop.f32.mrb[0].mxu0
        %v5275 = vpop.f32.mrb[0].mxu0
        %v5276 = vadd.f32 %v5212, %v5275
        %v5277 = vpop.f32.mrb[0].mxu0
        %5278 = vmatprep.mubr.bf16.mxu0 0
        %5279 = vmatmul.mubr.bf16.gmra.mrb[0].mxu0 %v3875
        %v5280 = vpop.f32.mrb[0].mxu0
        %v5281 = vadd.f32 %v5212, %v5280
        %v5282 = vpop.f32.mrb[0].mxu0
        %v5283 = vpop.f32.mrb[0].mxu0
        %v5284 = vadd.f32 %v5212, %v5283
        %v5285 = vpop.f32.mrb[0].mxu0
        %5286 = vmatprep.mubr.bf16.mxu0 0
        %5287 = vmatmul.mubr.bf16.gmra.mrb[0].mxu0 %v3878
        %v5288 = vpop.f32.mrb[0].mxu0
        %v5289 = vadd.f32 %v5212, %v5288
        %v5290 = vpop.f32.mrb[0].mxu0
        %v5291 = vpop.f32.mrb[0].mxu0
        %v5292 = vpop.f32.mrb[0].mxu0
        %5293 = vdwg.mxu0
        %v5294 = vpack.c.bf16 %v5082, %v5079
        %v5295 = vpack.c.bf16 %v5090, %v5087
        %v5296 = vpack.c.bf16 %v5095, %v5095
        %v5297 = vpack.c.bf16 %v5179, %v5176
        %v5298 = vpack.c.bf16 %v5187, %v5184
        %v5299 = vpack.c.bf16 %v5192, %v5192
        %v5301 = vsel %vm1306, %v5294, 0
        %v5304 = vsel %vm1306, %v5295, 0
        %v5307 = vsel %vm1306, %v5296, 0
        %v5310 = vsel %vm1306, %v5297, 0
        %v5313 = vsel %vm1306, %v5298, 0
        %v5316 = vsel %vm1306, %v5299, 0
        %5318 = vmatprep.subr.bf16.mxu0 0
        %5319 = vmatpush1.bf16.xpose.msra.mxu0 %v5310
        %5320 = vmatprep.subr.bf16.mxu0 0
        %5321 = vmatpush1.bf16.xpose.msra.mxu0 %v5313
        %5322 = vmatprep.subr.bf16.mxu0 0
        %5323 = vmatpush1.bf16.xpose.msra.mxu0 %v5316
        %5324 = vmatprep.subr.bf16.mxu0 0
        %5325 = vmatpush1.bf16.xpose.msra.mxu0 0
        %5326 = vmatprep.subr.bf16.mxu0 0
        %5327 = vmatpush1.bf16.xpose.msra.mxu0 0
        %5328 = vmatprep.subr.bf16.mxu0 0
        %5329 = vmatpush1.bf16.xpose.msra.mxu0 0
        %5330 = vmatprep.subr.bf16.mxu0 0
        %5331 = vmatpush1.bf16.xpose.msra.mxu0 0
        %5332 = vmatprep.subr.bf16.mxu0 0
        %5333 = vmatpush1.bf16.xpose.msra.mxu0 0
        %5334 = vmatprep.subr.bf16.mxu0 0
        %5335 = vmatpush1.bf16.xpose.msra.mxu0 0
        %5336 = vmatprep.subr.bf16.mxu0 0
        %5337 = vmatpush1.bf16.xpose.msra.mxu0 0
        %5338 = vmatprep.subr.bf16.mxu0 0
        %5339 = vmatpush1.bf16.xpose.msra.mxu0 0
        %5340 = vmatprep.subr.bf16.mxu0 0
        %5341 = vmatpush1.bf16.xpose.msra.mxu0 0
        %5342 = vmatprep.subr.bf16.mxu0 0
        %5343 = vmatpush1.bf16.xpose.msra.mxu0 0
        %5344 = vmatprep.subr.bf16.mxu0 0
        %5345 = vmatpush1.bf16.xpose.msra.mxu0 0
        %5346 = vmatprep.subr.bf16.mxu0 0
        %5347 = vmatpush1.bf16.xpose.msra.mxu0 0
        %5348 = vmatprep.subr.bf16.mxu0 0
        %5349 = vmatpush1.bf16.xpose.msra.mxu0 0
        %5350 = vmatprep.mubr.bf16.mxu0 0
        %5351 = vmatmul.mubr.bf16.gmra.mrb[0].mxu0 %v5301
        %v5352 = vpop.f32.mrb[0].mxu0
        %v5353 = vadd.f32 0.0, %v5352
        %v5354 = vpop.f32.mrb[0].mxu0
        %v5355 = vpop.f32.mrb[0].mxu0
        %v5356 = vadd.f32 0.0, %v5355
        %v5357 = vpop.f32.mrb[0].mxu0
        %5358 = vmatprep.mubr.bf16.mxu0 0
        %5359 = vmatmul.mubr.bf16.gmra.mrb[0].mxu0 %v5304
        %v5360 = vpop.f32.mrb[0].mxu0
        %v5361 = vadd.f32 0.0, %v5360
        %v5362 = vpop.f32.mrb[0].mxu0
        %v5363 = vpop.f32.mrb[0].mxu0
        %v5364 = vadd.f32 0.0, %v5363
        %v5365 = vpop.f32.mrb[0].mxu0
        %5366 = vmatprep.mubr.bf16.mxu0 0
        %5367 = vmatmul.mubr.bf16.gmra.mrb[0].mxu0 %v5307
        %v5368 = vpop.f32.mrb[0].mxu0
        %v5369 = vadd.f32 0.0, %v5368
        %v5370 = vpop.f32.mrb[0].mxu0
        %v5371 = vpop.f32.mrb[0].mxu0
        %v5372 = vpop.f32.mrb[0].mxu0
        %5373 = vdwg.mxu0
        %v5374 = vsel %vm1381, %v5353, -inf
        %5375 = vmax.xlane.f32.xlu0 %v5374
        %v5376 = vpop.xlane.xlu0 %5375
        %v5377 = vsel %vm1381, %v5356, -inf
        %5378 = vmax.xlane.f32.xlu0 %v5377
        %v5379 = vpop.xlane.xlu0 %5378
        %v5380 = vsel %vm1381, %v5361, -inf
        %5381 = vmax.xlane.f32.xlu0 %v5380
        %v5382 = vpop.xlane.xlu0 %5381
        %v5383 = vsel %vm1381, %v5364, -inf
        %5384 = vmax.xlane.f32.xlu0 %v5383
        %v5385 = vpop.xlane.xlu0 %5384
        %v5386 = vsel %vm1394, %v5369, -inf
        %5387 = vmax.xlane.f32.xlu0 %v5386
        %v5388 = vpop.xlane.xlu0 %5387
        %v5389 = vsub.f32 %v5353, %v5376
        %v5390 = vsub.f32 %v5356, %v5379
        %v5391 = vsub.f32 %v5361, %v5382
        %v5392 = vsub.f32 %v5364, %v5385
        %v5393 = vsub.f32 %v5369, %v5388
        %v5394 = vmul.f32 %v5389, 1.442695
        %v5395 = vpow.pop %v5394
        %v5396 = vmul.f32 %v5390, 1.442695
        %v5397 = vpow.pop %v5396
        %v5398 = vmul.f32 %v5391, 1.442695
        %v5399 = vpow.pop %v5398
        %v5400 = vmul.f32 %v5392, 1.442695
        %v5401 = vpow.pop %v5400
        %v5402 = vmul.f32 %v5393, 1.442695
        %v5403 = vpow.pop %v5402
        %v5404 = vsel %vm1381, %v5395, 0.0
        %5405 = vadd.xlane.f32.xlu0 %v5404
        %v5406 = vpop.xlane.xlu0 %5405
        %v5407 = vsel %vm1381, %v5397, 0.0
        %5408 = vadd.xlane.f32.xlu0 %v5407
        %v5409 = vpop.xlane.xlu0 %5408
        %v5410 = vsel %vm1381, %v5399, 0.0
        %5411 = vadd.xlane.f32.xlu0 %v5410
        %v5412 = vpop.xlane.xlu0 %5411
        %v5413 = vsel %vm1381, %v5401, 0.0
        %5414 = vadd.xlane.f32.xlu0 %v5413
        %v5415 = vpop.xlane.xlu0 %5414
        %v5416 = vsel %vm1394, %v5403, 0.0
        %5417 = vadd.xlane.f32.xlu0 %v5416
        %v5418 = vpop.xlane.xlu0 %5417
        %v5419 = vrcp.pop %v5406
        %v5420 = vrcp.pop %v5409
        %v5421 = vrcp.pop %v5412
        %v5422 = vrcp.pop %v5415
        %v5423 = vrcp.pop %v5418
        %v5424 = vmul.f32 %v5395, %v5419
        %v5425 = vmul.f32 %v5397, %v5420
        %v5426 = vmul.f32 %v5399, %v5421
        %v5427 = vmul.f32 %v5401, %v5422
        %v5428 = vmul.f32 %v5403, %v5423
        %v5429 = vpack.c.bf16 %v5425, %v5424
        %v5430 = vpack.c.bf16 %v5427, %v5426
        %v5431 = vpack.c.bf16 %v5428, %v5428
        %v5432 = vpack.c.bf16 %v5276, %v5273
        %v5433 = vpack.c.bf16 %v5284, %v5281
        %v5434 = vpack.c.bf16 %v5289, %v5289
        %v5436 = vsel %vm1381, %v5429, 0
        %v5439 = vsel %vm1381, %v5430, 0
        %v5442 = vsel %vm1381, %v5431, 0
        %v5445 = vand.u32 %v5434, %v1456
        %5447 = vmatprep.subr.bf16.mxu0 0
        %5448 = vmatpush1.bf16.msra.mxu0 %v5432
        %5449 = vmatprep.subr.bf16.mxu0 0
        %5450 = vmatpush1.bf16.msra.mxu0 %v5433
        %5451 = vmatprep.subr.bf16.mxu0 0
        %5452 = vmatpush1.bf16.msra.mxu0 %v5445
        %5453 = vmatprep.subr.bf16.mxu0 0
        %5454 = vmatpush1.bf16.msra.mxu0 0
        %5455 = vmatprep.subr.bf16.mxu0 0
        %5456 = vmatpush1.bf16.msra.mxu0 0
        %5457 = vmatprep.subr.bf16.mxu0 0
        %5458 = vmatpush1.bf16.msra.mxu0 0
        %5459 = vmatprep.subr.bf16.mxu0 0
        %5460 = vmatpush1.bf16.msra.mxu0 0
        %5461 = vmatprep.subr.bf16.mxu0 0
        %5462 = vmatpush1.bf16.msra.mxu0 0
        %5463 = vmatprep.subr.bf16.mxu0 0
        %5464 = vmatpush1.bf16.msra.mxu0 0
        %5465 = vmatprep.subr.bf16.mxu0 0
        %5466 = vmatpush1.bf16.msra.mxu0 0
        %5467 = vmatprep.subr.bf16.mxu0 0
        %5468 = vmatpush1.bf16.msra.mxu0 0
        %5469 = vmatprep.subr.bf16.mxu0 0
        %5470 = vmatpush1.bf16.msra.mxu0 0
        %5471 = vmatprep.subr.bf16.mxu0 0
        %5472 = vmatpush1.bf16.msra.mxu0 0
        %5473 = vmatprep.subr.bf16.mxu0 0
        %5474 = vmatpush1.bf16.msra.mxu0 0
        %5475 = vmatprep.subr.bf16.mxu0 0
        %5476 = vmatpush1.bf16.msra.mxu0 0
        %5477 = vmatprep.subr.bf16.mxu0 0
        %5478 = vmatpush1.bf16.msra.mxu0 0
        %5479 = vmatprep.mubr.bf16.mxu0 0
        %5480 = vmatmul.mubr.bf16.gmra.mrb[0].mxu0 %v5436
        %v5481 = vpop.f32.mrb[0].mxu0
        %v5482 = vadd.f32 0.0, %v5481
        %v5483 = vpop.f32.mrb[0].mxu0
        %v5484 = vpop.f32.mrb[0].mxu0
        %v5485 = vadd.f32 0.0, %v5484
        %v5486 = vpop.f32.mrb[0].mxu0
        %5487 = vmatprep.mubr.bf16.mxu0 0
        %5488 = vmatmul.mubr.bf16.gmra.mrb[0].mxu0 %v5439
        %v5489 = vpop.f32.mrb[0].mxu0
        %v5490 = vadd.f32 0.0, %v5489
        %v5491 = vpop.f32.mrb[0].mxu0
        %v5492 = vpop.f32.mrb[0].mxu0
        %v5493 = vadd.f32 0.0, %v5492
        %v5494 = vpop.f32.mrb[0].mxu0
        %5495 = vmatprep.mubr.bf16.mxu0 0
        %5496 = vmatmul.mubr.bf16.gmra.mrb[0].mxu0 %v5442
        %v5497 = vpop.f32.mrb[0].mxu0
        %v5498 = vadd.f32 0.0, %v5497
        %v5499 = vpop.f32.mrb[0].mxu0
        %v5500 = vpop.f32.mrb[0].mxu0
        %v5501 = vpop.f32.mrb[0].mxu0
        %5502 = vdwg.mxu0
        %v5503 = vpack.c.bf16 %v5485, %v5482
        %v5504 = vpack.c.bf16 %v5493, %v5490
        %v5505 = vpack.c.bf16 %v5498, %v5498
        %s5506 = scalar_lea.vmem %s13, 48
        %v5507 = vld [vmem:[%s5506] sm:$0xf]
        %v5508 = vld [vmem:[%s5506 + $0x4] sm:$0xf]
        %v5511 = vunpack.c.l.b16 %v5507
        %v5512 = vunpack.c.l.b16 %v5508
        %v5513 = vpack.c.b16 %v5512, %v5511
        %v5516 = vsel %vm1306, %v5503, 0
        %v5519 = vsel %vm1306, %v5504, 0
        %v5522 = vsel %vm1306, %v5505, 0
        %5524 = vmatprep.subr.bf16.mxu0 0
        %5525 = vmatpush1.bf16.msra.mxu0 %v5513
        %5526 = vmatprep.subr.bf16.mxu0 0
        %5527 = vmatpush1.bf16.msra.mxu0 0
        %5528 = vmatprep.subr.bf16.mxu0 0
        %5529 = vmatpush1.bf16.msra.mxu0 0
        %5530 = vmatprep.subr.bf16.mxu0 0
        %5531 = vmatpush1.bf16.msra.mxu0 0
        %5532 = vmatprep.subr.bf16.mxu0 0
        %5533 = vmatpush1.bf16.msra.mxu0 0
        %5534 = vmatprep.subr.bf16.mxu0 0
        %5535 = vmatpush1.bf16.msra.mxu0 0
        %5536 = vmatprep.subr.bf16.mxu0 0
        %5537 = vmatpush1.bf16.msra.mxu0 0
        %5538 = vmatprep.subr.bf16.mxu0 0
        %5539 = vmatpush1.bf16.msra.mxu0 0
        %5540 = vmatprep.subr.bf16.mxu0 0
        %5541 = vmatpush1.bf16.msra.mxu0 0
        %5542 = vmatprep.subr.bf16.mxu0 0
        %5543 = vmatpush1.bf16.msra.mxu0 0
        %5544 = vmatprep.subr.bf16.mxu0 0
        %5545 = vmatpush1.bf16.msra.mxu0 0
        %5546 = vmatprep.subr.bf16.mxu0 0
        %5547 = vmatpush1.bf16.msra.mxu0 0
        %5548 = vmatprep.subr.bf16.mxu0 0
        %5549 = vmatpush1.bf16.msra.mxu0 0
        %5550 = vmatprep.subr.bf16.mxu0 0
        %5551 = vmatpush1.bf16.msra.mxu0 0
        %5552 = vmatprep.subr.bf16.mxu0 0
        %5553 = vmatpush1.bf16.msra.mxu0 0
        %5554 = vmatprep.subr.bf16.mxu0 0
        %5555 = vmatpush1.bf16.msra.mxu0 0
        %5556 = vmatprep.mubr.bf16.mxu0 0
        %5557 = vmatmul.mubr.bf16.gmra.mrb[0].mxu0 %v5516
        %v5558 = vpop.f32.mrb[0].mxu0
        %v5559 = vadd.f32 0.0, %v5558
        %v5560 = vpop.f32.mrb[0].mxu0
        %v5561 = vpop.f32.mrb[0].mxu0
        %v5562 = vadd.f32 0.0, %v5561
        %v5563 = vpop.f32.mrb[0].mxu0
        %5564 = vmatprep.mubr.bf16.mxu0 0
        %5565 = vmatmul.mubr.bf16.gmra.mrb[0].mxu0 %v5519
        %v5566 = vpop.f32.mrb[0].mxu0
        %v5567 = vadd.f32 0.0, %v5566
        %v5568 = vpop.f32.mrb[0].mxu0
        %v5569 = vpop.f32.mrb[0].mxu0
        %v5570 = vadd.f32 0.0, %v5569
        %v5571 = vpop.f32.mrb[0].mxu0
        %5572 = vmatprep.mubr.bf16.mxu0 0
        %5573 = vmatmul.mubr.bf16.gmra.mrb[0].mxu0 %v5522
        %v5574 = vpop.f32.mrb[0].mxu0
        %v5575 = vadd.f32 0.0, %v5574
        %v5576 = vpop.f32.mrb[0].mxu0
        %v5577 = vpop.f32.mrb[0].mxu0
        %v5578 = vpop.f32.mrb[0].mxu0
        %5579 = vdwg.mxu0
        %v5580 = vadd.f32 %v4998, %v5559
        %v5581 = vadd.f32 %v4999, %v5562
        %v5582 = vadd.f32 %v5000, %v5567
        %v5583 = vadd.f32 %v5001, %v5570
        %v5584 = vadd.f32 %v5002, %v5575
        %s5585 = scalar_lea.vmem %s7, 224
        %v5586 = vld [vmem:[%s5585] sm:$0xf]
        %v5587 = vld [vmem:[%s5585 + $0x4] sm:$0xf]
        %v5588 = vld [vmem:[%s5585 + $0x8] sm:$0xf]
        %v5589 = vld [vmem:[%s5585 + $0xc] sm:$0xf]
        %v5590 = vld [vmem:[%s5585 + $0x10] sm:$0xf]
        %v5591 = vld [vmem:[%s5585 + $0x14] sm:$0xf]
        %v5592 = vld [vmem:[%s5585 + $0x18] sm:$0xf]
        %v5593 = vld [vmem:[%s5585 + $0x1c] sm:$0xf]
        %s5594 = scalar_lea.vmem %s8, 7
        %v5595 = vld [vmem:[%s5594] sm:$0x1]
        %v5597 = vlaneseq
        %v5598 = vshrl.u32 %v5597, 7
        %v5599 = vsub.s32 0, %v5598
        %v5600 = vrot.slane %v5595, %v5599
        %v5610 = vunpack.c.l.b16 %v5586
        %v5611 = vunpack.c.l.b16 %v5587
        %v5612 = vunpack.c.l.b16 %v5588
        %v5613 = vunpack.c.l.b16 %v5589
        %v5614 = vunpack.c.l.b16 %v5590
        %v5615 = vunpack.c.l.b16 %v5591
        %v5616 = vunpack.c.l.b16 %v5592
        %v5617 = vunpack.c.l.b16 %v5593
        %v5618 = vpack.c.b16 %v5611, %v5610
        %v5619 = vpack.c.b16 %v5613, %v5612
        %v5620 = vpack.c.b16 %v5615, %v5614
        %v5621 = vpack.c.b16 %v5617, %v5616
        %5626 = vmatprep.subr.bf16.mxu0 0
        %5627 = vmatpush1.bf16.msra.mxu0 %v5618
        %5628 = vmatprep.subr.bf16.mxu0 0
        %5629 = vmatpush1.bf16.msra.mxu0 %v5619
        %5630 = vmatprep.subr.bf16.mxu0 0
        %5631 = vmatpush1.bf16.msra.mxu0 %v5620
        %5632 = vmatprep.subr.bf16.mxu0 0
        %5633 = vmatpush1.bf16.msra.mxu0 %v5621
        %5634 = vmatprep.subr.bf16.mxu0 0
        %5635 = vmatpush1.bf16.msra.mxu0 0
        %5636 = vmatprep.subr.bf16.mxu0 0
        %5637 = vmatpush1.bf16.msra.mxu0 0
        %5638 = vmatprep.subr.bf16.mxu0 0
        %5639 = vmatpush1.bf16.msra.mxu0 0
        %5640 = vmatprep.subr.bf16.mxu0 0
        %5641 = vmatpush1.bf16.msra.mxu0 0
        %5642 = vmatprep.subr.bf16.mxu0 0
        %5643 = vmatpush1.bf16.msra.mxu0 0
        %5644 = vmatprep.subr.bf16.mxu0 0
        %5645 = vmatpush1.bf16.msra.mxu0 0
        %5646 = vmatprep.subr.bf16.mxu0 0
        %5647 = vmatpush1.bf16.msra.mxu0 0
        %5648 = vmatprep.subr.bf16.mxu0 0
        %5649 = vmatpush1.bf16.msra.mxu0 0
        %5650 = vmatprep.subr.bf16.mxu0 0
        %5651 = vmatpush1.bf16.msra.mxu0 0
        %5652 = vmatprep.subr.bf16.mxu0 0
        %5653 = vmatpush1.bf16.msra.mxu0 0
        %5654 = vmatprep.subr.bf16.mxu0 0
        %5655 = vmatpush1.bf16.msra.mxu0 0
        %5656 = vmatprep.subr.bf16.mxu0 0
        %5657 = vmatpush1.bf16.msra.mxu0 0
        %5658 = vmatprep.mubr.bf16.mxu0 0
        %5659 = vmatmul.mubr.bf16.gmra.mrb[0].mxu0 %v3872
        %v5660 = vpop.f32.mrb[0].mxu0
        %v5661 = vadd.f32 %v5600, %v5660
        %v5662 = vpop.f32.mrb[0].mxu0
        %v5663 = vpop.f32.mrb[0].mxu0
        %v5664 = vadd.f32 %v5600, %v5663
        %v5665 = vpop.f32.mrb[0].mxu0
        %5666 = vmatprep.mubr.bf16.mxu0 0
        %5667 = vmatmul.mubr.bf16.gmra.mrb[0].mxu0 %v3875
        %v5668 = vpop.f32.mrb[0].mxu0
        %v5669 = vadd.f32 %v5600, %v5668
        %v5670 = vpop.f32.mrb[0].mxu0
        %v5671 = vpop.f32.mrb[0].mxu0
        %v5672 = vadd.f32 %v5600, %v5671
        %v5673 = vpop.f32.mrb[0].mxu0
        %5674 = vmatprep.mubr.bf16.mxu0 0
        %5675 = vmatmul.mubr.bf16.gmra.mrb[0].mxu0 %v3878
        %v5676 = vpop.f32.mrb[0].mxu0
        %v5677 = vadd.f32 %v5600, %v5676
        %v5678 = vpop.f32.mrb[0].mxu0
        %v5679 = vpop.f32.mrb[0].mxu0
        %v5680 = vpop.f32.mrb[0].mxu0
        %5681 = vdwg.mxu0
        %s5682 = scalar_lea.vmem %s9, 224
        %v5683 = vld [vmem:[%s5682] sm:$0xf]
        %v5684 = vld [vmem:[%s5682 + $0x4] sm:$0xf]
        %v5685 = vld [vmem:[%s5682 + $0x8] sm:$0xf]
        %v5686 = vld [vmem:[%s5682 + $0xc] sm:$0xf]
        %v5687 = vld [vmem:[%s5682 + $0x10] sm:$0xf]
        %v5688 = vld [vmem:[%s5682 + $0x14] sm:$0xf]
        %v5689 = vld [vmem:[%s5682 + $0x18] sm:$0xf]
        %v5690 = vld [vmem:[%s5682 + $0x1c] sm:$0xf]
        %s5691 = scalar_lea.vmem %s10, 7
        %v5692 = vld [vmem:[%s5691] sm:$0x1]
        %v5694 = vlaneseq
        %v5695 = vshrl.u32 %v5694, 7
        %v5696 = vsub.s32 0, %v5695
        %v5697 = vrot.slane %v5692, %v5696
        %v5707 = vunpack.c.l.b16 %v5683
        %v5708 = vunpack.c.l.b16 %v5684
        %v5709 = vunpack.c.l.b16 %v5685
        %v5710 = vunpack.c.l.b16 %v5686
        %v5711 = vunpack.c.l.b16 %v5687
        %v5712 = vunpack.c.l.b16 %v5688
        %v5713 = vunpack.c.l.b16 %v5689
        %v5714 = vunpack.c.l.b16 %v5690
        %v5715 = vpack.c.b16 %v5708, %v5707
        %v5716 = vpack.c.b16 %v5710, %v5709
        %v5717 = vpack.c.b16 %v5712, %v5711
        %v5718 = vpack.c.b16 %v5714, %v5713
        %5723 = vmatprep.subr.bf16.mxu0 0
        %5724 = vmatpush1.bf16.msra.mxu0 %v5715
        %5725 = vmatprep.subr.bf16.mxu0 0
        %5726 = vmatpush1.bf16.msra.mxu0 %v5716
        %5727 = vmatprep.subr.bf16.mxu0 0
        %5728 = vmatpush1.bf16.msra.mxu0 %v5717
        %5729 = vmatprep.subr.bf16.mxu0 0
        %5730 = vmatpush1.bf16.msra.mxu0 %v5718
        %5731 = vmatprep.subr.bf16.mxu0 0
        %5732 = vmatpush1.bf16.msra.mxu0 0
        %5733 = vmatprep.subr.bf16.mxu0 0
        %5734 = vmatpush1.bf16.msra.mxu0 0
        %5735 = vmatprep.subr.bf16.mxu0 0
        %5736 = vmatpush1.bf16.msra.mxu0 0
        %5737 = vmatprep.subr.bf16.mxu0 0
        %5738 = vmatpush1.bf16.msra.mxu0 0
        %5739 = vmatprep.subr.bf16.mxu0 0
        %5740 = vmatpush1.bf16.msra.mxu0 0
        %5741 = vmatprep.subr.bf16.mxu0 0
        %5742 = vmatpush1.bf16.msra.mxu0 0
        %5743 = vmatprep.subr.bf16.mxu0 0
        %5744 = vmatpush1.bf16.msra.mxu0 0
        %5745 = vmatprep.subr.bf16.mxu0 0
        %5746 = vmatpush1.bf16.msra.mxu0 0
        %5747 = vmatprep.subr.bf16.mxu0 0
        %5748 = vmatpush1.bf16.msra.mxu0 0
        %5749 = vmatprep.subr.bf16.mxu0 0
        %5750 = vmatpush1.bf16.msra.mxu0 0
        %5751 = vmatprep.subr.bf16.mxu0 0
        %5752 = vmatpush1.bf16.msra.mxu0 0
        %5753 = vmatprep.subr.bf16.mxu0 0
        %5754 = vmatpush1.bf16.msra.mxu0 0
        %5755 = vmatprep.mubr.bf16.mxu0 0
        %5756 = vmatmul.mubr.bf16.gmra.mrb[0].mxu0 %v3872
        %v5757 = vpop.f32.mrb[0].mxu0
        %v5758 = vadd.f32 %v5697, %v5757
        %v5759 = vpop.f32.mrb[0].mxu0
        %v5760 = vpop.f32.mrb[0].mxu0
        %v5761 = vadd.f32 %v5697, %v5760
        %v5762 = vpop.f32.mrb[0].mxu0
        %5763 = vmatprep.mubr.bf16.mxu0 0
        %5764 = vmatmul.mubr.bf16.gmra.mrb[0].mxu0 %v3875
        %v5765 = vpop.f32.mrb[0].mxu0
        %v5766 = vadd.f32 %v5697, %v5765
        %v5767 = vpop.f32.mrb[0].mxu0
        %v5768 = vpop.f32.mrb[0].mxu0
        %v5769 = vadd.f32 %v5697, %v5768
        %v5770 = vpop.f32.mrb[0].mxu0
        %5771 = vmatprep.mubr.bf16.mxu0 0
        %5772 = vmatmul.mubr.bf16.gmra.mrb[0].mxu0 %v3878
        %v5773 = vpop.f32.mrb[0].mxu0
        %v5774 = vadd.f32 %v5697, %v5773
        %v5775 = vpop.f32.mrb[0].mxu0
        %v5776 = vpop.f32.mrb[0].mxu0
        %v5777 = vpop.f32.mrb[0].mxu0
        %5778 = vdwg.mxu0
        %s5779 = scalar_lea.vmem %s11, 224
        %v5780 = vld [vmem:[%s5779] sm:$0xf]
        %v5781 = vld [vmem:[%s5779 + $0x4] sm:$0xf]
        %v5782 = vld [vmem:[%s5779 + $0x8] sm:$0xf]
        %v5783 = vld [vmem:[%s5779 + $0xc] sm:$0xf]
        %v5784 = vld [vmem:[%s5779 + $0x10] sm:$0xf]
        %v5785 = vld [vmem:[%s5779 + $0x14] sm:$0xf]
        %v5786 = vld [vmem:[%s5779 + $0x18] sm:$0xf]
        %v5787 = vld [vmem:[%s5779 + $0x1c] sm:$0xf]
        %s5788 = scalar_lea.vmem %s12, 7
        %v5789 = vld [vmem:[%s5788] sm:$0x1]
        %v5791 = vlaneseq
        %v5792 = vshrl.u32 %v5791, 7
        %v5793 = vsub.s32 0, %v5792
        %v5794 = vrot.slane %v5789, %v5793
        %v5804 = vunpack.c.l.b16 %v5780
        %v5805 = vunpack.c.l.b16 %v5781
        %v5806 = vunpack.c.l.b16 %v5782
        %v5807 = vunpack.c.l.b16 %v5783
        %v5808 = vunpack.c.l.b16 %v5784
        %v5809 = vunpack.c.l.b16 %v5785
        %v5810 = vunpack.c.l.b16 %v5786
        %v5811 = vunpack.c.l.b16 %v5787
        %v5812 = vpack.c.b16 %v5805, %v5804
        %v5813 = vpack.c.b16 %v5807, %v5806
        %v5814 = vpack.c.b16 %v5809, %v5808
        %v5815 = vpack.c.b16 %v5811, %v5810
        %5820 = vmatprep.subr.bf16.mxu0 0
        %5821 = vmatpush1.bf16.msra.mxu0 %v5812
        %5822 = vmatprep.subr.bf16.mxu0 0
        %5823 = vmatpush1.bf16.msra.mxu0 %v5813
        %5824 = vmatprep.subr.bf16.mxu0 0
        %5825 = vmatpush1.bf16.msra.mxu0 %v5814
        %5826 = vmatprep.subr.bf16.mxu0 0
        %5827 = vmatpush1.bf16.msra.mxu0 %v5815
        %5828 = vmatprep.subr.bf16.mxu0 0
        %5829 = vmatpush1.bf16.msra.mxu0 0
        %5830 = vmatprep.subr.bf16.mxu0 0
        %5831 = vmatpush1.bf16.msra.mxu0 0
        %5832 = vmatprep.subr.bf16.mxu0 0
        %5833 = vmatpush1.bf16.msra.mxu0 0
        %5834 = vmatprep.subr.bf16.mxu0 0
        %5835 = vmatpush1.bf16.msra.mxu0 0
        %5836 = vmatprep.subr.bf16.mxu0 0
        %5837 = vmatpush1.bf16.msra.mxu0 0
        %5838 = vmatprep.subr.bf16.mxu0 0
        %5839 = vmatpush1.bf16.msra.mxu0 0
        %5840 = vmatprep.subr.bf16.mxu0 0
        %5841 = vmatpush1.bf16.msra.mxu0 0
        %5842 = vmatprep.subr.bf16.mxu0 0
        %5843 = vmatpush1.bf16.msra.mxu0 0
        %5844 = vmatprep.subr.bf16.mxu0 0
        %5845 = vmatpush1.bf16.msra.mxu0 0
        %5846 = vmatprep.subr.bf16.mxu0 0
        %5847 = vmatpush1.bf16.msra.mxu0 0
        %5848 = vmatprep.subr.bf16.mxu0 0
        %5849 = vmatpush1.bf16.msra.mxu0 0
        %5850 = vmatprep.subr.bf16.mxu0 0
        %5851 = vmatpush1.bf16.msra.mxu0 0
        %5852 = vmatprep.mubr.bf16.mxu0 0
        %5853 = vmatmul.mubr.bf16.gmra.mrb[0].mxu0 %v3872
        %v5854 = vpop.f32.mrb[0].mxu0
        %v5855 = vadd.f32 %v5794, %v5854
        %v5856 = vpop.f32.mrb[0].mxu0
        %v5857 = vpop.f32.mrb[0].mxu0
        %v5858 = vadd.f32 %v5794, %v5857
        %v5859 = vpop.f32.mrb[0].mxu0
        %5860 = vmatprep.mubr.bf16.mxu0 0
        %5861 = vmatmul.mubr.bf16.gmra.mrb[0].mxu0 %v3875
        %v5862 = vpop.f32.mrb[0].mxu0
        %v5863 = vadd.f32 %v5794, %v5862
        %v5864 = vpop.f32.mrb[0].mxu0
        %v5865 = vpop.f32.mrb[0].mxu0
        %v5866 = vadd.f32 %v5794, %v5865
        %v5867 = vpop.f32.mrb[0].mxu0
        %5868 = vmatprep.mubr.bf16.mxu0 0
        %5869 = vmatmul.mubr.bf16.gmra.mrb[0].mxu0 %v3878
        %v5870 = vpop.f32.mrb[0].mxu0
        %v5871 = vadd.f32 %v5794, %v5870
        %v5872 = vpop.f32.mrb[0].mxu0
        %v5873 = vpop.f32.mrb[0].mxu0
        %v5874 = vpop.f32.mrb[0].mxu0
        %5875 = vdwg.mxu0
        %v5876 = vpack.c.bf16 %v5664, %v5661
        %v5877 = vpack.c.bf16 %v5672, %v5669
        %v5878 = vpack.c.bf16 %v5677, %v5677
        %v5879 = vpack.c.bf16 %v5761, %v5758
        %v5880 = vpack.c.bf16 %v5769, %v5766
        %v5881 = vpack.c.bf16 %v5774, %v5774
        %v5883 = vsel %vm1306, %v5876, 0
        %v5886 = vsel %vm1306, %v5877, 0
        %v5889 = vsel %vm1306, %v5878, 0
        %v5892 = vsel %vm1306, %v5879, 0
        %v5895 = vsel %vm1306, %v5880, 0
        %v5898 = vsel %vm1306, %v5881, 0
        %5900 = vmatprep.subr.bf16.mxu0 0
        %5901 = vmatpush1.bf16.xpose.msra.mxu0 %v5892
        %5902 = vmatprep.subr.bf16.mxu0 0
        %5903 = vmatpush1.bf16.xpose.msra.mxu0 %v5895
        %5904 = vmatprep.subr.bf16.mxu0 0
        %5905 = vmatpush1.bf16.xpose.msra.mxu0 %v5898
        %5906 = vmatprep.subr.bf16.mxu0 0
        %5907 = vmatpush1.bf16.xpose.msra.mxu0 0
        %5908 = vmatprep.subr.bf16.mxu0 0
        %5909 = vmatpush1.bf16.xpose.msra.mxu0 0
        %5910 = vmatprep.subr.bf16.mxu0 0
        %5911 = vmatpush1.bf16.xpose.msra.mxu0 0
        %5912 = vmatprep.subr.bf16.mxu0 0
        %5913 = vmatpush1.bf16.xpose.msra.mxu0 0
        %5914 = vmatprep.subr.bf16.mxu0 0
        %5915 = vmatpush1.bf16.xpose.msra.mxu0 0
        %5916 = vmatprep.subr.bf16.mxu0 0
        %5917 = vmatpush1.bf16.xpose.msra.mxu0 0
        %5918 = vmatprep.subr.bf16.mxu0 0
        %5919 = vmatpush1.bf16.xpose.msra.mxu0 0
        %5920 = vmatprep.subr.bf16.mxu0 0
        %5921 = vmatpush1.bf16.xpose.msra.mxu0 0
        %5922 = vmatprep.subr.bf16.mxu0 0
        %5923 = vmatpush1.bf16.xpose.msra.mxu0 0
        %5924 = vmatprep.subr.bf16.mxu0 0
        %5925 = vmatpush1.bf16.xpose.msra.mxu0 0
        %5926 = vmatprep.subr.bf16.mxu0 0
        %5927 = vmatpush1.bf16.xpose.msra.mxu0 0
        %5928 = vmatprep.subr.bf16.mxu0 0
        %5929 = vmatpush1.bf16.xpose.msra.mxu0 0
        %5930 = vmatprep.subr.bf16.mxu0 0
        %5931 = vmatpush1.bf16.xpose.msra.mxu0 0
        %5932 = vmatprep.mubr.bf16.mxu0 0
        %5933 = vmatmul.mubr.bf16.gmra.mrb[0].mxu0 %v5883
        %v5934 = vpop.f32.mrb[0].mxu0
        %v5935 = vadd.f32 0.0, %v5934
        %v5936 = vpop.f32.mrb[0].mxu0
        %v5937 = vpop.f32.mrb[0].mxu0
        %v5938 = vadd.f32 0.0, %v5937
        %v5939 = vpop.f32.mrb[0].mxu0
        %5940 = vmatprep.mubr.bf16.mxu0 0
        %5941 = vmatmul.mubr.bf16.gmra.mrb[0].mxu0 %v5886
        %v5942 = vpop.f32.mrb[0].mxu0
        %v5943 = vadd.f32 0.0, %v5942
        %v5944 = vpop.f32.mrb[0].mxu0
        %v5945 = vpop.f32.mrb[0].mxu0
        %v5946 = vadd.f32 0.0, %v5945
        %v5947 = vpop.f32.mrb[0].mxu0
        %5948 = vmatprep.mubr.bf16.mxu0 0
        %5949 = vmatmul.mubr.bf16.gmra.mrb[0].mxu0 %v5889
        %v5950 = vpop.f32.mrb[0].mxu0
        %v5951 = vadd.f32 0.0, %v5950
        %v5952 = vpop.f32.mrb[0].mxu0
        %v5953 = vpop.f32.mrb[0].mxu0
        %v5954 = vpop.f32.mrb[0].mxu0
        %5955 = vdwg.mxu0
        %v5956 = vsel %vm1381, %v5935, -inf
        %5957 = vmax.xlane.f32.xlu0 %v5956
        %v5958 = vpop.xlane.xlu0 %5957
        %v5959 = vsel %vm1381, %v5938, -inf
        %5960 = vmax.xlane.f32.xlu0 %v5959
        %v5961 = vpop.xlane.xlu0 %5960
        %v5962 = vsel %vm1381, %v5943, -inf
        %5963 = vmax.xlane.f32.xlu0 %v5962
        %v5964 = vpop.xlane.xlu0 %5963
        %v5965 = vsel %vm1381, %v5946, -inf
        %5966 = vmax.xlane.f32.xlu0 %v5965
        %v5967 = vpop.xlane.xlu0 %5966
        %v5968 = vsel %vm1394, %v5951, -inf
        %5969 = vmax.xlane.f32.xlu0 %v5968
        %v5970 = vpop.xlane.xlu0 %5969
        %v5971 = vsub.f32 %v5935, %v5958
        %v5972 = vsub.f32 %v5938, %v5961
        %v5973 = vsub.f32 %v5943, %v5964
        %v5974 = vsub.f32 %v5946, %v5967
        %v5975 = vsub.f32 %v5951, %v5970
        %v5976 = vmul.f32 %v5971, 1.442695
        %v5977 = vpow.pop %v5976
        %v5978 = vmul.f32 %v5972, 1.442695
        %v5979 = vpow.pop %v5978
        %v5980 = vmul.f32 %v5973, 1.442695
        %v5981 = vpow.pop %v5980
        %v5982 = vmul.f32 %v5974, 1.442695
        %v5983 = vpow.pop %v5982
        %v5984 = vmul.f32 %v5975, 1.442695
        %v5985 = vpow.pop %v5984
        %v5986 = vsel %vm1381, %v5977, 0.0
        %5987 = vadd.xlane.f32.xlu0 %v5986
        %v5988 = vpop.xlane.xlu0 %5987
        %v5989 = vsel %vm1381, %v5979, 0.0
        %5990 = vadd.xlane.f32.xlu0 %v5989
        %v5991 = vpop.xlane.xlu0 %5990
        %v5992 = vsel %vm1381, %v5981, 0.0
        %5993 = vadd.xlane.f32.xlu0 %v5992
        %v5994 = vpop.xlane.xlu0 %5993
        %v5995 = vsel %vm1381, %v5983, 0.0
        %5996 = vadd.xlane.f32.xlu0 %v5995
        %v5997 = vpop.xlane.xlu0 %5996
        %v5998 = vsel %vm1394, %v5985, 0.0
        %5999 = vadd.xlane.f32.xlu0 %v5998
        %v6000 = vpop.xlane.xlu0 %5999
        %v6001 = vrcp.pop %v5988
        %v6002 = vrcp.pop %v5991
        %v6003 = vrcp.pop %v5994
        %v6004 = vrcp.pop %v5997
        %v6005 = vrcp.pop %v6000
        %v6006 = vmul.f32 %v5977, %v6001
        %v6007 = vmul.f32 %v5979, %v6002
        %v6008 = vmul.f32 %v5981, %v6003
        %v6009 = vmul.f32 %v5983, %v6004
        %v6010 = vmul.f32 %v5985, %v6005
        %v6011 = vpack.c.bf16 %v6007, %v6006
        %v6012 = vpack.c.bf16 %v6009, %v6008
        %v6013 = vpack.c.bf16 %v6010, %v6010
        %v6014 = vpack.c.bf16 %v5858, %v5855
        %v6015 = vpack.c.bf16 %v5866, %v5863
        %v6016 = vpack.c.bf16 %v5871, %v5871
        %v6018 = vsel %vm1381, %v6011, 0
        %v6021 = vsel %vm1381, %v6012, 0
        %v6024 = vsel %vm1381, %v6013, 0
        %v6027 = vand.u32 %v6016, %v1456
        %6029 = vmatprep.subr.bf16.mxu0 0
        %6030 = vmatpush1.bf16.msra.mxu0 %v6014
        %6031 = vmatprep.subr.bf16.mxu0 0
        %6032 = vmatpush1.bf16.msra.mxu0 %v6015
        %6033 = vmatprep.subr.bf16.mxu0 0
        %6034 = vmatpush1.bf16.msra.mxu0 %v6027
        %6035 = vmatprep.subr.bf16.mxu0 0
        %6036 = vmatpush1.bf16.msra.mxu0 0
        %6037 = vmatprep.subr.bf16.mxu0 0
        %6038 = vmatpush1.bf16.msra.mxu0 0
        %6039 = vmatprep.subr.bf16.mxu0 0
        %6040 = vmatpush1.bf16.msra.mxu0 0
        %6041 = vmatprep.subr.bf16.mxu0 0
        %6042 = vmatpush1.bf16.msra.mxu0 0
        %6043 = vmatprep.subr.bf16.mxu0 0
        %6044 = vmatpush1.bf16.msra.mxu0 0
        %6045 = vmatprep.subr.bf16.mxu0 0
        %6046 = vmatpush1.bf16.msra.mxu0 0
        %6047 = vmatprep.subr.bf16.mxu0 0
        %6048 = vmatpush1.bf16.msra.mxu0 0
        %6049 = vmatprep.subr.bf16.mxu0 0
        %6050 = vmatpush1.bf16.msra.mxu0 0
        %6051 = vmatprep.subr.bf16.mxu0 0
        %6052 = vmatpush1.bf16.msra.mxu0 0
        %6053 = vmatprep.subr.bf16.mxu0 0
        %6054 = vmatpush1.bf16.msra.mxu0 0
        %6055 = vmatprep.subr.bf16.mxu0 0
        %6056 = vmatpush1.bf16.msra.mxu0 0
        %6057 = vmatprep.subr.bf16.mxu0 0
        %6058 = vmatpush1.bf16.msra.mxu0 0
        %6059 = vmatprep.subr.bf16.mxu0 0
        %6060 = vmatpush1.bf16.msra.mxu0 0
        %6061 = vmatprep.mubr.bf16.mxu0 0
        %6062 = vmatmul.mubr.bf16.gmra.mrb[0].mxu0 %v6018
        %v6063 = vpop.f32.mrb[0].mxu0
        %v6064 = vadd.f32 0.0, %v6063
        %v6065 = vpop.f32.mrb[0].mxu0
        %v6066 = vpop.f32.mrb[0].mxu0
        %v6067 = vadd.f32 0.0, %v6066
        %v6068 = vpop.f32.mrb[0].mxu0
        %6069 = vmatprep.mubr.bf16.mxu0 0
        %6070 = vmatmul.mubr.bf16.gmra.mrb[0].mxu0 %v6021
        %v6071 = vpop.f32.mrb[0].mxu0
        %v6072 = vadd.f32 0.0, %v6071
        %v6073 = vpop.f32.mrb[0].mxu0
        %v6074 = vpop.f32.mrb[0].mxu0
        %v6075 = vadd.f32 0.0, %v6074
        %v6076 = vpop.f32.mrb[0].mxu0
        %6077 = vmatprep.mubr.bf16.mxu0 0
        %6078 = vmatmul.mubr.bf16.gmra.mrb[0].mxu0 %v6024
        %v6079 = vpop.f32.mrb[0].mxu0
        %v6080 = vadd.f32 0.0, %v6079
        %v6081 = vpop.f32.mrb[0].mxu0
        %v6082 = vpop.f32.mrb[0].mxu0
        %v6083 = vpop.f32.mrb[0].mxu0
        %6084 = vdwg.mxu0
        %v6085 = vpack.c.bf16 %v6067, %v6064
        %v6086 = vpack.c.bf16 %v6075, %v6072
        %v6087 = vpack.c.bf16 %v6080, %v6080
        %s6088 = scalar_lea.vmem %s13, 56
        %v6089 = vld [vmem:[%s6088] sm:$0xf]
        %v6090 = vld [vmem:[%s6088 + $0x4] sm:$0xf]
        %v6093 = vunpack.c.l.b16 %v6089
        %v6094 = vunpack.c.l.b16 %v6090
        %v6095 = vpack.c.b16 %v6094, %v6093
        %v6098 = vsel %vm1306, %v6085, 0
        %v6101 = vsel %vm1306, %v6086, 0
        %v6104 = vsel %vm1306, %v6087, 0
        %6106 = vmatprep.subr.bf16.mxu0 0
        %6107 = vmatpush1.bf16.msra.mxu0 %v6095
        %6108 = vmatprep.subr.bf16.mxu0 0
        %6109 = vmatpush1.bf16.msra.mxu0 0
        %6110 = vmatprep.subr.bf16.mxu0 0
        %6111 = vmatpush1.bf16.msra.mxu0 0
        %6112 = vmatprep.subr.bf16.mxu0 0
        %6113 = vmatpush1.bf16.msra.mxu0 0
        %6114 = vmatprep.subr.bf16.mxu0 0
        %6115 = vmatpush1.bf16.msra.mxu0 0
        %6116 = vmatprep.subr.bf16.mxu0 0
        %6117 = vmatpush1.bf16.msra.mxu0 0
        %6118 = vmatprep.subr.bf16.mxu0 0
        %6119 = vmatpush1.bf16.msra.mxu0 0
        %6120 = vmatprep.subr.bf16.mxu0 0
        %6121 = vmatpush1.bf16.msra.mxu0 0
        %6122 = vmatprep.subr.bf16.mxu0 0
        %6123 = vmatpush1.bf16.msra.mxu0 0
        %6124 = vmatprep.subr.bf16.mxu0 0
        %6125 = vmatpush1.bf16.msra.mxu0 0
        %6126 = vmatprep.subr.bf16.mxu0 0
        %6127 = vmatpush1.bf16.msra.mxu0 0
        %6128 = vmatprep.subr.bf16.mxu0 0
        %6129 = vmatpush1.bf16.msra.mxu0 0
        %6130 = vmatprep.subr.bf16.mxu0 0
        %6131 = vmatpush1.bf16.msra.mxu0 0
        %6132 = vmatprep.subr.bf16.mxu0 0
        %6133 = vmatpush1.bf16.msra.mxu0 0
        %6134 = vmatprep.subr.bf16.mxu0 0
        %6135 = vmatpush1.bf16.msra.mxu0 0
        %6136 = vmatprep.subr.bf16.mxu0 0
        %6137 = vmatpush1.bf16.msra.mxu0 0
        %6138 = vmatprep.mubr.bf16.mxu0 0
        %6139 = vmatmul.mubr.bf16.gmra.mrb[0].mxu0 %v6098
        %v6140 = vpop.f32.mrb[0].mxu0
        %v6141 = vadd.f32 0.0, %v6140
        %v6142 = vpop.f32.mrb[0].mxu0
        %v6143 = vpop.f32.mrb[0].mxu0
        %v6144 = vadd.f32 0.0, %v6143
        %v6145 = vpop.f32.mrb[0].mxu0
        %6146 = vmatprep.mubr.bf16.mxu0 0
        %6147 = vmatmul.mubr.bf16.gmra.mrb[0].mxu0 %v6101
        %v6148 = vpop.f32.mrb[0].mxu0
        %v6149 = vadd.f32 0.0, %v6148
        %v6150 = vpop.f32.mrb[0].mxu0
        %v6151 = vpop.f32.mrb[0].mxu0
        %v6152 = vadd.f32 0.0, %v6151
        %v6153 = vpop.f32.mrb[0].mxu0
        %6154 = vmatprep.mubr.bf16.mxu0 0
        %6155 = vmatmul.mubr.bf16.gmra.mrb[0].mxu0 %v6104
        %v6156 = vpop.f32.mrb[0].mxu0
        %v6157 = vadd.f32 0.0, %v6156
        %v6158 = vpop.f32.mrb[0].mxu0
        %v6159 = vpop.f32.mrb[0].mxu0
        %v6160 = vpop.f32.mrb[0].mxu0
        %6161 = vdwg.mxu0
        %v6162 = vadd.f32 %v5580, %v6141
        %v6163 = vadd.f32 %v5581, %v6144
        %v6164 = vadd.f32 %v5582, %v6149
        %v6165 = vadd.f32 %v5583, %v6152
        %v6166 = vadd.f32 %v5584, %v6157
        %s6167 = scalar_lea.vmem %s15, 1
        %v6168 = vld [vmem:[%s6167] sm:$0x1]
        %s6169 = scalar_lea.vmem %s16, 1
        %v6170 = vld [vmem:[%s6169] sm:$0x1]
        %v6171 = vsel %vm896, %v6162, 0.0
        %6172 = vadd.xlane.f32.xlu0 %v6171
        %v6173 = vpop.xlane.xlu0 %6172
        %v6174 = vsel %vm896, %v6163, 0.0
        %6175 = vadd.xlane.f32.xlu0 %v6174
        %v6176 = vpop.xlane.xlu0 %6175
        %v6177 = vsel %vm896, %v6164, 0.0
        %6178 = vadd.xlane.f32.xlu0 %v6177
        %v6179 = vpop.xlane.xlu0 %6178
        %v6180 = vsel %vm896, %v6165, 0.0
        %6181 = vadd.xlane.f32.xlu0 %v6180
        %v6182 = vpop.xlane.xlu0 %6181
        %v6183 = vsel %vm909, %v6166, 0.0
        %6184 = vadd.xlane.f32.xlu0 %v6183
        %v6185 = vpop.xlane.xlu0 %6184
        %v6186 = vmul.f32 %v6173, %v913
        %v6187 = vmul.f32 %v6176, %v913
        %v6188 = vmul.f32 %v6179, %v913
        %v6189 = vmul.f32 %v6182, %v913
        %v6190 = vmul.f32 %v6185, %v913
        %v6191 = vsub.f32 %v6162, %v6186
        %v6192 = vsub.f32 %v6163, %v6187
        %v6193 = vsub.f32 %v6164, %v6188
        %v6194 = vsub.f32 %v6165, %v6189
        %v6195 = vsub.f32 %v6166, %v6190
        %v6196 = vmul.f32 %v6191, %v6191
        %v6197 = vmul.f32 %v6192, %v6192
        %v6198 = vmul.f32 %v6193, %v6193
        %v6199 = vmul.f32 %v6194, %v6194
        %v6200 = vmul.f32 %v6195, %v6195
        %v6201 = vsel %vm896, %v6196, 0.0
        %6202 = vadd.xlane.f32.xlu0 %v6201
        %v6203 = vpop.xlane.xlu0 %6202
        %v6204 = vsel %vm896, %v6197, 0.0
        %6205 = vadd.xlane.f32.xlu0 %v6204
        %v6206 = vpop.xlane.xlu0 %6205
        %v6207 = vsel %vm896, %v6198, 0.0
        %6208 = vadd.xlane.f32.xlu0 %v6207
        %v6209 = vpop.xlane.xlu0 %6208
        %v6210 = vsel %vm896, %v6199, 0.0
        %6211 = vadd.xlane.f32.xlu0 %v6210
        %v6212 = vpop.xlane.xlu0 %6211
        %v6213 = vsel %vm909, %v6200, 0.0
        %6214 = vadd.xlane.f32.xlu0 %v6213
        %v6215 = vpop.xlane.xlu0 %6214
        %v6216 = vmul.f32 %v6203, %v913
        %v6217 = vmul.f32 %v6206, %v913
        %v6218 = vmul.f32 %v6209, %v913
        %v6219 = vmul.f32 %v6212, %v913
        %v6220 = vmul.f32 %v6215, %v913
        %v6221 = vadd.f32 %v6216, 1e-05
        %v6222 = vadd.f32 %v6217, 1e-05
        %v6223 = vadd.f32 %v6218, 1e-05
        %v6224 = vadd.f32 %v6219, 1e-05
        %v6225 = vadd.f32 %v6220, 1e-05
        %v6226 = vrsqrt.pop %v6221
        %v6227 = vrsqrt.pop %v6222
        %v6228 = vrsqrt.pop %v6223
        %v6229 = vrsqrt.pop %v6224
        %v6230 = vrsqrt.pop %v6225
        %v6231 = vmul.f32 %v6191, %v6226
        %v6232 = vmul.f32 %v6192, %v6227
        %v6233 = vmul.f32 %v6193, %v6228
        %v6234 = vmul.f32 %v6194, %v6229
        %v6235 = vmul.f32 %v6195, %v6230
        %v6237 = vlaneseq
        %v6238 = vshrl.u32 %v6237, 7
        %v6239 = vsub.s32 0, %v6238
        %v6240 = vrot.slane %v6168, %v6239
        %v6242 = vmul.f32 %v6231, %v6240
        %v6243 = vmul.f32 %v6232, %v6240
        %v6244 = vmul.f32 %v6233, %v6240
        %v6245 = vmul.f32 %v6234, %v6240
        %v6246 = vmul.f32 %v6235, %v6240
        %v6248 = vlaneseq
        %v6249 = vshrl.u32 %v6248, 7
        %v6250 = vsub.s32 0, %v6249
        %v6251 = vrot.slane %v6170, %v6250
        %v6253 = vadd.f32 %v6242, %v6251
        %v6254 = vadd.f32 %v6243, %v6251
        %v6255 = vadd.f32 %v6244, %v6251
        %v6256 = vadd.f32 %v6245, %v6251
        %v6257 = vadd.f32 %v6246, %v6251
        %v6258 = vpack.c.bf16 %v6254, %v6253
        %v6259 = vpack.c.bf16 %v6256, %v6255
        %v6260 = vpack.c.bf16 %v6257, %v6257
        %s6261 = scalar_lea.vmem %s17, 32
        %v6262 = vld [vmem:[%s6261] sm:$0xf]
        %v6263 = vld [vmem:[%s6261 + $0x4] sm:$0xf]
        %v6264 = vld [vmem:[%s6261 + $0x8] sm:$0xf]
        %v6265 = vld [vmem:[%s6261 + $0xc] sm:$0xf]
        %v6266 = vld [vmem:[%s6261 + $0x10] sm:$0xf]
        %v6267 = vld [vmem:[%s6261 + $0x14] sm:$0xf]
        %v6268 = vld [vmem:[%s6261 + $0x18] sm:$0xf]
        %v6269 = vld [vmem:[%s6261 + $0x1c] sm:$0xf]
        %s6270 = scalar_lea.vmem %s18, 1
        %v6271 = vld [vmem:[%s6270] sm:$0x1]
        %v6273 = vlaneseq
        %v6274 = vshrl.u32 %v6273, 7
        %v6275 = vsub.s32 0, %v6274
        %v6276 = vrot.slane %v6271, %v6275
        %v6286 = vunpack.c.l.b16 %v6262
        %v6287 = vunpack.c.l.b16 %v6263
        %v6288 = vunpack.c.l.b16 %v6264
        %v6289 = vunpack.c.l.b16 %v6265
        %v6290 = vunpack.c.l.b16 %v6266
        %v6291 = vunpack.c.l.b16 %v6267
        %v6292 = vunpack.c.l.b16 %v6268
        %v6293 = vunpack.c.l.b16 %v6269
        %v6294 = vpack.c.b16 %v6287, %v6286
        %v6295 = vpack.c.b16 %v6289, %v6288
        %v6296 = vpack.c.b16 %v6291, %v6290
        %v6297 = vpack.c.b16 %v6293, %v6292
        %v6303 = vsel %vm896, %v6258, 0
        %v6306 = vsel %vm896, %v6259, 0
        %v6309 = vsel %vm896, %v6260, 0
        %6311 = vmatprep.subr.bf16.mxu0 0
        %6312 = vmatpush1.bf16.msra.mxu0 %v6294
        %6313 = vmatprep.subr.bf16.mxu0 0
        %6314 = vmatpush1.bf16.msra.mxu0 %v6295
        %6315 = vmatprep.subr.bf16.mxu0 0
        %6316 = vmatpush1.bf16.msra.mxu0 %v6296
        %6317 = vmatprep.subr.bf16.mxu0 0
        %6318 = vmatpush1.bf16.msra.mxu0 %v6297
        %6319 = vmatprep.subr.bf16.mxu0 0
        %6320 = vmatpush1.bf16.msra.mxu0 0
        %6321 = vmatprep.subr.bf16.mxu0 0
        %6322 = vmatpush1.bf16.msra.mxu0 0
        %6323 = vmatprep.subr.bf16.mxu0 0
        %6324 = vmatpush1.bf16.msra.mxu0 0
        %6325 = vmatprep.subr.bf16.mxu0 0
        %6326 = vmatpush1.bf16.msra.mxu0 0
        %6327 = vmatprep.subr.bf16.mxu0 0
        %6328 = vmatpush1.bf16.msra.mxu0 0
        %6329 = vmatprep.subr.bf16.mxu0 0
        %6330 = vmatpush1.bf16.msra.mxu0 0
        %6331 = vmatprep.subr.bf16.mxu0 0
        %6332 = vmatpush1.bf16.msra.mxu0 0
        %6333 = vmatprep.subr.bf16.mxu0 0
        %6334 = vmatpush1.bf16.msra.mxu0 0
        %6335 = vmatprep.subr.bf16.mxu0 0
        %6336 = vmatpush1.bf16.msra.mxu0 0
        %6337 = vmatprep.subr.bf16.mxu0 0
        %6338 = vmatpush1.bf16.msra.mxu0 0
        %6339 = vmatprep.subr.bf16.mxu0 0
        %6340 = vmatpush1.bf16.msra.mxu0 0
        %6341 = vmatprep.subr.bf16.mxu0 0
        %6342 = vmatpush1.bf16.msra.mxu0 0
        %6343 = vmatprep.mubr.bf16.mxu0 0
        %6344 = vmatmul.mubr.bf16.gmra.mrb[0].mxu0 %v6303
        %v6345 = vpop.f32.mrb[0].mxu0
        %v6346 = vadd.f32 %v6276, %v6345
        %v6347 = vpop.f32.mrb[0].mxu0
        %v6348 = vpop.f32.mrb[0].mxu0
        %v6349 = vadd.f32 %v6276, %v6348
        %v6350 = vpop.f32.mrb[0].mxu0
        %6351 = vmatprep.mubr.bf16.mxu0 0
        %6352 = vmatmul.mubr.bf16.gmra.mrb[0].mxu0 %v6306
        %v6353 = vpop.f32.mrb[0].mxu0
        %v6354 = vadd.f32 %v6276, %v6353
        %v6355 = vpop.f32.mrb[0].mxu0
        %v6356 = vpop.f32.mrb[0].mxu0
        %v6357 = vadd.f32 %v6276, %v6356
        %v6358 = vpop.f32.mrb[0].mxu0
        %6359 = vmatprep.mubr.bf16.mxu0 0
        %6360 = vmatmul.mubr.bf16.gmra.mrb[0].mxu0 %v6309
        %v6361 = vpop.f32.mrb[0].mxu0
        %v6362 = vadd.f32 %v6276, %v6361
        %v6363 = vpop.f32.mrb[0].mxu0
        %v6364 = vpop.f32.mrb[0].mxu0
        %v6365 = vpop.f32.mrb[0].mxu0
        %6366 = vdwg.mxu0
        %v6367 = vmul.f32 %v6346, %v6346
        %v6368 = vmul.f32 %v6349, %v6349
        %v6369 = vmul.f32 %v6354, %v6354
        %v6370 = vmul.f32 %v6357, %v6357
        %v6371 = vmul.f32 %v6362, %v6362
        %v6372 = vmul.f32 %v6346, %v6367
        %v6373 = vmul.f32 %v6349, %v6368
        %v6374 = vmul.f32 %v6354, %v6369
        %v6375 = vmul.f32 %v6357, %v6370
        %v6376 = vmul.f32 %v6362, %v6371
        %v6377 = vmul.f32 %v6372, 0.044715
        %v6378 = vmul.f32 %v6373, 0.044715
        %v6379 = vmul.f32 %v6374, 0.044715
        %v6380 = vmul.f32 %v6375, 0.044715
        %v6381 = vmul.f32 %v6376, 0.044715
        %v6382 = vadd.f32 %v6346, %v6377
        %v6383 = vadd.f32 %v6349, %v6378
        %v6384 = vadd.f32 %v6354, %v6379
        %v6385 = vadd.f32 %v6357, %v6380
        %v6386 = vadd.f32 %v6362, %v6381
        %v6387 = vmul.f32 %v6382, 0.7978846
        %v6388 = vmul.f32 %v6383, 0.7978846
        %v6389 = vmul.f32 %v6384, 0.7978846
        %v6390 = vmul.f32 %v6385, 0.7978846
        %v6391 = vmul.f32 %v6386, 0.7978846
        %v6392 = vtanh.pop %v6387
        %v6393 = vtanh.pop %v6388
        %v6394 = vtanh.pop %v6389
        %v6395 = vtanh.pop %v6390
        %v6396 = vtanh.pop %v6391
        %v6397 = vadd.f32 %v6392, 1.0
        %v6398 = vadd.f32 %v6393, 1.0
        %v6399 = vadd.f32 %v6394, 1.0
        %v6400 = vadd.f32 %v6395, 1.0
        %v6401 = vadd.f32 %v6396, 1.0
        %v6402 = vmul.f32 %v6397, 0.5
        %v6403 = vmul.f32 %v6398, 0.5
        %v6404 = vmul.f32 %v6399, 0.5
        %v6405 = vmul.f32 %v6400, 0.5
        %v6406 = vmul.f32 %v6401, 0.5
        %v6407 = vmul.f32 %v6346, %v6402
        %v6408 = vmul.f32 %v6349, %v6403
        %v6409 = vmul.f32 %v6354, %v6404
        %v6410 = vmul.f32 %v6357, %v6405
        %v6411 = vmul.f32 %v6362, %v6406
        %v6412 = vpack.c.bf16 %v6408, %v6407
        %v6413 = vpack.c.bf16 %v6410, %v6409
        %v6414 = vpack.c.bf16 %v6411, %v6411
        %s6415 = scalar_lea.vmem %s19, 64
        %v6416 = vld [vmem:[%s6415] sm:$0xf]
        %v6417 = vld [vmem:[%s6415 + $0x4] sm:$0xf]
        %v6418 = vld [vmem:[%s6415 + $0x8] sm:$0xf]
        %v6419 = vld [vmem:[%s6415 + $0xc] sm:$0xf]
        %v6420 = vld [vmem:[%s6415 + $0x10] sm:$0xf]
        %v6421 = vld [vmem:[%s6415 + $0x14] sm:$0xf]
        %v6422 = vld [vmem:[%s6415 + $0x18] sm:$0xf]
        %v6423 = vld [vmem:[%s6415 + $0x1c] sm:$0xf]
        %v6424 = vld [vmem:[%s6415 + $0x20] sm:$0xf]
        %v6425 = vld [vmem:[%s6415 + $0x24] sm:$0xf]
        %v6426 = vld [vmem:[%s6415 + $0x28] sm:$0xf]
        %v6427 = vld [vmem:[%s6415 + $0x2c] sm:$0xf]
        %v6428 = vld [vmem:[%s6415 + $0x30] sm:$0xf]
        %v6429 = vld [vmem:[%s6415 + $0x34] sm:$0xf]
        %v6430 = vld [vmem:[%s6415 + $0x38] sm:$0xf]
        %v6431 = vld [vmem:[%s6415 + $0x3c] sm:$0xf]
        %s6432 = scalar_lea.vmem %s20, 1
        %v6433 = vld [vmem:[%s6432] sm:$0x1]
        %v6435 = vlaneseq
        %v6436 = vshrl.u32 %v6435, 7
        %v6437 = vsub.s32 0, %v6436
        %v6438 = vrot.slane %v6433, %v6437
        %v6456 = vunpack.c.l.b16 %v6416
        %v6457 = vunpack.c.l.b16 %v6417
        %v6458 = vunpack.c.l.b16 %v6418
        %v6459 = vunpack.c.l.b16 %v6419
        %v6460 = vunpack.c.l.b16 %v6420
        %v6461 = vunpack.c.l.b16 %v6421
        %v6462 = vunpack.c.l.b16 %v6422
        %v6463 = vunpack.c.l.b16 %v6423
        %v6464 = vunpack.c.l.b16 %v6424
        %v6465 = vunpack.c.l.b16 %v6425
        %v6466 = vunpack.c.l.b16 %v6426
        %v6467 = vunpack.c.l.b16 %v6427
        %v6468 = vunpack.c.l.b16 %v6428
        %v6469 = vunpack.c.l.b16 %v6429
        %v6470 = vunpack.c.l.b16 %v6430
        %v6471 = vunpack.c.l.b16 %v6431
        %v6472 = vpack.c.b16 %v6457, %v6456
        %v6473 = vpack.c.b16 %v6459, %v6458
        %v6474 = vpack.c.b16 %v6461, %v6460
        %v6475 = vpack.c.b16 %v6463, %v6462
        %v6476 = vpack.c.b16 %v6465, %v6464
        %v6477 = vpack.c.b16 %v6467, %v6466
        %v6478 = vpack.c.b16 %v6469, %v6468
        %v6479 = vpack.c.b16 %v6471, %v6470
        %6488 = vmatprep.subr.bf16.mxu0 0
        %6489 = vmatpush1.bf16.msra.mxu0 %v6472
        %6490 = vmatprep.subr.bf16.mxu0 0
        %6491 = vmatpush1.bf16.msra.mxu0 %v6473
        %6492 = vmatprep.subr.bf16.mxu0 0
        %6493 = vmatpush1.bf16.msra.mxu0 %v6474
        %6494 = vmatprep.subr.bf16.mxu0 0
        %6495 = vmatpush1.bf16.msra.mxu0 %v6475
        %6496 = vmatprep.subr.bf16.mxu0 0
        %6497 = vmatpush1.bf16.msra.mxu0 %v6476
        %6498 = vmatprep.subr.bf16.mxu0 0
        %6499 = vmatpush1.bf16.msra.mxu0 %v6477
        %6500 = vmatprep.subr.bf16.mxu0 0
        %6501 = vmatpush1.bf16.msra.mxu0 %v6478
        %6502 = vmatprep.subr.bf16.mxu0 0
        %6503 = vmatpush1.bf16.msra.mxu0 %v6479
        %6504 = vmatprep.subr.bf16.mxu0 0
        %6505 = vmatpush1.bf16.msra.mxu0 0
        %6506 = vmatprep.subr.bf16.mxu0 0
        %6507 = vmatpush1.bf16.msra.mxu0 0
        %6508 = vmatprep.subr.bf16.mxu0 0
        %6509 = vmatpush1.bf16.msra.mxu0 0
        %6510 = vmatprep.subr.bf16.mxu0 0
        %6511 = vmatpush1.bf16.msra.mxu0 0
        %6512 = vmatprep.subr.bf16.mxu0 0
        %6513 = vmatpush1.bf16.msra.mxu0 0
        %6514 = vmatprep.subr.bf16.mxu0 0
        %6515 = vmatpush1.bf16.msra.mxu0 0
        %6516 = vmatprep.subr.bf16.mxu0 0
        %6517 = vmatpush1.bf16.msra.mxu0 0
        %6518 = vmatprep.subr.bf16.mxu0 0
        %6519 = vmatpush1.bf16.msra.mxu0 0
        %6520 = vmatprep.mubr.bf16.mxu0 0
        %6521 = vmatmul.mubr.bf16.gmra.mrb[0].mxu0 %v6412
        %v6522 = vpop.f32.mrb[0].mxu0
        %v6523 = vadd.f32 %v6438, %v6522
        %v6524 = vpop.f32.mrb[0].mxu0
        %v6525 = vpop.f32.mrb[0].mxu0
        %v6526 = vadd.f32 %v6438, %v6525
        %v6527 = vpop.f32.mrb[0].mxu0
        %6528 = vmatprep.mubr.bf16.mxu0 0
        %6529 = vmatmul.mubr.bf16.gmra.mrb[0].mxu0 %v6413
        %v6530 = vpop.f32.mrb[0].mxu0
        %v6531 = vadd.f32 %v6438, %v6530
        %v6532 = vpop.f32.mrb[0].mxu0
        %v6533 = vpop.f32.mrb[0].mxu0
        %v6534 = vadd.f32 %v6438, %v6533
        %v6535 = vpop.f32.mrb[0].mxu0
        %6536 = vmatprep.mubr.bf16.mxu0 0
        %6537 = vmatmul.mubr.bf16.gmra.mrb[0].mxu0 %v6414
        %v6538 = vpop.f32.mrb[0].mxu0
        %v6539 = vadd.f32 %v6438, %v6538
        %v6540 = vpop.f32.mrb[0].mxu0
        %v6541 = vpop.f32.mrb[0].mxu0
        %v6542 = vpop.f32.mrb[0].mxu0
        %6543 = vdwg.mxu0
        %v6544 = vadd.f32 %v6253, %v6523
        %v6545 = vadd.f32 %v6254, %v6526
        %v6546 = vadd.f32 %v6255, %v6531
        %v6547 = vadd.f32 %v6256, %v6534
        %v6548 = vadd.f32 %v6257, %v6539
        %s6549 = scalar_lea.vmem %s21, 1
        %v6550 = vld [vmem:[%s6549] sm:$0x1]
        %s6551 = scalar_lea.vmem %s22, 1
        %v6552 = vld [vmem:[%s6551] sm:$0x1]
        %v6553 = vsel %vm896, %v6544, 0.0
        %6554 = vadd.xlane.f32.xlu0 %v6553
        %v6555 = vpop.xlane.xlu0 %6554
        %v6556 = vsel %vm896, %v6545, 0.0
        %6557 = vadd.xlane.f32.xlu0 %v6556
        %v6558 = vpop.xlane.xlu0 %6557
        %v6559 = vsel %vm896, %v6546, 0.0
        %6560 = vadd.xlane.f32.xlu0 %v6559
        %v6561 = vpop.xlane.xlu0 %6560
        %v6562 = vsel %vm896, %v6547, 0.0
        %6563 = vadd.xlane.f32.xlu0 %v6562
        %v6564 = vpop.xlane.xlu0 %6563
        %v6565 = vsel %vm909, %v6548, 0.0
        %6566 = vadd.xlane.f32.xlu0 %v6565
        %v6567 = vpop.xlane.xlu0 %6566
        %v6568 = vmul.f32 %v6555, %v913
        %v6569 = vmul.f32 %v6558, %v913
        %v6570 = vmul.f32 %v6561, %v913
        %v6571 = vmul.f32 %v6564, %v913
        %v6572 = vmul.f32 %v6567, %v913
        %v6573 = vsub.f32 %v6544, %v6568
        %v6574 = vsub.f32 %v6545, %v6569
        %v6575 = vsub.f32 %v6546, %v6570
        %v6576 = vsub.f32 %v6547, %v6571
        %v6577 = vsub.f32 %v6548, %v6572
        %v6578 = vmul.f32 %v6573, %v6573
        %v6579 = vmul.f32 %v6574, %v6574
        %v6580 = vmul.f32 %v6575, %v6575
        %v6581 = vmul.f32 %v6576, %v6576
        %v6582 = vmul.f32 %v6577, %v6577
        %v6583 = vsel %vm896, %v6578, 0.0
        %6584 = vadd.xlane.f32.xlu0 %v6583
        %v6585 = vpop.xlane.xlu0 %6584
        %v6586 = vsel %vm896, %v6579, 0.0
        %6587 = vadd.xlane.f32.xlu0 %v6586
        %v6588 = vpop.xlane.xlu0 %6587
        %v6589 = vsel %vm896, %v6580, 0.0
        %6590 = vadd.xlane.f32.xlu0 %v6589
        %v6591 = vpop.xlane.xlu0 %6590
        %v6592 = vsel %vm896, %v6581, 0.0
        %6593 = vadd.xlane.f32.xlu0 %v6592
        %v6594 = vpop.xlane.xlu0 %6593
        %v6595 = vsel %vm909, %v6582, 0.0
        %6596 = vadd.xlane.f32.xlu0 %v6595
        %v6597 = vpop.xlane.xlu0 %6596
        %v6598 = vmul.f32 %v6585, %v913
        %v6599 = vmul.f32 %v6588, %v913
        %v6600 = vmul.f32 %v6591, %v913
        %v6601 = vmul.f32 %v6594, %v913
        %v6602 = vmul.f32 %v6597, %v913
        %v6603 = vadd.f32 %v6598, 1e-05
        %v6604 = vadd.f32 %v6599, 1e-05
        %v6605 = vadd.f32 %v6600, 1e-05
        %v6606 = vadd.f32 %v6601, 1e-05
        %v6607 = vadd.f32 %v6602, 1e-05
        %v6608 = vrsqrt.pop %v6603
        %v6609 = vrsqrt.pop %v6604
        %v6610 = vrsqrt.pop %v6605
        %v6611 = vrsqrt.pop %v6606
        %v6612 = vrsqrt.pop %v6607
        %v6613 = vmul.f32 %v6573, %v6608
        %v6614 = vmul.f32 %v6574, %v6609
        %v6615 = vmul.f32 %v6575, %v6610
        %v6616 = vmul.f32 %v6576, %v6611
        %v6617 = vmul.f32 %v6577, %v6612
        %v6619 = vlaneseq
        %v6620 = vshrl.u32 %v6619, 7
        %v6621 = vsub.s32 0, %v6620
        %v6622 = vrot.slane %v6550, %v6621
        %v6624 = vmul.f32 %v6613, %v6622
        %v6625 = vmul.f32 %v6614, %v6622
        %v6626 = vmul.f32 %v6615, %v6622
        %v6627 = vmul.f32 %v6616, %v6622
        %v6628 = vmul.f32 %v6617, %v6622
        %v6630 = vlaneseq
        %v6631 = vshrl.u32 %v6630, 7
        %v6632 = vsub.s32 0, %v6631
        %v6633 = vrot.slane %v6552, %v6632
        %v6635 = vadd.f32 %v6624, %v6633
        %v6636 = vadd.f32 %v6625, %v6633
        %v6637 = vadd.f32 %v6626, %v6633
        %v6638 = vadd.f32 %v6627, %v6633
        %v6639 = vadd.f32 %v6628, %v6633
        %s6640 = scalar_lea.vmem %s699, 80 [#allocation2]
        %6641 = vst.msk [vmem:[%s6640] sm:$0xff] %vm896, %v6635
        %6642 = vst.msk [vmem:[%s6640 + $0x8] sm:$0xff] %vm896, %v6636
        %6643 = vst.msk [vmem:[%s6640 + $0x10] sm:$0xff] %vm896, %v6637
        %6644 = vst.msk [vmem:[%s6640 + $0x18] sm:$0xff] %vm896, %v6638
        %6645 = vst.msk [vmem:[%s6640 + $0x20] sm:$0x7f] %vm909, %v6639
        %s6646 = sand.u32 %s530, 1
        %s6647 = sand.u32 %s530, 1
        %s6648 = smul.addr %s6647, 120
        %s6649 = scalar_lea.vmem [#allocation2], %s6648
        // Predicated region
        $region113: #{forward.5} parent=111 // pred_check
          %p6650 = pneg %p540
        $region114: #{forward.5} parent=111 // pred_check_branch
          %6652 = sbr.rel (%p6650) target = $region116
        $region115: #{forward.5} parent=111 // pred_region
          %s6653 = smul.addr %s34, 5
          %s6654 = smul.addr %s6653, 8
          %s6655 = scalar_lea.vmem %s23, %s6654
          // Predicated region
          $region117: #{forward.5} parent=115 // pred_check
            _
          $region118: #{forward.5} parent=115 // pred_check_branch
            %6657 = sbr.rel (0) target = $region120
          $region119: #{forward.5} parent=115 // pred_region
            // Predicated region
            $region121: #{forward.5} parent=119 // pred_check
              _
            $region122: #{forward.5} parent=119 // pred_check_branch
              %6659 = sbr.rel (0) target = $region124
            $region123: #{forward.5} parent=119 // pred_region
              // Predicated region
              $region136: #{forward.5} parent=123 // pred_check
                _
              $region137: #{forward.5} parent=123 // pred_check_branch
                %6702 = sbr.rel (0) target = $region139
              $region138: #{forward.5} parent=123 // pred_region
                loop: start=0, step=1, limit=1
                $region140: #{forward.5} parent=138 // loop_pre_header
                  _
                $region141: #{forward.5} parent=138 // loop_header
                  %s6704 = sphi 0, %s6708
                  %p6705 = scmp.ge.s32.totalorder %s6704, 1
                  %s6709 = sphi %s6649, %s6649
                  %s6710 = sphi %s6655, %s6655
                $region142: #{forward.5} parent=138 // loop_header_branch
                  %6707 = sbr.rel (%p6705) target = $region146
                $region143: #{forward.5} parent=138 // loop_body
                  %v6711 = vld [vmem:[%s6709] sm:$0xff]
                  %6712 = vst [vmem:[%s6710] sm:$0xff] %v6711
                  %v6713 = vld [vmem:[%s6709 + $0x8] sm:$0xff]
                  %6714 = vst [vmem:[%s6710 + $0x8] sm:$0xff] %v6713
                  %v6715 = vld [vmem:[%s6709 + $0x10] sm:$0xff]
                  %6716 = vst [vmem:[%s6710 + $0x10] sm:$0xff] %v6715
                  %v6717 = vld [vmem:[%s6709 + $0x18] sm:$0xff]
                  %6718 = vst [vmem:[%s6710 + $0x18] sm:$0xff] %v6717
                  %v6719 = vld [vmem:[%s6709 + $0x20] sm:$0xff]
                  %6720 = vst [vmem:[%s6710 + $0x20] sm:$0xff] %v6719
                  %v6721 = vld [vmem:[%s6709 + $0x28] sm:$0xff]
                  %6722 = vst [vmem:[%s6710 + $0x50] sm:$0xff] %v6721
                  %v6723 = vld [vmem:[%s6709 + $0x30] sm:$0xff]
                  %6724 = vst [vmem:[%s6710 + $0x58] sm:$0xff] %v6723
                  %v6725 = vld [vmem:[%s6709 + $0x38] sm:$0xff]
                  %6726 = vst [vmem:[%s6710 + $0x60] sm:$0xff] %v6725
                  %v6727 = vld [vmem:[%s6709 + $0x40] sm:$0xff]
                  %6728 = vst [vmem:[%s6710 + $0x68] sm:$0xff] %v6727
                  %v6729 = vld [vmem:[%s6709 + $0x48] sm:$0xff]
                  %6730 = vst [vmem:[%s6710 + $0x70] sm:$0xff] %v6729
                  %v6731 = vld [vmem:[%s6709 + $0x50] sm:$0xff]
                  %6732 = vst [vmem:[%s6710 + $0xa0] sm:$0xff] %v6731
                  %v6733 = vld [vmem:[%s6709 + $0x58] sm:$0xff]
                  %6734 = vst [vmem:[%s6710 + $0xa8] sm:$0xff] %v6733
                  %v6735 = vld [vmem:[%s6709 + $0x60] sm:$0xff]
                  %6736 = vst [vmem:[%s6710 + $0xb0] sm:$0xff] %v6735
                  %v6737 = vld [vmem:[%s6709 + $0x68] sm:$0xff]
                  %6738 = vst [vmem:[%s6710 + $0xb8] sm:$0xff] %v6737
                  %v6739 = vld [vmem:[%s6709 + $0x70] sm:$0xff]
                  %6740 = vst [vmem:[%s6710 + $0xc0] sm:$0xff] %v6739
                $region144: #{forward.5} parent=138 // loop_footer
                  %s6708 = sadd.s32 1, %s6704
                $region145: #{forward.5} parent=138 // loop_footer_branch
                  %6703 = sbr.rel target = $region141
                $region146: #{forward.5} parent=138 // loop_exit
                  _
              $region139: #{forward.5} parent=123 // pred_fallthru
                _
              // Predicated region
              $region147: #{forward.5} parent=123 // pred_check
                _
              $region148: #{forward.5} parent=123 // pred_check_branch
                %6742 = sbr.rel target = $region150
              $region149: #{forward.5} parent=123 // pred_region
                _
              $region150: #{forward.5} parent=123 // pred_fallthru
                _
            $region124: #{forward.5} parent=119 // pred_fallthru
              _
            // Predicated region
            $region125: #{forward.5} parent=119 // pred_check
              _
            $region126: #{forward.5} parent=119 // pred_check_branch
              %6661 = sbr.rel target = $region128
            $region127: #{forward.5} parent=119 // pred_region
              loop: start=0, step=1, limit=1
              $region129: #{forward.5} parent=127 // loop_pre_header
                _
              $region130: #{forward.5} parent=127 // loop_header
                %s6664 = sphi 0, %s6668
                %p6665 = scmp.ge.s32.totalorder %s6664, 1
                %s6669 = sphi %s6649, %s6649
                %s6670 = sphi %s6655, %s6655
              $region131: #{forward.5} parent=127 // loop_header_branch
                %6667 = sbr.rel (%p6665) target = $region135
              $region132: #{forward.5} parent=127 // loop_body
                %v6671 = vld [vmem:[%s6669] sm:$0xff]
                %6672 = vst [vmem:[%s6670] sm:$0xff] %v6671
                %v6673 = vld [vmem:[%s6669 + $0x8] sm:$0xff]
                %6674 = vst [vmem:[%s6670 + $0x8] sm:$0xff] %v6673
                %v6675 = vld [vmem:[%s6669 + $0x10] sm:$0xff]
                %6676 = vst [vmem:[%s6670 + $0x10] sm:$0xff] %v6675
                %v6677 = vld [vmem:[%s6669 + $0x18] sm:$0xff]
                %6678 = vst [vmem:[%s6670 + $0x18] sm:$0xff] %v6677
                %v6679 = vld [vmem:[%s6669 + $0x20] sm:$0xff]
                %6680 = vst [vmem:[%s6670 + $0x20] sm:$0xff] %v6679
                %v6681 = vld [vmem:[%s6669 + $0x28] sm:$0xff]
                %6682 = vst [vmem:[%s6670 + $0x50] sm:$0xff] %v6681
                %v6683 = vld [vmem:[%s6669 + $0x30] sm:$0xff]
                %6684 = vst [vmem:[%s6670 + $0x58] sm:$0xff] %v6683
                %v6685 = vld [vmem:[%s6669 + $0x38] sm:$0xff]
                %6686 = vst [vmem:[%s6670 + $0x60] sm:$0xff] %v6685
                %v6687 = vld [vmem:[%s6669 + $0x40] sm:$0xff]
                %6688 = vst [vmem:[%s6670 + $0x68] sm:$0xff] %v6687
                %v6689 = vld [vmem:[%s6669 + $0x48] sm:$0xff]
                %6690 = vst [vmem:[%s6670 + $0x70] sm:$0xff] %v6689
                %v6691 = vld [vmem:[%s6669 + $0x50] sm:$0xff]
                %6692 = vst [vmem:[%s6670 + $0xa0] sm:$0xff] %v6691
                %v6693 = vld [vmem:[%s6669 + $0x58] sm:$0xff]
                %6694 = vst [vmem:[%s6670 + $0xa8] sm:$0xff] %v6693
                %v6695 = vld [vmem:[%s6669 + $0x60] sm:$0xff]
                %6696 = vst [vmem:[%s6670 + $0xb0] sm:$0xff] %v6695
                %v6697 = vld [vmem:[%s6669 + $0x68] sm:$0xff]
                %6698 = vst [vmem:[%s6670 + $0xb8] sm:$0xff] %v6697
                %v6699 = vld [vmem:[%s6669 + $0x70] sm:$0xff]
                %6700 = vst [vmem:[%s6670 + $0xc0] sm:$0xff] %v6699
              $region133: #{forward.5} parent=127 // loop_footer
                %s6668 = sadd.s32 1, %s6664
              $region134: #{forward.5} parent=127 // loop_footer_branch
                %6663 = sbr.rel target = $region130
              $region135: #{forward.5} parent=127 // loop_exit
                _
            $region128: #{forward.5} parent=119 // pred_fallthru
              _
          $region120: #{forward.5} parent=115 // pred_fallthru
            _
          %6743 = vnop
        $region116: #{forward.5} parent=111 // pred_fallthru
          _
      $region112: #{forward.5} parent=5 // pred_fallthru
        _
      %p6744 = scmp.le.s32.totalorder 2, %s29
      // Predicated region
      $region151: #{forward.5} parent=5 // pred_check
        %p6745 = pneg %p6744
      $region152: #{forward.5} parent=5 // pred_check_branch
        %6747 = sbr.rel (%p6745) target = $region154
      $region153: #{forward.5} parent=5 // pred_region
        %s6748 = ssub.s32 %s29, 2
        // Predicated region
        $region155: #{forward.5} parent=153 // pred_check
          %p6749 = pneg %p546
        $region156: #{forward.5} parent=153 // pred_check_branch
          %6751 = sbr.rel (%p6749) target = $region158
        $region157: #{forward.5} parent=153 // pred_region
          %s6752 = sand.u32 %s531, 1
          %s6753 = sand.u32 %s531, 1
          %s6754 = smul.addr %s6753, 120
          %s6755 = scalar_lea.vmem [#allocation2], %s6754
        $region158: #{forward.5} parent=153 // pred_fallthru
          _
      $region154: #{forward.5} parent=5 // pred_fallthru
        _
    $region6: #{forward.5} parent=1 // loop_footer
      %s33 = sadd.s32 1, %s29
    $region7: #{forward.5} parent=1 // loop_footer_branch
      %28 = sbr.rel target = $region3
    $region8: #{forward.5} parent=1 // loop_exit
      _

</llo_original>
